<compile_context>
chip_gen: v7x
topology: tpu7x:2x2x1
jax: 0.10.0
libtpu: 0.0.40
codegen_flags: <defaults>
</compile_context>

<pallas_src>
import functools

import numpy as np
import jax
import jax.numpy as jnp
from jax import lax
from jax.experimental import pallas as pl
from jax.experimental.pallas import tpu as pltpu


def _pad128(x: int) -> int:
    return ((x + 127) // 128) * 128


def _pad8(x: int) -> int:
    return ((x + 7) // 8) * 8


# ----------------------------------------------------------------------------
# Fused kernel: Tree-LSTM reader + policy MLP + masked global softmax
# ----------------------------------------------------------------------------
def fused_kernel(children_ref,                       # SMEM (2*n_nodes,) int32
                 nodes_ref,                          # (n_nodes, Ip)
                 mask_ref,                           # (n_nodes, Ap) {0,1}
                 wx_ref, bx_ref,                     # (Ip, 5*Hp), (1, 5*Hp)
                 u_ref,                              # (2, Hp, 5*Hp)
                 w_in_ref, b_in_ref,                 # (Hp, Pp), (1, Pp)
                 w_mid_ref, b_mid_ref,               # (L, Pp, Pp), (L, 1, Pp)
                 w_out_ref, b_out_ref,               # (Pp, Ap), (1, Ap)
                 pi_ref,                             # out: (n_nodes, Ap)
                 h_scr, c_scr, xw_scr):              # VMEM scratch
    n_nodes, hp = h_scr.shape
    dot = functools.partial(jnp.dot, preferred_element_type=jnp.float32)
    sig = jax.nn.sigmoid

    # Zero-init live state (child gather relies on zeros for missing children,
    # and the padded lanes must stay exactly zero through the recurrence).
    h_scr[...] = jnp.zeros_like(h_scr)
    c_scr[...] = jnp.zeros_like(c_scr)

    # Hoisted input projection: one batched matmul for all nodes & all gates.
    xw_scr[...] = dot(nodes_ref[...], wx_ref[...]) + bx_ref[...]

    def node_step(step, carry):
        # bottom-up: children always have a larger index than their parent
        idx = n_nodes - 1 - step

        def child(l):
            cidx = children_ref[2 * idx + l]               # scalar int32 (SMEM)
            gate = (cidx >= 0).astype(jnp.float32)         # 0.0 if no child
            safe = jnp.maximum(cidx, 0)
            h_l = h_scr[pl.ds(safe, 1), :] * gate          # (1, Hp)
            c_l = c_scr[pl.ds(safe, 1), :] * gate          # (1, Hp)
            return h_l, c_l

        h0, c0 = child(0)
        h1, c1 = child(1)

        # Fused gate pre-activations: x-part (precomputed) + 2 recurrent dots.
        pre = (xw_scr[pl.ds(idx, 1), :]
               + dot(h0, u_ref[0])
               + dot(h1, u_ref[1]))                        # (1, 5*Hp)

        i  = sig(pre[:, 0 * hp:1 * hp])
        o  = sig(pre[:, 1 * hp:2 * hp])
        u  = jnp.tanh(pre[:, 2 * hp:3 * hp])
        f0 = sig(pre[:, 3 * hp:4 * hp])
        f1 = sig(pre[:, 4 * hp:5 * hp])

        c_new = i * u + f0 * c0 + f1 * c1
        h_new = o * jnp.tanh(c_new)
        c_scr[pl.ds(idx, 1), :] = c_new
        h_scr[pl.ds(idx, 1), :] = h_new
        return carry

    lax.fori_loop(0, n_nodes, node_step, 0, unroll=True)

    # ---------------- policy MLP + masking + global softmax -----------------
    z = jnp.maximum(dot(h_scr[...], w_in_ref[...]) + b_in_ref[...], 0.0)
    for l in range(w_mid_ref.shape[0]):                    # static, unrolled
        z = jnp.maximum(dot(z, w_mid_ref[l]) + b_mid_ref[l], 0.0)
    logits = dot(z, w_out_ref[...]) + b_out_ref[...]

    # pi[~valid_actions] = -inf  (finite sentinel; exp underflows to 0 exactly.
    # Padded action lanes carry mask == 0, so they are masked out too.)
    logits = jnp.where(mask_ref[...] > 0.5, logits, jnp.float32(-1e30))

    # softmax over the flattened (n_nodes * n_actions) vector
    m = jnp.max(logits)
    p = jnp.exp(logits - m)
    pi_ref[...] = p * (1.0 / jnp.sum(p))


# ----------------------------------------------------------------------------
# Module wrapper (= SimplifierBaseline.forward)
# ----------------------------------------------------------------------------
def simplifier_baseline_forward(nodes, children, valid_actions, state,
                                reader_params, policy_params):
    rp, pp = reader_params, policy_params
    n_nodes, input_size = nodes.shape
    n_actions = valid_actions.shape[1]
    H = rp["w_i"].shape[1]
    P = pp["w_in"].shape[1]
    L = pp["w_mid"].shape[0]
    Hp, Pp, Ap = _pad128(H), _pad128(P), _pad128(n_actions)
    Ip = _pad8(input_size)
    f32 = jnp.float32

    # --- pad the tiny input feature dim (sublane-friendly) -------------------
    nodes_p = jnp.zeros((n_nodes, Ip), f32).at[:, :input_size].set(
        nodes.astype(f32))

    # --- fuse + lane-pad the Tree-LSTM weights (gates: [i, o, u, f0, f1]) ---
    wx = jnp.zeros((Ip, 5 * Hp), f32)
    bx = jnp.zeros((1, 5 * Hp), f32)
    gate_w = [rp["w_i"], rp["w_o"], rp["w_u"], rp["w_f"], rp["w_f"]]
    gate_b = [rp["b_i"], rp["b_o"], rp["b_u"], rp["b_f"], rp["b_f"]]
    for g in range(5):
        wx = wx.at[:input_size, g * Hp:g * Hp + H].set(gate_w[g])
        bx = bx.at[:, g * Hp:g * Hp + H].set(gate_b[g])

    uf = jnp.zeros((2, Hp, 5 * Hp), f32)
    for k in range(2):
        gate_u = [rp["u_i"][k], rp["u_o"][k], rp["u_u"][k],
                  rp["u_f"][0, k], rp["u_f"][1, k]]
        for g in range(5):
            uf = uf.at[k, :H, g * Hp:g * Hp + H].set(gate_u[g])

    # --- lane-pad the policy weights -----------------------------------------
    w_in = jnp.zeros((Hp, Pp), f32).at[:H, :P].set(pp["w_in"])
    b_in = jnp.zeros((1, Pp), f32).at[:, :P].set(pp["b_in"])
    w_mid = jnp.zeros((L, Pp, Pp), f32).at[:, :P, :P].set(pp["w_mid"])
    b_mid = jnp.zeros((L, 1, Pp), f32).at[:, :, :P].set(pp["b_mid"])
    w_out = jnp.zeros((Pp, Ap), f32).at[:P, :n_actions].set(pp["w_out"])
    b_out = jnp.zeros((1, Ap), f32).at[:, :n_actions].set(pp["b_out"])

    # padded action lanes get mask == 0 so the softmax ignores them
    mask_p = jnp.zeros((n_nodes, Ap), f32).at[:, :n_actions].set(
        valid_actions.astype(f32))

    # flat 1-D SMEM layout: [n0_c0, n0_c1, n1_c0, n1_c1, ...]
    children_flat = children.reshape(-1).astype(jnp.int32)

    vmem = pl.BlockSpec(memory_space=pltpu.MemorySpace.VMEM)
    smem = pl.BlockSpec(memory_space=pltpu.MemorySpace.SMEM)

    pi_padded = pl.pallas_call(
        fused_kernel,
        out_shape=jax.ShapeDtypeStruct((n_nodes, Ap), jnp.float32),
        in_specs=[smem] + [vmem] * 11,
        out_specs=vmem,
        scratch_shapes=[pltpu.VMEM((n_nodes, Hp), jnp.float32),       # h state
                        pltpu.VMEM((n_nodes, Hp), jnp.float32),       # c state
                        pltpu.VMEM((n_nodes, 5 * Hp), jnp.float32)],  # x @ W
    )(children_flat, nodes_p, mask_p,
      wx, bx, uf, w_in, b_in, w_mid, b_mid, w_out, b_out)

    pi = pi_padded[:, :n_actions]
    return pi, None  # matches `return (pi, None)`


# ----------------------------------------------------------------------------
# Deterministic parameter init (shapes implied by __init__)
# ----------------------------------------------------------------------------
def init_params(key, reader_hidden_size, policy_hidden_size, policy_layers,
                n_actions, input_size=2, n_children=2):
    ks = jax.random.split(key, 18)
    w = lambda k, shape: (0.1 * jax.random.normal(k, shape)).astype(jnp.float32)
    H, P = reader_hidden_size, policy_hidden_size
    reader = dict(
        w_i=w(ks[0], (input_size, H)), w_f=w(ks[1], (input_size, H)),
        w_o=w(ks[2], (input_size, H)), w_u=w(ks[3], (input_size, H)),
        b_i=w(ks[4], (1, H)), b_f=w(ks[5], (1, H)),
        b_o=w(ks[6], (1, H)), b_u=w(ks[7], (1, H)),
        u_i=w(ks[8], (n_children, H, H)), u_o=w(ks[9], (n_children, H, H)),
        u_u=w(ks[10], (n_children, H, H)),
        u_f=w(ks[11], (n_children, n_children, H, H)),
    )
    pol = dict(
        w_in=w(ks[12], (H, P)), b_in=w(ks[13], (1, P)),
        w_mid=w(ks[14], (policy_layers, P, P)),
        b_mid=w(ks[15], (policy_layers, 1, P)),
        w_out=w(ks[16], (P, n_actions)), b_out=w(ks[17], (1, n_actions)),
    )
    return reader, pol


# ----------------------------------------------------------------------------
# Pure numpy reference (for correctness check)
# ----------------------------------------------------------------------------
def ref_forward(nodes, children, valid_actions, reader_p, policy_p):
    nodes = np.asarray(nodes); children = np.asarray(children)
    rp = {k: np.asarray(v) for k, v in reader_p.items()}
    pp = {k: np.asarray(v) for k, v in policy_p.items()}
    n_nodes = nodes.shape[0]
    H = rp["w_i"].shape[1]
    sig = lambda z: 1.0 / (1.0 + np.exp(-z))
    h = np.zeros((n_nodes, H), np.float64)
    c = np.zeros((n_nodes, H), np.float64)
    for idx in range(n_nodes - 1, -1, -1):
        x = nodes[idx:idx + 1]
        hs, cs = [], []
        for l in range(2):
            ci = int(children[idx, l])
            if ci >= 0:
                hs.append(h[ci:ci + 1]); cs.append(c[ci:ci + 1])
            else:
                hs.append(np.zeros((1, H))); cs.append(np.zeros((1, H)))
        i = sig(x @ rp["w_i"] + rp["b_i"] + hs[0] @ rp["u_i"][0] + hs[1] @ rp["u_i"][1])
        o = sig(x @ rp["w_o"] + rp["b_o"] + hs[0] @ rp["u_o"][0] + hs[1] @ rp["u_o"][1])
        u = np.tanh(x @ rp["w_u"] + rp["b_u"] + hs[0] @ rp["u_u"][0] + hs[1] @ rp["u_u"][1])
        fx = x @ rp["w_f"] + rp["b_f"]
        f0 = sig(fx + hs[0] @ rp["u_f"][0, 0] + hs[1] @ rp["u_f"][0, 1])
        f1 = sig(fx + hs[0] @ rp["u_f"][1, 0] + hs[1] @ rp["u_f"][1, 1])
        c[idx] = (i * u + f0 * cs[0] + f1 * cs[1])[0]
        h[idx] = (o * np.tanh(c[idx:idx + 1]))[0]
    z = np.maximum(h @ pp["w_in"] + pp["b_in"], 0.0)
    for l in range(pp["w_mid"].shape[0]):
        z = np.maximum(z @ pp["w_mid"][l] + pp["b_mid"][l], 0.0)
    logits = z @ pp["w_out"] + pp["b_out"]
    logits = np.where(np.asarray(valid_actions) > 0.5, logits, -np.inf)
    p = np.exp(logits - logits.max())
    return (p / p.sum()).astype(np.float32)


if __name__ == "__main__":
    n_nodes, input_size = 8, 2
    reader_hidden_size, policy_hidden_size = 32, 32
    policy_layers, n_actions = 2, 8

    key = jax.random.PRNGKey(0)
    k_nodes, k_mask, k_params = jax.random.split(key, 3)

    nodes = jax.random.normal(k_nodes, (n_nodes, input_size), jnp.float32)
    # pre-order binary tree: children indices always > parent index, -1 = none
    children = jnp.array([[1, 2], [3, 4], [5, 6], [7, -1],
                          [-1, -1], [-1, -1], [-1, -1], [-1, -1]], jnp.int32)
    valid_actions = (jax.random.uniform(k_mask, (n_nodes, n_actions)) > 0.4
                     ).astype(jnp.float32)
    valid_actions = valid_actions.at[0, 0].set(1.0)  # ensure >=1 valid action

    reader_p, policy_p = init_params(k_params, reader_hidden_size,
                                     policy_hidden_size, policy_layers,
                                     n_actions, input_size)

    pi, st = simplifier_baseline_forward(nodes, children, valid_actions, None,
                                         reader_p, policy_p)
    pi = jax.block_until_ready(pi)

    ref = ref_forward(nodes, children, valid_actions, reader_p, policy_p)
    np.testing.assert_allclose(np.asarray(pi), ref, rtol=5e-2, atol=1e-4)
    assert abs(float(np.asarray(pi).sum()) - 1.0) < 1e-3
    print("KERNEL_OK")
</pallas_src>

<mosaic_0001>
module attributes {stable_mosaic.version = 11 : i64} {
  func.func @fused_kernel(%arg0: memref<16xi32, #tpu.memory_space<smem>>, %arg1: memref<8x8xf32, #tpu.memory_space<vmem>>, %arg2: memref<8x128xf32, #tpu.memory_space<vmem>>, %arg3: memref<8x640xf32, #tpu.memory_space<vmem>>, %arg4: memref<1x640xf32, #tpu.memory_space<vmem>>, %arg5: memref<2x128x640xf32, #tpu.memory_space<vmem>>, %arg6: memref<128x128xf32, #tpu.memory_space<vmem>>, %arg7: memref<1x128xf32, #tpu.memory_space<vmem>>, %arg8: memref<2x128x128xf32, #tpu.memory_space<vmem>>, %arg9: memref<2x1x128xf32, #tpu.memory_space<vmem>>, %arg10: memref<128x128xf32, #tpu.memory_space<vmem>>, %arg11: memref<1x128xf32, #tpu.memory_space<vmem>>, %arg12: memref<8x128xf32, #tpu.memory_space<vmem>>, %arg13: memref<8x128xf32, #tpu.memory_space<vmem>>, %arg14: memref<8x128xf32, #tpu.memory_space<vmem>>, %arg15: memref<8x640xf32, #tpu.memory_space<vmem>>) attributes {dimension_semantics = [], scalar_prefetch = 0 : i64, scratch_operands = 3 : i64, tpu.core_type = #tpu.core_type<tc>} {
    %cst = arith.constant 0.000000e+00 : f32
    %0 = vector.broadcast %cst : f32 to vector<8x128xf32>
    %c0 = arith.constant 0 : index
    %c0_0 = arith.constant 0 : index
    %1 = vector.load %arg13[%c0, %c0_0] : memref<8x128xf32, #tpu.memory_space<vmem>>, vector<8x128xf32>
    tpu.vector_store %arg13[%c0, %c0_0], %0 {strides = array<i32>} : memref<8x128xf32, #tpu.memory_space<vmem>>, vector<8x128xf32>,
    %cst_1 = arith.constant 0.000000e+00 : f32
    %2 = vector.broadcast %cst_1 : f32 to vector<8x128xf32>
    %c0_2 = arith.constant 0 : index
    %c0_3 = arith.constant 0 : index
    %3 = vector.load %arg14[%c0_2, %c0_3] : memref<8x128xf32, #tpu.memory_space<vmem>>, vector<8x128xf32>
    tpu.vector_store %arg14[%c0_2, %c0_3], %2 {strides = array<i32>} : memref<8x128xf32, #tpu.memory_space<vmem>>, vector<8x128xf32>,
    %c0_4 = arith.constant 0 : index
    %c0_5 = arith.constant 0 : index
    %4 = vector.load %arg1[%c0_4, %c0_5] : memref<8x8xf32, #tpu.memory_space<vmem>>, vector<8x8xf32>
    %c0_6 = arith.constant 0 : index
    %c0_7 = arith.constant 0 : index
    %5 = vector.load %arg3[%c0_6, %c0_7] : memref<8x640xf32, #tpu.memory_space<vmem>>, vector<8x640xf32>
    %cst_8 = arith.constant dense<0.000000e+00> : vector<8x640xf32>
    %6 = tpu.matmul %4, %5, %cst_8 {dimension_numbers = #tpu.dot_dimension_numbers<[1], [0], [0], [1], [0, 0, 1, 1], [], []>} : vector<8x8xf32>, vector<8x640xf32>, vector<8x640xf32> -> vector<8x640xf32>
    %c0_9 = arith.constant 0 : index
    %c0_10 = arith.constant 0 : index
    %7 = vector.load %arg4[%c0_9, %c0_10] : memref<1x640xf32, #tpu.memory_space<vmem>>, vector<1x640xf32>
    %8 = vector.broadcast %7 : vector<1x640xf32> to vector<8x640xf32>
    %9 = arith.addf %6, %8 : vector<8x640xf32>
    %c0_11 = arith.constant 0 : index
    %c0_12 = arith.constant 0 : index
    %10 = vector.load %arg15[%c0_11, %c0_12] : memref<8x640xf32, #tpu.memory_space<vmem>>, vector<8x640xf32>
    tpu.vector_store %arg15[%c0_11, %c0_12], %9 {strides = array<i32>} : memref<8x640xf32, #tpu.memory_space<vmem>>, vector<8x640xf32>,
    %c0_i32 = arith.constant 0 : i32
    %c7_i32 = arith.constant 7 : i32
    %11 = arith.subi %c7_i32, %c0_i32 : i32
    %c2_i32 = arith.constant 2 : i32
    %12 = arith.muli %c2_i32, %11 : i32
    %c0_i32_13 = arith.constant 0 : i32
    %13 = arith.addi %12, %c0_i32_13 : i32
    %14 = arith.index_cast %13 : i32 to index
    %15 = memref.load %arg0[%14] : memref<16xi32, #tpu.memory_space<smem>>
    %c0_i32_14 = arith.constant 0 : i32
    %16 = arith.cmpi sge, %15, %c0_i32_14 : i32
    %17 = arith.extui %16 : i1 to i32
    %18 = arith.sitofp %17 : i32 to f32
    %c0_i32_15 = arith.constant 0 : i32
    %19 = arith.maxsi %15, %c0_i32_15 : i32
    %20 = arith.index_cast %19 : i32 to index
    %c0_16 = arith.constant 0 : index
    %21 = vector.load %arg13[%20, %c0_16] : memref<8x128xf32, #tpu.memory_space<vmem>>, vector<1x128xf32>
    %22 = vector.broadcast %18 : f32 to vector<1x128xf32>
    %23 = arith.mulf %21, %22 : vector<1x128xf32>
    %24 = arith.index_cast %19 : i32 to index
    %c0_17 = arith.constant 0 : index
    %25 = vector.load %arg14[%24, %c0_17] : memref<8x128xf32, #tpu.memory_space<vmem>>, vector<1x128xf32>
    %26 = vector.broadcast %18 : f32 to vector<1x128xf32>
    %27 = arith.mulf %25, %26 : vector<1x128xf32>
    %c2_i32_18 = arith.constant 2 : i32
    %28 = arith.muli %c2_i32_18, %11 : i32
    %c1_i32 = arith.constant 1 : i32
    %29 = arith.addi %28, %c1_i32 : i32
    %30 = arith.index_cast %29 : i32 to index
    %31 = memref.load %arg0[%30] : memref<16xi32, #tpu.memory_space<smem>>
    %c0_i32_19 = arith.constant 0 : i32
    %32 = arith.cmpi sge, %31, %c0_i32_19 : i32
    %33 = arith.extui %32 : i1 to i32
    %34 = arith.sitofp %33 : i32 to f32
    %c0_i32_20 = arith.constant 0 : i32
    %35 = arith.maxsi %31, %c0_i32_20 : i32
    %36 = arith.index_cast %35 : i32 to index
    %c0_21 = arith.constant 0 : index
    %37 = vector.load %arg13[%36, %c0_21] : memref<8x128xf32, #tpu.memory_space<vmem>>, vector<1x128xf32>
    %38 = vector.broadcast %34 : f32 to vector<1x128xf32>
    %39 = arith.mulf %37, %38 : vector<1x128xf32>
    %40 = arith.index_cast %35 : i32 to index
    %c0_22 = arith.constant 0 : index
    %41 = vector.load %arg14[%40, %c0_22] : memref<8x128xf32, #tpu.memory_space<vmem>>, vector<1x128xf32>
    %42 = vector.broadcast %34 : f32 to vector<1x128xf32>
    %43 = arith.mulf %41, %42 : vector<1x128xf32>
    %44 = arith.index_cast %11 : i32 to index
    %c0_23 = arith.constant 0 : index
    %45 = vector.load %arg15[%44, %c0_23] : memref<8x640xf32, #tpu.memory_space<vmem>>, vector<1x640xf32>
    %c0_24 = arith.constant 0 : index
    %c0_25 = arith.constant 0 : index
    %c0_26 = arith.constant 0 : index
    %46 = vector.load %arg5[%c0_24, %c0_25, %c0_26] : memref<2x128x640xf32, #tpu.memory_space<vmem>>, vector<1x128x640xf32>
    %47 = vector.shape_cast %46 : vector<1x128x640xf32> to vector<128x640xf32>
    %cst_27 = arith.constant dense<0.000000e+00> : vector<1x640xf32>
    %48 = tpu.matmul %23, %47, %cst_27 {dimension_numbers = #tpu.dot_dimension_numbers<[1], [0], [0], [1], [0, 0, 1, 1], [], []>} : vector<1x128xf32>, vector<128x640xf32>, vector<1x640xf32> -> vector<1x640xf32>
    %49 = arith.addf %45, %48 : vector<1x640xf32>
    %c1 = arith.constant 1 : index
    %c0_28 = arith.constant 0 : index
    %c0_29 = arith.constant 0 : index
    %50 = vector.load %arg5[%c1, %c0_28, %c0_29] : memref<2x128x640xf32, #tpu.memory_space<vmem>>, vector<1x128x640xf32>
    %51 = vector.shape_cast %50 : vector<1x128x640xf32> to vector<128x640xf32>
    %cst_30 = arith.constant dense<0.000000e+00> : vector<1x640xf32>
    %52 = tpu.matmul %39, %51, %cst_30 {dimension_numbers = #tpu.dot_dimension_numbers<[1], [0], [0], [1], [0, 0, 1, 1], [], []>} : vector<1x128xf32>, vector<128x640xf32>, vector<1x640xf32> -> vector<1x640xf32>
    %53 = arith.addf %49, %52 : vector<1x640xf32>
    %54 = vector.extract_strided_slice %53 {offsets = [0, 0], sizes = [1, 128], strides = [1, 1]} : vector<1x640xf32> to vector<1x128xf32>
    %55 = arith.negf %54 : vector<1x128xf32>
    %56 = math.exp %55 : vector<1x128xf32>
    %cst_31 = arith.constant 1.000000e+00 : f32
    %57 = vector.broadcast %cst_31 : f32 to vector<1x128xf32>
    %58 = arith.addf %57, %56 : vector<1x128xf32>
    %59 = arith.divf %57, %58 : vector<1x128xf32>
    %60 = vector.extract_strided_slice %53 {offsets = [0, 128], sizes = [1, 128], strides = [1, 1]} : vector<1x640xf32> to vector<1x128xf32>
    %61 = arith.negf %60 : vector<1x128xf32>
    %62 = math.exp %61 : vector<1x128xf32>
    %cst_32 = arith.constant 1.000000e+00 : f32
    %63 = vector.broadcast %cst_32 : f32 to vector<1x128xf32>
    %64 = arith.addf %63, %62 : vector<1x128xf32>
    %65 = arith.divf %63, %64 : vector<1x128xf32>
    %66 = vector.extract_strided_slice %53 {offsets = [0, 256], sizes = [1, 128], strides = [1, 1]} : vector<1x640xf32> to vector<1x128xf32>
    %67 = math.tanh %66 : vector<1x128xf32>
    %68 = vector.extract_strided_slice %53 {offsets = [0, 384], sizes = [1, 128], strides = [1, 1]} : vector<1x640xf32> to vector<1x128xf32>
    %69 = arith.negf %68 : vector<1x128xf32>
    %70 = math.exp %69 : vector<1x128xf32>
    %cst_33 = arith.constant 1.000000e+00 : f32
    %71 = vector.broadcast %cst_33 : f32 to vector<1x128xf32>
    %72 = arith.addf %71, %70 : vector<1x128xf32>
    %73 = arith.divf %71, %72 : vector<1x128xf32>
    %74 = vector.extract_strided_slice %53 {offsets = [0, 512], sizes = [1, 128], strides = [1, 1]} : vector<1x640xf32> to vector<1x128xf32>
    %75 = arith.negf %74 : vector<1x128xf32>
    %76 = math.exp %75 : vector<1x128xf32>
    %cst_34 = arith.constant 1.000000e+00 : f32
    %77 = vector.broadcast %cst_34 : f32 to vector<1x128xf32>
    %78 = arith.addf %77, %76 : vector<1x128xf32>
    %79 = arith.divf %77, %78 : vector<1x128xf32>
    %80 = arith.mulf %59, %67 : vector<1x128xf32>
    %81 = arith.mulf %73, %27 : vector<1x128xf32>
    %82 = arith.addf %80, %81 : vector<1x128xf32>
    %83 = arith.mulf %79, %43 : vector<1x128xf32>
    %84 = arith.addf %82, %83 : vector<1x128xf32>
    %85 = math.tanh %84 : vector<1x128xf32>
    %86 = arith.mulf %65, %85 : vector<1x128xf32>
    %87 = arith.index_cast %11 : i32 to index
    %c0_35 = arith.constant 0 : index
    %88 = vector.load %arg14[%87, %c0_35] : memref<8x128xf32, #tpu.memory_space<vmem>>, vector<1x128xf32>
    tpu.vector_store %arg14[%87, %c0_35], %84 {strides = array<i32>} : memref<8x128xf32, #tpu.memory_space<vmem>>, vector<1x128xf32>,
    %89 = arith.index_cast %11 : i32 to index
    %c0_36 = arith.constant 0 : index
    %90 = vector.load %arg13[%89, %c0_36] : memref<8x128xf32, #tpu.memory_space<vmem>>, vector<1x128xf32>
    tpu.vector_store %arg13[%89, %c0_36], %86 {strides = array<i32>} : memref<8x128xf32, #tpu.memory_space<vmem>>, vector<1x128xf32>,
    %c1_i32_37 = arith.constant 1 : i32
    %c7_i32_38 = arith.constant 7 : i32
    %91 = arith.subi %c7_i32_38, %c1_i32_37 : i32
    %c2_i32_39 = arith.constant 2 : i32
    %92 = arith.muli %c2_i32_39, %91 : i32
    %c0_i32_40 = arith.constant 0 : i32
    %93 = arith.addi %92, %c0_i32_40 : i32
    %94 = arith.index_cast %93 : i32 to index
    %95 = memref.load %arg0[%94] : memref<16xi32, #tpu.memory_space<smem>>
    %c0_i32_41 = arith.constant 0 : i32
    %96 = arith.cmpi sge, %95, %c0_i32_41 : i32
    %97 = arith.extui %96 : i1 to i32
    %98 = arith.sitofp %97 : i32 to f32
    %c0_i32_42 = arith.constant 0 : i32
    %99 = arith.maxsi %95, %c0_i32_42 : i32
    %100 = arith.index_cast %99 : i32 to index
    %c0_43 = arith.constant 0 : index
    %101 = vector.load %arg13[%100, %c0_43] : memref<8x128xf32, #tpu.memory_space<vmem>>, vector<1x128xf32>
    %102 = vector.broadcast %98 : f32 to vector<1x128xf32>
    %103 = arith.mulf %101, %102 : vector<1x128xf32>
    %104 = arith.index_cast %99 : i32 to index
    %c0_44 = arith.constant 0 : index
    %105 = vector.load %arg14[%104, %c0_44] : memref<8x128xf32, #tpu.memory_space<vmem>>, vector<1x128xf32>
    %106 = vector.broadcast %98 : f32 to vector<1x128xf32>
    %107 = arith.mulf %105, %106 : vector<1x128xf32>
    %c2_i32_45 = arith.constant 2 : i32
    %108 = arith.muli %c2_i32_45, %91 : i32
    %c1_i32_46 = arith.constant 1 : i32
    %109 = arith.addi %108, %c1_i32_46 : i32
    %110 = arith.index_cast %109 : i32 to index
    %111 = memref.load %arg0[%110] : memref<16xi32, #tpu.memory_space<smem>>
    %c0_i32_47 = arith.constant 0 : i32
    %112 = arith.cmpi sge, %111, %c0_i32_47 : i32
    %113 = arith.extui %112 : i1 to i32
    %114 = arith.sitofp %113 : i32 to f32
    %c0_i32_48 = arith.constant 0 : i32
    %115 = arith.maxsi %111, %c0_i32_48 : i32
    %116 = arith.index_cast %115 : i32 to index
    %c0_49 = arith.constant 0 : index
    %117 = vector.load %arg13[%116, %c0_49] : memref<8x128xf32, #tpu.memory_space<vmem>>, vector<1x128xf32>
    %118 = vector.broadcast %114 : f32 to vector<1x128xf32>
    %119 = arith.mulf %117, %118 : vector<1x128xf32>
    %120 = arith.index_cast %115 : i32 to index
    %c0_50 = arith.constant 0 : index
    %121 = vector.load %arg14[%120, %c0_50] : memref<8x128xf32, #tpu.memory_space<vmem>>, vector<1x128xf32>
    %122 = vector.broadcast %114 : f32 to vector<1x128xf32>
    %123 = arith.mulf %121, %122 : vector<1x128xf32>
    %124 = arith.index_cast %91 : i32 to index
    %c0_51 = arith.constant 0 : index
    %125 = vector.load %arg15[%124, %c0_51] : memref<8x640xf32, #tpu.memory_space<vmem>>, vector<1x640xf32>
    %c0_52 = arith.constant 0 : index
    %c0_53 = arith.constant 0 : index
    %c0_54 = arith.constant 0 : index
    %126 = vector.load %arg5[%c0_52, %c0_53, %c0_54] : memref<2x128x640xf32, #tpu.memory_space<vmem>>, vector<1x128x640xf32>
    %127 = vector.shape_cast %126 : vector<1x128x640xf32> to vector<128x640xf32>
    %cst_55 = arith.constant dense<0.000000e+00> : vector<1x640xf32>
    %128 = tpu.matmul %103, %127, %cst_55 {dimension_numbers = #tpu.dot_dimension_numbers<[1], [0], [0], [1], [0, 0, 1, 1], [], []>} : vector<1x128xf32>, vector<128x640xf32>, vector<1x640xf32> -> vector<1x640xf32>
    %129 = arith.addf %125, %128 : vector<1x640xf32>
    %c1_56 = arith.constant 1 : index
    %c0_57 = arith.constant 0 : index
    %c0_58 = arith.constant 0 : index
    %130 = vector.load %arg5[%c1_56, %c0_57, %c0_58] : memref<2x128x640xf32, #tpu.memory_space<vmem>>, vector<1x128x640xf32>
    %131 = vector.shape_cast %130 : vector<1x128x640xf32> to vector<128x640xf32>
    %cst_59 = arith.constant dense<0.000000e+00> : vector<1x640xf32>
    %132 = tpu.matmul %119, %131, %cst_59 {dimension_numbers = #tpu.dot_dimension_numbers<[1], [0], [0], [1], [0, 0, 1, 1], [], []>} : vector<1x128xf32>, vector<128x640xf32>, vector<1x640xf32> -> vector<1x640xf32>
    %133 = arith.addf %129, %132 : vector<1x640xf32>
    %134 = vector.extract_strided_slice %133 {offsets = [0, 0], sizes = [1, 128], strides = [1, 1]} : vector<1x640xf32> to vector<1x128xf32>
    %135 = arith.negf %134 : vector<1x128xf32>
    %136 = math.exp %135 : vector<1x128xf32>
    %cst_60 = arith.constant 1.000000e+00 : f32
    %137 = vector.broadcast %cst_60 : f32 to vector<1x128xf32>
    %138 = arith.addf %137, %136 : vector<1x128xf32>
    %139 = arith.divf %137, %138 : vector<1x128xf32>
    %140 = vector.extract_strided_slice %133 {offsets = [0, 128], sizes = [1, 128], strides = [1, 1]} : vector<1x640xf32> to vector<1x128xf32>
    %141 = arith.negf %140 : vector<1x128xf32>
    %142 = math.exp %141 : vector<1x128xf32>
    %cst_61 = arith.constant 1.000000e+00 : f32
    %143 = vector.broadcast %cst_61 : f32 to vector<1x128xf32>
    %144 = arith.addf %143, %142 : vector<1x128xf32>
    %145 = arith.divf %143, %144 : vector<1x128xf32>
    %146 = vector.extract_strided_slice %133 {offsets = [0, 256], sizes = [1, 128], strides = [1, 1]} : vector<1x640xf32> to vector<1x128xf32>
    %147 = math.tanh %146 : vector<1x128xf32>
    %148 = vector.extract_strided_slice %133 {offsets = [0, 384], sizes = [1, 128], strides = [1, 1]} : vector<1x640xf32> to vector<1x128xf32>
    %149 = arith.negf %148 : vector<1x128xf32>
    %150 = math.exp %149 : vector<1x128xf32>
    %cst_62 = arith.constant 1.000000e+00 : f32
    %151 = vector.broadcast %cst_62 : f32 to vector<1x128xf32>
    %152 = arith.addf %151, %150 : vector<1x128xf32>
    %153 = arith.divf %151, %152 : vector<1x128xf32>
    %154 = vector.extract_strided_slice %133 {offsets = [0, 512], sizes = [1, 128], strides = [1, 1]} : vector<1x640xf32> to vector<1x128xf32>
    %155 = arith.negf %154 : vector<1x128xf32>
    %156 = math.exp %155 : vector<1x128xf32>
    %cst_63 = arith.constant 1.000000e+00 : f32
    %157 = vector.broadcast %cst_63 : f32 to vector<1x128xf32>
    %158 = arith.addf %157, %156 : vector<1x128xf32>
    %159 = arith.divf %157, %158 : vector<1x128xf32>
    %160 = arith.mulf %139, %147 : vector<1x128xf32>
    %161 = arith.mulf %153, %107 : vector<1x128xf32>
    %162 = arith.addf %160, %161 : vector<1x128xf32>
    %163 = arith.mulf %159, %123 : vector<1x128xf32>
    %164 = arith.addf %162, %163 : vector<1x128xf32>
    %165 = math.tanh %164 : vector<1x128xf32>
    %166 = arith.mulf %145, %165 : vector<1x128xf32>
    %167 = arith.index_cast %91 : i32 to index
    %c0_64 = arith.constant 0 : index
    %168 = vector.load %arg14[%167, %c0_64] : memref<8x128xf32, #tpu.memory_space<vmem>>, vector<1x128xf32>
    tpu.vector_store %arg14[%167, %c0_64], %164 {strides = array<i32>} : memref<8x128xf32, #tpu.memory_space<vmem>>, vector<1x128xf32>,
    %169 = arith.index_cast %91 : i32 to index
    %c0_65 = arith.constant 0 : index
    %170 = vector.load %arg13[%169, %c0_65] : memref<8x128xf32, #tpu.memory_space<vmem>>, vector<1x128xf32>
    tpu.vector_store %arg13[%169, %c0_65], %166 {strides = array<i32>} : memref<8x128xf32, #tpu.memory_space<vmem>>, vector<1x128xf32>,
    %c2_i32_66 = arith.constant 2 : i32
    %c7_i32_67 = arith.constant 7 : i32
    %171 = arith.subi %c7_i32_67, %c2_i32_66 : i32
    %c2_i32_68 = arith.constant 2 : i32
    %172 = arith.muli %c2_i32_68, %171 : i32
    %c0_i32_69 = arith.constant 0 : i32
    %173 = arith.addi %172, %c0_i32_69 : i32
    %174 = arith.index_cast %173 : i32 to index
    %175 = memref.load %arg0[%174] : memref<16xi32, #tpu.memory_space<smem>>
    %c0_i32_70 = arith.constant 0 : i32
    %176 = arith.cmpi sge, %175, %c0_i32_70 : i32
    %177 = arith.extui %176 : i1 to i32
    %178 = arith.sitofp %177 : i32 to f32
    %c0_i32_71 = arith.constant 0 : i32
    %179 = arith.maxsi %175, %c0_i32_71 : i32
    %180 = arith.index_cast %179 : i32 to index
    %c0_72 = arith.constant 0 : index
    %181 = vector.load %arg13[%180, %c0_72] : memref<8x128xf32, #tpu.memory_space<vmem>>, vector<1x128xf32>
    %182 = vector.broadcast %178 : f32 to vector<1x128xf32>
    %183 = arith.mulf %181, %182 : vector<1x128xf32>
    %184 = arith.index_cast %179 : i32 to index
    %c0_73 = arith.constant 0 : index
    %185 = vector.load %arg14[%184, %c0_73] : memref<8x128xf32, #tpu.memory_space<vmem>>, vector<1x128xf32>
    %186 = vector.broadcast %178 : f32 to vector<1x128xf32>
    %187 = arith.mulf %185, %186 : vector<1x128xf32>
    %c2_i32_74 = arith.constant 2 : i32
    %188 = arith.muli %c2_i32_74, %171 : i32
    %c1_i32_75 = arith.constant 1 : i32
    %189 = arith.addi %188, %c1_i32_75 : i32
    %190 = arith.index_cast %189 : i32 to index
    %191 = memref.load %arg0[%190] : memref<16xi32, #tpu.memory_space<smem>>
    %c0_i32_76 = arith.constant 0 : i32
    %192 = arith.cmpi sge, %191, %c0_i32_76 : i32
    %193 = arith.extui %192 : i1 to i32
    %194 = arith.sitofp %193 : i32 to f32
    %c0_i32_77 = arith.constant 0 : i32
    %195 = arith.maxsi %191, %c0_i32_77 : i32
    %196 = arith.index_cast %195 : i32 to index
    %c0_78 = arith.constant 0 : index
    %197 = vector.load %arg13[%196, %c0_78] : memref<8x128xf32, #tpu.memory_space<vmem>>, vector<1x128xf32>
    %198 = vector.broadcast %194 : f32 to vector<1x128xf32>
    %199 = arith.mulf %197, %198 : vector<1x128xf32>
    %200 = arith.index_cast %195 : i32 to index
    %c0_79 = arith.constant 0 : index
    %201 = vector.load %arg14[%200, %c0_79] : memref<8x128xf32, #tpu.memory_space<vmem>>, vector<1x128xf32>
    %202 = vector.broadcast %194 : f32 to vector<1x128xf32>
    %203 = arith.mulf %201, %202 : vector<1x128xf32>
    %204 = arith.index_cast %171 : i32 to index
    %c0_80 = arith.constant 0 : index
    %205 = vector.load %arg15[%204, %c0_80] : memref<8x640xf32, #tpu.memory_space<vmem>>, vector<1x640xf32>
    %c0_81 = arith.constant 0 : index
    %c0_82 = arith.constant 0 : index
    %c0_83 = arith.constant 0 : index
    %206 = vector.load %arg5[%c0_81, %c0_82, %c0_83] : memref<2x128x640xf32, #tpu.memory_space<vmem>>, vector<1x128x640xf32>
    %207 = vector.shape_cast %206 : vector<1x128x640xf32> to vector<128x640xf32>
    %cst_84 = arith.constant dense<0.000000e+00> : vector<1x640xf32>
    %208 = tpu.matmul %183, %207, %cst_84 {dimension_numbers = #tpu.dot_dimension_numbers<[1], [0], [0], [1], [0, 0, 1, 1], [], []>} : vector<1x128xf32>, vector<128x640xf32>, vector<1x640xf32> -> vector<1x640xf32>
    %209 = arith.addf %205, %208 : vector<1x640xf32>
    %c1_85 = arith.constant 1 : index
    %c0_86 = arith.constant 0 : index
    %c0_87 = arith.constant 0 : index
    %210 = vector.load %arg5[%c1_85, %c0_86, %c0_87] : memref<2x128x640xf32, #tpu.memory_space<vmem>>, vector<1x128x640xf32>
    %211 = vector.shape_cast %210 : vector<1x128x640xf32> to vector<128x640xf32>
    %cst_88 = arith.constant dense<0.000000e+00> : vector<1x640xf32>
    %212 = tpu.matmul %199, %211, %cst_88 {dimension_numbers = #tpu.dot_dimension_numbers<[1], [0], [0], [1], [0, 0, 1, 1], [], []>} : vector<1x128xf32>, vector<128x640xf32>, vector<1x640xf32> -> vector<1x640xf32>
    %213 = arith.addf %209, %212 : vector<1x640xf32>
    %214 = vector.extract_strided_slice %213 {offsets = [0, 0], sizes = [1, 128], strides = [1, 1]} : vector<1x640xf32> to vector<1x128xf32>
    %215 = arith.negf %214 : vector<1x128xf32>
    %216 = math.exp %215 : vector<1x128xf32>
    %cst_89 = arith.constant 1.000000e+00 : f32
    %217 = vector.broadcast %cst_89 : f32 to vector<1x128xf32>
    %218 = arith.addf %217, %216 : vector<1x128xf32>
    %219 = arith.divf %217, %218 : vector<1x128xf32>
    %220 = vector.extract_strided_slice %213 {offsets = [0, 128], sizes = [1, 128], strides = [1, 1]} : vector<1x640xf32> to vector<1x128xf32>
    %221 = arith.negf %220 : vector<1x128xf32>
    %222 = math.exp %221 : vector<1x128xf32>
    %cst_90 = arith.constant 1.000000e+00 : f32
    %223 = vector.broadcast %cst_90 : f32 to vector<1x128xf32>
    %224 = arith.addf %223, %222 : vector<1x128xf32>
    %225 = arith.divf %223, %224 : vector<1x128xf32>
    %226 = vector.extract_strided_slice %213 {offsets = [0, 256], sizes = [1, 128], strides = [1, 1]} : vector<1x640xf32> to vector<1x128xf32>
    %227 = math.tanh %226 : vector<1x128xf32>
    %228 = vector.extract_strided_slice %213 {offsets = [0, 384], sizes = [1, 128], strides = [1, 1]} : vector<1x640xf32> to vector<1x128xf32>
    %229 = arith.negf %228 : vector<1x128xf32>
    %230 = math.exp %229 : vector<1x128xf32>
    %cst_91 = arith.constant 1.000000e+00 : f32
    %231 = vector.broadcast %cst_91 : f32 to vector<1x128xf32>
    %232 = arith.addf %231, %230 : vector<1x128xf32>
    %233 = arith.divf %231, %232 : vector<1x128xf32>
    %234 = vector.extract_strided_slice %213 {offsets = [0, 512], sizes = [1, 128], strides = [1, 1]} : vector<1x640xf32> to vector<1x128xf32>
    %235 = arith.negf %234 : vector<1x128xf32>
    %236 = math.exp %235 : vector<1x128xf32>
    %cst_92 = arith.constant 1.000000e+00 : f32
    %237 = vector.broadcast %cst_92 : f32 to vector<1x128xf32>
    %238 = arith.addf %237, %236 : vector<1x128xf32>
    %239 = arith.divf %237, %238 : vector<1x128xf32>
    %240 = arith.mulf %219, %227 : vector<1x128xf32>
    %241 = arith.mulf %233, %187 : vector<1x128xf32>
    %242 = arith.addf %240, %241 : vector<1x128xf32>
    %243 = arith.mulf %239, %203 : vector<1x128xf32>
    %244 = arith.addf %242, %243 : vector<1x128xf32>
    %245 = math.tanh %244 : vector<1x128xf32>
    %246 = arith.mulf %225, %245 : vector<1x128xf32>
    %247 = arith.index_cast %171 : i32 to index
    %c0_93 = arith.constant 0 : index
    %248 = vector.load %arg14[%247, %c0_93] : memref<8x128xf32, #tpu.memory_space<vmem>>, vector<1x128xf32>
    tpu.vector_store %arg14[%247, %c0_93], %244 {strides = array<i32>} : memref<8x128xf32, #tpu.memory_space<vmem>>, vector<1x128xf32>,
    %249 = arith.index_cast %171 : i32 to index
    %c0_94 = arith.constant 0 : index
    %250 = vector.load %arg13[%249, %c0_94] : memref<8x128xf32, #tpu.memory_space<vmem>>, vector<1x128xf32>
    tpu.vector_store %arg13[%249, %c0_94], %246 {strides = array<i32>} : memref<8x128xf32, #tpu.memory_space<vmem>>, vector<1x128xf32>,
    %c3_i32 = arith.constant 3 : i32
    %c7_i32_95 = arith.constant 7 : i32
    %251 = arith.subi %c7_i32_95, %c3_i32 : i32
    %c2_i32_96 = arith.constant 2 : i32
    %252 = arith.muli %c2_i32_96, %251 : i32
    %c0_i32_97 = arith.constant 0 : i32
    %253 = arith.addi %252, %c0_i32_97 : i32
    %254 = arith.index_cast %253 : i32 to index
    %255 = memref.load %arg0[%254] : memref<16xi32, #tpu.memory_space<smem>>
    %c0_i32_98 = arith.constant 0 : i32
    %256 = arith.cmpi sge, %255, %c0_i32_98 : i32
    %257 = arith.extui %256 : i1 to i32
    %258 = arith.sitofp %257 : i32 to f32
    %c0_i32_99 = arith.constant 0 : i32
    %259 = arith.maxsi %255, %c0_i32_99 : i32
    %260 = arith.index_cast %259 : i32 to index
    %c0_100 = arith.constant 0 : index
    %261 = vector.load %arg13[%260, %c0_100] : memref<8x128xf32, #tpu.memory_space<vmem>>, vector<1x128xf32>
    %262 = vector.broadcast %258 : f32 to vector<1x128xf32>
    %263 = arith.mulf %261, %262 : vector<1x128xf32>
    %264 = arith.index_cast %259 : i32 to index
    %c0_101 = arith.constant 0 : index
    %265 = vector.load %arg14[%264, %c0_101] : memref<8x128xf32, #tpu.memory_space<vmem>>, vector<1x128xf32>
    %266 = vector.broadcast %258 : f32 to vector<1x128xf32>
    %267 = arith.mulf %265, %266 : vector<1x128xf32>
    %c2_i32_102 = arith.constant 2 : i32
    %268 = arith.muli %c2_i32_102, %251 : i32
    %c1_i32_103 = arith.constant 1 : i32
    %269 = arith.addi %268, %c1_i32_103 : i32
    %270 = arith.index_cast %269 : i32 to index
    %271 = memref.load %arg0[%270] : memref<16xi32, #tpu.memory_space<smem>>
    %c0_i32_104 = arith.constant 0 : i32
    %272 = arith.cmpi sge, %271, %c0_i32_104 : i32
    %273 = arith.extui %272 : i1 to i32
    %274 = arith.sitofp %273 : i32 to f32
    %c0_i32_105 = arith.constant 0 : i32
    %275 = arith.maxsi %271, %c0_i32_105 : i32
    %276 = arith.index_cast %275 : i32 to index
    %c0_106 = arith.constant 0 : index
    %277 = vector.load %arg13[%276, %c0_106] : memref<8x128xf32, #tpu.memory_space<vmem>>, vector<1x128xf32>
    %278 = vector.broadcast %274 : f32 to vector<1x128xf32>
    %279 = arith.mulf %277, %278 : vector<1x128xf32>
    %280 = arith.index_cast %275 : i32 to index
    %c0_107 = arith.constant 0 : index
    %281 = vector.load %arg14[%280, %c0_107] : memref<8x128xf32, #tpu.memory_space<vmem>>, vector<1x128xf32>
    %282 = vector.broadcast %274 : f32 to vector<1x128xf32>
    %283 = arith.mulf %281, %282 : vector<1x128xf32>
    %284 = arith.index_cast %251 : i32 to index
    %c0_108 = arith.constant 0 : index
    %285 = vector.load %arg15[%284, %c0_108] : memref<8x640xf32, #tpu.memory_space<vmem>>, vector<1x640xf32>
    %c0_109 = arith.constant 0 : index
    %c0_110 = arith.constant 0 : index
    %c0_111 = arith.constant 0 : index
    %286 = vector.load %arg5[%c0_109, %c0_110, %c0_111] : memref<2x128x640xf32, #tpu.memory_space<vmem>>, vector<1x128x640xf32>
    %287 = vector.shape_cast %286 : vector<1x128x640xf32> to vector<128x640xf32>
    %cst_112 = arith.constant dense<0.000000e+00> : vector<1x640xf32>
    %288 = tpu.matmul %263, %287, %cst_112 {dimension_numbers = #tpu.dot_dimension_numbers<[1], [0], [0], [1], [0, 0, 1, 1], [], []>} : vector<1x128xf32>, vector<128x640xf32>, vector<1x640xf32> -> vector<1x640xf32>
    %289 = arith.addf %285, %288 : vector<1x640xf32>
    %c1_113 = arith.constant 1 : index
    %c0_114 = arith.constant 0 : index
    %c0_115 = arith.constant 0 : index
    %290 = vector.load %arg5[%c1_113, %c0_114, %c0_115] : memref<2x128x640xf32, #tpu.memory_space<vmem>>, vector<1x128x640xf32>
    %291 = vector.shape_cast %290 : vector<1x128x640xf32> to vector<128x640xf32>
    %cst_116 = arith.constant dense<0.000000e+00> : vector<1x640xf32>
    %292 = tpu.matmul %279, %291, %cst_116 {dimension_numbers = #tpu.dot_dimension_numbers<[1], [0], [0], [1], [0, 0, 1, 1], [], []>} : vector<1x128xf32>, vector<128x640xf32>, vector<1x640xf32> -> vector<1x640xf32>
    %293 = arith.addf %289, %292 : vector<1x640xf32>
    %294 = vector.extract_strided_slice %293 {offsets = [0, 0], sizes = [1, 128], strides = [1, 1]} : vector<1x640xf32> to vector<1x128xf32>
    %295 = arith.negf %294 : vector<1x128xf32>
    %296 = math.exp %295 : vector<1x128xf32>
    %cst_117 = arith.constant 1.000000e+00 : f32
    %297 = vector.broadcast %cst_117 : f32 to vector<1x128xf32>
    %298 = arith.addf %297, %296 : vector<1x128xf32>
    %299 = arith.divf %297, %298 : vector<1x128xf32>
    %300 = vector.extract_strided_slice %293 {offsets = [0, 128], sizes = [1, 128], strides = [1, 1]} : vector<1x640xf32> to vector<1x128xf32>
    %301 = arith.negf %300 : vector<1x128xf32>
    %302 = math.exp %301 : vector<1x128xf32>
    %cst_118 = arith.constant 1.000000e+00 : f32
    %303 = vector.broadcast %cst_118 : f32 to vector<1x128xf32>
    %304 = arith.addf %303, %302 : vector<1x128xf32>
    %305 = arith.divf %303, %304 : vector<1x128xf32>
    %306 = vector.extract_strided_slice %293 {offsets = [0, 256], sizes = [1, 128], strides = [1, 1]} : vector<1x640xf32> to vector<1x128xf32>
    %307 = math.tanh %306 : vector<1x128xf32>
    %308 = vector.extract_strided_slice %293 {offsets = [0, 384], sizes = [1, 128], strides = [1, 1]} : vector<1x640xf32> to vector<1x128xf32>
    %309 = arith.negf %308 : vector<1x128xf32>
    %310 = math.exp %309 : vector<1x128xf32>
    %cst_119 = arith.constant 1.000000e+00 : f32
    %311 = vector.broadcast %cst_119 : f32 to vector<1x128xf32>
    %312 = arith.addf %311, %310 : vector<1x128xf32>
    %313 = arith.divf %311, %312 : vector<1x128xf32>
    %314 = vector.extract_strided_slice %293 {offsets = [0, 512], sizes = [1, 128], strides = [1, 1]} : vector<1x640xf32> to vector<1x128xf32>
    %315 = arith.negf %314 : vector<1x128xf32>
    %316 = math.exp %315 : vector<1x128xf32>
    %cst_120 = arith.constant 1.000000e+00 : f32
    %317 = vector.broadcast %cst_120 : f32 to vector<1x128xf32>
    %318 = arith.addf %317, %316 : vector<1x128xf32>
    %319 = arith.divf %317, %318 : vector<1x128xf32>
    %320 = arith.mulf %299, %307 : vector<1x128xf32>
    %321 = arith.mulf %313, %267 : vector<1x128xf32>
    %322 = arith.addf %320, %321 : vector<1x128xf32>
    %323 = arith.mulf %319, %283 : vector<1x128xf32>
    %324 = arith.addf %322, %323 : vector<1x128xf32>
    %325 = math.tanh %324 : vector<1x128xf32>
    %326 = arith.mulf %305, %325 : vector<1x128xf32>
    %327 = arith.index_cast %251 : i32 to index
    %c0_121 = arith.constant 0 : index
    %328 = vector.load %arg14[%327, %c0_121] : memref<8x128xf32, #tpu.memory_space<vmem>>, vector<1x128xf32>
    tpu.vector_store %arg14[%327, %c0_121], %324 {strides = array<i32>} : memref<8x128xf32, #tpu.memory_space<vmem>>, vector<1x128xf32>,
    %329 = arith.index_cast %251 : i32 to index
    %c0_122 = arith.constant 0 : index
    %330 = vector.load %arg13[%329, %c0_122] : memref<8x128xf32, #tpu.memory_space<vmem>>, vector<1x128xf32>
    tpu.vector_store %arg13[%329, %c0_122], %326 {strides = array<i32>} : memref<8x128xf32, #tpu.memory_space<vmem>>, vector<1x128xf32>,
    %c4_i32 = arith.constant 4 : i32
    %c7_i32_123 = arith.constant 7 : i32
    %331 = arith.subi %c7_i32_123, %c4_i32 : i32
    %c2_i32_124 = arith.constant 2 : i32
    %332 = arith.muli %c2_i32_124, %331 : i32
    %c0_i32_125 = arith.constant 0 : i32
    %333 = arith.addi %332, %c0_i32_125 : i32
    %334 = arith.index_cast %333 : i32 to index
    %335 = memref.load %arg0[%334] : memref<16xi32, #tpu.memory_space<smem>>
    %c0_i32_126 = arith.constant 0 : i32
    %336 = arith.cmpi sge, %335, %c0_i32_126 : i32
    %337 = arith.extui %336 : i1 to i32
    %338 = arith.sitofp %337 : i32 to f32
    %c0_i32_127 = arith.constant 0 : i32
    %339 = arith.maxsi %335, %c0_i32_127 : i32
    %340 = arith.index_cast %339 : i32 to index
    %c0_128 = arith.constant 0 : index
    %341 = vector.load %arg13[%340, %c0_128] : memref<8x128xf32, #tpu.memory_space<vmem>>, vector<1x128xf32>
    %342 = vector.broadcast %338 : f32 to vector<1x128xf32>
    %343 = arith.mulf %341, %342 : vector<1x128xf32>
    %344 = arith.index_cast %339 : i32 to index
    %c0_129 = arith.constant 0 : index
    %345 = vector.load %arg14[%344, %c0_129] : memref<8x128xf32, #tpu.memory_space<vmem>>, vector<1x128xf32>
    %346 = vector.broadcast %338 : f32 to vector<1x128xf32>
    %347 = arith.mulf %345, %346 : vector<1x128xf32>
    %c2_i32_130 = arith.constant 2 : i32
    %348 = arith.muli %c2_i32_130, %331 : i32
    %c1_i32_131 = arith.constant 1 : i32
    %349 = arith.addi %348, %c1_i32_131 : i32
    %350 = arith.index_cast %349 : i32 to index
    %351 = memref.load %arg0[%350] : memref<16xi32, #tpu.memory_space<smem>>
    %c0_i32_132 = arith.constant 0 : i32
    %352 = arith.cmpi sge, %351, %c0_i32_132 : i32
    %353 = arith.extui %352 : i1 to i32
    %354 = arith.sitofp %353 : i32 to f32
    %c0_i32_133 = arith.constant 0 : i32
    %355 = arith.maxsi %351, %c0_i32_133 : i32
    %356 = arith.index_cast %355 : i32 to index
    %c0_134 = arith.constant 0 : index
    %357 = vector.load %arg13[%356, %c0_134] : memref<8x128xf32, #tpu.memory_space<vmem>>, vector<1x128xf32>
    %358 = vector.broadcast %354 : f32 to vector<1x128xf32>
    %359 = arith.mulf %357, %358 : vector<1x128xf32>
    %360 = arith.index_cast %355 : i32 to index
    %c0_135 = arith.constant 0 : index
    %361 = vector.load %arg14[%360, %c0_135] : memref<8x128xf32, #tpu.memory_space<vmem>>, vector<1x128xf32>
    %362 = vector.broadcast %354 : f32 to vector<1x128xf32>
    %363 = arith.mulf %361, %362 : vector<1x128xf32>
    %364 = arith.index_cast %331 : i32 to index
    %c0_136 = arith.constant 0 : index
    %365 = vector.load %arg15[%364, %c0_136] : memref<8x640xf32, #tpu.memory_space<vmem>>, vector<1x640xf32>
    %c0_137 = arith.constant 0 : index
    %c0_138 = arith.constant 0 : index
    %c0_139 = arith.constant 0 : index
    %366 = vector.load %arg5[%c0_137, %c0_138, %c0_139] : memref<2x128x640xf32, #tpu.memory_space<vmem>>, vector<1x128x640xf32>
    %367 = vector.shape_cast %366 : vector<1x128x640xf32> to vector<128x640xf32>
    %cst_140 = arith.constant dense<0.000000e+00> : vector<1x640xf32>
    %368 = tpu.matmul %343, %367, %cst_140 {dimension_numbers = #tpu.dot_dimension_numbers<[1], [0], [0], [1], [0, 0, 1, 1], [], []>} : vector<1x128xf32>, vector<128x640xf32>, vector<1x640xf32> -> vector<1x640xf32>
    %369 = arith.addf %365, %368 : vector<1x640xf32>
    %c1_141 = arith.constant 1 : index
    %c0_142 = arith.constant 0 : index
    %c0_143 = arith.constant 0 : index
    %370 = vector.load %arg5[%c1_141, %c0_142, %c0_143] : memref<2x128x640xf32, #tpu.memory_space<vmem>>, vector<1x128x640xf32>
    %371 = vector.shape_cast %370 : vector<1x128x640xf32> to vector<128x640xf32>
    %cst_144 = arith.constant dense<0.000000e+00> : vector<1x640xf32>
    %372 = tpu.matmul %359, %371, %cst_144 {dimension_numbers = #tpu.dot_dimension_numbers<[1], [0], [0], [1], [0, 0, 1, 1], [], []>} : vector<1x128xf32>, vector<128x640xf32>, vector<1x640xf32> -> vector<1x640xf32>
    %373 = arith.addf %369, %372 : vector<1x640xf32>
    %374 = vector.extract_strided_slice %373 {offsets = [0, 0], sizes = [1, 128], strides = [1, 1]} : vector<1x640xf32> to vector<1x128xf32>
    %375 = arith.negf %374 : vector<1x128xf32>
    %376 = math.exp %375 : vector<1x128xf32>
    %cst_145 = arith.constant 1.000000e+00 : f32
    %377 = vector.broadcast %cst_145 : f32 to vector<1x128xf32>
    %378 = arith.addf %377, %376 : vector<1x128xf32>
    %379 = arith.divf %377, %378 : vector<1x128xf32>
    %380 = vector.extract_strided_slice %373 {offsets = [0, 128], sizes = [1, 128], strides = [1, 1]} : vector<1x640xf32> to vector<1x128xf32>
    %381 = arith.negf %380 : vector<1x128xf32>
    %382 = math.exp %381 : vector<1x128xf32>
    %cst_146 = arith.constant 1.000000e+00 : f32
    %383 = vector.broadcast %cst_146 : f32 to vector<1x128xf32>
    %384 = arith.addf %383, %382 : vector<1x128xf32>
    %385 = arith.divf %383, %384 : vector<1x128xf32>
    %386 = vector.extract_strided_slice %373 {offsets = [0, 256], sizes = [1, 128], strides = [1, 1]} : vector<1x640xf32> to vector<1x128xf32>
    %387 = math.tanh %386 : vector<1x128xf32>
    %388 = vector.extract_strided_slice %373 {offsets = [0, 384], sizes = [1, 128], strides = [1, 1]} : vector<1x640xf32> to vector<1x128xf32>
    %389 = arith.negf %388 : vector<1x128xf32>
    %390 = math.exp %389 : vector<1x128xf32>
    %cst_147 = arith.constant 1.000000e+00 : f32
    %391 = vector.broadcast %cst_147 : f32 to vector<1x128xf32>
    %392 = arith.addf %391, %390 : vector<1x128xf32>
    %393 = arith.divf %391, %392 : vector<1x128xf32>
    %394 = vector.extract_strided_slice %373 {offsets = [0, 512], sizes = [1, 128], strides = [1, 1]} : vector<1x640xf32> to vector<1x128xf32>
    %395 = arith.negf %394 : vector<1x128xf32>
    %396 = math.exp %395 : vector<1x128xf32>
    %cst_148 = arith.constant 1.000000e+00 : f32
    %397 = vector.broadcast %cst_148 : f32 to vector<1x128xf32>
    %398 = arith.addf %397, %396 : vector<1x128xf32>
    %399 = arith.divf %397, %398 : vector<1x128xf32>
    %400 = arith.mulf %379, %387 : vector<1x128xf32>
    %401 = arith.mulf %393, %347 : vector<1x128xf32>
    %402 = arith.addf %400, %401 : vector<1x128xf32>
    %403 = arith.mulf %399, %363 : vector<1x128xf32>
    %404 = arith.addf %402, %403 : vector<1x128xf32>
    %405 = math.tanh %404 : vector<1x128xf32>
    %406 = arith.mulf %385, %405 : vector<1x128xf32>
    %407 = arith.index_cast %331 : i32 to index
    %c0_149 = arith.constant 0 : index
    %408 = vector.load %arg14[%407, %c0_149] : memref<8x128xf32, #tpu.memory_space<vmem>>, vector<1x128xf32>
    tpu.vector_store %arg14[%407, %c0_149], %404 {strides = array<i32>} : memref<8x128xf32, #tpu.memory_space<vmem>>, vector<1x128xf32>,
    %409 = arith.index_cast %331 : i32 to index
    %c0_150 = arith.constant 0 : index
    %410 = vector.load %arg13[%409, %c0_150] : memref<8x128xf32, #tpu.memory_space<vmem>>, vector<1x128xf32>
    tpu.vector_store %arg13[%409, %c0_150], %406 {strides = array<i32>} : memref<8x128xf32, #tpu.memory_space<vmem>>, vector<1x128xf32>,
    %c5_i32 = arith.constant 5 : i32
    %c7_i32_151 = arith.constant 7 : i32
    %411 = arith.subi %c7_i32_151, %c5_i32 : i32
    %c2_i32_152 = arith.constant 2 : i32
    %412 = arith.muli %c2_i32_152, %411 : i32
    %c0_i32_153 = arith.constant 0 : i32
    %413 = arith.addi %412, %c0_i32_153 : i32
    %414 = arith.index_cast %413 : i32 to index
    %415 = memref.load %arg0[%414] : memref<16xi32, #tpu.memory_space<smem>>
    %c0_i32_154 = arith.constant 0 : i32
    %416 = arith.cmpi sge, %415, %c0_i32_154 : i32
    %417 = arith.extui %416 : i1 to i32
    %418 = arith.sitofp %417 : i32 to f32
    %c0_i32_155 = arith.constant 0 : i32
    %419 = arith.maxsi %415, %c0_i32_155 : i32
    %420 = arith.index_cast %419 : i32 to index
    %c0_156 = arith.constant 0 : index
    %421 = vector.load %arg13[%420, %c0_156] : memref<8x128xf32, #tpu.memory_space<vmem>>, vector<1x128xf32>
    %422 = vector.broadcast %418 : f32 to vector<1x128xf32>
    %423 = arith.mulf %421, %422 : vector<1x128xf32>
    %424 = arith.index_cast %419 : i32 to index
    %c0_157 = arith.constant 0 : index
    %425 = vector.load %arg14[%424, %c0_157] : memref<8x128xf32, #tpu.memory_space<vmem>>, vector<1x128xf32>
    %426 = vector.broadcast %418 : f32 to vector<1x128xf32>
    %427 = arith.mulf %425, %426 : vector<1x128xf32>
    %c2_i32_158 = arith.constant 2 : i32
    %428 = arith.muli %c2_i32_158, %411 : i32
    %c1_i32_159 = arith.constant 1 : i32
    %429 = arith.addi %428, %c1_i32_159 : i32
    %430 = arith.index_cast %429 : i32 to index
    %431 = memref.load %arg0[%430] : memref<16xi32, #tpu.memory_space<smem>>
    %c0_i32_160 = arith.constant 0 : i32
    %432 = arith.cmpi sge, %431, %c0_i32_160 : i32
    %433 = arith.extui %432 : i1 to i32
    %434 = arith.sitofp %433 : i32 to f32
    %c0_i32_161 = arith.constant 0 : i32
    %435 = arith.maxsi %431, %c0_i32_161 : i32
    %436 = arith.index_cast %435 : i32 to index
    %c0_162 = arith.constant 0 : index
    %437 = vector.load %arg13[%436, %c0_162] : memref<8x128xf32, #tpu.memory_space<vmem>>, vector<1x128xf32>
    %438 = vector.broadcast %434 : f32 to vector<1x128xf32>
    %439 = arith.mulf %437, %438 : vector<1x128xf32>
    %440 = arith.index_cast %435 : i32 to index
    %c0_163 = arith.constant 0 : index
    %441 = vector.load %arg14[%440, %c0_163] : memref<8x128xf32, #tpu.memory_space<vmem>>, vector<1x128xf32>
    %442 = vector.broadcast %434 : f32 to vector<1x128xf32>
    %443 = arith.mulf %441, %442 : vector<1x128xf32>
    %444 = arith.index_cast %411 : i32 to index
    %c0_164 = arith.constant 0 : index
    %445 = vector.load %arg15[%444, %c0_164] : memref<8x640xf32, #tpu.memory_space<vmem>>, vector<1x640xf32>
    %c0_165 = arith.constant 0 : index
    %c0_166 = arith.constant 0 : index
    %c0_167 = arith.constant 0 : index
    %446 = vector.load %arg5[%c0_165, %c0_166, %c0_167] : memref<2x128x640xf32, #tpu.memory_space<vmem>>, vector<1x128x640xf32>
    %447 = vector.shape_cast %446 : vector<1x128x640xf32> to vector<128x640xf32>
    %cst_168 = arith.constant dense<0.000000e+00> : vector<1x640xf32>
    %448 = tpu.matmul %423, %447, %cst_168 {dimension_numbers = #tpu.dot_dimension_numbers<[1], [0], [0], [1], [0, 0, 1, 1], [], []>} : vector<1x128xf32>, vector<128x640xf32>, vector<1x640xf32> -> vector<1x640xf32>
    %449 = arith.addf %445, %448 : vector<1x640xf32>
    %c1_169 = arith.constant 1 : index
    %c0_170 = arith.constant 0 : index
    %c0_171 = arith.constant 0 : index
    %450 = vector.load %arg5[%c1_169, %c0_170, %c0_171] : memref<2x128x640xf32, #tpu.memory_space<vmem>>, vector<1x128x640xf32>
    %451 = vector.shape_cast %450 : vector<1x128x640xf32> to vector<128x640xf32>
    %cst_172 = arith.constant dense<0.000000e+00> : vector<1x640xf32>
    %452 = tpu.matmul %439, %451, %cst_172 {dimension_numbers = #tpu.dot_dimension_numbers<[1], [0], [0], [1], [0, 0, 1, 1], [], []>} : vector<1x128xf32>, vector<128x640xf32>, vector<1x640xf32> -> vector<1x640xf32>
    %453 = arith.addf %449, %452 : vector<1x640xf32>
    %454 = vector.extract_strided_slice %453 {offsets = [0, 0], sizes = [1, 128], strides = [1, 1]} : vector<1x640xf32> to vector<1x128xf32>
    %455 = arith.negf %454 : vector<1x128xf32>
    %456 = math.exp %455 : vector<1x128xf32>
    %cst_173 = arith.constant 1.000000e+00 : f32
    %457 = vector.broadcast %cst_173 : f32 to vector<1x128xf32>
    %458 = arith.addf %457, %456 : vector<1x128xf32>
    %459 = arith.divf %457, %458 : vector<1x128xf32>
    %460 = vector.extract_strided_slice %453 {offsets = [0, 128], sizes = [1, 128], strides = [1, 1]} : vector<1x640xf32> to vector<1x128xf32>
    %461 = arith.negf %460 : vector<1x128xf32>
    %462 = math.exp %461 : vector<1x128xf32>
    %cst_174 = arith.constant 1.000000e+00 : f32
    %463 = vector.broadcast %cst_174 : f32 to vector<1x128xf32>
    %464 = arith.addf %463, %462 : vector<1x128xf32>
    %465 = arith.divf %463, %464 : vector<1x128xf32>
    %466 = vector.extract_strided_slice %453 {offsets = [0, 256], sizes = [1, 128], strides = [1, 1]} : vector<1x640xf32> to vector<1x128xf32>
    %467 = math.tanh %466 : vector<1x128xf32>
    %468 = vector.extract_strided_slice %453 {offsets = [0, 384], sizes = [1, 128], strides = [1, 1]} : vector<1x640xf32> to vector<1x128xf32>
    %469 = arith.negf %468 : vector<1x128xf32>
    %470 = math.exp %469 : vector<1x128xf32>
    %cst_175 = arith.constant 1.000000e+00 : f32
    %471 = vector.broadcast %cst_175 : f32 to vector<1x128xf32>
    %472 = arith.addf %471, %470 : vector<1x128xf32>
    %473 = arith.divf %471, %472 : vector<1x128xf32>
    %474 = vector.extract_strided_slice %453 {offsets = [0, 512], sizes = [1, 128], strides = [1, 1]} : vector<1x640xf32> to vector<1x128xf32>
    %475 = arith.negf %474 : vector<1x128xf32>
    %476 = math.exp %475 : vector<1x128xf32>
    %cst_176 = arith.constant 1.000000e+00 : f32
    %477 = vector.broadcast %cst_176 : f32 to vector<1x128xf32>
    %478 = arith.addf %477, %476 : vector<1x128xf32>
    %479 = arith.divf %477, %478 : vector<1x128xf32>
    %480 = arith.mulf %459, %467 : vector<1x128xf32>
    %481 = arith.mulf %473, %427 : vector<1x128xf32>
    %482 = arith.addf %480, %481 : vector<1x128xf32>
    %483 = arith.mulf %479, %443 : vector<1x128xf32>
    %484 = arith.addf %482, %483 : vector<1x128xf32>
    %485 = math.tanh %484 : vector<1x128xf32>
    %486 = arith.mulf %465, %485 : vector<1x128xf32>
    %487 = arith.index_cast %411 : i32 to index
    %c0_177 = arith.constant 0 : index
    %488 = vector.load %arg14[%487, %c0_177] : memref<8x128xf32, #tpu.memory_space<vmem>>, vector<1x128xf32>
    tpu.vector_store %arg14[%487, %c0_177], %484 {strides = array<i32>} : memref<8x128xf32, #tpu.memory_space<vmem>>, vector<1x128xf32>,
    %489 = arith.index_cast %411 : i32 to index
    %c0_178 = arith.constant 0 : index
    %490 = vector.load %arg13[%489, %c0_178] : memref<8x128xf32, #tpu.memory_space<vmem>>, vector<1x128xf32>
    tpu.vector_store %arg13[%489, %c0_178], %486 {strides = array<i32>} : memref<8x128xf32, #tpu.memory_space<vmem>>, vector<1x128xf32>,
    %c6_i32 = arith.constant 6 : i32
    %c7_i32_179 = arith.constant 7 : i32
    %491 = arith.subi %c7_i32_179, %c6_i32 : i32
    %c2_i32_180 = arith.constant 2 : i32
    %492 = arith.muli %c2_i32_180, %491 : i32
    %c0_i32_181 = arith.constant 0 : i32
    %493 = arith.addi %492, %c0_i32_181 : i32
    %494 = arith.index_cast %493 : i32 to index
    %495 = memref.load %arg0[%494] : memref<16xi32, #tpu.memory_space<smem>>
    %c0_i32_182 = arith.constant 0 : i32
    %496 = arith.cmpi sge, %495, %c0_i32_182 : i32
    %497 = arith.extui %496 : i1 to i32
    %498 = arith.sitofp %497 : i32 to f32
    %c0_i32_183 = arith.constant 0 : i32
    %499 = arith.maxsi %495, %c0_i32_183 : i32
    %500 = arith.index_cast %499 : i32 to index
    %c0_184 = arith.constant 0 : index
    %501 = vector.load %arg13[%500, %c0_184] : memref<8x128xf32, #tpu.memory_space<vmem>>, vector<1x128xf32>
    %502 = vector.broadcast %498 : f32 to vector<1x128xf32>
    %503 = arith.mulf %501, %502 : vector<1x128xf32>
    %504 = arith.index_cast %499 : i32 to index
    %c0_185 = arith.constant 0 : index
    %505 = vector.load %arg14[%504, %c0_185] : memref<8x128xf32, #tpu.memory_space<vmem>>, vector<1x128xf32>
    %506 = vector.broadcast %498 : f32 to vector<1x128xf32>
    %507 = arith.mulf %505, %506 : vector<1x128xf32>
    %c2_i32_186 = arith.constant 2 : i32
    %508 = arith.muli %c2_i32_186, %491 : i32
    %c1_i32_187 = arith.constant 1 : i32
    %509 = arith.addi %508, %c1_i32_187 : i32
    %510 = arith.index_cast %509 : i32 to index
    %511 = memref.load %arg0[%510] : memref<16xi32, #tpu.memory_space<smem>>
    %c0_i32_188 = arith.constant 0 : i32
    %512 = arith.cmpi sge, %511, %c0_i32_188 : i32
    %513 = arith.extui %512 : i1 to i32
    %514 = arith.sitofp %513 : i32 to f32
    %c0_i32_189 = arith.constant 0 : i32
    %515 = arith.maxsi %511, %c0_i32_189 : i32
    %516 = arith.index_cast %515 : i32 to index
    %c0_190 = arith.constant 0 : index
    %517 = vector.load %arg13[%516, %c0_190] : memref<8x128xf32, #tpu.memory_space<vmem>>, vector<1x128xf32>
    %518 = vector.broadcast %514 : f32 to vector<1x128xf32>
    %519 = arith.mulf %517, %518 : vector<1x128xf32>
    %520 = arith.index_cast %515 : i32 to index
    %c0_191 = arith.constant 0 : index
    %521 = vector.load %arg14[%520, %c0_191] : memref<8x128xf32, #tpu.memory_space<vmem>>, vector<1x128xf32>
    %522 = vector.broadcast %514 : f32 to vector<1x128xf32>
    %523 = arith.mulf %521, %522 : vector<1x128xf32>
    %524 = arith.index_cast %491 : i32 to index
    %c0_192 = arith.constant 0 : index
    %525 = vector.load %arg15[%524, %c0_192] : memref<8x640xf32, #tpu.memory_space<vmem>>, vector<1x640xf32>
    %c0_193 = arith.constant 0 : index
    %c0_194 = arith.constant 0 : index
    %c0_195 = arith.constant 0 : index
    %526 = vector.load %arg5[%c0_193, %c0_194, %c0_195] : memref<2x128x640xf32, #tpu.memory_space<vmem>>, vector<1x128x640xf32>
    %527 = vector.shape_cast %526 : vector<1x128x640xf32> to vector<128x640xf32>
    %cst_196 = arith.constant dense<0.000000e+00> : vector<1x640xf32>
    %528 = tpu.matmul %503, %527, %cst_196 {dimension_numbers = #tpu.dot_dimension_numbers<[1], [0], [0], [1], [0, 0, 1, 1], [], []>} : vector<1x128xf32>, vector<128x640xf32>, vector<1x640xf32> -> vector<1x640xf32>
    %529 = arith.addf %525, %528 : vector<1x640xf32>
    %c1_197 = arith.constant 1 : index
    %c0_198 = arith.constant 0 : index
    %c0_199 = arith.constant 0 : index
    %530 = vector.load %arg5[%c1_197, %c0_198, %c0_199] : memref<2x128x640xf32, #tpu.memory_space<vmem>>, vector<1x128x640xf32>
    %531 = vector.shape_cast %530 : vector<1x128x640xf32> to vector<128x640xf32>
    %cst_200 = arith.constant dense<0.000000e+00> : vector<1x640xf32>
    %532 = tpu.matmul %519, %531, %cst_200 {dimension_numbers = #tpu.dot_dimension_numbers<[1], [0], [0], [1], [0, 0, 1, 1], [], []>} : vector<1x128xf32>, vector<128x640xf32>, vector<1x640xf32> -> vector<1x640xf32>
    %533 = arith.addf %529, %532 : vector<1x640xf32>
    %534 = vector.extract_strided_slice %533 {offsets = [0, 0], sizes = [1, 128], strides = [1, 1]} : vector<1x640xf32> to vector<1x128xf32>
    %535 = arith.negf %534 : vector<1x128xf32>
    %536 = math.exp %535 : vector<1x128xf32>
    %cst_201 = arith.constant 1.000000e+00 : f32
    %537 = vector.broadcast %cst_201 : f32 to vector<1x128xf32>
    %538 = arith.addf %537, %536 : vector<1x128xf32>
    %539 = arith.divf %537, %538 : vector<1x128xf32>
    %540 = vector.extract_strided_slice %533 {offsets = [0, 128], sizes = [1, 128], strides = [1, 1]} : vector<1x640xf32> to vector<1x128xf32>
    %541 = arith.negf %540 : vector<1x128xf32>
    %542 = math.exp %541 : vector<1x128xf32>
    %cst_202 = arith.constant 1.000000e+00 : f32
    %543 = vector.broadcast %cst_202 : f32 to vector<1x128xf32>
    %544 = arith.addf %543, %542 : vector<1x128xf32>
    %545 = arith.divf %543, %544 : vector<1x128xf32>
    %546 = vector.extract_strided_slice %533 {offsets = [0, 256], sizes = [1, 128], strides = [1, 1]} : vector<1x640xf32> to vector<1x128xf32>
    %547 = math.tanh %546 : vector<1x128xf32>
    %548 = vector.extract_strided_slice %533 {offsets = [0, 384], sizes = [1, 128], strides = [1, 1]} : vector<1x640xf32> to vector<1x128xf32>
    %549 = arith.negf %548 : vector<1x128xf32>
    %550 = math.exp %549 : vector<1x128xf32>
    %cst_203 = arith.constant 1.000000e+00 : f32
    %551 = vector.broadcast %cst_203 : f32 to vector<1x128xf32>
    %552 = arith.addf %551, %550 : vector<1x128xf32>
    %553 = arith.divf %551, %552 : vector<1x128xf32>
    %554 = vector.extract_strided_slice %533 {offsets = [0, 512], sizes = [1, 128], strides = [1, 1]} : vector<1x640xf32> to vector<1x128xf32>
    %555 = arith.negf %554 : vector<1x128xf32>
    %556 = math.exp %555 : vector<1x128xf32>
    %cst_204 = arith.constant 1.000000e+00 : f32
    %557 = vector.broadcast %cst_204 : f32 to vector<1x128xf32>
    %558 = arith.addf %557, %556 : vector<1x128xf32>
    %559 = arith.divf %557, %558 : vector<1x128xf32>
    %560 = arith.mulf %539, %547 : vector<1x128xf32>
    %561 = arith.mulf %553, %507 : vector<1x128xf32>
    %562 = arith.addf %560, %561 : vector<1x128xf32>
    %563 = arith.mulf %559, %523 : vector<1x128xf32>
    %564 = arith.addf %562, %563 : vector<1x128xf32>
    %565 = math.tanh %564 : vector<1x128xf32>
    %566 = arith.mulf %545, %565 : vector<1x128xf32>
    %567 = arith.index_cast %491 : i32 to index
    %c0_205 = arith.constant 0 : index
    %568 = vector.load %arg14[%567, %c0_205] : memref<8x128xf32, #tpu.memory_space<vmem>>, vector<1x128xf32>
    tpu.vector_store %arg14[%567, %c0_205], %564 {strides = array<i32>} : memref<8x128xf32, #tpu.memory_space<vmem>>, vector<1x128xf32>,
    %569 = arith.index_cast %491 : i32 to index
    %c0_206 = arith.constant 0 : index
    %570 = vector.load %arg13[%569, %c0_206] : memref<8x128xf32, #tpu.memory_space<vmem>>, vector<1x128xf32>
    tpu.vector_store %arg13[%569, %c0_206], %566 {strides = array<i32>} : memref<8x128xf32, #tpu.memory_space<vmem>>, vector<1x128xf32>,
    %c7_i32_207 = arith.constant 7 : i32
    %c7_i32_208 = arith.constant 7 : i32
    %571 = arith.subi %c7_i32_208, %c7_i32_207 : i32
    %c2_i32_209 = arith.constant 2 : i32
    %572 = arith.muli %c2_i32_209, %571 : i32
    %c0_i32_210 = arith.constant 0 : i32
    %573 = arith.addi %572, %c0_i32_210 : i32
    %574 = arith.index_cast %573 : i32 to index
    %575 = memref.load %arg0[%574] : memref<16xi32, #tpu.memory_space<smem>>
    %c0_i32_211 = arith.constant 0 : i32
    %576 = arith.cmpi sge, %575, %c0_i32_211 : i32
    %577 = arith.extui %576 : i1 to i32
    %578 = arith.sitofp %577 : i32 to f32
    %c0_i32_212 = arith.constant 0 : i32
    %579 = arith.maxsi %575, %c0_i32_212 : i32
    %580 = arith.index_cast %579 : i32 to index
    %c0_213 = arith.constant 0 : index
    %581 = vector.load %arg13[%580, %c0_213] : memref<8x128xf32, #tpu.memory_space<vmem>>, vector<1x128xf32>
    %582 = vector.broadcast %578 : f32 to vector<1x128xf32>
    %583 = arith.mulf %581, %582 : vector<1x128xf32>
    %584 = arith.index_cast %579 : i32 to index
    %c0_214 = arith.constant 0 : index
    %585 = vector.load %arg14[%584, %c0_214] : memref<8x128xf32, #tpu.memory_space<vmem>>, vector<1x128xf32>
    %586 = vector.broadcast %578 : f32 to vector<1x128xf32>
    %587 = arith.mulf %585, %586 : vector<1x128xf32>
    %c2_i32_215 = arith.constant 2 : i32
    %588 = arith.muli %c2_i32_215, %571 : i32
    %c1_i32_216 = arith.constant 1 : i32
    %589 = arith.addi %588, %c1_i32_216 : i32
    %590 = arith.index_cast %589 : i32 to index
    %591 = memref.load %arg0[%590] : memref<16xi32, #tpu.memory_space<smem>>
    %c0_i32_217 = arith.constant 0 : i32
    %592 = arith.cmpi sge, %591, %c0_i32_217 : i32
    %593 = arith.extui %592 : i1 to i32
    %594 = arith.sitofp %593 : i32 to f32
    %c0_i32_218 = arith.constant 0 : i32
    %595 = arith.maxsi %591, %c0_i32_218 : i32
    %596 = arith.index_cast %595 : i32 to index
    %c0_219 = arith.constant 0 : index
    %597 = vector.load %arg13[%596, %c0_219] : memref<8x128xf32, #tpu.memory_space<vmem>>, vector<1x128xf32>
    %598 = vector.broadcast %594 : f32 to vector<1x128xf32>
    %599 = arith.mulf %597, %598 : vector<1x128xf32>
    %600 = arith.index_cast %595 : i32 to index
    %c0_220 = arith.constant 0 : index
    %601 = vector.load %arg14[%600, %c0_220] : memref<8x128xf32, #tpu.memory_space<vmem>>, vector<1x128xf32>
    %602 = vector.broadcast %594 : f32 to vector<1x128xf32>
    %603 = arith.mulf %601, %602 : vector<1x128xf32>
    %604 = arith.index_cast %571 : i32 to index
    %c0_221 = arith.constant 0 : index
    %605 = vector.load %arg15[%604, %c0_221] : memref<8x640xf32, #tpu.memory_space<vmem>>, vector<1x640xf32>
    %c0_222 = arith.constant 0 : index
    %c0_223 = arith.constant 0 : index
    %c0_224 = arith.constant 0 : index
    %606 = vector.load %arg5[%c0_222, %c0_223, %c0_224] : memref<2x128x640xf32, #tpu.memory_space<vmem>>, vector<1x128x640xf32>
    %607 = vector.shape_cast %606 : vector<1x128x640xf32> to vector<128x640xf32>
    %cst_225 = arith.constant dense<0.000000e+00> : vector<1x640xf32>
    %608 = tpu.matmul %583, %607, %cst_225 {dimension_numbers = #tpu.dot_dimension_numbers<[1], [0], [0], [1], [0, 0, 1, 1], [], []>} : vector<1x128xf32>, vector<128x640xf32>, vector<1x640xf32> -> vector<1x640xf32>
    %609 = arith.addf %605, %608 : vector<1x640xf32>
    %c1_226 = arith.constant 1 : index
    %c0_227 = arith.constant 0 : index
    %c0_228 = arith.constant 0 : index
    %610 = vector.load %arg5[%c1_226, %c0_227, %c0_228] : memref<2x128x640xf32, #tpu.memory_space<vmem>>, vector<1x128x640xf32>
    %611 = vector.shape_cast %610 : vector<1x128x640xf32> to vector<128x640xf32>
    %cst_229 = arith.constant dense<0.000000e+00> : vector<1x640xf32>
    %612 = tpu.matmul %599, %611, %cst_229 {dimension_numbers = #tpu.dot_dimension_numbers<[1], [0], [0], [1], [0, 0, 1, 1], [], []>} : vector<1x128xf32>, vector<128x640xf32>, vector<1x640xf32> -> vector<1x640xf32>
    %613 = arith.addf %609, %612 : vector<1x640xf32>
    %614 = vector.extract_strided_slice %613 {offsets = [0, 0], sizes = [1, 128], strides = [1, 1]} : vector<1x640xf32> to vector<1x128xf32>
    %615 = arith.negf %614 : vector<1x128xf32>
    %616 = math.exp %615 : vector<1x128xf32>
    %cst_230 = arith.constant 1.000000e+00 : f32
    %617 = vector.broadcast %cst_230 : f32 to vector<1x128xf32>
    %618 = arith.addf %617, %616 : vector<1x128xf32>
    %619 = arith.divf %617, %618 : vector<1x128xf32>
    %620 = vector.extract_strided_slice %613 {offsets = [0, 128], sizes = [1, 128], strides = [1, 1]} : vector<1x640xf32> to vector<1x128xf32>
    %621 = arith.negf %620 : vector<1x128xf32>
    %622 = math.exp %621 : vector<1x128xf32>
    %cst_231 = arith.constant 1.000000e+00 : f32
    %623 = vector.broadcast %cst_231 : f32 to vector<1x128xf32>
    %624 = arith.addf %623, %622 : vector<1x128xf32>
    %625 = arith.divf %623, %624 : vector<1x128xf32>
    %626 = vector.extract_strided_slice %613 {offsets = [0, 256], sizes = [1, 128], strides = [1, 1]} : vector<1x640xf32> to vector<1x128xf32>
    %627 = math.tanh %626 : vector<1x128xf32>
    %628 = vector.extract_strided_slice %613 {offsets = [0, 384], sizes = [1, 128], strides = [1, 1]} : vector<1x640xf32> to vector<1x128xf32>
    %629 = arith.negf %628 : vector<1x128xf32>
    %630 = math.exp %629 : vector<1x128xf32>
    %cst_232 = arith.constant 1.000000e+00 : f32
    %631 = vector.broadcast %cst_232 : f32 to vector<1x128xf32>
    %632 = arith.addf %631, %630 : vector<1x128xf32>
    %633 = arith.divf %631, %632 : vector<1x128xf32>
    %634 = vector.extract_strided_slice %613 {offsets = [0, 512], sizes = [1, 128], strides = [1, 1]} : vector<1x640xf32> to vector<1x128xf32>
    %635 = arith.negf %634 : vector<1x128xf32>
    %636 = math.exp %635 : vector<1x128xf32>
    %cst_233 = arith.constant 1.000000e+00 : f32
    %637 = vector.broadcast %cst_233 : f32 to vector<1x128xf32>
    %638 = arith.addf %637, %636 : vector<1x128xf32>
    %639 = arith.divf %637, %638 : vector<1x128xf32>
    %640 = arith.mulf %619, %627 : vector<1x128xf32>
    %641 = arith.mulf %633, %587 : vector<1x128xf32>
    %642 = arith.addf %640, %641 : vector<1x128xf32>
    %643 = arith.mulf %639, %603 : vector<1x128xf32>
    %644 = arith.addf %642, %643 : vector<1x128xf32>
    %645 = math.tanh %644 : vector<1x128xf32>
    %646 = arith.mulf %625, %645 : vector<1x128xf32>
    %647 = arith.index_cast %571 : i32 to index
    %c0_234 = arith.constant 0 : index
    %648 = vector.load %arg14[%647, %c0_234] : memref<8x128xf32, #tpu.memory_space<vmem>>, vector<1x128xf32>
    tpu.vector_store %arg14[%647, %c0_234], %644 {strides = array<i32>} : memref<8x128xf32, #tpu.memory_space<vmem>>, vector<1x128xf32>,
    %649 = arith.index_cast %571 : i32 to index
    %c0_235 = arith.constant 0 : index
    %650 = vector.load %arg13[%649, %c0_235] : memref<8x128xf32, #tpu.memory_space<vmem>>, vector<1x128xf32>
    tpu.vector_store %arg13[%649, %c0_235], %646 {strides = array<i32>} : memref<8x128xf32, #tpu.memory_space<vmem>>, vector<1x128xf32>,
    %c8_i32 = arith.constant 8 : i32
    %c0_236 = arith.constant 0 : index
    %c0_237 = arith.constant 0 : index
    %651 = vector.load %arg13[%c0_236, %c0_237] : memref<8x128xf32, #tpu.memory_space<vmem>>, vector<8x128xf32>
    %c0_238 = arith.constant 0 : index
    %c0_239 = arith.constant 0 : index
    %652 = vector.load %arg6[%c0_238, %c0_239] : memref<128x128xf32, #tpu.memory_space<vmem>>, vector<128x128xf32>
    %cst_240 = arith.constant dense<0.000000e+00> : vector<8x128xf32>
    %653 = tpu.matmul %651, %652, %cst_240 {dimension_numbers = #tpu.dot_dimension_numbers<[1], [0], [0], [1], [0, 0, 1, 1], [], []>} : vector<8x128xf32>, vector<128x128xf32>, vector<8x128xf32> -> vector<8x128xf32>
    %c0_241 = arith.constant 0 : index
    %c0_242 = arith.constant 0 : index
    %654 = vector.load %arg7[%c0_241, %c0_242] : memref<1x128xf32, #tpu.memory_space<vmem>>, vector<1x128xf32>
    %655 = vector.broadcast %654 : vector<1x128xf32> to vector<8x128xf32>
    %656 = arith.addf %653, %655 : vector<8x128xf32>
    %cst_243 = arith.constant 0.000000e+00 : f32
    %657 = vector.broadcast %cst_243 : f32 to vector<8x128xf32>
    %658 = arith.maximumf %656, %657 : vector<8x128xf32>
    %c0_244 = arith.constant 0 : index
    %c0_245 = arith.constant 0 : index
    %c0_246 = arith.constant 0 : index
    %659 = vector.load %arg8[%c0_244, %c0_245, %c0_246] : memref<2x128x128xf32, #tpu.memory_space<vmem>>, vector<1x128x128xf32>
    %660 = vector.shape_cast %659 : vector<1x128x128xf32> to vector<128x128xf32>
    %cst_247 = arith.constant dense<0.000000e+00> : vector<8x128xf32>
    %661 = tpu.matmul %658, %660, %cst_247 {dimension_numbers = #tpu.dot_dimension_numbers<[1], [0], [0], [1], [0, 0, 1, 1], [], []>} : vector<8x128xf32>, vector<128x128xf32>, vector<8x128xf32> -> vector<8x128xf32>
    %c0_248 = arith.constant 0 : index
    %c0_249 = arith.constant 0 : index
    %c0_250 = arith.constant 0 : index
    %662 = vector.load %arg9[%c0_248, %c0_249, %c0_250] : memref<2x1x128xf32, #tpu.memory_space<vmem>>, vector<1x1x128xf32>
    %663 = vector.shape_cast %662 : vector<1x1x128xf32> to vector<1x128xf32>
    %664 = vector.broadcast %663 : vector<1x128xf32> to vector<8x128xf32>
    %665 = arith.addf %661, %664 : vector<8x128xf32>
    %cst_251 = arith.constant 0.000000e+00 : f32
    %666 = vector.broadcast %cst_251 : f32 to vector<8x128xf32>
    %667 = arith.maximumf %665, %666 : vector<8x128xf32>
    %c1_252 = arith.constant 1 : index
    %c0_253 = arith.constant 0 : index
    %c0_254 = arith.constant 0 : index
    %668 = vector.load %arg8[%c1_252, %c0_253, %c0_254] : memref<2x128x128xf32, #tpu.memory_space<vmem>>, vector<1x128x128xf32>
    %669 = vector.shape_cast %668 : vector<1x128x128xf32> to vector<128x128xf32>
    %cst_255 = arith.constant dense<0.000000e+00> : vector<8x128xf32>
    %670 = tpu.matmul %667, %669, %cst_255 {dimension_numbers = #tpu.dot_dimension_numbers<[1], [0], [0], [1], [0, 0, 1, 1], [], []>} : vector<8x128xf32>, vector<128x128xf32>, vector<8x128xf32> -> vector<8x128xf32>
    %c1_256 = arith.constant 1 : index
    %c0_257 = arith.constant 0 : index
    %c0_258 = arith.constant 0 : index
    %671 = vector.load %arg9[%c1_256, %c0_257, %c0_258] : memref<2x1x128xf32, #tpu.memory_space<vmem>>, vector<1x1x128xf32>
    %672 = vector.shape_cast %671 : vector<1x1x128xf32> to vector<1x128xf32>
    %673 = vector.broadcast %672 : vector<1x128xf32> to vector<8x128xf32>
    %674 = arith.addf %670, %673 : vector<8x128xf32>
    %cst_259 = arith.constant 0.000000e+00 : f32
    %675 = vector.broadcast %cst_259 : f32 to vector<8x128xf32>
    %676 = arith.maximumf %674, %675 : vector<8x128xf32>
    %c0_260 = arith.constant 0 : index
    %c0_261 = arith.constant 0 : index
    %677 = vector.load %arg10[%c0_260, %c0_261] : memref<128x128xf32, #tpu.memory_space<vmem>>, vector<128x128xf32>
    %cst_262 = arith.constant dense<0.000000e+00> : vector<8x128xf32>
    %678 = tpu.matmul %676, %677, %cst_262 {dimension_numbers = #tpu.dot_dimension_numbers<[1], [0], [0], [1], [0, 0, 1, 1], [], []>} : vector<8x128xf32>, vector<128x128xf32>, vector<8x128xf32> -> vector<8x128xf32>
    %c0_263 = arith.constant 0 : index
    %c0_264 = arith.constant 0 : index
    %679 = vector.load %arg11[%c0_263, %c0_264] : memref<1x128xf32, #tpu.memory_space<vmem>>, vector<1x128xf32>
    %680 = vector.broadcast %679 : vector<1x128xf32> to vector<8x128xf32>
    %681 = arith.addf %678, %680 : vector<8x128xf32>
    %c0_265 = arith.constant 0 : index
    %c0_266 = arith.constant 0 : index
    %682 = vector.load %arg2[%c0_265, %c0_266] : memref<8x128xf32, #tpu.memory_space<vmem>>, vector<8x128xf32>
    %cst_267 = arith.constant 5.000000e-01 : f32
    %683 = vector.broadcast %cst_267 : f32 to vector<8x128xf32>
    %684 = arith.cmpf ogt, %682, %683 : vector<8x128xf32>
    %cst_268 = arith.constant -1.000000e+30 : f32
    %685 = vector.broadcast %cst_268 : f32 to vector<8x128xf32>
    %686 = arith.select %684, %681, %685 : vector<8x128xi1>, vector<8x128xf32>
    %687 = vector.shape_cast %686 : vector<8x128xf32> to vector<1x8x128xf32>
    %cst_269 = arith.constant dense<0xFF800000> : vector<1xf32>
    %688 = vector.multi_reduction <maximumf>, %687, %cst_269 [1, 2] : vector<1x8x128xf32> to vector<1xf32>
    %689 = vector.shape_cast %688 : vector<1xf32> to vector<1x1x1xf32>
    %690 = vector.extract %689[0, 0, 0] : f32 from vector<1x1x1xf32>
    %691 = vector.broadcast %690 : f32 to vector<8x128xf32>
    %692 = arith.subf %686, %691 : vector<8x128xf32>
    %693 = math.exp %692 : vector<8x128xf32>
    %694 = vector.shape_cast %693 : vector<8x128xf32> to vector<1x8x128xf32>
    %cst_270 = arith.constant dense<0.000000e+00> : vector<1xf32>
    %695 = vector.multi_reduction <add>, %694, %cst_270 [1, 2] : vector<1x8x128xf32> to vector<1xf32>
    %696 = vector.shape_cast %695 : vector<1xf32> to vector<1x1x1xf32>
    %697 = vector.extract %696[0, 0, 0] : f32 from vector<1x1x1xf32>
    %cst_271 = arith.constant 1.000000e+00 : f32
    %698 = arith.divf %cst_271, %697 : f32
    %699 = vector.broadcast %698 : f32 to vector<8x128xf32>
    %700 = arith.mulf %693, %699 : vector<8x128xf32>
    %c0_272 = arith.constant 0 : index
    %c0_273 = arith.constant 0 : index
    %701 = vector.load %arg12[%c0_272, %c0_273] : memref<8x128xf32, #tpu.memory_space<vmem>>, vector<8x128xf32>
    tpu.vector_store %arg12[%c0_272, %c0_273], %700 {strides = array<i32>} : memref<8x128xf32, #tpu.memory_space<vmem>>, vector<8x128xf32>,
    return
  }
}

</mosaic_0001>

<llo_original>
// kernel: tpu_custom_call.1
$region0: #{tpu_custom_call.1}
  #allocation0 [shape = 'u32[]', space=smem, size = 0x4, offset = 0x4, fixed_abs, tag = 'smem constant byte address 0x4 - core index']
  #allocation1 [shape = 'u32[144,128]{1,0:T(1,128)}', space=vmem, size = 0x12000, scoped, tag = 'internal scratch']
  #allocation2 [shape = 'f32[8,128]{1,0:T(8,128)}', space=vmem, size = 0x1000, scoped, tag = 'scratch operand']
  #allocation3 [shape = 'f32[8,128]{1,0:T(8,128)}', space=vmem, size = 0x1000, scoped, tag = 'scratch operand']
  #allocation4 [shape = 'f32[8,640]{1,0:T(8,128)}', space=vmem, size = 0x5000, scoped, tag = 'scratch operand']
  %s0 = inlined_call_operand.hbm [shape: s32[16], index: 0, kind: input, shape index: {}]
  %s1 = inlined_call_operand.hbm [shape: f32[8,8], index: 1, kind: input, shape index: {}]
  %s2 = inlined_call_operand.hbm [shape: f32[8,128], index: 2, kind: input, shape index: {}]
  %s3 = inlined_call_operand.hbm [shape: f32[8,640], index: 3, kind: input, shape index: {}]
  %s4 = inlined_call_operand.vmem [shape: f32[1,640], index: 4, kind: input, shape index: {}]
  %s5 = inlined_call_operand.hbm [shape: f32[2,128,640], index: 5, kind: input, shape index: {}]
  %s6 = inlined_call_operand.hbm [shape: f32[128,128], index: 6, kind: input, shape index: {}]
  %s7 = inlined_call_operand.vmem [shape: f32[1,128], index: 7, kind: input, shape index: {}]
  %s8 = inlined_call_operand.hbm [shape: f32[2,128,128], index: 8, kind: input, shape index: {}]
  %s9 = inlined_call_operand.vmem [shape: f32[2,1,128], index: 9, kind: input, shape index: {}]
  %s10 = inlined_call_operand.hbm [shape: f32[128,128], index: 10, kind: input, shape index: {}]
  %s11 = inlined_call_operand.vmem [shape: f32[1,128], index: 11, kind: input, shape index: {}]
  %s12 = inlined_call_operand.hbm [shape: f32[8,128], index: 12, kind: output, shape index: {}]
  %s13 = sld [smem:[#allocation0]]
  $region90: #{tpu_custom_call.1} parent=0
    _
  %s15 = ssub.s32 1, %s13
  %s16 = scalar_select 0, %s15, %s13
  $region1: #{tpu_custom_call.1} parent=0
    #allocation5 [shape = 'u8[512]{0}', space=smem, size = 0x200, scoped, tag = 'input window, operand 0, single buffered']
    #allocation6 [shape = 's32[1]{0}', space=sflag, size = 0x4, scoped, tag = 'scoped memory for tpu_custom_call.1']
    #allocation7 [shape = 's32[1]{0}', space=sflag, size = 0x4, scoped, tag = 'scoped memory for tpu_custom_call.1']
    #allocation8 [shape = 's32[1]{0}', space=sflag, size = 0x4, scoped, tag = 'scoped memory for tpu_custom_call.1']
    #allocation9 [shape = 'u8[4096]{0}', space=vmem, size = 0x1000, scoped, tag = 'input window, operand 1, single buffered']
    #allocation10 [shape = 'u8[4096]{0}', space=vmem, size = 0x1000, scoped, tag = 'input window, operand 2, single buffered']
    #allocation11 [shape = 's32[1]{0}', space=sflag, size = 0x4, scoped, tag = 'scoped memory for tpu_custom_call.1']
    #allocation12 [shape = 'u8[20480]{0}', space=vmem, size = 0x5000, scoped, tag = 'input window, operand 3, single buffered']
    #allocation13 [shape = 'u8[655360]{0}', space=vmem, size = 0xa0000, scoped, tag = 'input window, operand 5, single buffered']
    #allocation14 [shape = 's32[1]{0}', space=sflag, size = 0x4, scoped, tag = 'scoped memory for tpu_custom_call.1']
    #allocation15 [shape = 'u8[65536]{0}', space=vmem, size = 0x10000, scoped, tag = 'input window, operand 6, single buffered']
    #allocation16 [shape = 'u8[131072]{0}', space=vmem, size = 0x20000, scoped, tag = 'input window, operand 8, single buffered']
    #allocation17 [shape = 's32[1]{0}', space=sflag, size = 0x4, scoped, tag = 'scoped memory for tpu_custom_call.1']
    #allocation18 [shape = 'u8[65536]{0}', space=vmem, size = 0x10000, scoped, tag = 'input window, operand 10, single buffered']
    #allocation19 [shape = 'u8[4096]{0}', space=vmem, size = 0x1000, scoped, tag = 'output window, operand 0, single buffered']
    %17 = vsyncpa [#allocation8], 0
    %18 = vsyncpa [#allocation6], 0
    %19 = vsyncpa [#allocation11], 0
    %20 = vsyncpa [#allocation14], 0
    %21 = vsyncpa [#allocation17], 0
    %22 = vsyncpa [#allocation7], 0
    // Predicated region
    $region2: #{tpu_custom_call.1} parent=1 // pred_check
      _
    $region3: #{tpu_custom_call.1} parent=1 // pred_check_branch
      %24 = sbr.rel (0) target = $region5
    $region4: #{tpu_custom_call.1} parent=1 // pred_region
      %s26 = ssub.s32 16, 16
      %27 = vsyncadd [#allocation8], %s26
      %30 = dma.hbm_to_smem %s0, 16, [#allocation5], [#allocation8]
    $region5: #{tpu_custom_call.1} parent=1 // pred_fallthru
      _
    // Predicated region
    $region6: #{tpu_custom_call.1} parent=1 // pred_check
      _
    $region7: #{tpu_custom_call.1} parent=1 // pred_check_branch
      %32 = sbr.rel (0) target = $region9
    $region8: #{tpu_custom_call.1} parent=1 // pred_region
      %s34 = ssub.s32 128, 128
      %35 = vsyncadd [#allocation6], %s34
      %s37 = sshll.u32 [#allocation9], 4
      %s38 = int_to_ptr.vmem [resolvable:$true] %s37
      %40 = dma.hbm_to_vmem [thread:$0]  %s1, 128, %s38, [#allocation6]
    $region9: #{tpu_custom_call.1} parent=1 // pred_fallthru
      _
    // Predicated region
    $region10: #{tpu_custom_call.1} parent=1 // pred_check
      _
    $region11: #{tpu_custom_call.1} parent=1 // pred_check_branch
      %42 = sbr.rel (0) target = $region13
    $region12: #{tpu_custom_call.1} parent=1 // pred_region
      %s44 = ssub.s32 128, 128
      %45 = vsyncadd [#allocation11], %s44
      %s47 = sshll.u32 [#allocation10], 4
      %s48 = int_to_ptr.vmem [resolvable:$true] %s47
      %50 = dma.hbm_to_vmem [thread:$0]  %s2, 128, %s48, [#allocation11]
    $region13: #{tpu_custom_call.1} parent=1 // pred_fallthru
      _
    // Predicated region
    $region14: #{tpu_custom_call.1} parent=1 // pred_check
      _
    $region15: #{tpu_custom_call.1} parent=1 // pred_check_branch
      %52 = sbr.rel (0) target = $region17
    $region16: #{tpu_custom_call.1} parent=1 // pred_region
      %s54 = ssub.s32 640, 640
      %55 = vsyncadd [#allocation11], %s54
      %s57 = sshll.u32 [#allocation12], 4
      %s58 = int_to_ptr.vmem [resolvable:$true] %s57
      %60 = dma.hbm_to_vmem [thread:$0]  %s3, 640, %s58, [#allocation11]
    $region17: #{tpu_custom_call.1} parent=1 // pred_fallthru
      _
    // Predicated region
    $region18: #{tpu_custom_call.1} parent=1 // pred_check
      _
    $region19: #{tpu_custom_call.1} parent=1 // pred_check_branch
      %62 = sbr.rel (0) target = $region21
    $region20: #{tpu_custom_call.1} parent=1 // pred_region
      _
    $region21: #{tpu_custom_call.1} parent=1 // pred_fallthru
      _
    // Predicated region
    $region22: #{tpu_custom_call.1} parent=1 // pred_check
      _
    $region23: #{tpu_custom_call.1} parent=1 // pred_check_branch
      %64 = sbr.rel (0) target = $region25
    $region24: #{tpu_custom_call.1} parent=1 // pred_region
      %s66 = ssub.s32 20480, 20480
      %67 = vsyncadd [#allocation14], %s66
      %s68 = sshll.u32 [#allocation13], 4
      %s69 = int_to_ptr.vmem [resolvable:$true] %s68
      %74 = dma.hbm_to_vmem [thread:$0]  %s5, 20480, %s69, [#allocation14], 640, 640, 40
    $region25: #{tpu_custom_call.1} parent=1 // pred_fallthru
      _
    // Predicated region
    $region26: #{tpu_custom_call.1} parent=1 // pred_check
      _
    $region27: #{tpu_custom_call.1} parent=1 // pred_check_branch
      %76 = sbr.rel (0) target = $region29
    $region28: #{tpu_custom_call.1} parent=1 // pred_region
      %s78 = ssub.s32 2048, 2048
      %79 = vsyncadd [#allocation14], %s78
      %s80 = sshll.u32 [#allocation15], 4
      %s81 = int_to_ptr.vmem [resolvable:$true] %s80
      %86 = dma.hbm_to_vmem [thread:$0]  %s6, 2048, %s81, [#allocation14], 128, 128, 8
    $region29: #{tpu_custom_call.1} parent=1 // pred_fallthru
      _
    // Predicated region
    $region30: #{tpu_custom_call.1} parent=1 // pred_check
      _
    $region31: #{tpu_custom_call.1} parent=1 // pred_check_branch
      %88 = sbr.rel (0) target = $region33
    $region32: #{tpu_custom_call.1} parent=1 // pred_region
      _
    $region33: #{tpu_custom_call.1} parent=1 // pred_fallthru
      _
    // Predicated region
    $region34: #{tpu_custom_call.1} parent=1 // pred_check
      _
    $region35: #{tpu_custom_call.1} parent=1 // pred_check_branch
      %90 = sbr.rel (0) target = $region37
    $region36: #{tpu_custom_call.1} parent=1 // pred_region
      %s92 = ssub.s32 4096, 4096
      %93 = vsyncadd [#allocation17], %s92
      %s94 = sshll.u32 [#allocation16], 4
      %s95 = int_to_ptr.vmem [resolvable:$true] %s94
      %100 = dma.hbm_to_vmem [thread:$0]  %s8, 4096, %s95, [#allocation17], 128, 128, 8
    $region37: #{tpu_custom_call.1} parent=1 // pred_fallthru
      _
    // Predicated region
    $region38: #{tpu_custom_call.1} parent=1 // pred_check
      _
    $region39: #{tpu_custom_call.1} parent=1 // pred_check_branch
      %102 = sbr.rel (0) target = $region41
    $region40: #{tpu_custom_call.1} parent=1 // pred_region
      _
    $region41: #{tpu_custom_call.1} parent=1 // pred_fallthru
      _
    // Predicated region
    $region42: #{tpu_custom_call.1} parent=1 // pred_check
      _
    $region43: #{tpu_custom_call.1} parent=1 // pred_check_branch
      %104 = sbr.rel (0) target = $region45
    $region44: #{tpu_custom_call.1} parent=1 // pred_region
      %s106 = ssub.s32 2048, 2048
      %107 = vsyncadd [#allocation17], %s106
      %s108 = sshll.u32 [#allocation18], 4
      %s109 = int_to_ptr.vmem [resolvable:$true] %s108
      %114 = dma.hbm_to_vmem [thread:$0]  %s10, 2048, %s109, [#allocation17], 128, 128, 8
    $region45: #{tpu_custom_call.1} parent=1 // pred_fallthru
      _
    // Predicated region
    $region46: #{tpu_custom_call.1} parent=1 // pred_check
      _
    $region47: #{tpu_custom_call.1} parent=1 // pred_check_branch
      %116 = sbr.rel (0) target = $region49
    $region48: #{tpu_custom_call.1} parent=1 // pred_region
      _
    $region49: #{tpu_custom_call.1} parent=1 // pred_fallthru
      _
    // Predicated region
    $region50: #{tpu_custom_call.1} parent=1 // pred_check
      _
    $region51: #{tpu_custom_call.1} parent=1 // pred_check_branch
      %118 = sbr.rel (0) target = $region53
    $region52: #{tpu_custom_call.1} parent=1 // pred_region
      %119 = dma.done [#allocation8], 16
    $region53: #{tpu_custom_call.1} parent=1 // pred_fallthru
      _
    // Predicated region
    $region54: #{tpu_custom_call.1} parent=1 // pred_check
      _
    $region55: #{tpu_custom_call.1} parent=1 // pred_check_branch
      %121 = sbr.rel (0) target = $region57
    $region56: #{tpu_custom_call.1} parent=1 // pred_region
      %122 = dma.done [#allocation6], 128
    $region57: #{tpu_custom_call.1} parent=1 // pred_fallthru
      _
    // Predicated region
    $region58: #{tpu_custom_call.1} parent=1 // pred_check
      _
    $region59: #{tpu_custom_call.1} parent=1 // pred_check_branch
      %124 = sbr.rel (0) target = $region61
    $region60: #{tpu_custom_call.1} parent=1 // pred_region
      %125 = dma.done [#allocation11], 128
    $region61: #{tpu_custom_call.1} parent=1 // pred_fallthru
      _
    // Predicated region
    $region62: #{tpu_custom_call.1} parent=1 // pred_check
      _
    $region63: #{tpu_custom_call.1} parent=1 // pred_check_branch
      %127 = sbr.rel (0) target = $region65
    $region64: #{tpu_custom_call.1} parent=1 // pred_region
      %128 = dma.done [#allocation11], 640
    $region65: #{tpu_custom_call.1} parent=1 // pred_fallthru
      _
    // Predicated region
    $region66: #{tpu_custom_call.1} parent=1 // pred_check
      _
    $region67: #{tpu_custom_call.1} parent=1 // pred_check_branch
      %130 = sbr.rel (0) target = $region69
    $region68: #{tpu_custom_call.1} parent=1 // pred_region
      %131 = dma.done [#allocation14], 20480
    $region69: #{tpu_custom_call.1} parent=1 // pred_fallthru
      _
    // Predicated region
    $region70: #{tpu_custom_call.1} parent=1 // pred_check
      _
    $region71: #{tpu_custom_call.1} parent=1 // pred_check_branch
      %133 = sbr.rel (0) target = $region73
    $region72: #{tpu_custom_call.1} parent=1 // pred_region
      %134 = dma.done [#allocation14], 2048
    $region73: #{tpu_custom_call.1} parent=1 // pred_fallthru
      _
    // Predicated region
    $region74: #{tpu_custom_call.1} parent=1 // pred_check
      _
    $region75: #{tpu_custom_call.1} parent=1 // pred_check_branch
      %136 = sbr.rel (0) target = $region77
    $region76: #{tpu_custom_call.1} parent=1 // pred_region
      %137 = dma.done [#allocation17], 4096
    $region77: #{tpu_custom_call.1} parent=1 // pred_fallthru
      _
    // Predicated region
    $region78: #{tpu_custom_call.1} parent=1 // pred_check
      _
    $region79: #{tpu_custom_call.1} parent=1 // pred_check_branch
      %139 = sbr.rel (0) target = $region81
    $region80: #{tpu_custom_call.1} parent=1 // pred_region
      %140 = dma.done [#allocation17], 2048
    $region81: #{tpu_custom_call.1} parent=1 // pred_fallthru
      _
    %141 = sfence
    %142 = vst [vmem:[#allocation2] sm:$0xff] 0.0
    %143 = vst [vmem:[#allocation3] sm:$0xff] 0.0
    %v144 = vld [vmem:[#allocation9] sm:$0xff]
    %v145 = vld [vmem:[#allocation12] sm:$0xff]
    %v146 = vld [vmem:[#allocation12 + $0x8] sm:$0xff]
    %v147 = vld [vmem:[#allocation12 + $0x10] sm:$0xff]
    %v148 = vld [vmem:[#allocation12 + $0x18] sm:$0xff]
    %v149 = vld [vmem:[#allocation12 + $0x20] sm:$0xff]
    %v150 = vld [vmem:[%s4] sm:$0x1f]
    %v152 = vlaneseq
    %v153 = vshrl.u32 %v152, 7
    %v154 = vsub.s32 0, %v153
    %v155 = vrot.slane %v150, %v154
    %v156 = vlaneseq
    %v157 = vshrl.u32 %v156, 7
    %v158 = vsub.s32 1, %v157
    %v159 = vrot.slane %v150, %v158
    %v160 = vlaneseq
    %v161 = vshrl.u32 %v160, 7
    %v162 = vsub.s32 2, %v161
    %v163 = vrot.slane %v150, %v162
    %v164 = vlaneseq
    %v165 = vshrl.u32 %v164, 7
    %v166 = vsub.s32 3, %v165
    %v167 = vrot.slane %v150, %v166
    %v168 = vlaneseq
    %v169 = vshrl.u32 %v168, 7
    %v170 = vsub.s32 4, %v169
    %v171 = vrot.slane %v150, %v170
    %vm177 = vcmask 64512
    %v179 = vsel %vm177, %v144, 0
    %181 = vmatprep.subr.mxu0 %v146
    %182 = vmatpush1.msra.mxu0 %v145
    %183 = vmatprep.subr.mxu0 0.0
    %184 = vmatpush1.msra.mxu0 0.0
    %185 = vmatprep.subr.mxu0 0.0
    %186 = vmatpush1.msra.mxu0 0.0
    %187 = vmatprep.subr.mxu0 0.0
    %188 = vmatpush1.msra.mxu0 0.0
    %189 = vmatprep.subr.mxu0 0.0
    %190 = vmatpush1.msra.mxu0 0.0
    %191 = vmatprep.subr.mxu0 0.0
    %192 = vmatpush1.msra.mxu0 0.0
    %193 = vmatprep.subr.mxu0 0.0
    %194 = vmatpush1.msra.mxu0 0.0
    %195 = vmatprep.subr.mxu0 0.0
    %196 = vmatpush1.msra.mxu0 0.0
    %197 = vmatprep.subr.mxu0 0.0
    %198 = vmatpush1.msra.mxu0 0.0
    %199 = vmatprep.subr.mxu0 0.0
    %200 = vmatpush1.msra.mxu0 0.0
    %201 = vmatprep.subr.mxu0 0.0
    %202 = vmatpush1.msra.mxu0 0.0
    %203 = vmatprep.subr.mxu0 0.0
    %204 = vmatpush1.msra.mxu0 0.0
    %205 = vmatprep.subr.mxu0 0.0
    %206 = vmatpush1.msra.mxu0 0.0
    %207 = vmatprep.subr.mxu0 0.0
    %208 = vmatpush1.msra.mxu0 0.0
    %209 = vmatprep.subr.mxu0 0.0
    %210 = vmatpush1.msra.mxu0 0.0
    %211 = vmatprep.subr.mxu0 0.0
    %212 = vmatpush1.msra.mxu0 0.0
    %213 = vmatprep.subr.mxu0 0.0
    %214 = vmatpush1.msra.mxu0 0.0
    %215 = vmatprep.subr.mxu0 0.0
    %216 = vmatpush1.msra.mxu0 0.0
    %217 = vmatprep.subr.mxu0 0.0
    %218 = vmatpush1.msra.mxu0 0.0
    %219 = vmatprep.subr.mxu0 0.0
    %220 = vmatpush1.msra.mxu0 0.0
    %221 = vmatprep.subr.mxu0 0.0
    %222 = vmatpush1.msra.mxu0 0.0
    %223 = vmatprep.subr.mxu0 0.0
    %224 = vmatpush1.msra.mxu0 0.0
    %225 = vmatprep.subr.mxu0 0.0
    %226 = vmatpush1.msra.mxu0 0.0
    %227 = vmatprep.subr.mxu0 0.0
    %228 = vmatpush1.msra.mxu0 0.0
    %229 = vmatprep.subr.mxu0 0.0
    %230 = vmatpush1.msra.mxu0 0.0
    %231 = vmatprep.subr.mxu0 0.0
    %232 = vmatpush1.msra.mxu0 0.0
    %233 = vmatprep.subr.mxu0 0.0
    %234 = vmatpush1.msra.mxu0 0.0
    %235 = vmatprep.subr.mxu0 0.0
    %236 = vmatpush1.msra.mxu0 0.0
    %237 = vmatprep.subr.mxu0 0.0
    %238 = vmatpush1.msra.mxu0 0.0
    %239 = vmatprep.subr.mxu0 0.0
    %240 = vmatpush1.msra.mxu0 0.0
    %241 = vmatprep.subr.mxu0 0.0
    %242 = vmatpush1.msra.mxu0 0.0
    %243 = vmatprep.subr.mxu0 0.0
    %244 = vmatpush1.msra.mxu0 0.0
    %245 = vmatprep.mubr.f32.mxu0 0.0
    %246 = vmatmul.mubr.f32.gmra.mrb[0].mxu0 %v179
    %v247 = vpop.f32.mrb[0].mxu0
    %v248 = vadd.f32 %v155, %v247
    %v249 = vpop.f32.mrb[0].mxu0
    %v250 = vadd.f32 %v159, %v249
    %251 = vdwg.mxu0
    %252 = vmatprep.subr.mxu0 %v148
    %253 = vmatpush1.msra.mxu0 %v147
    %254 = vmatprep.subr.mxu0 0.0
    %255 = vmatpush1.msra.mxu0 0.0
    %256 = vmatprep.subr.mxu0 0.0
    %257 = vmatpush1.msra.mxu0 0.0
    %258 = vmatprep.subr.mxu0 0.0
    %259 = vmatpush1.msra.mxu0 0.0
    %260 = vmatprep.subr.mxu0 0.0
    %261 = vmatpush1.msra.mxu0 0.0
    %262 = vmatprep.subr.mxu0 0.0
    %263 = vmatpush1.msra.mxu0 0.0
    %264 = vmatprep.subr.mxu0 0.0
    %265 = vmatpush1.msra.mxu0 0.0
    %266 = vmatprep.subr.mxu0 0.0
    %267 = vmatpush1.msra.mxu0 0.0
    %268 = vmatprep.subr.mxu0 0.0
    %269 = vmatpush1.msra.mxu0 0.0
    %270 = vmatprep.subr.mxu0 0.0
    %271 = vmatpush1.msra.mxu0 0.0
    %272 = vmatprep.subr.mxu0 0.0
    %273 = vmatpush1.msra.mxu0 0.0
    %274 = vmatprep.subr.mxu0 0.0
    %275 = vmatpush1.msra.mxu0 0.0
    %276 = vmatprep.subr.mxu0 0.0
    %277 = vmatpush1.msra.mxu0 0.0
    %278 = vmatprep.subr.mxu0 0.0
    %279 = vmatpush1.msra.mxu0 0.0
    %280 = vmatprep.subr.mxu0 0.0
    %281 = vmatpush1.msra.mxu0 0.0
    %282 = vmatprep.subr.mxu0 0.0
    %283 = vmatpush1.msra.mxu0 0.0
    %284 = vmatprep.subr.mxu0 0.0
    %285 = vmatpush1.msra.mxu0 0.0
    %286 = vmatprep.subr.mxu0 0.0
    %287 = vmatpush1.msra.mxu0 0.0
    %288 = vmatprep.subr.mxu0 0.0
    %289 = vmatpush1.msra.mxu0 0.0
    %290 = vmatprep.subr.mxu0 0.0
    %291 = vmatpush1.msra.mxu0 0.0
    %292 = vmatprep.subr.mxu0 0.0
    %293 = vmatpush1.msra.mxu0 0.0
    %294 = vmatprep.subr.mxu0 0.0
    %295 = vmatpush1.msra.mxu0 0.0
    %296 = vmatprep.subr.mxu0 0.0
    %297 = vmatpush1.msra.mxu0 0.0
    %298 = vmatprep.subr.mxu0 0.0
    %299 = vmatpush1.msra.mxu0 0.0
    %300 = vmatprep.subr.mxu0 0.0
    %301 = vmatpush1.msra.mxu0 0.0
    %302 = vmatprep.subr.mxu0 0.0
    %303 = vmatpush1.msra.mxu0 0.0
    %304 = vmatprep.subr.mxu0 0.0
    %305 = vmatpush1.msra.mxu0 0.0
    %306 = vmatprep.subr.mxu0 0.0
    %307 = vmatpush1.msra.mxu0 0.0
    %308 = vmatprep.subr.mxu0 0.0
    %309 = vmatpush1.msra.mxu0 0.0
    %310 = vmatprep.subr.mxu0 0.0
    %311 = vmatpush1.msra.mxu0 0.0
    %312 = vmatprep.subr.mxu0 0.0
    %313 = vmatpush1.msra.mxu0 0.0
    %314 = vmatprep.subr.mxu0 0.0
    %315 = vmatpush1.msra.mxu0 0.0
    %316 = vmatprep.mubr.f32.mxu0 0.0
    %317 = vmatmul.mubr.f32.gmra.mrb[0].mxu0 %v179
    %v318 = vpop.f32.mrb[0].mxu0
    %v319 = vadd.f32 %v163, %v318
    %v320 = vpop.f32.mrb[0].mxu0
    %v321 = vadd.f32 %v167, %v320
    %322 = vdwg.mxu0
    %323 = vmatprep.subr.mxu0 0.0
    %324 = vmatpush1.msra.mxu0 %v149
    %325 = vmatprep.subr.mxu0 0.0
    %326 = vmatpush1.msra.mxu0 0.0
    %327 = vmatprep.subr.mxu0 0.0
    %328 = vmatpush1.msra.mxu0 0.0
    %329 = vmatprep.subr.mxu0 0.0
    %330 = vmatpush1.msra.mxu0 0.0
    %331 = vmatprep.subr.mxu0 0.0
    %332 = vmatpush1.msra.mxu0 0.0
    %333 = vmatprep.subr.mxu0 0.0
    %334 = vmatpush1.msra.mxu0 0.0
    %335 = vmatprep.subr.mxu0 0.0
    %336 = vmatpush1.msra.mxu0 0.0
    %337 = vmatprep.subr.mxu0 0.0
    %338 = vmatpush1.msra.mxu0 0.0
    %339 = vmatprep.subr.mxu0 0.0
    %340 = vmatpush1.msra.mxu0 0.0
    %341 = vmatprep.subr.mxu0 0.0
    %342 = vmatpush1.msra.mxu0 0.0
    %343 = vmatprep.subr.mxu0 0.0
    %344 = vmatpush1.msra.mxu0 0.0
    %345 = vmatprep.subr.mxu0 0.0
    %346 = vmatpush1.msra.mxu0 0.0
    %347 = vmatprep.subr.mxu0 0.0
    %348 = vmatpush1.msra.mxu0 0.0
    %349 = vmatprep.subr.mxu0 0.0
    %350 = vmatpush1.msra.mxu0 0.0
    %351 = vmatprep.subr.mxu0 0.0
    %352 = vmatpush1.msra.mxu0 0.0
    %353 = vmatprep.subr.mxu0 0.0
    %354 = vmatpush1.msra.mxu0 0.0
    %355 = vmatprep.subr.mxu0 0.0
    %356 = vmatpush1.msra.mxu0 0.0
    %357 = vmatprep.subr.mxu0 0.0
    %358 = vmatpush1.msra.mxu0 0.0
    %359 = vmatprep.subr.mxu0 0.0
    %360 = vmatpush1.msra.mxu0 0.0
    %361 = vmatprep.subr.mxu0 0.0
    %362 = vmatpush1.msra.mxu0 0.0
    %363 = vmatprep.subr.mxu0 0.0
    %364 = vmatpush1.msra.mxu0 0.0
    %365 = vmatprep.subr.mxu0 0.0
    %366 = vmatpush1.msra.mxu0 0.0
    %367 = vmatprep.subr.mxu0 0.0
    %368 = vmatpush1.msra.mxu0 0.0
    %369 = vmatprep.subr.mxu0 0.0
    %370 = vmatpush1.msra.mxu0 0.0
    %371 = vmatprep.subr.mxu0 0.0
    %372 = vmatpush1.msra.mxu0 0.0
    %373 = vmatprep.subr.mxu0 0.0
    %374 = vmatpush1.msra.mxu0 0.0
    %375 = vmatprep.subr.mxu0 0.0
    %376 = vmatpush1.msra.mxu0 0.0
    %377 = vmatprep.subr.mxu0 0.0
    %378 = vmatpush1.msra.mxu0 0.0
    %379 = vmatprep.subr.mxu0 0.0
    %380 = vmatpush1.msra.mxu0 0.0
    %381 = vmatprep.subr.mxu0 0.0
    %382 = vmatpush1.msra.mxu0 0.0
    %383 = vmatprep.subr.mxu0 0.0
    %384 = vmatpush1.msra.mxu0 0.0
    %385 = vmatprep.subr.mxu0 0.0
    %386 = vmatpush1.msra.mxu0 0.0
    %387 = vmatprep.mubr.f32.mxu0 0.0
    %388 = vmatmul.mubr.f32.gmra.mrb[0].mxu0 %v179
    %v389 = vpop.f32.mrb[0].mxu0
    %v390 = vadd.f32 %v171, %v389
    %v391 = vpop.f32.mrb[0].mxu0
    %392 = vdwg.mxu0
    %393 = vst [vmem:[#allocation4] sm:$0xff] %v248
    %394 = vst [vmem:[#allocation4 + $0x8] sm:$0xff] %v250
    %395 = vst [vmem:[#allocation4 + $0x10] sm:$0xff] %v319
    %396 = vst [vmem:[#allocation4 + $0x18] sm:$0xff] %v321
    %397 = vst [vmem:[#allocation4 + $0x20] sm:$0xff] %v390
    %s398 = sld [smem:[#allocation5 + $0xe]]
    %p399 = scmp.ge.s32.totalorder %s398, 0
    %s400 = scalar_select %p399, 1, 0
    %s401 = scvt.s32.f32 %s400
    %p402 = scmp.gt.s32.totalorder %s398, 0
    %s403 = scalar_select %p402, %s398, 0
    %s404 = scalar_lea.vmem [#allocation2], %s403
    %v405 = vld [vmem:[%s404] sm:$0x1]
    %v406 = vstv %s401
    %v407 = vmul.f32 %v405, %v406
    %s408 = scalar_lea.vmem [#allocation3], %s403
    %v409 = vld [vmem:[%s408] sm:$0x1]
    %v410 = vmul.f32 %v409, %v406
    %s411 = sld [smem:[#allocation5 + $0xf]]
    %p412 = scmp.ge.s32.totalorder %s411, 0
    %s413 = scalar_select %p412, 1, 0
    %s414 = scvt.s32.f32 %s413
    %p415 = scmp.gt.s32.totalorder %s411, 0
    %s416 = scalar_select %p415, %s411, 0
    %s417 = scalar_lea.vmem [#allocation2], %s416
    %v418 = vld [vmem:[%s417] sm:$0x1]
    %v419 = vstv %s414
    %v420 = vmul.f32 %v418, %v419
    %s421 = scalar_lea.vmem [#allocation3], %s416
    %v422 = vld [vmem:[%s421] sm:$0x1]
    %v423 = vmul.f32 %v422, %v419
    %s424 = scalar_lea.vmem [#allocation4], 7
    %v425 = vld [vmem:[%s424] ss:$8 sm:$0xf]
    %v426 = vld [vmem:[%s424] ss:$8 sm:$0x10]
    %v427 = vor.u32 %v425, %v426
    %v428 = vld [vmem:[#allocation13] sm:$0xff]
    %v429 = vld [vmem:[#allocation13 + $0x8] sm:$0xff]
    %v430 = vld [vmem:[#allocation13 + $0x10] sm:$0xff]
    %v431 = vld [vmem:[#allocation13 + $0x18] sm:$0xff]
    %v432 = vld [vmem:[#allocation13 + $0x20] sm:$0xff]
    %v433 = vld [vmem:[#allocation13 + $0x28] sm:$0xff]
    %v434 = vld [vmem:[#allocation13 + $0x30] sm:$0xff]
    %v435 = vld [vmem:[#allocation13 + $0x38] sm:$0xff]
    %v436 = vld [vmem:[#allocation13 + $0x40] sm:$0xff]
    %v437 = vld [vmem:[#allocation13 + $0x48] sm:$0xff]
    %v438 = vld [vmem:[#allocation13 + $0x50] sm:$0xff]
    %v439 = vld [vmem:[#allocation13 + $0x58] sm:$0xff]
    %v440 = vld [vmem:[#allocation13 + $0x60] sm:$0xff]
    %v441 = vld [vmem:[#allocation13 + $0x68] sm:$0xff]
    %v442 = vld [vmem:[#allocation13 + $0x70] sm:$0xff]
    %v443 = vld [vmem:[#allocation13 + $0x78] sm:$0xff]
    %v444 = vld [vmem:[#allocation13 + $0x80] sm:$0xff]
    %v445 = vld [vmem:[#allocation13 + $0x88] sm:$0xff]
    %v446 = vld [vmem:[#allocation13 + $0x90] sm:$0xff]
    %v447 = vld [vmem:[#allocation13 + $0x98] sm:$0xff]
    %v448 = vld [vmem:[#allocation13 + $0xa0] sm:$0xff]
    %v449 = vld [vmem:[#allocation13 + $0xa8] sm:$0xff]
    %v450 = vld [vmem:[#allocation13 + $0xb0] sm:$0xff]
    %v451 = vld [vmem:[#allocation13 + $0xb8] sm:$0xff]
    %v452 = vld [vmem:[#allocation13 + $0xc0] sm:$0xff]
    %v453 = vld [vmem:[#allocation13 + $0xc8] sm:$0xff]
    %v454 = vld [vmem:[#allocation13 + $0xd0] sm:$0xff]
    %v455 = vld [vmem:[#allocation13 + $0xd8] sm:$0xff]
    %v456 = vld [vmem:[#allocation13 + $0xe0] sm:$0xff]
    %v457 = vld [vmem:[#allocation13 + $0xe8] sm:$0xff]
    %v458 = vld [vmem:[#allocation13 + $0xf0] sm:$0xff]
    %v459 = vld [vmem:[#allocation13 + $0xf8] sm:$0xff]
    %v460 = vld [vmem:[#allocation13 + $0x100] sm:$0xff]
    %v461 = vld [vmem:[#allocation13 + $0x108] sm:$0xff]
    %v462 = vld [vmem:[#allocation13 + $0x110] sm:$0xff]
    %v463 = vld [vmem:[#allocation13 + $0x118] sm:$0xff]
    %v464 = vld [vmem:[#allocation13 + $0x120] sm:$0xff]
    %v465 = vld [vmem:[#allocation13 + $0x128] sm:$0xff]
    %v466 = vld [vmem:[#allocation13 + $0x130] sm:$0xff]
    %v467 = vld [vmem:[#allocation13 + $0x138] sm:$0xff]
    %v468 = vld [vmem:[#allocation13 + $0x140] sm:$0xff]
    %v469 = vld [vmem:[#allocation13 + $0x148] sm:$0xff]
    %v470 = vld [vmem:[#allocation13 + $0x150] sm:$0xff]
    %v471 = vld [vmem:[#allocation13 + $0x158] sm:$0xff]
    %v472 = vld [vmem:[#allocation13 + $0x160] sm:$0xff]
    %v473 = vld [vmem:[#allocation13 + $0x168] sm:$0xff]
    %v474 = vld [vmem:[#allocation13 + $0x170] sm:$0xff]
    %v475 = vld [vmem:[#allocation13 + $0x178] sm:$0xff]
    %v476 = vld [vmem:[#allocation13 + $0x180] sm:$0xff]
    %v477 = vld [vmem:[#allocation13 + $0x188] sm:$0xff]
    %v478 = vld [vmem:[#allocation13 + $0x190] sm:$0xff]
    %v479 = vld [vmem:[#allocation13 + $0x198] sm:$0xff]
    %v480 = vld [vmem:[#allocation13 + $0x1a0] sm:$0xff]
    %v481 = vld [vmem:[#allocation13 + $0x1a8] sm:$0xff]
    %v482 = vld [vmem:[#allocation13 + $0x1b0] sm:$0xff]
    %v483 = vld [vmem:[#allocation13 + $0x1b8] sm:$0xff]
    %v484 = vld [vmem:[#allocation13 + $0x1c0] sm:$0xff]
    %v485 = vld [vmem:[#allocation13 + $0x1c8] sm:$0xff]
    %v486 = vld [vmem:[#allocation13 + $0x1d0] sm:$0xff]
    %v487 = vld [vmem:[#allocation13 + $0x1d8] sm:$0xff]
    %v488 = vld [vmem:[#allocation13 + $0x1e0] sm:$0xff]
    %v489 = vld [vmem:[#allocation13 + $0x1e8] sm:$0xff]
    %v490 = vld [vmem:[#allocation13 + $0x1f0] sm:$0xff]
    %v491 = vld [vmem:[#allocation13 + $0x1f8] sm:$0xff]
    %v492 = vld [vmem:[#allocation13 + $0x200] sm:$0xff]
    %v493 = vld [vmem:[#allocation13 + $0x208] sm:$0xff]
    %v494 = vld [vmem:[#allocation13 + $0x210] sm:$0xff]
    %v495 = vld [vmem:[#allocation13 + $0x218] sm:$0xff]
    %v496 = vld [vmem:[#allocation13 + $0x220] sm:$0xff]
    %v497 = vld [vmem:[#allocation13 + $0x228] sm:$0xff]
    %v498 = vld [vmem:[#allocation13 + $0x230] sm:$0xff]
    %v499 = vld [vmem:[#allocation13 + $0x238] sm:$0xff]
    %v500 = vld [vmem:[#allocation13 + $0x240] sm:$0xff]
    %v501 = vld [vmem:[#allocation13 + $0x248] sm:$0xff]
    %v502 = vld [vmem:[#allocation13 + $0x250] sm:$0xff]
    %v503 = vld [vmem:[#allocation13 + $0x258] sm:$0xff]
    %v504 = vld [vmem:[#allocation13 + $0x260] sm:$0xff]
    %v505 = vld [vmem:[#allocation13 + $0x268] sm:$0xff]
    %v506 = vld [vmem:[#allocation13 + $0x270] sm:$0xff]
    %v507 = vld [vmem:[#allocation13 + $0x278] sm:$0xff]
    %508 = vmatprep.subr.mxu0 %v429
    %509 = vmatpush1.msra.mxu0 %v428
    %510 = vmatprep.subr.mxu0 %v434
    %511 = vmatpush1.msra.mxu0 %v433
    %512 = vmatprep.subr.mxu0 %v439
    %513 = vmatpush1.msra.mxu0 %v438
    %514 = vmatprep.subr.mxu0 %v444
    %515 = vmatpush1.msra.mxu0 %v443
    %516 = vmatprep.subr.mxu0 %v449
    %517 = vmatpush1.msra.mxu0 %v448
    %518 = vmatprep.subr.mxu0 %v454
    %519 = vmatpush1.msra.mxu0 %v453
    %520 = vmatprep.subr.mxu0 %v459
    %521 = vmatpush1.msra.mxu0 %v458
    %522 = vmatprep.subr.mxu0 %v464
    %523 = vmatpush1.msra.mxu0 %v463
    %524 = vmatprep.subr.mxu0 %v469
    %525 = vmatpush1.msra.mxu0 %v468
    %526 = vmatprep.subr.mxu0 %v474
    %527 = vmatpush1.msra.mxu0 %v473
    %528 = vmatprep.subr.mxu0 %v479
    %529 = vmatpush1.msra.mxu0 %v478
    %530 = vmatprep.subr.mxu0 %v484
    %531 = vmatpush1.msra.mxu0 %v483
    %532 = vmatprep.subr.mxu0 %v489
    %533 = vmatpush1.msra.mxu0 %v488
    %534 = vmatprep.subr.mxu0 %v494
    %535 = vmatpush1.msra.mxu0 %v493
    %536 = vmatprep.subr.mxu0 %v499
    %537 = vmatpush1.msra.mxu0 %v498
    %538 = vmatprep.subr.mxu0 %v504
    %539 = vmatpush1.msra.mxu0 %v503
    %540 = vmatprep.subr.mxu0 0.0
    %541 = vmatpush1.msra.mxu0 0.0
    %542 = vmatprep.subr.mxu0 0.0
    %543 = vmatpush1.msra.mxu0 0.0
    %544 = vmatprep.subr.mxu0 0.0
    %545 = vmatpush1.msra.mxu0 0.0
    %546 = vmatprep.subr.mxu0 0.0
    %547 = vmatpush1.msra.mxu0 0.0
    %548 = vmatprep.subr.mxu0 0.0
    %549 = vmatpush1.msra.mxu0 0.0
    %550 = vmatprep.subr.mxu0 0.0
    %551 = vmatpush1.msra.mxu0 0.0
    %552 = vmatprep.subr.mxu0 0.0
    %553 = vmatpush1.msra.mxu0 0.0
    %554 = vmatprep.subr.mxu0 0.0
    %555 = vmatpush1.msra.mxu0 0.0
    %556 = vmatprep.subr.mxu0 0.0
    %557 = vmatpush1.msra.mxu0 0.0
    %558 = vmatprep.subr.mxu0 0.0
    %559 = vmatpush1.msra.mxu0 0.0
    %560 = vmatprep.subr.mxu0 0.0
    %561 = vmatpush1.msra.mxu0 0.0
    %562 = vmatprep.subr.mxu0 0.0
    %563 = vmatpush1.msra.mxu0 0.0
    %564 = vmatprep.subr.mxu0 0.0
    %565 = vmatpush1.msra.mxu0 0.0
    %566 = vmatprep.subr.mxu0 0.0
    %567 = vmatpush1.msra.mxu0 0.0
    %568 = vmatprep.subr.mxu0 0.0
    %569 = vmatpush1.msra.mxu0 0.0
    %570 = vmatprep.subr.mxu0 0.0
    %571 = vmatpush1.msra.mxu0 0.0
    %572 = vmatprep.mubr.f32.mxu0 0.0
    %573 = vmatmul.mubr.f32.gmra.mrb[0].mxu0 %v407
    %v574 = vpop.f32.mrb[0].mxu0
    %v575 = vadd.f32 0.0, %v574
    %v576 = vpop.f32.mrb[0].mxu0
    %v577 = vadd.f32 0.0, %v576
    %578 = vdwg.mxu0
    %579 = vmatprep.subr.mxu0 %v431
    %580 = vmatpush1.msra.mxu0 %v430
    %581 = vmatprep.subr.mxu0 %v436
    %582 = vmatpush1.msra.mxu0 %v435
    %583 = vmatprep.subr.mxu0 %v441
    %584 = vmatpush1.msra.mxu0 %v440
    %585 = vmatprep.subr.mxu0 %v446
    %586 = vmatpush1.msra.mxu0 %v445
    %587 = vmatprep.subr.mxu0 %v451
    %588 = vmatpush1.msra.mxu0 %v450
    %589 = vmatprep.subr.mxu0 %v456
    %590 = vmatpush1.msra.mxu0 %v455
    %591 = vmatprep.subr.mxu0 %v461
    %592 = vmatpush1.msra.mxu0 %v460
    %593 = vmatprep.subr.mxu0 %v466
    %594 = vmatpush1.msra.mxu0 %v465
    %595 = vmatprep.subr.mxu0 %v471
    %596 = vmatpush1.msra.mxu0 %v470
    %597 = vmatprep.subr.mxu0 %v476
    %598 = vmatpush1.msra.mxu0 %v475
    %599 = vmatprep.subr.mxu0 %v481
    %600 = vmatpush1.msra.mxu0 %v480
    %601 = vmatprep.subr.mxu0 %v486
    %602 = vmatpush1.msra.mxu0 %v485
    %603 = vmatprep.subr.mxu0 %v491
    %604 = vmatpush1.msra.mxu0 %v490
    %605 = vmatprep.subr.mxu0 %v496
    %606 = vmatpush1.msra.mxu0 %v495
    %607 = vmatprep.subr.mxu0 %v501
    %608 = vmatpush1.msra.mxu0 %v500
    %609 = vmatprep.subr.mxu0 %v506
    %610 = vmatpush1.msra.mxu0 %v505
    %611 = vmatprep.subr.mxu0 0.0
    %612 = vmatpush1.msra.mxu0 0.0
    %613 = vmatprep.subr.mxu0 0.0
    %614 = vmatpush1.msra.mxu0 0.0
    %615 = vmatprep.subr.mxu0 0.0
    %616 = vmatpush1.msra.mxu0 0.0
    %617 = vmatprep.subr.mxu0 0.0
    %618 = vmatpush1.msra.mxu0 0.0
    %619 = vmatprep.subr.mxu0 0.0
    %620 = vmatpush1.msra.mxu0 0.0
    %621 = vmatprep.subr.mxu0 0.0
    %622 = vmatpush1.msra.mxu0 0.0
    %623 = vmatprep.subr.mxu0 0.0
    %624 = vmatpush1.msra.mxu0 0.0
    %625 = vmatprep.subr.mxu0 0.0
    %626 = vmatpush1.msra.mxu0 0.0
    %627 = vmatprep.subr.mxu0 0.0
    %628 = vmatpush1.msra.mxu0 0.0
    %629 = vmatprep.subr.mxu0 0.0
    %630 = vmatpush1.msra.mxu0 0.0
    %631 = vmatprep.subr.mxu0 0.0
    %632 = vmatpush1.msra.mxu0 0.0
    %633 = vmatprep.subr.mxu0 0.0
    %634 = vmatpush1.msra.mxu0 0.0
    %635 = vmatprep.subr.mxu0 0.0
    %636 = vmatpush1.msra.mxu0 0.0
    %637 = vmatprep.subr.mxu0 0.0
    %638 = vmatpush1.msra.mxu0 0.0
    %639 = vmatprep.subr.mxu0 0.0
    %640 = vmatpush1.msra.mxu0 0.0
    %641 = vmatprep.subr.mxu0 0.0
    %642 = vmatpush1.msra.mxu0 0.0
    %643 = vmatprep.mubr.f32.mxu0 0.0
    %644 = vmatmul.mubr.f32.gmra.mrb[0].mxu0 %v407
    %v645 = vpop.f32.mrb[0].mxu0
    %v646 = vadd.f32 0.0, %v645
    %v647 = vpop.f32.mrb[0].mxu0
    %v648 = vadd.f32 0.0, %v647
    %649 = vdwg.mxu0
    %650 = vmatprep.subr.mxu0 0.0
    %651 = vmatpush1.msra.mxu0 %v432
    %652 = vmatprep.subr.mxu0 0.0
    %653 = vmatpush1.msra.mxu0 %v437
    %654 = vmatprep.subr.mxu0 0.0
    %655 = vmatpush1.msra.mxu0 %v442
    %656 = vmatprep.subr.mxu0 0.0
    %657 = vmatpush1.msra.mxu0 %v447
    %658 = vmatprep.subr.mxu0 0.0
    %659 = vmatpush1.msra.mxu0 %v452
    %660 = vmatprep.subr.mxu0 0.0
    %661 = vmatpush1.msra.mxu0 %v457
    %662 = vmatprep.subr.mxu0 0.0
    %663 = vmatpush1.msra.mxu0 %v462
    %664 = vmatprep.subr.mxu0 0.0
    %665 = vmatpush1.msra.mxu0 %v467
    %666 = vmatprep.subr.mxu0 0.0
    %667 = vmatpush1.msra.mxu0 %v472
    %668 = vmatprep.subr.mxu0 0.0
    %669 = vmatpush1.msra.mxu0 %v477
    %670 = vmatprep.subr.mxu0 0.0
    %671 = vmatpush1.msra.mxu0 %v482
    %672 = vmatprep.subr.mxu0 0.0
    %673 = vmatpush1.msra.mxu0 %v487
    %674 = vmatprep.subr.mxu0 0.0
    %675 = vmatpush1.msra.mxu0 %v492
    %676 = vmatprep.subr.mxu0 0.0
    %677 = vmatpush1.msra.mxu0 %v497
    %678 = vmatprep.subr.mxu0 0.0
    %679 = vmatpush1.msra.mxu0 %v502
    %680 = vmatprep.subr.mxu0 0.0
    %681 = vmatpush1.msra.mxu0 %v507
    %682 = vmatprep.subr.mxu0 0.0
    %683 = vmatpush1.msra.mxu0 0.0
    %684 = vmatprep.subr.mxu0 0.0
    %685 = vmatpush1.msra.mxu0 0.0
    %686 = vmatprep.subr.mxu0 0.0
    %687 = vmatpush1.msra.mxu0 0.0
    %688 = vmatprep.subr.mxu0 0.0
    %689 = vmatpush1.msra.mxu0 0.0
    %690 = vmatprep.subr.mxu0 0.0
    %691 = vmatpush1.msra.mxu0 0.0
    %692 = vmatprep.subr.mxu0 0.0
    %693 = vmatpush1.msra.mxu0 0.0
    %694 = vmatprep.subr.mxu0 0.0
    %695 = vmatpush1.msra.mxu0 0.0
    %696 = vmatprep.subr.mxu0 0.0
    %697 = vmatpush1.msra.mxu0 0.0
    %698 = vmatprep.subr.mxu0 0.0
    %699 = vmatpush1.msra.mxu0 0.0
    %700 = vmatprep.subr.mxu0 0.0
    %701 = vmatpush1.msra.mxu0 0.0
    %702 = vmatprep.subr.mxu0 0.0
    %703 = vmatpush1.msra.mxu0 0.0
    %704 = vmatprep.subr.mxu0 0.0
    %705 = vmatpush1.msra.mxu0 0.0
    %706 = vmatprep.subr.mxu0 0.0
    %707 = vmatpush1.msra.mxu0 0.0
    %708 = vmatprep.subr.mxu0 0.0
    %709 = vmatpush1.msra.mxu0 0.0
    %710 = vmatprep.subr.mxu0 0.0
    %711 = vmatpush1.msra.mxu0 0.0
    %712 = vmatprep.subr.mxu0 0.0
    %713 = vmatpush1.msra.mxu0 0.0
    %714 = vmatprep.mubr.f32.mxu0 0.0
    %715 = vmatmul.mubr.f32.gmra.mrb[0].mxu0 %v407
    %v716 = vpop.f32.mrb[0].mxu0
    %v717 = vadd.f32 0.0, %v716
    %v718 = vpop.f32.mrb[0].mxu0
    %719 = vdwg.mxu0
    %v725 = vcombine.low %v575, %v577
    %v726 = vcombine.low %v646, %v648
    %v728 = vunpack.c.l.s4 1966171168
    %v729 = vunpack.c.0.s8 %v728
    %v730 = vlaneseq
    %v731 = vshrl.u32 %v730, 7
    %v732 = vsub.s32 %v729, %v731
    %v733 = vrot.slane %v725, %v732
    %v735 = vunpack.c.l.s4 1966171168
    %v736 = vunpack.c.0.s8 %v735
    %v737 = vlaneseq
    %v738 = vshrl.u32 %v737, 7
    %v739 = vsub.s32 %v736, %v738
    %v740 = vrot.slane %v726, %v739
    %v742 = vunpack.c.l.s4 1966171168
    %v743 = vunpack.c.0.s8 %v742
    %v744 = vlaneseq
    %v745 = vshrl.u32 %v744, 7
    %v746 = vsub.s32 %v743, %v745
    %v747 = vrot.slane %v717, %v746
    %v748 = vcombine.low %v733, %v740
    %v750 = vunpack.c.l.s4 1966171168
    %v751 = vunpack.c.0.s8 %v750
    %v752 = vlaneseq
    %v753 = vshrl.u32 %v752, 7
    %v754 = vsub.s32 %v751, %v753
    %v755 = vrot.slane %v748, %v754
    %v757 = vunpack.c.l.s4 1966171168
    %v758 = vunpack.c.0.s8 %v757
    %v759 = vlaneseq
    %v760 = vshrl.u32 %v759, 7
    %v761 = vsub.s32 %v758, %v760
    %v762 = vrot.slane %v747, %v761
    %v763 = vcombine.low %v755, %v762
    %v765 = vadd.f32 %v427, %v763
    %s766 = scalar_lea.vmem [#allocation13], 640
    %v767 = vld [vmem:[%s766] sm:$0xff]
    %v768 = vld [vmem:[%s766 + $0x8] sm:$0xff]
    %v769 = vld [vmem:[%s766 + $0x10] sm:$0xff]
    %v770 = vld [vmem:[%s766 + $0x18] sm:$0xff]
    %v771 = vld [vmem:[%s766 + $0x20] sm:$0xff]
    %v772 = vld [vmem:[%s766 + $0x28] sm:$0xff]
    %v773 = vld [vmem:[%s766 + $0x30] sm:$0xff]
    %v774 = vld [vmem:[%s766 + $0x38] sm:$0xff]
    %v775 = vld [vmem:[%s766 + $0x40] sm:$0xff]
    %v776 = vld [vmem:[%s766 + $0x48] sm:$0xff]
    %v777 = vld [vmem:[%s766 + $0x50] sm:$0xff]
    %v778 = vld [vmem:[%s766 + $0x58] sm:$0xff]
    %v779 = vld [vmem:[%s766 + $0x60] sm:$0xff]
    %v780 = vld [vmem:[%s766 + $0x68] sm:$0xff]
    %v781 = vld [vmem:[%s766 + $0x70] sm:$0xff]
    %v782 = vld [vmem:[%s766 + $0x78] sm:$0xff]
    %v783 = vld [vmem:[%s766 + $0x80] sm:$0xff]
    %v784 = vld [vmem:[%s766 + $0x88] sm:$0xff]
    %v785 = vld [vmem:[%s766 + $0x90] sm:$0xff]
    %v786 = vld [vmem:[%s766 + $0x98] sm:$0xff]
    %v787 = vld [vmem:[%s766 + $0xa0] sm:$0xff]
    %v788 = vld [vmem:[%s766 + $0xa8] sm:$0xff]
    %v789 = vld [vmem:[%s766 + $0xb0] sm:$0xff]
    %v790 = vld [vmem:[%s766 + $0xb8] sm:$0xff]
    %v791 = vld [vmem:[%s766 + $0xc0] sm:$0xff]
    %v792 = vld [vmem:[%s766 + $0xc8] sm:$0xff]
    %v793 = vld [vmem:[%s766 + $0xd0] sm:$0xff]
    %v794 = vld [vmem:[%s766 + $0xd8] sm:$0xff]
    %v795 = vld [vmem:[%s766 + $0xe0] sm:$0xff]
    %v796 = vld [vmem:[%s766 + $0xe8] sm:$0xff]
    %v797 = vld [vmem:[%s766 + $0xf0] sm:$0xff]
    %v798 = vld [vmem:[%s766 + $0xf8] sm:$0xff]
    %v799 = vld [vmem:[%s766 + $0x100] sm:$0xff]
    %v800 = vld [vmem:[%s766 + $0x108] sm:$0xff]
    %v801 = vld [vmem:[%s766 + $0x110] sm:$0xff]
    %v802 = vld [vmem:[%s766 + $0x118] sm:$0xff]
    %v803 = vld [vmem:[%s766 + $0x120] sm:$0xff]
    %v804 = vld [vmem:[%s766 + $0x128] sm:$0xff]
    %v805 = vld [vmem:[%s766 + $0x130] sm:$0xff]
    %v806 = vld [vmem:[%s766 + $0x138] sm:$0xff]
    %v807 = vld [vmem:[%s766 + $0x140] sm:$0xff]
    %v808 = vld [vmem:[%s766 + $0x148] sm:$0xff]
    %v809 = vld [vmem:[%s766 + $0x150] sm:$0xff]
    %v810 = vld [vmem:[%s766 + $0x158] sm:$0xff]
    %v811 = vld [vmem:[%s766 + $0x160] sm:$0xff]
    %v812 = vld [vmem:[%s766 + $0x168] sm:$0xff]
    %v813 = vld [vmem:[%s766 + $0x170] sm:$0xff]
    %v814 = vld [vmem:[%s766 + $0x178] sm:$0xff]
    %v815 = vld [vmem:[%s766 + $0x180] sm:$0xff]
    %v816 = vld [vmem:[%s766 + $0x188] sm:$0xff]
    %v817 = vld [vmem:[%s766 + $0x190] sm:$0xff]
    %v818 = vld [vmem:[%s766 + $0x198] sm:$0xff]
    %v819 = vld [vmem:[%s766 + $0x1a0] sm:$0xff]
    %v820 = vld [vmem:[%s766 + $0x1a8] sm:$0xff]
    %v821 = vld [vmem:[%s766 + $0x1b0] sm:$0xff]
    %v822 = vld [vmem:[%s766 + $0x1b8] sm:$0xff]
    %v823 = vld [vmem:[%s766 + $0x1c0] sm:$0xff]
    %v824 = vld [vmem:[%s766 + $0x1c8] sm:$0xff]
    %v825 = vld [vmem:[%s766 + $0x1d0] sm:$0xff]
    %v826 = vld [vmem:[%s766 + $0x1d8] sm:$0xff]
    %v827 = vld [vmem:[%s766 + $0x1e0] sm:$0xff]
    %v828 = vld [vmem:[%s766 + $0x1e8] sm:$0xff]
    %v829 = vld [vmem:[%s766 + $0x1f0] sm:$0xff]
    %v830 = vld [vmem:[%s766 + $0x1f8] sm:$0xff]
    %v831 = vld [vmem:[%s766 + $0x200] sm:$0xff]
    %v832 = vld [vmem:[%s766 + $0x208] sm:$0xff]
    %v833 = vld [vmem:[%s766 + $0x210] sm:$0xff]
    %v834 = vld [vmem:[%s766 + $0x218] sm:$0xff]
    %v835 = vld [vmem:[%s766 + $0x220] sm:$0xff]
    %v836 = vld [vmem:[%s766 + $0x228] sm:$0xff]
    %v837 = vld [vmem:[%s766 + $0x230] sm:$0xff]
    %v838 = vld [vmem:[%s766 + $0x238] sm:$0xff]
    %v839 = vld [vmem:[%s766 + $0x240] sm:$0xff]
    %v840 = vld [vmem:[%s766 + $0x248] sm:$0xff]
    %v841 = vld [vmem:[%s766 + $0x250] sm:$0xff]
    %v842 = vld [vmem:[%s766 + $0x258] sm:$0xff]
    %v843 = vld [vmem:[%s766 + $0x260] sm:$0xff]
    %v844 = vld [vmem:[%s766 + $0x268] sm:$0xff]
    %v845 = vld [vmem:[%s766 + $0x270] sm:$0xff]
    %v846 = vld [vmem:[%s766 + $0x278] sm:$0xff]
    %847 = vmatprep.subr.mxu0 %v768
    %848 = vmatpush1.msra.mxu0 %v767
    %849 = vmatprep.subr.mxu0 %v773
    %850 = vmatpush1.msra.mxu0 %v772
    %851 = vmatprep.subr.mxu0 %v778
    %852 = vmatpush1.msra.mxu0 %v777
    %853 = vmatprep.subr.mxu0 %v783
    %854 = vmatpush1.msra.mxu0 %v782
    %855 = vmatprep.subr.mxu0 %v788
    %856 = vmatpush1.msra.mxu0 %v787
    %857 = vmatprep.subr.mxu0 %v793
    %858 = vmatpush1.msra.mxu0 %v792
    %859 = vmatprep.subr.mxu0 %v798
    %860 = vmatpush1.msra.mxu0 %v797
    %861 = vmatprep.subr.mxu0 %v803
    %862 = vmatpush1.msra.mxu0 %v802
    %863 = vmatprep.subr.mxu0 %v808
    %864 = vmatpush1.msra.mxu0 %v807
    %865 = vmatprep.subr.mxu0 %v813
    %866 = vmatpush1.msra.mxu0 %v812
    %867 = vmatprep.subr.mxu0 %v818
    %868 = vmatpush1.msra.mxu0 %v817
    %869 = vmatprep.subr.mxu0 %v823
    %870 = vmatpush1.msra.mxu0 %v822
    %871 = vmatprep.subr.mxu0 %v828
    %872 = vmatpush1.msra.mxu0 %v827
    %873 = vmatprep.subr.mxu0 %v833
    %874 = vmatpush1.msra.mxu0 %v832
    %875 = vmatprep.subr.mxu0 %v838
    %876 = vmatpush1.msra.mxu0 %v837
    %877 = vmatprep.subr.mxu0 %v843
    %878 = vmatpush1.msra.mxu0 %v842
    %879 = vmatprep.subr.mxu0 0.0
    %880 = vmatpush1.msra.mxu0 0.0
    %881 = vmatprep.subr.mxu0 0.0
    %882 = vmatpush1.msra.mxu0 0.0
    %883 = vmatprep.subr.mxu0 0.0
    %884 = vmatpush1.msra.mxu0 0.0
    %885 = vmatprep.subr.mxu0 0.0
    %886 = vmatpush1.msra.mxu0 0.0
    %887 = vmatprep.subr.mxu0 0.0
    %888 = vmatpush1.msra.mxu0 0.0
    %889 = vmatprep.subr.mxu0 0.0
    %890 = vmatpush1.msra.mxu0 0.0
    %891 = vmatprep.subr.mxu0 0.0
    %892 = vmatpush1.msra.mxu0 0.0
    %893 = vmatprep.subr.mxu0 0.0
    %894 = vmatpush1.msra.mxu0 0.0
    %895 = vmatprep.subr.mxu0 0.0
    %896 = vmatpush1.msra.mxu0 0.0
    %897 = vmatprep.subr.mxu0 0.0
    %898 = vmatpush1.msra.mxu0 0.0
    %899 = vmatprep.subr.mxu0 0.0
    %900 = vmatpush1.msra.mxu0 0.0
    %901 = vmatprep.subr.mxu0 0.0
    %902 = vmatpush1.msra.mxu0 0.0
    %903 = vmatprep.subr.mxu0 0.0
    %904 = vmatpush1.msra.mxu0 0.0
    %905 = vmatprep.subr.mxu0 0.0
    %906 = vmatpush1.msra.mxu0 0.0
    %907 = vmatprep.subr.mxu0 0.0
    %908 = vmatpush1.msra.mxu0 0.0
    %909 = vmatprep.subr.mxu0 0.0
    %910 = vmatpush1.msra.mxu0 0.0
    %911 = vmatprep.mubr.f32.mxu0 0.0
    %912 = vmatmul.mubr.f32.gmra.mrb[0].mxu0 %v420
    %v913 = vpop.f32.mrb[0].mxu0
    %v914 = vadd.f32 0.0, %v913
    %v915 = vpop.f32.mrb[0].mxu0
    %v916 = vadd.f32 0.0, %v915
    %917 = vdwg.mxu0
    %918 = vmatprep.subr.mxu0 %v770
    %919 = vmatpush1.msra.mxu0 %v769
    %920 = vmatprep.subr.mxu0 %v775
    %921 = vmatpush1.msra.mxu0 %v774
    %922 = vmatprep.subr.mxu0 %v780
    %923 = vmatpush1.msra.mxu0 %v779
    %924 = vmatprep.subr.mxu0 %v785
    %925 = vmatpush1.msra.mxu0 %v784
    %926 = vmatprep.subr.mxu0 %v790
    %927 = vmatpush1.msra.mxu0 %v789
    %928 = vmatprep.subr.mxu0 %v795
    %929 = vmatpush1.msra.mxu0 %v794
    %930 = vmatprep.subr.mxu0 %v800
    %931 = vmatpush1.msra.mxu0 %v799
    %932 = vmatprep.subr.mxu0 %v805
    %933 = vmatpush1.msra.mxu0 %v804
    %934 = vmatprep.subr.mxu0 %v810
    %935 = vmatpush1.msra.mxu0 %v809
    %936 = vmatprep.subr.mxu0 %v815
    %937 = vmatpush1.msra.mxu0 %v814
    %938 = vmatprep.subr.mxu0 %v820
    %939 = vmatpush1.msra.mxu0 %v819
    %940 = vmatprep.subr.mxu0 %v825
    %941 = vmatpush1.msra.mxu0 %v824
    %942 = vmatprep.subr.mxu0 %v830
    %943 = vmatpush1.msra.mxu0 %v829
    %944 = vmatprep.subr.mxu0 %v835
    %945 = vmatpush1.msra.mxu0 %v834
    %946 = vmatprep.subr.mxu0 %v840
    %947 = vmatpush1.msra.mxu0 %v839
    %948 = vmatprep.subr.mxu0 %v845
    %949 = vmatpush1.msra.mxu0 %v844
    %950 = vmatprep.subr.mxu0 0.0
    %951 = vmatpush1.msra.mxu0 0.0
    %952 = vmatprep.subr.mxu0 0.0
    %953 = vmatpush1.msra.mxu0 0.0
    %954 = vmatprep.subr.mxu0 0.0
    %955 = vmatpush1.msra.mxu0 0.0
    %956 = vmatprep.subr.mxu0 0.0
    %957 = vmatpush1.msra.mxu0 0.0
    %958 = vmatprep.subr.mxu0 0.0
    %959 = vmatpush1.msra.mxu0 0.0
    %960 = vmatprep.subr.mxu0 0.0
    %961 = vmatpush1.msra.mxu0 0.0
    %962 = vmatprep.subr.mxu0 0.0
    %963 = vmatpush1.msra.mxu0 0.0
    %964 = vmatprep.subr.mxu0 0.0
    %965 = vmatpush1.msra.mxu0 0.0
    %966 = vmatprep.subr.mxu0 0.0
    %967 = vmatpush1.msra.mxu0 0.0
    %968 = vmatprep.subr.mxu0 0.0
    %969 = vmatpush1.msra.mxu0 0.0
    %970 = vmatprep.subr.mxu0 0.0
    %971 = vmatpush1.msra.mxu0 0.0
    %972 = vmatprep.subr.mxu0 0.0
    %973 = vmatpush1.msra.mxu0 0.0
    %974 = vmatprep.subr.mxu0 0.0
    %975 = vmatpush1.msra.mxu0 0.0
    %976 = vmatprep.subr.mxu0 0.0
    %977 = vmatpush1.msra.mxu0 0.0
    %978 = vmatprep.subr.mxu0 0.0
    %979 = vmatpush1.msra.mxu0 0.0
    %980 = vmatprep.subr.mxu0 0.0
    %981 = vmatpush1.msra.mxu0 0.0
    %982 = vmatprep.mubr.f32.mxu0 0.0
    %983 = vmatmul.mubr.f32.gmra.mrb[0].mxu0 %v420
    %v984 = vpop.f32.mrb[0].mxu0
    %v985 = vadd.f32 0.0, %v984
    %v986 = vpop.f32.mrb[0].mxu0
    %v987 = vadd.f32 0.0, %v986
    %988 = vdwg.mxu0
    %989 = vmatprep.subr.mxu0 0.0
    %990 = vmatpush1.msra.mxu0 %v771
    %991 = vmatprep.subr.mxu0 0.0
    %992 = vmatpush1.msra.mxu0 %v776
    %993 = vmatprep.subr.mxu0 0.0
    %994 = vmatpush1.msra.mxu0 %v781
    %995 = vmatprep.subr.mxu0 0.0
    %996 = vmatpush1.msra.mxu0 %v786
    %997 = vmatprep.subr.mxu0 0.0
    %998 = vmatpush1.msra.mxu0 %v791
    %999 = vmatprep.subr.mxu0 0.0
    %1000 = vmatpush1.msra.mxu0 %v796
    %1001 = vmatprep.subr.mxu0 0.0
    %1002 = vmatpush1.msra.mxu0 %v801
    %1003 = vmatprep.subr.mxu0 0.0
    %1004 = vmatpush1.msra.mxu0 %v806
    %1005 = vmatprep.subr.mxu0 0.0
    %1006 = vmatpush1.msra.mxu0 %v811
    %1007 = vmatprep.subr.mxu0 0.0
    %1008 = vmatpush1.msra.mxu0 %v816
    %1009 = vmatprep.subr.mxu0 0.0
    %1010 = vmatpush1.msra.mxu0 %v821
    %1011 = vmatprep.subr.mxu0 0.0
    %1012 = vmatpush1.msra.mxu0 %v826
    %1013 = vmatprep.subr.mxu0 0.0
    %1014 = vmatpush1.msra.mxu0 %v831
    %1015 = vmatprep.subr.mxu0 0.0
    %1016 = vmatpush1.msra.mxu0 %v836
    %1017 = vmatprep.subr.mxu0 0.0
    %1018 = vmatpush1.msra.mxu0 %v841
    %1019 = vmatprep.subr.mxu0 0.0
    %1020 = vmatpush1.msra.mxu0 %v846
    %1021 = vmatprep.subr.mxu0 0.0
    %1022 = vmatpush1.msra.mxu0 0.0
    %1023 = vmatprep.subr.mxu0 0.0
    %1024 = vmatpush1.msra.mxu0 0.0
    %1025 = vmatprep.subr.mxu0 0.0
    %1026 = vmatpush1.msra.mxu0 0.0
    %1027 = vmatprep.subr.mxu0 0.0
    %1028 = vmatpush1.msra.mxu0 0.0
    %1029 = vmatprep.subr.mxu0 0.0
    %1030 = vmatpush1.msra.mxu0 0.0
    %1031 = vmatprep.subr.mxu0 0.0
    %1032 = vmatpush1.msra.mxu0 0.0
    %1033 = vmatprep.subr.mxu0 0.0
    %1034 = vmatpush1.msra.mxu0 0.0
    %1035 = vmatprep.subr.mxu0 0.0
    %1036 = vmatpush1.msra.mxu0 0.0
    %1037 = vmatprep.subr.mxu0 0.0
    %1038 = vmatpush1.msra.mxu0 0.0
    %1039 = vmatprep.subr.mxu0 0.0
    %1040 = vmatpush1.msra.mxu0 0.0
    %1041 = vmatprep.subr.mxu0 0.0
    %1042 = vmatpush1.msra.mxu0 0.0
    %1043 = vmatprep.subr.mxu0 0.0
    %1044 = vmatpush1.msra.mxu0 0.0
    %1045 = vmatprep.subr.mxu0 0.0
    %1046 = vmatpush1.msra.mxu0 0.0
    %1047 = vmatprep.subr.mxu0 0.0
    %1048 = vmatpush1.msra.mxu0 0.0
    %1049 = vmatprep.subr.mxu0 0.0
    %1050 = vmatpush1.msra.mxu0 0.0
    %1051 = vmatprep.subr.mxu0 0.0
    %1052 = vmatpush1.msra.mxu0 0.0
    %1053 = vmatprep.mubr.f32.mxu0 0.0
    %1054 = vmatmul.mubr.f32.gmra.mrb[0].mxu0 %v420
    %v1055 = vpop.f32.mrb[0].mxu0
    %v1056 = vadd.f32 0.0, %v1055
    %v1057 = vpop.f32.mrb[0].mxu0
    %1058 = vdwg.mxu0
    %v1064 = vcombine.low %v914, %v916
    %v1065 = vcombine.low %v985, %v987
    %v1067 = vunpack.c.l.s4 1966171168
    %v1068 = vunpack.c.0.s8 %v1067
    %v1069 = vlaneseq
    %v1070 = vshrl.u32 %v1069, 7
    %v1071 = vsub.s32 %v1068, %v1070
    %v1072 = vrot.slane %v1064, %v1071
    %v1074 = vunpack.c.l.s4 1966171168
    %v1075 = vunpack.c.0.s8 %v1074
    %v1076 = vlaneseq
    %v1077 = vshrl.u32 %v1076, 7
    %v1078 = vsub.s32 %v1075, %v1077
    %v1079 = vrot.slane %v1065, %v1078
    %v1081 = vunpack.c.l.s4 1966171168
    %v1082 = vunpack.c.0.s8 %v1081
    %v1083 = vlaneseq
    %v1084 = vshrl.u32 %v1083, 7
    %v1085 = vsub.s32 %v1082, %v1084
    %v1086 = vrot.slane %v1056, %v1085
    %v1087 = vcombine.low %v1072, %v1079
    %v1089 = vunpack.c.l.s4 1966171168
    %v1090 = vunpack.c.0.s8 %v1089
    %v1091 = vlaneseq
    %v1092 = vshrl.u32 %v1091, 7
    %v1093 = vsub.s32 %v1090, %v1092
    %v1094 = vrot.slane %v1087, %v1093
    %v1096 = vunpack.c.l.s4 1966171168
    %v1097 = vunpack.c.0.s8 %v1096
    %v1098 = vlaneseq
    %v1099 = vshrl.u32 %v1098, 7
    %v1100 = vsub.s32 %v1097, %v1099
    %v1101 = vrot.slane %v1086, %v1100
    %v1102 = vcombine.low %v1094, %v1101
    %v1104 = vadd.f32 %v765, %v1102
    %v1105 = vxor.u32 %v1104, 2147483648
    %v1106 = vmul.f32 %v1105, 1.442695
    %v1107 = vpow.pop %v1106
    %v1108 = vadd.f32 %v1107, 1.0
    %v1109 = vrcp.pop %v1108
    %v1110 = vmul.f32 1.0, %v1109
    %v1112 = vrot.slane %v1104, 1
    %v1114 = vxor.u32 %v1112, 2147483648
    %v1115 = vmul.f32 %v1114, 1.442695
    %v1116 = vpow.pop %v1115
    %v1117 = vadd.f32 %v1116, 1.0
    %v1118 = vrcp.pop %v1117
    %v1119 = vmul.f32 1.0, %v1118
    %v1120 = vrot.slane %v1104, 2
    %v1122 = vtanh.pop %v1120
    %v1123 = vrot.slane %v1104, 3
    %v1125 = vxor.u32 %v1123, 2147483648
    %v1126 = vmul.f32 %v1125, 1.442695
    %v1127 = vpow.pop %v1126
    %v1128 = vadd.f32 %v1127, 1.0
    %v1129 = vrcp.pop %v1128
    %v1130 = vmul.f32 1.0, %v1129
    %v1131 = vrot.slane %v1104, 4
    %v1133 = vxor.u32 %v1131, 2147483648
    %v1134 = vmul.f32 %v1133, 1.442695
    %v1135 = vpow.pop %v1134
    %v1136 = vadd.f32 %v1135, 1.0
    %v1137 = vrcp.pop %v1136
    %v1138 = vmul.f32 1.0, %v1137
    %v1139 = vmul.f32 %v1110, %v1122
    %v1140 = vmul.f32 %v1130, %v410
    %v1141 = vadd.f32 %v1139, %v1140
    %v1142 = vmul.f32 %v1138, %v423
    %v1143 = vadd.f32 %v1141, %v1142
    %v1144 = vtanh.pop %v1143
    %v1145 = vmul.f32 %v1119, %v1144
    %1146 = vst [vmem:[#allocation3 + $0x7] sm:$0x1] %v1143
    %1147 = vst [vmem:[#allocation2 + $0x7] sm:$0x1] %v1145
    %s1148 = sld [smem:[#allocation5 + $0xc]]
    %p1149 = scmp.ge.s32.totalorder %s1148, 0
    %s1150 = scalar_select %p1149, 1, 0
    %s1151 = scvt.s32.f32 %s1150
    %p1152 = scmp.gt.s32.totalorder %s1148, 0
    %s1153 = scalar_select %p1152, %s1148, 0
    %s1154 = scalar_lea.vmem [#allocation2], %s1153
    %v1155 = vld [vmem:[%s1154] sm:$0x1]
    %v1156 = vstv %s1151
    %v1157 = vmul.f32 %v1155, %v1156
    %s1158 = scalar_lea.vmem [#allocation3], %s1153
    %v1159 = vld [vmem:[%s1158] sm:$0x1]
    %v1160 = vmul.f32 %v1159, %v1156
    %s1161 = sld [smem:[#allocation5 + $0xd]]
    %p1162 = scmp.ge.s32.totalorder %s1161, 0
    %s1163 = scalar_select %p1162, 1, 0
    %s1164 = scvt.s32.f32 %s1163
    %p1165 = scmp.gt.s32.totalorder %s1161, 0
    %s1166 = scalar_select %p1165, %s1161, 0
    %s1167 = scalar_lea.vmem [#allocation2], %s1166
    %v1168 = vld [vmem:[%s1167] sm:$0x1]
    %v1169 = vstv %s1164
    %v1170 = vmul.f32 %v1168, %v1169
    %s1171 = scalar_lea.vmem [#allocation3], %s1166
    %v1172 = vld [vmem:[%s1171] sm:$0x1]
    %v1173 = vmul.f32 %v1172, %v1169
    %s1174 = scalar_lea.vmem [#allocation4], 6
    %v1175 = vld [vmem:[%s1174] ss:$8 sm:$0xf]
    %v1176 = vld [vmem:[%s1174] ss:$8 sm:$0x10]
    %v1177 = vor.u32 %v1175, %v1176
    %v1178 = vld [vmem:[#allocation13] sm:$0xff]
    %v1179 = vld [vmem:[#allocation13 + $0x8] sm:$0xff]
    %v1180 = vld [vmem:[#allocation13 + $0x10] sm:$0xff]
    %v1181 = vld [vmem:[#allocation13 + $0x18] sm:$0xff]
    %v1182 = vld [vmem:[#allocation13 + $0x20] sm:$0xff]
    %v1183 = vld [vmem:[#allocation13 + $0x28] sm:$0xff]
    %v1184 = vld [vmem:[#allocation13 + $0x30] sm:$0xff]
    %v1185 = vld [vmem:[#allocation13 + $0x38] sm:$0xff]
    %v1186 = vld [vmem:[#allocation13 + $0x40] sm:$0xff]
    %v1187 = vld [vmem:[#allocation13 + $0x48] sm:$0xff]
    %v1188 = vld [vmem:[#allocation13 + $0x50] sm:$0xff]
    %v1189 = vld [vmem:[#allocation13 + $0x58] sm:$0xff]
    %v1190 = vld [vmem:[#allocation13 + $0x60] sm:$0xff]
    %v1191 = vld [vmem:[#allocation13 + $0x68] sm:$0xff]
    %v1192 = vld [vmem:[#allocation13 + $0x70] sm:$0xff]
    %v1193 = vld [vmem:[#allocation13 + $0x78] sm:$0xff]
    %v1194 = vld [vmem:[#allocation13 + $0x80] sm:$0xff]
    %v1195 = vld [vmem:[#allocation13 + $0x88] sm:$0xff]
    %v1196 = vld [vmem:[#allocation13 + $0x90] sm:$0xff]
    %v1197 = vld [vmem:[#allocation13 + $0x98] sm:$0xff]
    %v1198 = vld [vmem:[#allocation13 + $0xa0] sm:$0xff]
    %v1199 = vld [vmem:[#allocation13 + $0xa8] sm:$0xff]
    %v1200 = vld [vmem:[#allocation13 + $0xb0] sm:$0xff]
    %v1201 = vld [vmem:[#allocation13 + $0xb8] sm:$0xff]
    %v1202 = vld [vmem:[#allocation13 + $0xc0] sm:$0xff]
    %v1203 = vld [vmem:[#allocation13 + $0xc8] sm:$0xff]
    %v1204 = vld [vmem:[#allocation13 + $0xd0] sm:$0xff]
    %v1205 = vld [vmem:[#allocation13 + $0xd8] sm:$0xff]
    %v1206 = vld [vmem:[#allocation13 + $0xe0] sm:$0xff]
    %v1207 = vld [vmem:[#allocation13 + $0xe8] sm:$0xff]
    %v1208 = vld [vmem:[#allocation13 + $0xf0] sm:$0xff]
    %v1209 = vld [vmem:[#allocation13 + $0xf8] sm:$0xff]
    %v1210 = vld [vmem:[#allocation13 + $0x100] sm:$0xff]
    %v1211 = vld [vmem:[#allocation13 + $0x108] sm:$0xff]
    %v1212 = vld [vmem:[#allocation13 + $0x110] sm:$0xff]
    %v1213 = vld [vmem:[#allocation13 + $0x118] sm:$0xff]
    %v1214 = vld [vmem:[#allocation13 + $0x120] sm:$0xff]
    %v1215 = vld [vmem:[#allocation13 + $0x128] sm:$0xff]
    %v1216 = vld [vmem:[#allocation13 + $0x130] sm:$0xff]
    %v1217 = vld [vmem:[#allocation13 + $0x138] sm:$0xff]
    %v1218 = vld [vmem:[#allocation13 + $0x140] sm:$0xff]
    %v1219 = vld [vmem:[#allocation13 + $0x148] sm:$0xff]
    %v1220 = vld [vmem:[#allocation13 + $0x150] sm:$0xff]
    %v1221 = vld [vmem:[#allocation13 + $0x158] sm:$0xff]
    %v1222 = vld [vmem:[#allocation13 + $0x160] sm:$0xff]
    %v1223 = vld [vmem:[#allocation13 + $0x168] sm:$0xff]
    %v1224 = vld [vmem:[#allocation13 + $0x170] sm:$0xff]
    %v1225 = vld [vmem:[#allocation13 + $0x178] sm:$0xff]
    %v1226 = vld [vmem:[#allocation13 + $0x180] sm:$0xff]
    %v1227 = vld [vmem:[#allocation13 + $0x188] sm:$0xff]
    %v1228 = vld [vmem:[#allocation13 + $0x190] sm:$0xff]
    %v1229 = vld [vmem:[#allocation13 + $0x198] sm:$0xff]
    %v1230 = vld [vmem:[#allocation13 + $0x1a0] sm:$0xff]
    %v1231 = vld [vmem:[#allocation13 + $0x1a8] sm:$0xff]
    %v1232 = vld [vmem:[#allocation13 + $0x1b0] sm:$0xff]
    %v1233 = vld [vmem:[#allocation13 + $0x1b8] sm:$0xff]
    %v1234 = vld [vmem:[#allocation13 + $0x1c0] sm:$0xff]
    %v1235 = vld [vmem:[#allocation13 + $0x1c8] sm:$0xff]
    %v1236 = vld [vmem:[#allocation13 + $0x1d0] sm:$0xff]
    %v1237 = vld [vmem:[#allocation13 + $0x1d8] sm:$0xff]
    %v1238 = vld [vmem:[#allocation13 + $0x1e0] sm:$0xff]
    %v1239 = vld [vmem:[#allocation13 + $0x1e8] sm:$0xff]
    %v1240 = vld [vmem:[#allocation13 + $0x1f0] sm:$0xff]
    %v1241 = vld [vmem:[#allocation13 + $0x1f8] sm:$0xff]
    %v1242 = vld [vmem:[#allocation13 + $0x200] sm:$0xff]
    %v1243 = vld [vmem:[#allocation13 + $0x208] sm:$0xff]
    %v1244 = vld [vmem:[#allocation13 + $0x210] sm:$0xff]
    %v1245 = vld [vmem:[#allocation13 + $0x218] sm:$0xff]
    %v1246 = vld [vmem:[#allocation13 + $0x220] sm:$0xff]
    %v1247 = vld [vmem:[#allocation13 + $0x228] sm:$0xff]
    %v1248 = vld [vmem:[#allocation13 + $0x230] sm:$0xff]
    %v1249 = vld [vmem:[#allocation13 + $0x238] sm:$0xff]
    %v1250 = vld [vmem:[#allocation13 + $0x240] sm:$0xff]
    %v1251 = vld [vmem:[#allocation13 + $0x248] sm:$0xff]
    %v1252 = vld [vmem:[#allocation13 + $0x250] sm:$0xff]
    %v1253 = vld [vmem:[#allocation13 + $0x258] sm:$0xff]
    %v1254 = vld [vmem:[#allocation13 + $0x260] sm:$0xff]
    %v1255 = vld [vmem:[#allocation13 + $0x268] sm:$0xff]
    %v1256 = vld [vmem:[#allocation13 + $0x270] sm:$0xff]
    %v1257 = vld [vmem:[#allocation13 + $0x278] sm:$0xff]
    %1258 = vmatprep.subr.mxu0 %v1179
    %1259 = vmatpush1.msra.mxu0 %v1178
    %1260 = vmatprep.subr.mxu0 %v1184
    %1261 = vmatpush1.msra.mxu0 %v1183
    %1262 = vmatprep.subr.mxu0 %v1189
    %1263 = vmatpush1.msra.mxu0 %v1188
    %1264 = vmatprep.subr.mxu0 %v1194
    %1265 = vmatpush1.msra.mxu0 %v1193
    %1266 = vmatprep.subr.mxu0 %v1199
    %1267 = vmatpush1.msra.mxu0 %v1198
    %1268 = vmatprep.subr.mxu0 %v1204
    %1269 = vmatpush1.msra.mxu0 %v1203
    %1270 = vmatprep.subr.mxu0 %v1209
    %1271 = vmatpush1.msra.mxu0 %v1208
    %1272 = vmatprep.subr.mxu0 %v1214
    %1273 = vmatpush1.msra.mxu0 %v1213
    %1274 = vmatprep.subr.mxu0 %v1219
    %1275 = vmatpush1.msra.mxu0 %v1218
    %1276 = vmatprep.subr.mxu0 %v1224
    %1277 = vmatpush1.msra.mxu0 %v1223
    %1278 = vmatprep.subr.mxu0 %v1229
    %1279 = vmatpush1.msra.mxu0 %v1228
    %1280 = vmatprep.subr.mxu0 %v1234
    %1281 = vmatpush1.msra.mxu0 %v1233
    %1282 = vmatprep.subr.mxu0 %v1239
    %1283 = vmatpush1.msra.mxu0 %v1238
    %1284 = vmatprep.subr.mxu0 %v1244
    %1285 = vmatpush1.msra.mxu0 %v1243
    %1286 = vmatprep.subr.mxu0 %v1249
    %1287 = vmatpush1.msra.mxu0 %v1248
    %1288 = vmatprep.subr.mxu0 %v1254
    %1289 = vmatpush1.msra.mxu0 %v1253
    %1290 = vmatprep.subr.mxu0 0.0
    %1291 = vmatpush1.msra.mxu0 0.0
    %1292 = vmatprep.subr.mxu0 0.0
    %1293 = vmatpush1.msra.mxu0 0.0
    %1294 = vmatprep.subr.mxu0 0.0
    %1295 = vmatpush1.msra.mxu0 0.0
    %1296 = vmatprep.subr.mxu0 0.0
    %1297 = vmatpush1.msra.mxu0 0.0
    %1298 = vmatprep.subr.mxu0 0.0
    %1299 = vmatpush1.msra.mxu0 0.0
    %1300 = vmatprep.subr.mxu0 0.0
    %1301 = vmatpush1.msra.mxu0 0.0
    %1302 = vmatprep.subr.mxu0 0.0
    %1303 = vmatpush1.msra.mxu0 0.0
    %1304 = vmatprep.subr.mxu0 0.0
    %1305 = vmatpush1.msra.mxu0 0.0
    %1306 = vmatprep.subr.mxu0 0.0
    %1307 = vmatpush1.msra.mxu0 0.0
    %1308 = vmatprep.subr.mxu0 0.0
    %1309 = vmatpush1.msra.mxu0 0.0
    %1310 = vmatprep.subr.mxu0 0.0
    %1311 = vmatpush1.msra.mxu0 0.0
    %1312 = vmatprep.subr.mxu0 0.0
    %1313 = vmatpush1.msra.mxu0 0.0
    %1314 = vmatprep.subr.mxu0 0.0
    %1315 = vmatpush1.msra.mxu0 0.0
    %1316 = vmatprep.subr.mxu0 0.0
    %1317 = vmatpush1.msra.mxu0 0.0
    %1318 = vmatprep.subr.mxu0 0.0
    %1319 = vmatpush1.msra.mxu0 0.0
    %1320 = vmatprep.subr.mxu0 0.0
    %1321 = vmatpush1.msra.mxu0 0.0
    %1322 = vmatprep.mubr.f32.mxu0 0.0
    %1323 = vmatmul.mubr.f32.gmra.mrb[0].mxu0 %v1157
    %v1324 = vpop.f32.mrb[0].mxu0
    %v1325 = vadd.f32 0.0, %v1324
    %v1326 = vpop.f32.mrb[0].mxu0
    %v1327 = vadd.f32 0.0, %v1326
    %1328 = vdwg.mxu0
    %1329 = vmatprep.subr.mxu0 %v1181
    %1330 = vmatpush1.msra.mxu0 %v1180
    %1331 = vmatprep.subr.mxu0 %v1186
    %1332 = vmatpush1.msra.mxu0 %v1185
    %1333 = vmatprep.subr.mxu0 %v1191
    %1334 = vmatpush1.msra.mxu0 %v1190
    %1335 = vmatprep.subr.mxu0 %v1196
    %1336 = vmatpush1.msra.mxu0 %v1195
    %1337 = vmatprep.subr.mxu0 %v1201
    %1338 = vmatpush1.msra.mxu0 %v1200
    %1339 = vmatprep.subr.mxu0 %v1206
    %1340 = vmatpush1.msra.mxu0 %v1205
    %1341 = vmatprep.subr.mxu0 %v1211
    %1342 = vmatpush1.msra.mxu0 %v1210
    %1343 = vmatprep.subr.mxu0 %v1216
    %1344 = vmatpush1.msra.mxu0 %v1215
    %1345 = vmatprep.subr.mxu0 %v1221
    %1346 = vmatpush1.msra.mxu0 %v1220
    %1347 = vmatprep.subr.mxu0 %v1226
    %1348 = vmatpush1.msra.mxu0 %v1225
    %1349 = vmatprep.subr.mxu0 %v1231
    %1350 = vmatpush1.msra.mxu0 %v1230
    %1351 = vmatprep.subr.mxu0 %v1236
    %1352 = vmatpush1.msra.mxu0 %v1235
    %1353 = vmatprep.subr.mxu0 %v1241
    %1354 = vmatpush1.msra.mxu0 %v1240
    %1355 = vmatprep.subr.mxu0 %v1246
    %1356 = vmatpush1.msra.mxu0 %v1245
    %1357 = vmatprep.subr.mxu0 %v1251
    %1358 = vmatpush1.msra.mxu0 %v1250
    %1359 = vmatprep.subr.mxu0 %v1256
    %1360 = vmatpush1.msra.mxu0 %v1255
    %1361 = vmatprep.subr.mxu0 0.0
    %1362 = vmatpush1.msra.mxu0 0.0
    %1363 = vmatprep.subr.mxu0 0.0
    %1364 = vmatpush1.msra.mxu0 0.0
    %1365 = vmatprep.subr.mxu0 0.0
    %1366 = vmatpush1.msra.mxu0 0.0
    %1367 = vmatprep.subr.mxu0 0.0
    %1368 = vmatpush1.msra.mxu0 0.0
    %1369 = vmatprep.subr.mxu0 0.0
    %1370 = vmatpush1.msra.mxu0 0.0
    %1371 = vmatprep.subr.mxu0 0.0
    %1372 = vmatpush1.msra.mxu0 0.0
    %1373 = vmatprep.subr.mxu0 0.0
    %1374 = vmatpush1.msra.mxu0 0.0
    %1375 = vmatprep.subr.mxu0 0.0
    %1376 = vmatpush1.msra.mxu0 0.0
    %1377 = vmatprep.subr.mxu0 0.0
    %1378 = vmatpush1.msra.mxu0 0.0
    %1379 = vmatprep.subr.mxu0 0.0
    %1380 = vmatpush1.msra.mxu0 0.0
    %1381 = vmatprep.subr.mxu0 0.0
    %1382 = vmatpush1.msra.mxu0 0.0
    %1383 = vmatprep.subr.mxu0 0.0
    %1384 = vmatpush1.msra.mxu0 0.0
    %1385 = vmatprep.subr.mxu0 0.0
    %1386 = vmatpush1.msra.mxu0 0.0
    %1387 = vmatprep.subr.mxu0 0.0
    %1388 = vmatpush1.msra.mxu0 0.0
    %1389 = vmatprep.subr.mxu0 0.0
    %1390 = vmatpush1.msra.mxu0 0.0
    %1391 = vmatprep.subr.mxu0 0.0
    %1392 = vmatpush1.msra.mxu0 0.0
    %1393 = vmatprep.mubr.f32.mxu0 0.0
    %1394 = vmatmul.mubr.f32.gmra.mrb[0].mxu0 %v1157
    %v1395 = vpop.f32.mrb[0].mxu0
    %v1396 = vadd.f32 0.0, %v1395
    %v1397 = vpop.f32.mrb[0].mxu0
    %v1398 = vadd.f32 0.0, %v1397
    %1399 = vdwg.mxu0
    %1400 = vmatprep.subr.mxu0 0.0
    %1401 = vmatpush1.msra.mxu0 %v1182
    %1402 = vmatprep.subr.mxu0 0.0
    %1403 = vmatpush1.msra.mxu0 %v1187
    %1404 = vmatprep.subr.mxu0 0.0
    %1405 = vmatpush1.msra.mxu0 %v1192
    %1406 = vmatprep.subr.mxu0 0.0
    %1407 = vmatpush1.msra.mxu0 %v1197
    %1408 = vmatprep.subr.mxu0 0.0
    %1409 = vmatpush1.msra.mxu0 %v1202
    %1410 = vmatprep.subr.mxu0 0.0
    %1411 = vmatpush1.msra.mxu0 %v1207
    %1412 = vmatprep.subr.mxu0 0.0
    %1413 = vmatpush1.msra.mxu0 %v1212
    %1414 = vmatprep.subr.mxu0 0.0
    %1415 = vmatpush1.msra.mxu0 %v1217
    %1416 = vmatprep.subr.mxu0 0.0
    %1417 = vmatpush1.msra.mxu0 %v1222
    %1418 = vmatprep.subr.mxu0 0.0
    %1419 = vmatpush1.msra.mxu0 %v1227
    %1420 = vmatprep.subr.mxu0 0.0
    %1421 = vmatpush1.msra.mxu0 %v1232
    %1422 = vmatprep.subr.mxu0 0.0
    %1423 = vmatpush1.msra.mxu0 %v1237
    %1424 = vmatprep.subr.mxu0 0.0
    %1425 = vmatpush1.msra.mxu0 %v1242
    %1426 = vmatprep.subr.mxu0 0.0
    %1427 = vmatpush1.msra.mxu0 %v1247
    %1428 = vmatprep.subr.mxu0 0.0
    %1429 = vmatpush1.msra.mxu0 %v1252
    %1430 = vmatprep.subr.mxu0 0.0
    %1431 = vmatpush1.msra.mxu0 %v1257
    %1432 = vmatprep.subr.mxu0 0.0
    %1433 = vmatpush1.msra.mxu0 0.0
    %1434 = vmatprep.subr.mxu0 0.0
    %1435 = vmatpush1.msra.mxu0 0.0
    %1436 = vmatprep.subr.mxu0 0.0
    %1437 = vmatpush1.msra.mxu0 0.0
    %1438 = vmatprep.subr.mxu0 0.0
    %1439 = vmatpush1.msra.mxu0 0.0
    %1440 = vmatprep.subr.mxu0 0.0
    %1441 = vmatpush1.msra.mxu0 0.0
    %1442 = vmatprep.subr.mxu0 0.0
    %1443 = vmatpush1.msra.mxu0 0.0
    %1444 = vmatprep.subr.mxu0 0.0
    %1445 = vmatpush1.msra.mxu0 0.0
    %1446 = vmatprep.subr.mxu0 0.0
    %1447 = vmatpush1.msra.mxu0 0.0
    %1448 = vmatprep.subr.mxu0 0.0
    %1449 = vmatpush1.msra.mxu0 0.0
    %1450 = vmatprep.subr.mxu0 0.0
    %1451 = vmatpush1.msra.mxu0 0.0
    %1452 = vmatprep.subr.mxu0 0.0
    %1453 = vmatpush1.msra.mxu0 0.0
    %1454 = vmatprep.subr.mxu0 0.0
    %1455 = vmatpush1.msra.mxu0 0.0
    %1456 = vmatprep.subr.mxu0 0.0
    %1457 = vmatpush1.msra.mxu0 0.0
    %1458 = vmatprep.subr.mxu0 0.0
    %1459 = vmatpush1.msra.mxu0 0.0
    %1460 = vmatprep.subr.mxu0 0.0
    %1461 = vmatpush1.msra.mxu0 0.0
    %1462 = vmatprep.subr.mxu0 0.0
    %1463 = vmatpush1.msra.mxu0 0.0
    %1464 = vmatprep.mubr.f32.mxu0 0.0
    %1465 = vmatmul.mubr.f32.gmra.mrb[0].mxu0 %v1157
    %v1466 = vpop.f32.mrb[0].mxu0
    %v1467 = vadd.f32 0.0, %v1466
    %v1468 = vpop.f32.mrb[0].mxu0
    %1469 = vdwg.mxu0
    %v1475 = vcombine.low %v1325, %v1327
    %v1476 = vcombine.low %v1396, %v1398
    %v1478 = vunpack.c.l.s4 1966171168
    %v1479 = vunpack.c.0.s8 %v1478
    %v1480 = vlaneseq
    %v1481 = vshrl.u32 %v1480, 7
    %v1482 = vsub.s32 %v1479, %v1481
    %v1483 = vrot.slane %v1475, %v1482
    %v1485 = vunpack.c.l.s4 1966171168
    %v1486 = vunpack.c.0.s8 %v1485
    %v1487 = vlaneseq
    %v1488 = vshrl.u32 %v1487, 7
    %v1489 = vsub.s32 %v1486, %v1488
    %v1490 = vrot.slane %v1476, %v1489
    %v1492 = vunpack.c.l.s4 1966171168
    %v1493 = vunpack.c.0.s8 %v1492
    %v1494 = vlaneseq
    %v1495 = vshrl.u32 %v1494, 7
    %v1496 = vsub.s32 %v1493, %v1495
    %v1497 = vrot.slane %v1467, %v1496
    %v1498 = vcombine.low %v1483, %v1490
    %v1500 = vunpack.c.l.s4 1966171168
    %v1501 = vunpack.c.0.s8 %v1500
    %v1502 = vlaneseq
    %v1503 = vshrl.u32 %v1502, 7
    %v1504 = vsub.s32 %v1501, %v1503
    %v1505 = vrot.slane %v1498, %v1504
    %v1507 = vunpack.c.l.s4 1966171168
    %v1508 = vunpack.c.0.s8 %v1507
    %v1509 = vlaneseq
    %v1510 = vshrl.u32 %v1509, 7
    %v1511 = vsub.s32 %v1508, %v1510
    %v1512 = vrot.slane %v1497, %v1511
    %v1513 = vcombine.low %v1505, %v1512
    %v1515 = vadd.f32 %v1177, %v1513
    %v1516 = vld [vmem:[%s766] sm:$0xff]
    %v1517 = vld [vmem:[%s766 + $0x8] sm:$0xff]
    %v1518 = vld [vmem:[%s766 + $0x10] sm:$0xff]
    %v1519 = vld [vmem:[%s766 + $0x18] sm:$0xff]
    %v1520 = vld [vmem:[%s766 + $0x20] sm:$0xff]
    %v1521 = vld [vmem:[%s766 + $0x28] sm:$0xff]
    %v1522 = vld [vmem:[%s766 + $0x30] sm:$0xff]
    %v1523 = vld [vmem:[%s766 + $0x38] sm:$0xff]
    %v1524 = vld [vmem:[%s766 + $0x40] sm:$0xff]
    %v1525 = vld [vmem:[%s766 + $0x48] sm:$0xff]
    %v1526 = vld [vmem:[%s766 + $0x50] sm:$0xff]
    %v1527 = vld [vmem:[%s766 + $0x58] sm:$0xff]
    %v1528 = vld [vmem:[%s766 + $0x60] sm:$0xff]
    %v1529 = vld [vmem:[%s766 + $0x68] sm:$0xff]
    %v1530 = vld [vmem:[%s766 + $0x70] sm:$0xff]
    %v1531 = vld [vmem:[%s766 + $0x78] sm:$0xff]
    %v1532 = vld [vmem:[%s766 + $0x80] sm:$0xff]
    %v1533 = vld [vmem:[%s766 + $0x88] sm:$0xff]
    %v1534 = vld [vmem:[%s766 + $0x90] sm:$0xff]
    %v1535 = vld [vmem:[%s766 + $0x98] sm:$0xff]
    %v1536 = vld [vmem:[%s766 + $0xa0] sm:$0xff]
    %v1537 = vld [vmem:[%s766 + $0xa8] sm:$0xff]
    %v1538 = vld [vmem:[%s766 + $0xb0] sm:$0xff]
    %v1539 = vld [vmem:[%s766 + $0xb8] sm:$0xff]
    %v1540 = vld [vmem:[%s766 + $0xc0] sm:$0xff]
    %v1541 = vld [vmem:[%s766 + $0xc8] sm:$0xff]
    %v1542 = vld [vmem:[%s766 + $0xd0] sm:$0xff]
    %v1543 = vld [vmem:[%s766 + $0xd8] sm:$0xff]
    %v1544 = vld [vmem:[%s766 + $0xe0] sm:$0xff]
    %v1545 = vld [vmem:[%s766 + $0xe8] sm:$0xff]
    %v1546 = vld [vmem:[%s766 + $0xf0] sm:$0xff]
    %v1547 = vld [vmem:[%s766 + $0xf8] sm:$0xff]
    %v1548 = vld [vmem:[%s766 + $0x100] sm:$0xff]
    %v1549 = vld [vmem:[%s766 + $0x108] sm:$0xff]
    %v1550 = vld [vmem:[%s766 + $0x110] sm:$0xff]
    %v1551 = vld [vmem:[%s766 + $0x118] sm:$0xff]
    %v1552 = vld [vmem:[%s766 + $0x120] sm:$0xff]
    %v1553 = vld [vmem:[%s766 + $0x128] sm:$0xff]
    %v1554 = vld [vmem:[%s766 + $0x130] sm:$0xff]
    %v1555 = vld [vmem:[%s766 + $0x138] sm:$0xff]
    %v1556 = vld [vmem:[%s766 + $0x140] sm:$0xff]
    %v1557 = vld [vmem:[%s766 + $0x148] sm:$0xff]
    %v1558 = vld [vmem:[%s766 + $0x150] sm:$0xff]
    %v1559 = vld [vmem:[%s766 + $0x158] sm:$0xff]
    %v1560 = vld [vmem:[%s766 + $0x160] sm:$0xff]
    %v1561 = vld [vmem:[%s766 + $0x168] sm:$0xff]
    %v1562 = vld [vmem:[%s766 + $0x170] sm:$0xff]
    %v1563 = vld [vmem:[%s766 + $0x178] sm:$0xff]
    %v1564 = vld [vmem:[%s766 + $0x180] sm:$0xff]
    %v1565 = vld [vmem:[%s766 + $0x188] sm:$0xff]
    %v1566 = vld [vmem:[%s766 + $0x190] sm:$0xff]
    %v1567 = vld [vmem:[%s766 + $0x198] sm:$0xff]
    %v1568 = vld [vmem:[%s766 + $0x1a0] sm:$0xff]
    %v1569 = vld [vmem:[%s766 + $0x1a8] sm:$0xff]
    %v1570 = vld [vmem:[%s766 + $0x1b0] sm:$0xff]
    %v1571 = vld [vmem:[%s766 + $0x1b8] sm:$0xff]
    %v1572 = vld [vmem:[%s766 + $0x1c0] sm:$0xff]
    %v1573 = vld [vmem:[%s766 + $0x1c8] sm:$0xff]
    %v1574 = vld [vmem:[%s766 + $0x1d0] sm:$0xff]
    %v1575 = vld [vmem:[%s766 + $0x1d8] sm:$0xff]
    %v1576 = vld [vmem:[%s766 + $0x1e0] sm:$0xff]
    %v1577 = vld [vmem:[%s766 + $0x1e8] sm:$0xff]
    %v1578 = vld [vmem:[%s766 + $0x1f0] sm:$0xff]
    %v1579 = vld [vmem:[%s766 + $0x1f8] sm:$0xff]
    %v1580 = vld [vmem:[%s766 + $0x200] sm:$0xff]
    %v1581 = vld [vmem:[%s766 + $0x208] sm:$0xff]
    %v1582 = vld [vmem:[%s766 + $0x210] sm:$0xff]
    %v1583 = vld [vmem:[%s766 + $0x218] sm:$0xff]
    %v1584 = vld [vmem:[%s766 + $0x220] sm:$0xff]
    %v1585 = vld [vmem:[%s766 + $0x228] sm:$0xff]
    %v1586 = vld [vmem:[%s766 + $0x230] sm:$0xff]
    %v1587 = vld [vmem:[%s766 + $0x238] sm:$0xff]
    %v1588 = vld [vmem:[%s766 + $0x240] sm:$0xff]
    %v1589 = vld [vmem:[%s766 + $0x248] sm:$0xff]
    %v1590 = vld [vmem:[%s766 + $0x250] sm:$0xff]
    %v1591 = vld [vmem:[%s766 + $0x258] sm:$0xff]
    %v1592 = vld [vmem:[%s766 + $0x260] sm:$0xff]
    %v1593 = vld [vmem:[%s766 + $0x268] sm:$0xff]
    %v1594 = vld [vmem:[%s766 + $0x270] sm:$0xff]
    %v1595 = vld [vmem:[%s766 + $0x278] sm:$0xff]
    %1596 = vmatprep.subr.mxu0 %v1517
    %1597 = vmatpush1.msra.mxu0 %v1516
    %1598 = vmatprep.subr.mxu0 %v1522
    %1599 = vmatpush1.msra.mxu0 %v1521
    %1600 = vmatprep.subr.mxu0 %v1527
    %1601 = vmatpush1.msra.mxu0 %v1526
    %1602 = vmatprep.subr.mxu0 %v1532
    %1603 = vmatpush1.msra.mxu0 %v1531
    %1604 = vmatprep.subr.mxu0 %v1537
    %1605 = vmatpush1.msra.mxu0 %v1536
    %1606 = vmatprep.subr.mxu0 %v1542
    %1607 = vmatpush1.msra.mxu0 %v1541
    %1608 = vmatprep.subr.mxu0 %v1547
    %1609 = vmatpush1.msra.mxu0 %v1546
    %1610 = vmatprep.subr.mxu0 %v1552
    %1611 = vmatpush1.msra.mxu0 %v1551
    %1612 = vmatprep.subr.mxu0 %v1557
    %1613 = vmatpush1.msra.mxu0 %v1556
    %1614 = vmatprep.subr.mxu0 %v1562
    %1615 = vmatpush1.msra.mxu0 %v1561
    %1616 = vmatprep.subr.mxu0 %v1567
    %1617 = vmatpush1.msra.mxu0 %v1566
    %1618 = vmatprep.subr.mxu0 %v1572
    %1619 = vmatpush1.msra.mxu0 %v1571
    %1620 = vmatprep.subr.mxu0 %v1577
    %1621 = vmatpush1.msra.mxu0 %v1576
    %1622 = vmatprep.subr.mxu0 %v1582
    %1623 = vmatpush1.msra.mxu0 %v1581
    %1624 = vmatprep.subr.mxu0 %v1587
    %1625 = vmatpush1.msra.mxu0 %v1586
    %1626 = vmatprep.subr.mxu0 %v1592
    %1627 = vmatpush1.msra.mxu0 %v1591
    %1628 = vmatprep.subr.mxu0 0.0
    %1629 = vmatpush1.msra.mxu0 0.0
    %1630 = vmatprep.subr.mxu0 0.0
    %1631 = vmatpush1.msra.mxu0 0.0
    %1632 = vmatprep.subr.mxu0 0.0
    %1633 = vmatpush1.msra.mxu0 0.0
    %1634 = vmatprep.subr.mxu0 0.0
    %1635 = vmatpush1.msra.mxu0 0.0
    %1636 = vmatprep.subr.mxu0 0.0
    %1637 = vmatpush1.msra.mxu0 0.0
    %1638 = vmatprep.subr.mxu0 0.0
    %1639 = vmatpush1.msra.mxu0 0.0
    %1640 = vmatprep.subr.mxu0 0.0
    %1641 = vmatpush1.msra.mxu0 0.0
    %1642 = vmatprep.subr.mxu0 0.0
    %1643 = vmatpush1.msra.mxu0 0.0
    %1644 = vmatprep.subr.mxu0 0.0
    %1645 = vmatpush1.msra.mxu0 0.0
    %1646 = vmatprep.subr.mxu0 0.0
    %1647 = vmatpush1.msra.mxu0 0.0
    %1648 = vmatprep.subr.mxu0 0.0
    %1649 = vmatpush1.msra.mxu0 0.0
    %1650 = vmatprep.subr.mxu0 0.0
    %1651 = vmatpush1.msra.mxu0 0.0
    %1652 = vmatprep.subr.mxu0 0.0
    %1653 = vmatpush1.msra.mxu0 0.0
    %1654 = vmatprep.subr.mxu0 0.0
    %1655 = vmatpush1.msra.mxu0 0.0
    %1656 = vmatprep.subr.mxu0 0.0
    %1657 = vmatpush1.msra.mxu0 0.0
    %1658 = vmatprep.subr.mxu0 0.0
    %1659 = vmatpush1.msra.mxu0 0.0
    %1660 = vmatprep.mubr.f32.mxu0 0.0
    %1661 = vmatmul.mubr.f32.gmra.mrb[0].mxu0 %v1170
    %v1662 = vpop.f32.mrb[0].mxu0
    %v1663 = vadd.f32 0.0, %v1662
    %v1664 = vpop.f32.mrb[0].mxu0
    %v1665 = vadd.f32 0.0, %v1664
    %1666 = vdwg.mxu0
    %1667 = vmatprep.subr.mxu0 %v1519
    %1668 = vmatpush1.msra.mxu0 %v1518
    %1669 = vmatprep.subr.mxu0 %v1524
    %1670 = vmatpush1.msra.mxu0 %v1523
    %1671 = vmatprep.subr.mxu0 %v1529
    %1672 = vmatpush1.msra.mxu0 %v1528
    %1673 = vmatprep.subr.mxu0 %v1534
    %1674 = vmatpush1.msra.mxu0 %v1533
    %1675 = vmatprep.subr.mxu0 %v1539
    %1676 = vmatpush1.msra.mxu0 %v1538
    %1677 = vmatprep.subr.mxu0 %v1544
    %1678 = vmatpush1.msra.mxu0 %v1543
    %1679 = vmatprep.subr.mxu0 %v1549
    %1680 = vmatpush1.msra.mxu0 %v1548
    %1681 = vmatprep.subr.mxu0 %v1554
    %1682 = vmatpush1.msra.mxu0 %v1553
    %1683 = vmatprep.subr.mxu0 %v1559
    %1684 = vmatpush1.msra.mxu0 %v1558
    %1685 = vmatprep.subr.mxu0 %v1564
    %1686 = vmatpush1.msra.mxu0 %v1563
    %1687 = vmatprep.subr.mxu0 %v1569
    %1688 = vmatpush1.msra.mxu0 %v1568
    %1689 = vmatprep.subr.mxu0 %v1574
    %1690 = vmatpush1.msra.mxu0 %v1573
    %1691 = vmatprep.subr.mxu0 %v1579
    %1692 = vmatpush1.msra.mxu0 %v1578
    %1693 = vmatprep.subr.mxu0 %v1584
    %1694 = vmatpush1.msra.mxu0 %v1583
    %1695 = vmatprep.subr.mxu0 %v1589
    %1696 = vmatpush1.msra.mxu0 %v1588
    %1697 = vmatprep.subr.mxu0 %v1594
    %1698 = vmatpush1.msra.mxu0 %v1593
    %1699 = vmatprep.subr.mxu0 0.0
    %1700 = vmatpush1.msra.mxu0 0.0
    %1701 = vmatprep.subr.mxu0 0.0
    %1702 = vmatpush1.msra.mxu0 0.0
    %1703 = vmatprep.subr.mxu0 0.0
    %1704 = vmatpush1.msra.mxu0 0.0
    %1705 = vmatprep.subr.mxu0 0.0
    %1706 = vmatpush1.msra.mxu0 0.0
    %1707 = vmatprep.subr.mxu0 0.0
    %1708 = vmatpush1.msra.mxu0 0.0
    %1709 = vmatprep.subr.mxu0 0.0
    %1710 = vmatpush1.msra.mxu0 0.0
    %1711 = vmatprep.subr.mxu0 0.0
    %1712 = vmatpush1.msra.mxu0 0.0
    %1713 = vmatprep.subr.mxu0 0.0
    %1714 = vmatpush1.msra.mxu0 0.0
    %1715 = vmatprep.subr.mxu0 0.0
    %1716 = vmatpush1.msra.mxu0 0.0
    %1717 = vmatprep.subr.mxu0 0.0
    %1718 = vmatpush1.msra.mxu0 0.0
    %1719 = vmatprep.subr.mxu0 0.0
    %1720 = vmatpush1.msra.mxu0 0.0
    %1721 = vmatprep.subr.mxu0 0.0
    %1722 = vmatpush1.msra.mxu0 0.0
    %1723 = vmatprep.subr.mxu0 0.0
    %1724 = vmatpush1.msra.mxu0 0.0
    %1725 = vmatprep.subr.mxu0 0.0
    %1726 = vmatpush1.msra.mxu0 0.0
    %1727 = vmatprep.subr.mxu0 0.0
    %1728 = vmatpush1.msra.mxu0 0.0
    %1729 = vmatprep.subr.mxu0 0.0
    %1730 = vmatpush1.msra.mxu0 0.0
    %1731 = vmatprep.mubr.f32.mxu0 0.0
    %1732 = vmatmul.mubr.f32.gmra.mrb[0].mxu0 %v1170
    %v1733 = vpop.f32.mrb[0].mxu0
    %v1734 = vadd.f32 0.0, %v1733
    %v1735 = vpop.f32.mrb[0].mxu0
    %v1736 = vadd.f32 0.0, %v1735
    %1737 = vdwg.mxu0
    %1738 = vmatprep.subr.mxu0 0.0
    %1739 = vmatpush1.msra.mxu0 %v1520
    %1740 = vmatprep.subr.mxu0 0.0
    %1741 = vmatpush1.msra.mxu0 %v1525
    %1742 = vmatprep.subr.mxu0 0.0
    %1743 = vmatpush1.msra.mxu0 %v1530
    %1744 = vmatprep.subr.mxu0 0.0
    %1745 = vmatpush1.msra.mxu0 %v1535
    %1746 = vmatprep.subr.mxu0 0.0
    %1747 = vmatpush1.msra.mxu0 %v1540
    %1748 = vmatprep.subr.mxu0 0.0
    %1749 = vmatpush1.msra.mxu0 %v1545
    %1750 = vmatprep.subr.mxu0 0.0
    %1751 = vmatpush1.msra.mxu0 %v1550
    %1752 = vmatprep.subr.mxu0 0.0
    %1753 = vmatpush1.msra.mxu0 %v1555
    %1754 = vmatprep.subr.mxu0 0.0
    %1755 = vmatpush1.msra.mxu0 %v1560
    %1756 = vmatprep.subr.mxu0 0.0
    %1757 = vmatpush1.msra.mxu0 %v1565
    %1758 = vmatprep.subr.mxu0 0.0
    %1759 = vmatpush1.msra.mxu0 %v1570
    %1760 = vmatprep.subr.mxu0 0.0
    %1761 = vmatpush1.msra.mxu0 %v1575
    %1762 = vmatprep.subr.mxu0 0.0
    %1763 = vmatpush1.msra.mxu0 %v1580
    %1764 = vmatprep.subr.mxu0 0.0
    %1765 = vmatpush1.msra.mxu0 %v1585
    %1766 = vmatprep.subr.mxu0 0.0
    %1767 = vmatpush1.msra.mxu0 %v1590
    %1768 = vmatprep.subr.mxu0 0.0
    %1769 = vmatpush1.msra.mxu0 %v1595
    %1770 = vmatprep.subr.mxu0 0.0
    %1771 = vmatpush1.msra.mxu0 0.0
    %1772 = vmatprep.subr.mxu0 0.0
    %1773 = vmatpush1.msra.mxu0 0.0
    %1774 = vmatprep.subr.mxu0 0.0
    %1775 = vmatpush1.msra.mxu0 0.0
    %1776 = vmatprep.subr.mxu0 0.0
    %1777 = vmatpush1.msra.mxu0 0.0
    %1778 = vmatprep.subr.mxu0 0.0
    %1779 = vmatpush1.msra.mxu0 0.0
    %1780 = vmatprep.subr.mxu0 0.0
    %1781 = vmatpush1.msra.mxu0 0.0
    %1782 = vmatprep.subr.mxu0 0.0
    %1783 = vmatpush1.msra.mxu0 0.0
    %1784 = vmatprep.subr.mxu0 0.0
    %1785 = vmatpush1.msra.mxu0 0.0
    %1786 = vmatprep.subr.mxu0 0.0
    %1787 = vmatpush1.msra.mxu0 0.0
    %1788 = vmatprep.subr.mxu0 0.0
    %1789 = vmatpush1.msra.mxu0 0.0
    %1790 = vmatprep.subr.mxu0 0.0
    %1791 = vmatpush1.msra.mxu0 0.0
    %1792 = vmatprep.subr.mxu0 0.0
    %1793 = vmatpush1.msra.mxu0 0.0
    %1794 = vmatprep.subr.mxu0 0.0
    %1795 = vmatpush1.msra.mxu0 0.0
    %1796 = vmatprep.subr.mxu0 0.0
    %1797 = vmatpush1.msra.mxu0 0.0
    %1798 = vmatprep.subr.mxu0 0.0
    %1799 = vmatpush1.msra.mxu0 0.0
    %1800 = vmatprep.subr.mxu0 0.0
    %1801 = vmatpush1.msra.mxu0 0.0
    %1802 = vmatprep.mubr.f32.mxu0 0.0
    %1803 = vmatmul.mubr.f32.gmra.mrb[0].mxu0 %v1170
    %v1804 = vpop.f32.mrb[0].mxu0
    %v1805 = vadd.f32 0.0, %v1804
    %v1806 = vpop.f32.mrb[0].mxu0
    %1807 = vdwg.mxu0
    %v1813 = vcombine.low %v1663, %v1665
    %v1814 = vcombine.low %v1734, %v1736
    %v1816 = vunpack.c.l.s4 1966171168
    %v1817 = vunpack.c.0.s8 %v1816
    %v1818 = vlaneseq
    %v1819 = vshrl.u32 %v1818, 7
    %v1820 = vsub.s32 %v1817, %v1819
    %v1821 = vrot.slane %v1813, %v1820
    %v1823 = vunpack.c.l.s4 1966171168
    %v1824 = vunpack.c.0.s8 %v1823
    %v1825 = vlaneseq
    %v1826 = vshrl.u32 %v1825, 7
    %v1827 = vsub.s32 %v1824, %v1826
    %v1828 = vrot.slane %v1814, %v1827
    %v1830 = vunpack.c.l.s4 1966171168
    %v1831 = vunpack.c.0.s8 %v1830
    %v1832 = vlaneseq
    %v1833 = vshrl.u32 %v1832, 7
    %v1834 = vsub.s32 %v1831, %v1833
    %v1835 = vrot.slane %v1805, %v1834
    %v1836 = vcombine.low %v1821, %v1828
    %v1838 = vunpack.c.l.s4 1966171168
    %v1839 = vunpack.c.0.s8 %v1838
    %v1840 = vlaneseq
    %v1841 = vshrl.u32 %v1840, 7
    %v1842 = vsub.s32 %v1839, %v1841
    %v1843 = vrot.slane %v1836, %v1842
    %v1845 = vunpack.c.l.s4 1966171168
    %v1846 = vunpack.c.0.s8 %v1845
    %v1847 = vlaneseq
    %v1848 = vshrl.u32 %v1847, 7
    %v1849 = vsub.s32 %v1846, %v1848
    %v1850 = vrot.slane %v1835, %v1849
    %v1851 = vcombine.low %v1843, %v1850
    %v1853 = vadd.f32 %v1515, %v1851
    %v1854 = vxor.u32 %v1853, 2147483648
    %v1855 = vmul.f32 %v1854, 1.442695
    %v1856 = vpow.pop %v1855
    %v1857 = vadd.f32 %v1856, 1.0
    %v1858 = vrcp.pop %v1857
    %v1859 = vmul.f32 1.0, %v1858
    %v1861 = vrot.slane %v1853, 1
    %v1863 = vxor.u32 %v1861, 2147483648
    %v1864 = vmul.f32 %v1863, 1.442695
    %v1865 = vpow.pop %v1864
    %v1866 = vadd.f32 %v1865, 1.0
    %v1867 = vrcp.pop %v1866
    %v1868 = vmul.f32 1.0, %v1867
    %v1869 = vrot.slane %v1853, 2
    %v1871 = vtanh.pop %v1869
    %v1872 = vrot.slane %v1853, 3
    %v1874 = vxor.u32 %v1872, 2147483648
    %v1875 = vmul.f32 %v1874, 1.442695
    %v1876 = vpow.pop %v1875
    %v1877 = vadd.f32 %v1876, 1.0
    %v1878 = vrcp.pop %v1877
    %v1879 = vmul.f32 1.0, %v1878
    %v1880 = vrot.slane %v1853, 4
    %v1882 = vxor.u32 %v1880, 2147483648
    %v1883 = vmul.f32 %v1882, 1.442695
    %v1884 = vpow.pop %v1883
    %v1885 = vadd.f32 %v1884, 1.0
    %v1886 = vrcp.pop %v1885
    %v1887 = vmul.f32 1.0, %v1886
    %v1888 = vmul.f32 %v1859, %v1871
    %v1889 = vmul.f32 %v1879, %v1160
    %v1890 = vadd.f32 %v1888, %v1889
    %v1891 = vmul.f32 %v1887, %v1173
    %v1892 = vadd.f32 %v1890, %v1891
    %v1893 = vtanh.pop %v1892
    %v1894 = vmul.f32 %v1868, %v1893
    %1895 = vst [vmem:[#allocation3 + $0x6] sm:$0x1] %v1892
    %1896 = vst [vmem:[#allocation2 + $0x6] sm:$0x1] %v1894
    %s1897 = sld [smem:[#allocation5 + $0xa]]
    %p1898 = scmp.ge.s32.totalorder %s1897, 0
    %s1899 = scalar_select %p1898, 1, 0
    %s1900 = scvt.s32.f32 %s1899
    %p1901 = scmp.gt.s32.totalorder %s1897, 0
    %s1902 = scalar_select %p1901, %s1897, 0
    %s1903 = scalar_lea.vmem [#allocation2], %s1902
    %v1904 = vld [vmem:[%s1903] sm:$0x1]
    %v1905 = vstv %s1900
    %v1906 = vmul.f32 %v1904, %v1905
    %s1907 = scalar_lea.vmem [#allocation3], %s1902
    %v1908 = vld [vmem:[%s1907] sm:$0x1]
    %v1909 = vmul.f32 %v1908, %v1905
    %s1910 = sld [smem:[#allocation5 + $0xb]]
    %p1911 = scmp.ge.s32.totalorder %s1910, 0
    %s1912 = scalar_select %p1911, 1, 0
    %s1913 = scvt.s32.f32 %s1912
    %p1914 = scmp.gt.s32.totalorder %s1910, 0
    %s1915 = scalar_select %p1914, %s1910, 0
    %s1916 = scalar_lea.vmem [#allocation2], %s1915
    %v1917 = vld [vmem:[%s1916] sm:$0x1]
    %v1918 = vstv %s1913
    %v1919 = vmul.f32 %v1917, %v1918
    %s1920 = scalar_lea.vmem [#allocation3], %s1915
    %v1921 = vld [vmem:[%s1920] sm:$0x1]
    %v1922 = vmul.f32 %v1921, %v1918
    %s1923 = scalar_lea.vmem [#allocation4], 5
    %v1924 = vld [vmem:[%s1923] ss:$8 sm:$0xf]
    %v1925 = vld [vmem:[%s1923] ss:$8 sm:$0x10]
    %v1926 = vor.u32 %v1924, %v1925
    %v1927 = vld [vmem:[#allocation13] sm:$0xff]
    %v1928 = vld [vmem:[#allocation13 + $0x8] sm:$0xff]
    %v1929 = vld [vmem:[#allocation13 + $0x10] sm:$0xff]
    %v1930 = vld [vmem:[#allocation13 + $0x18] sm:$0xff]
    %v1931 = vld [vmem:[#allocation13 + $0x20] sm:$0xff]
    %v1932 = vld [vmem:[#allocation13 + $0x28] sm:$0xff]
    %v1933 = vld [vmem:[#allocation13 + $0x30] sm:$0xff]
    %v1934 = vld [vmem:[#allocation13 + $0x38] sm:$0xff]
    %v1935 = vld [vmem:[#allocation13 + $0x40] sm:$0xff]
    %v1936 = vld [vmem:[#allocation13 + $0x48] sm:$0xff]
    %v1937 = vld [vmem:[#allocation13 + $0x50] sm:$0xff]
    %v1938 = vld [vmem:[#allocation13 + $0x58] sm:$0xff]
    %v1939 = vld [vmem:[#allocation13 + $0x60] sm:$0xff]
    %v1940 = vld [vmem:[#allocation13 + $0x68] sm:$0xff]
    %v1941 = vld [vmem:[#allocation13 + $0x70] sm:$0xff]
    %v1942 = vld [vmem:[#allocation13 + $0x78] sm:$0xff]
    %v1943 = vld [vmem:[#allocation13 + $0x80] sm:$0xff]
    %v1944 = vld [vmem:[#allocation13 + $0x88] sm:$0xff]
    %v1945 = vld [vmem:[#allocation13 + $0x90] sm:$0xff]
    %v1946 = vld [vmem:[#allocation13 + $0x98] sm:$0xff]
    %v1947 = vld [vmem:[#allocation13 + $0xa0] sm:$0xff]
    %v1948 = vld [vmem:[#allocation13 + $0xa8] sm:$0xff]
    %v1949 = vld [vmem:[#allocation13 + $0xb0] sm:$0xff]
    %v1950 = vld [vmem:[#allocation13 + $0xb8] sm:$0xff]
    %v1951 = vld [vmem:[#allocation13 + $0xc0] sm:$0xff]
    %v1952 = vld [vmem:[#allocation13 + $0xc8] sm:$0xff]
    %v1953 = vld [vmem:[#allocation13 + $0xd0] sm:$0xff]
    %v1954 = vld [vmem:[#allocation13 + $0xd8] sm:$0xff]
    %v1955 = vld [vmem:[#allocation13 + $0xe0] sm:$0xff]
    %v1956 = vld [vmem:[#allocation13 + $0xe8] sm:$0xff]
    %v1957 = vld [vmem:[#allocation13 + $0xf0] sm:$0xff]
    %v1958 = vld [vmem:[#allocation13 + $0xf8] sm:$0xff]
    %v1959 = vld [vmem:[#allocation13 + $0x100] sm:$0xff]
    %v1960 = vld [vmem:[#allocation13 + $0x108] sm:$0xff]
    %v1961 = vld [vmem:[#allocation13 + $0x110] sm:$0xff]
    %v1962 = vld [vmem:[#allocation13 + $0x118] sm:$0xff]
    %v1963 = vld [vmem:[#allocation13 + $0x120] sm:$0xff]
    %v1964 = vld [vmem:[#allocation13 + $0x128] sm:$0xff]
    %v1965 = vld [vmem:[#allocation13 + $0x130] sm:$0xff]
    %v1966 = vld [vmem:[#allocation13 + $0x138] sm:$0xff]
    %v1967 = vld [vmem:[#allocation13 + $0x140] sm:$0xff]
    %v1968 = vld [vmem:[#allocation13 + $0x148] sm:$0xff]
    %v1969 = vld [vmem:[#allocation13 + $0x150] sm:$0xff]
    %v1970 = vld [vmem:[#allocation13 + $0x158] sm:$0xff]
    %v1971 = vld [vmem:[#allocation13 + $0x160] sm:$0xff]
    %v1972 = vld [vmem:[#allocation13 + $0x168] sm:$0xff]
    %v1973 = vld [vmem:[#allocation13 + $0x170] sm:$0xff]
    %v1974 = vld [vmem:[#allocation13 + $0x178] sm:$0xff]
    %v1975 = vld [vmem:[#allocation13 + $0x180] sm:$0xff]
    %v1976 = vld [vmem:[#allocation13 + $0x188] sm:$0xff]
    %v1977 = vld [vmem:[#allocation13 + $0x190] sm:$0xff]
    %v1978 = vld [vmem:[#allocation13 + $0x198] sm:$0xff]
    %v1979 = vld [vmem:[#allocation13 + $0x1a0] sm:$0xff]
    %v1980 = vld [vmem:[#allocation13 + $0x1a8] sm:$0xff]
    %v1981 = vld [vmem:[#allocation13 + $0x1b0] sm:$0xff]
    %v1982 = vld [vmem:[#allocation13 + $0x1b8] sm:$0xff]
    %v1983 = vld [vmem:[#allocation13 + $0x1c0] sm:$0xff]
    %v1984 = vld [vmem:[#allocation13 + $0x1c8] sm:$0xff]
    %v1985 = vld [vmem:[#allocation13 + $0x1d0] sm:$0xff]
    %v1986 = vld [vmem:[#allocation13 + $0x1d8] sm:$0xff]
    %v1987 = vld [vmem:[#allocation13 + $0x1e0] sm:$0xff]
    %v1988 = vld [vmem:[#allocation13 + $0x1e8] sm:$0xff]
    %v1989 = vld [vmem:[#allocation13 + $0x1f0] sm:$0xff]
    %v1990 = vld [vmem:[#allocation13 + $0x1f8] sm:$0xff]
    %v1991 = vld [vmem:[#allocation13 + $0x200] sm:$0xff]
    %v1992 = vld [vmem:[#allocation13 + $0x208] sm:$0xff]
    %v1993 = vld [vmem:[#allocation13 + $0x210] sm:$0xff]
    %v1994 = vld [vmem:[#allocation13 + $0x218] sm:$0xff]
    %v1995 = vld [vmem:[#allocation13 + $0x220] sm:$0xff]
    %v1996 = vld [vmem:[#allocation13 + $0x228] sm:$0xff]
    %v1997 = vld [vmem:[#allocation13 + $0x230] sm:$0xff]
    %v1998 = vld [vmem:[#allocation13 + $0x238] sm:$0xff]
    %v1999 = vld [vmem:[#allocation13 + $0x240] sm:$0xff]
    %v2000 = vld [vmem:[#allocation13 + $0x248] sm:$0xff]
    %v2001 = vld [vmem:[#allocation13 + $0x250] sm:$0xff]
    %v2002 = vld [vmem:[#allocation13 + $0x258] sm:$0xff]
    %v2003 = vld [vmem:[#allocation13 + $0x260] sm:$0xff]
    %v2004 = vld [vmem:[#allocation13 + $0x268] sm:$0xff]
    %v2005 = vld [vmem:[#allocation13 + $0x270] sm:$0xff]
    %v2006 = vld [vmem:[#allocation13 + $0x278] sm:$0xff]
    %2007 = vmatprep.subr.mxu0 %v1928
    %2008 = vmatpush1.msra.mxu0 %v1927
    %2009 = vmatprep.subr.mxu0 %v1933
    %2010 = vmatpush1.msra.mxu0 %v1932
    %2011 = vmatprep.subr.mxu0 %v1938
    %2012 = vmatpush1.msra.mxu0 %v1937
    %2013 = vmatprep.subr.mxu0 %v1943
    %2014 = vmatpush1.msra.mxu0 %v1942
    %2015 = vmatprep.subr.mxu0 %v1948
    %2016 = vmatpush1.msra.mxu0 %v1947
    %2017 = vmatprep.subr.mxu0 %v1953
    %2018 = vmatpush1.msra.mxu0 %v1952
    %2019 = vmatprep.subr.mxu0 %v1958
    %2020 = vmatpush1.msra.mxu0 %v1957
    %2021 = vmatprep.subr.mxu0 %v1963
    %2022 = vmatpush1.msra.mxu0 %v1962
    %2023 = vmatprep.subr.mxu0 %v1968
    %2024 = vmatpush1.msra.mxu0 %v1967
    %2025 = vmatprep.subr.mxu0 %v1973
    %2026 = vmatpush1.msra.mxu0 %v1972
    %2027 = vmatprep.subr.mxu0 %v1978
    %2028 = vmatpush1.msra.mxu0 %v1977
    %2029 = vmatprep.subr.mxu0 %v1983
    %2030 = vmatpush1.msra.mxu0 %v1982
    %2031 = vmatprep.subr.mxu0 %v1988
    %2032 = vmatpush1.msra.mxu0 %v1987
    %2033 = vmatprep.subr.mxu0 %v1993
    %2034 = vmatpush1.msra.mxu0 %v1992
    %2035 = vmatprep.subr.mxu0 %v1998
    %2036 = vmatpush1.msra.mxu0 %v1997
    %2037 = vmatprep.subr.mxu0 %v2003
    %2038 = vmatpush1.msra.mxu0 %v2002
    %2039 = vmatprep.subr.mxu0 0.0
    %2040 = vmatpush1.msra.mxu0 0.0
    %2041 = vmatprep.subr.mxu0 0.0
    %2042 = vmatpush1.msra.mxu0 0.0
    %2043 = vmatprep.subr.mxu0 0.0
    %2044 = vmatpush1.msra.mxu0 0.0
    %2045 = vmatprep.subr.mxu0 0.0
    %2046 = vmatpush1.msra.mxu0 0.0
    %2047 = vmatprep.subr.mxu0 0.0
    %2048 = vmatpush1.msra.mxu0 0.0
    %2049 = vmatprep.subr.mxu0 0.0
    %2050 = vmatpush1.msra.mxu0 0.0
    %2051 = vmatprep.subr.mxu0 0.0
    %2052 = vmatpush1.msra.mxu0 0.0
    %2053 = vmatprep.subr.mxu0 0.0
    %2054 = vmatpush1.msra.mxu0 0.0
    %2055 = vmatprep.subr.mxu0 0.0
    %2056 = vmatpush1.msra.mxu0 0.0
    %2057 = vmatprep.subr.mxu0 0.0
    %2058 = vmatpush1.msra.mxu0 0.0
    %2059 = vmatprep.subr.mxu0 0.0
    %2060 = vmatpush1.msra.mxu0 0.0
    %2061 = vmatprep.subr.mxu0 0.0
    %2062 = vmatpush1.msra.mxu0 0.0
    %2063 = vmatprep.subr.mxu0 0.0
    %2064 = vmatpush1.msra.mxu0 0.0
    %2065 = vmatprep.subr.mxu0 0.0
    %2066 = vmatpush1.msra.mxu0 0.0
    %2067 = vmatprep.subr.mxu0 0.0
    %2068 = vmatpush1.msra.mxu0 0.0
    %2069 = vmatprep.subr.mxu0 0.0
    %2070 = vmatpush1.msra.mxu0 0.0
    %2071 = vmatprep.mubr.f32.mxu0 0.0
    %2072 = vmatmul.mubr.f32.gmra.mrb[0].mxu0 %v1906
    %v2073 = vpop.f32.mrb[0].mxu0
    %v2074 = vadd.f32 0.0, %v2073
    %v2075 = vpop.f32.mrb[0].mxu0
    %v2076 = vadd.f32 0.0, %v2075
    %2077 = vdwg.mxu0
    %2078 = vmatprep.subr.mxu0 %v1930
    %2079 = vmatpush1.msra.mxu0 %v1929
    %2080 = vmatprep.subr.mxu0 %v1935
    %2081 = vmatpush1.msra.mxu0 %v1934
    %2082 = vmatprep.subr.mxu0 %v1940
    %2083 = vmatpush1.msra.mxu0 %v1939
    %2084 = vmatprep.subr.mxu0 %v1945
    %2085 = vmatpush1.msra.mxu0 %v1944
    %2086 = vmatprep.subr.mxu0 %v1950
    %2087 = vmatpush1.msra.mxu0 %v1949
    %2088 = vmatprep.subr.mxu0 %v1955
    %2089 = vmatpush1.msra.mxu0 %v1954
    %2090 = vmatprep.subr.mxu0 %v1960
    %2091 = vmatpush1.msra.mxu0 %v1959
    %2092 = vmatprep.subr.mxu0 %v1965
    %2093 = vmatpush1.msra.mxu0 %v1964
    %2094 = vmatprep.subr.mxu0 %v1970
    %2095 = vmatpush1.msra.mxu0 %v1969
    %2096 = vmatprep.subr.mxu0 %v1975
    %2097 = vmatpush1.msra.mxu0 %v1974
    %2098 = vmatprep.subr.mxu0 %v1980
    %2099 = vmatpush1.msra.mxu0 %v1979
    %2100 = vmatprep.subr.mxu0 %v1985
    %2101 = vmatpush1.msra.mxu0 %v1984
    %2102 = vmatprep.subr.mxu0 %v1990
    %2103 = vmatpush1.msra.mxu0 %v1989
    %2104 = vmatprep.subr.mxu0 %v1995
    %2105 = vmatpush1.msra.mxu0 %v1994
    %2106 = vmatprep.subr.mxu0 %v2000
    %2107 = vmatpush1.msra.mxu0 %v1999
    %2108 = vmatprep.subr.mxu0 %v2005
    %2109 = vmatpush1.msra.mxu0 %v2004
    %2110 = vmatprep.subr.mxu0 0.0
    %2111 = vmatpush1.msra.mxu0 0.0
    %2112 = vmatprep.subr.mxu0 0.0
    %2113 = vmatpush1.msra.mxu0 0.0
    %2114 = vmatprep.subr.mxu0 0.0
    %2115 = vmatpush1.msra.mxu0 0.0
    %2116 = vmatprep.subr.mxu0 0.0
    %2117 = vmatpush1.msra.mxu0 0.0
    %2118 = vmatprep.subr.mxu0 0.0
    %2119 = vmatpush1.msra.mxu0 0.0
    %2120 = vmatprep.subr.mxu0 0.0
    %2121 = vmatpush1.msra.mxu0 0.0
    %2122 = vmatprep.subr.mxu0 0.0
    %2123 = vmatpush1.msra.mxu0 0.0
    %2124 = vmatprep.subr.mxu0 0.0
    %2125 = vmatpush1.msra.mxu0 0.0
    %2126 = vmatprep.subr.mxu0 0.0
    %2127 = vmatpush1.msra.mxu0 0.0
    %2128 = vmatprep.subr.mxu0 0.0
    %2129 = vmatpush1.msra.mxu0 0.0
    %2130 = vmatprep.subr.mxu0 0.0
    %2131 = vmatpush1.msra.mxu0 0.0
    %2132 = vmatprep.subr.mxu0 0.0
    %2133 = vmatpush1.msra.mxu0 0.0
    %2134 = vmatprep.subr.mxu0 0.0
    %2135 = vmatpush1.msra.mxu0 0.0
    %2136 = vmatprep.subr.mxu0 0.0
    %2137 = vmatpush1.msra.mxu0 0.0
    %2138 = vmatprep.subr.mxu0 0.0
    %2139 = vmatpush1.msra.mxu0 0.0
    %2140 = vmatprep.subr.mxu0 0.0
    %2141 = vmatpush1.msra.mxu0 0.0
    %2142 = vmatprep.mubr.f32.mxu0 0.0
    %2143 = vmatmul.mubr.f32.gmra.mrb[0].mxu0 %v1906
    %v2144 = vpop.f32.mrb[0].mxu0
    %v2145 = vadd.f32 0.0, %v2144
    %v2146 = vpop.f32.mrb[0].mxu0
    %v2147 = vadd.f32 0.0, %v2146
    %2148 = vdwg.mxu0
    %2149 = vmatprep.subr.mxu0 0.0
    %2150 = vmatpush1.msra.mxu0 %v1931
    %2151 = vmatprep.subr.mxu0 0.0
    %2152 = vmatpush1.msra.mxu0 %v1936
    %2153 = vmatprep.subr.mxu0 0.0
    %2154 = vmatpush1.msra.mxu0 %v1941
    %2155 = vmatprep.subr.mxu0 0.0
    %2156 = vmatpush1.msra.mxu0 %v1946
    %2157 = vmatprep.subr.mxu0 0.0
    %2158 = vmatpush1.msra.mxu0 %v1951
    %2159 = vmatprep.subr.mxu0 0.0
    %2160 = vmatpush1.msra.mxu0 %v1956
    %2161 = vmatprep.subr.mxu0 0.0
    %2162 = vmatpush1.msra.mxu0 %v1961
    %2163 = vmatprep.subr.mxu0 0.0
    %2164 = vmatpush1.msra.mxu0 %v1966
    %2165 = vmatprep.subr.mxu0 0.0
    %2166 = vmatpush1.msra.mxu0 %v1971
    %2167 = vmatprep.subr.mxu0 0.0
    %2168 = vmatpush1.msra.mxu0 %v1976
    %2169 = vmatprep.subr.mxu0 0.0
    %2170 = vmatpush1.msra.mxu0 %v1981
    %2171 = vmatprep.subr.mxu0 0.0
    %2172 = vmatpush1.msra.mxu0 %v1986
    %2173 = vmatprep.subr.mxu0 0.0
    %2174 = vmatpush1.msra.mxu0 %v1991
    %2175 = vmatprep.subr.mxu0 0.0
    %2176 = vmatpush1.msra.mxu0 %v1996
    %2177 = vmatprep.subr.mxu0 0.0
    %2178 = vmatpush1.msra.mxu0 %v2001
    %2179 = vmatprep.subr.mxu0 0.0
    %2180 = vmatpush1.msra.mxu0 %v2006
    %2181 = vmatprep.subr.mxu0 0.0
    %2182 = vmatpush1.msra.mxu0 0.0
    %2183 = vmatprep.subr.mxu0 0.0
    %2184 = vmatpush1.msra.mxu0 0.0
    %2185 = vmatprep.subr.mxu0 0.0
    %2186 = vmatpush1.msra.mxu0 0.0
    %2187 = vmatprep.subr.mxu0 0.0
    %2188 = vmatpush1.msra.mxu0 0.0
    %2189 = vmatprep.subr.mxu0 0.0
    %2190 = vmatpush1.msra.mxu0 0.0
    %2191 = vmatprep.subr.mxu0 0.0
    %2192 = vmatpush1.msra.mxu0 0.0
    %2193 = vmatprep.subr.mxu0 0.0
    %2194 = vmatpush1.msra.mxu0 0.0
    %2195 = vmatprep.subr.mxu0 0.0
    %2196 = vmatpush1.msra.mxu0 0.0
    %2197 = vmatprep.subr.mxu0 0.0
    %2198 = vmatpush1.msra.mxu0 0.0
    %2199 = vmatprep.subr.mxu0 0.0
    %2200 = vmatpush1.msra.mxu0 0.0
    %2201 = vmatprep.subr.mxu0 0.0
    %2202 = vmatpush1.msra.mxu0 0.0
    %2203 = vmatprep.subr.mxu0 0.0
    %2204 = vmatpush1.msra.mxu0 0.0
    %2205 = vmatprep.subr.mxu0 0.0
    %2206 = vmatpush1.msra.mxu0 0.0
    %2207 = vmatprep.subr.mxu0 0.0
    %2208 = vmatpush1.msra.mxu0 0.0
    %2209 = vmatprep.subr.mxu0 0.0
    %2210 = vmatpush1.msra.mxu0 0.0
    %2211 = vmatprep.subr.mxu0 0.0
    %2212 = vmatpush1.msra.mxu0 0.0
    %2213 = vmatprep.mubr.f32.mxu0 0.0
    %2214 = vmatmul.mubr.f32.gmra.mrb[0].mxu0 %v1906
    %v2215 = vpop.f32.mrb[0].mxu0
    %v2216 = vadd.f32 0.0, %v2215
    %v2217 = vpop.f32.mrb[0].mxu0
    %2218 = vdwg.mxu0
    %v2224 = vcombine.low %v2074, %v2076
    %v2225 = vcombine.low %v2145, %v2147
    %v2227 = vunpack.c.l.s4 1966171168
    %v2228 = vunpack.c.0.s8 %v2227
    %v2229 = vlaneseq
    %v2230 = vshrl.u32 %v2229, 7
    %v2231 = vsub.s32 %v2228, %v2230
    %v2232 = vrot.slane %v2224, %v2231
    %v2234 = vunpack.c.l.s4 1966171168
    %v2235 = vunpack.c.0.s8 %v2234
    %v2236 = vlaneseq
    %v2237 = vshrl.u32 %v2236, 7
    %v2238 = vsub.s32 %v2235, %v2237
    %v2239 = vrot.slane %v2225, %v2238
    %v2241 = vunpack.c.l.s4 1966171168
    %v2242 = vunpack.c.0.s8 %v2241
    %v2243 = vlaneseq
    %v2244 = vshrl.u32 %v2243, 7
    %v2245 = vsub.s32 %v2242, %v2244
    %v2246 = vrot.slane %v2216, %v2245
    %v2247 = vcombine.low %v2232, %v2239
    %v2249 = vunpack.c.l.s4 1966171168
    %v2250 = vunpack.c.0.s8 %v2249
    %v2251 = vlaneseq
    %v2252 = vshrl.u32 %v2251, 7
    %v2253 = vsub.s32 %v2250, %v2252
    %v2254 = vrot.slane %v2247, %v2253
    %v2256 = vunpack.c.l.s4 1966171168
    %v2257 = vunpack.c.0.s8 %v2256
    %v2258 = vlaneseq
    %v2259 = vshrl.u32 %v2258, 7
    %v2260 = vsub.s32 %v2257, %v2259
    %v2261 = vrot.slane %v2246, %v2260
    %v2262 = vcombine.low %v2254, %v2261
    %v2264 = vadd.f32 %v1926, %v2262
    %v2265 = vld [vmem:[%s766] sm:$0xff]
    %v2266 = vld [vmem:[%s766 + $0x8] sm:$0xff]
    %v2267 = vld [vmem:[%s766 + $0x10] sm:$0xff]
    %v2268 = vld [vmem:[%s766 + $0x18] sm:$0xff]
    %v2269 = vld [vmem:[%s766 + $0x20] sm:$0xff]
    %v2270 = vld [vmem:[%s766 + $0x28] sm:$0xff]
    %v2271 = vld [vmem:[%s766 + $0x30] sm:$0xff]
    %v2272 = vld [vmem:[%s766 + $0x38] sm:$0xff]
    %v2273 = vld [vmem:[%s766 + $0x40] sm:$0xff]
    %v2274 = vld [vmem:[%s766 + $0x48] sm:$0xff]
    %v2275 = vld [vmem:[%s766 + $0x50] sm:$0xff]
    %v2276 = vld [vmem:[%s766 + $0x58] sm:$0xff]
    %v2277 = vld [vmem:[%s766 + $0x60] sm:$0xff]
    %v2278 = vld [vmem:[%s766 + $0x68] sm:$0xff]
    %v2279 = vld [vmem:[%s766 + $0x70] sm:$0xff]
    %v2280 = vld [vmem:[%s766 + $0x78] sm:$0xff]
    %v2281 = vld [vmem:[%s766 + $0x80] sm:$0xff]
    %v2282 = vld [vmem:[%s766 + $0x88] sm:$0xff]
    %v2283 = vld [vmem:[%s766 + $0x90] sm:$0xff]
    %v2284 = vld [vmem:[%s766 + $0x98] sm:$0xff]
    %v2285 = vld [vmem:[%s766 + $0xa0] sm:$0xff]
    %v2286 = vld [vmem:[%s766 + $0xa8] sm:$0xff]
    %v2287 = vld [vmem:[%s766 + $0xb0] sm:$0xff]
    %v2288 = vld [vmem:[%s766 + $0xb8] sm:$0xff]
    %v2289 = vld [vmem:[%s766 + $0xc0] sm:$0xff]
    %v2290 = vld [vmem:[%s766 + $0xc8] sm:$0xff]
    %v2291 = vld [vmem:[%s766 + $0xd0] sm:$0xff]
    %v2292 = vld [vmem:[%s766 + $0xd8] sm:$0xff]
    %v2293 = vld [vmem:[%s766 + $0xe0] sm:$0xff]
    %v2294 = vld [vmem:[%s766 + $0xe8] sm:$0xff]
    %v2295 = vld [vmem:[%s766 + $0xf0] sm:$0xff]
    %v2296 = vld [vmem:[%s766 + $0xf8] sm:$0xff]
    %v2297 = vld [vmem:[%s766 + $0x100] sm:$0xff]
    %v2298 = vld [vmem:[%s766 + $0x108] sm:$0xff]
    %v2299 = vld [vmem:[%s766 + $0x110] sm:$0xff]
    %v2300 = vld [vmem:[%s766 + $0x118] sm:$0xff]
    %v2301 = vld [vmem:[%s766 + $0x120] sm:$0xff]
    %v2302 = vld [vmem:[%s766 + $0x128] sm:$0xff]
    %v2303 = vld [vmem:[%s766 + $0x130] sm:$0xff]
    %v2304 = vld [vmem:[%s766 + $0x138] sm:$0xff]
    %v2305 = vld [vmem:[%s766 + $0x140] sm:$0xff]
    %v2306 = vld [vmem:[%s766 + $0x148] sm:$0xff]
    %v2307 = vld [vmem:[%s766 + $0x150] sm:$0xff]
    %v2308 = vld [vmem:[%s766 + $0x158] sm:$0xff]
    %v2309 = vld [vmem:[%s766 + $0x160] sm:$0xff]
    %v2310 = vld [vmem:[%s766 + $0x168] sm:$0xff]
    %v2311 = vld [vmem:[%s766 + $0x170] sm:$0xff]
    %v2312 = vld [vmem:[%s766 + $0x178] sm:$0xff]
    %v2313 = vld [vmem:[%s766 + $0x180] sm:$0xff]
    %v2314 = vld [vmem:[%s766 + $0x188] sm:$0xff]
    %v2315 = vld [vmem:[%s766 + $0x190] sm:$0xff]
    %v2316 = vld [vmem:[%s766 + $0x198] sm:$0xff]
    %v2317 = vld [vmem:[%s766 + $0x1a0] sm:$0xff]
    %v2318 = vld [vmem:[%s766 + $0x1a8] sm:$0xff]
    %v2319 = vld [vmem:[%s766 + $0x1b0] sm:$0xff]
    %v2320 = vld [vmem:[%s766 + $0x1b8] sm:$0xff]
    %v2321 = vld [vmem:[%s766 + $0x1c0] sm:$0xff]
    %v2322 = vld [vmem:[%s766 + $0x1c8] sm:$0xff]
    %v2323 = vld [vmem:[%s766 + $0x1d0] sm:$0xff]
    %v2324 = vld [vmem:[%s766 + $0x1d8] sm:$0xff]
    %v2325 = vld [vmem:[%s766 + $0x1e0] sm:$0xff]
    %v2326 = vld [vmem:[%s766 + $0x1e8] sm:$0xff]
    %v2327 = vld [vmem:[%s766 + $0x1f0] sm:$0xff]
    %v2328 = vld [vmem:[%s766 + $0x1f8] sm:$0xff]
    %v2329 = vld [vmem:[%s766 + $0x200] sm:$0xff]
    %v2330 = vld [vmem:[%s766 + $0x208] sm:$0xff]
    %v2331 = vld [vmem:[%s766 + $0x210] sm:$0xff]
    %v2332 = vld [vmem:[%s766 + $0x218] sm:$0xff]
    %v2333 = vld [vmem:[%s766 + $0x220] sm:$0xff]
    %v2334 = vld [vmem:[%s766 + $0x228] sm:$0xff]
    %v2335 = vld [vmem:[%s766 + $0x230] sm:$0xff]
    %v2336 = vld [vmem:[%s766 + $0x238] sm:$0xff]
    %v2337 = vld [vmem:[%s766 + $0x240] sm:$0xff]
    %v2338 = vld [vmem:[%s766 + $0x248] sm:$0xff]
    %v2339 = vld [vmem:[%s766 + $0x250] sm:$0xff]
    %v2340 = vld [vmem:[%s766 + $0x258] sm:$0xff]
    %v2341 = vld [vmem:[%s766 + $0x260] sm:$0xff]
    %v2342 = vld [vmem:[%s766 + $0x268] sm:$0xff]
    %v2343 = vld [vmem:[%s766 + $0x270] sm:$0xff]
    %v2344 = vld [vmem:[%s766 + $0x278] sm:$0xff]
    %2345 = vmatprep.subr.mxu0 %v2266
    %2346 = vmatpush1.msra.mxu0 %v2265
    %2347 = vmatprep.subr.mxu0 %v2271
    %2348 = vmatpush1.msra.mxu0 %v2270
    %2349 = vmatprep.subr.mxu0 %v2276
    %2350 = vmatpush1.msra.mxu0 %v2275
    %2351 = vmatprep.subr.mxu0 %v2281
    %2352 = vmatpush1.msra.mxu0 %v2280
    %2353 = vmatprep.subr.mxu0 %v2286
    %2354 = vmatpush1.msra.mxu0 %v2285
    %2355 = vmatprep.subr.mxu0 %v2291
    %2356 = vmatpush1.msra.mxu0 %v2290
    %2357 = vmatprep.subr.mxu0 %v2296
    %2358 = vmatpush1.msra.mxu0 %v2295
    %2359 = vmatprep.subr.mxu0 %v2301
    %2360 = vmatpush1.msra.mxu0 %v2300
    %2361 = vmatprep.subr.mxu0 %v2306
    %2362 = vmatpush1.msra.mxu0 %v2305
    %2363 = vmatprep.subr.mxu0 %v2311
    %2364 = vmatpush1.msra.mxu0 %v2310
    %2365 = vmatprep.subr.mxu0 %v2316
    %2366 = vmatpush1.msra.mxu0 %v2315
    %2367 = vmatprep.subr.mxu0 %v2321
    %2368 = vmatpush1.msra.mxu0 %v2320
    %2369 = vmatprep.subr.mxu0 %v2326
    %2370 = vmatpush1.msra.mxu0 %v2325
    %2371 = vmatprep.subr.mxu0 %v2331
    %2372 = vmatpush1.msra.mxu0 %v2330
    %2373 = vmatprep.subr.mxu0 %v2336
    %2374 = vmatpush1.msra.mxu0 %v2335
    %2375 = vmatprep.subr.mxu0 %v2341
    %2376 = vmatpush1.msra.mxu0 %v2340
    %2377 = vmatprep.subr.mxu0 0.0
    %2378 = vmatpush1.msra.mxu0 0.0
    %2379 = vmatprep.subr.mxu0 0.0
    %2380 = vmatpush1.msra.mxu0 0.0
    %2381 = vmatprep.subr.mxu0 0.0
    %2382 = vmatpush1.msra.mxu0 0.0
    %2383 = vmatprep.subr.mxu0 0.0
    %2384 = vmatpush1.msra.mxu0 0.0
    %2385 = vmatprep.subr.mxu0 0.0
    %2386 = vmatpush1.msra.mxu0 0.0
    %2387 = vmatprep.subr.mxu0 0.0
    %2388 = vmatpush1.msra.mxu0 0.0
    %2389 = vmatprep.subr.mxu0 0.0
    %2390 = vmatpush1.msra.mxu0 0.0
    %2391 = vmatprep.subr.mxu0 0.0
    %2392 = vmatpush1.msra.mxu0 0.0
    %2393 = vmatprep.subr.mxu0 0.0
    %2394 = vmatpush1.msra.mxu0 0.0
    %2395 = vmatprep.subr.mxu0 0.0
    %2396 = vmatpush1.msra.mxu0 0.0
    %2397 = vmatprep.subr.mxu0 0.0
    %2398 = vmatpush1.msra.mxu0 0.0
    %2399 = vmatprep.subr.mxu0 0.0
    %2400 = vmatpush1.msra.mxu0 0.0
    %2401 = vmatprep.subr.mxu0 0.0
    %2402 = vmatpush1.msra.mxu0 0.0
    %2403 = vmatprep.subr.mxu0 0.0
    %2404 = vmatpush1.msra.mxu0 0.0
    %2405 = vmatprep.subr.mxu0 0.0
    %2406 = vmatpush1.msra.mxu0 0.0
    %2407 = vmatprep.subr.mxu0 0.0
    %2408 = vmatpush1.msra.mxu0 0.0
    %2409 = vmatprep.mubr.f32.mxu0 0.0
    %2410 = vmatmul.mubr.f32.gmra.mrb[0].mxu0 %v1919
    %v2411 = vpop.f32.mrb[0].mxu0
    %v2412 = vadd.f32 0.0, %v2411
    %v2413 = vpop.f32.mrb[0].mxu0
    %v2414 = vadd.f32 0.0, %v2413
    %2415 = vdwg.mxu0
    %2416 = vmatprep.subr.mxu0 %v2268
    %2417 = vmatpush1.msra.mxu0 %v2267
    %2418 = vmatprep.subr.mxu0 %v2273
    %2419 = vmatpush1.msra.mxu0 %v2272
    %2420 = vmatprep.subr.mxu0 %v2278
    %2421 = vmatpush1.msra.mxu0 %v2277
    %2422 = vmatprep.subr.mxu0 %v2283
    %2423 = vmatpush1.msra.mxu0 %v2282
    %2424 = vmatprep.subr.mxu0 %v2288
    %2425 = vmatpush1.msra.mxu0 %v2287
    %2426 = vmatprep.subr.mxu0 %v2293
    %2427 = vmatpush1.msra.mxu0 %v2292
    %2428 = vmatprep.subr.mxu0 %v2298
    %2429 = vmatpush1.msra.mxu0 %v2297
    %2430 = vmatprep.subr.mxu0 %v2303
    %2431 = vmatpush1.msra.mxu0 %v2302
    %2432 = vmatprep.subr.mxu0 %v2308
    %2433 = vmatpush1.msra.mxu0 %v2307
    %2434 = vmatprep.subr.mxu0 %v2313
    %2435 = vmatpush1.msra.mxu0 %v2312
    %2436 = vmatprep.subr.mxu0 %v2318
    %2437 = vmatpush1.msra.mxu0 %v2317
    %2438 = vmatprep.subr.mxu0 %v2323
    %2439 = vmatpush1.msra.mxu0 %v2322
    %2440 = vmatprep.subr.mxu0 %v2328
    %2441 = vmatpush1.msra.mxu0 %v2327
    %2442 = vmatprep.subr.mxu0 %v2333
    %2443 = vmatpush1.msra.mxu0 %v2332
    %2444 = vmatprep.subr.mxu0 %v2338
    %2445 = vmatpush1.msra.mxu0 %v2337
    %2446 = vmatprep.subr.mxu0 %v2343
    %2447 = vmatpush1.msra.mxu0 %v2342
    %2448 = vmatprep.subr.mxu0 0.0
    %2449 = vmatpush1.msra.mxu0 0.0
    %2450 = vmatprep.subr.mxu0 0.0
    %2451 = vmatpush1.msra.mxu0 0.0
    %2452 = vmatprep.subr.mxu0 0.0
    %2453 = vmatpush1.msra.mxu0 0.0
    %2454 = vmatprep.subr.mxu0 0.0
    %2455 = vmatpush1.msra.mxu0 0.0
    %2456 = vmatprep.subr.mxu0 0.0
    %2457 = vmatpush1.msra.mxu0 0.0
    %2458 = vmatprep.subr.mxu0 0.0
    %2459 = vmatpush1.msra.mxu0 0.0
    %2460 = vmatprep.subr.mxu0 0.0
    %2461 = vmatpush1.msra.mxu0 0.0
    %2462 = vmatprep.subr.mxu0 0.0
    %2463 = vmatpush1.msra.mxu0 0.0
    %2464 = vmatprep.subr.mxu0 0.0
    %2465 = vmatpush1.msra.mxu0 0.0
    %2466 = vmatprep.subr.mxu0 0.0
    %2467 = vmatpush1.msra.mxu0 0.0
    %2468 = vmatprep.subr.mxu0 0.0
    %2469 = vmatpush1.msra.mxu0 0.0
    %2470 = vmatprep.subr.mxu0 0.0
    %2471 = vmatpush1.msra.mxu0 0.0
    %2472 = vmatprep.subr.mxu0 0.0
    %2473 = vmatpush1.msra.mxu0 0.0
    %2474 = vmatprep.subr.mxu0 0.0
    %2475 = vmatpush1.msra.mxu0 0.0
    %2476 = vmatprep.subr.mxu0 0.0
    %2477 = vmatpush1.msra.mxu0 0.0
    %2478 = vmatprep.subr.mxu0 0.0
    %2479 = vmatpush1.msra.mxu0 0.0
    %2480 = vmatprep.mubr.f32.mxu0 0.0
    %2481 = vmatmul.mubr.f32.gmra.mrb[0].mxu0 %v1919
    %v2482 = vpop.f32.mrb[0].mxu0
    %v2483 = vadd.f32 0.0, %v2482
    %v2484 = vpop.f32.mrb[0].mxu0
    %v2485 = vadd.f32 0.0, %v2484
    %2486 = vdwg.mxu0
    %2487 = vmatprep.subr.mxu0 0.0
    %2488 = vmatpush1.msra.mxu0 %v2269
    %2489 = vmatprep.subr.mxu0 0.0
    %2490 = vmatpush1.msra.mxu0 %v2274
    %2491 = vmatprep.subr.mxu0 0.0
    %2492 = vmatpush1.msra.mxu0 %v2279
    %2493 = vmatprep.subr.mxu0 0.0
    %2494 = vmatpush1.msra.mxu0 %v2284
    %2495 = vmatprep.subr.mxu0 0.0
    %2496 = vmatpush1.msra.mxu0 %v2289
    %2497 = vmatprep.subr.mxu0 0.0
    %2498 = vmatpush1.msra.mxu0 %v2294
    %2499 = vmatprep.subr.mxu0 0.0
    %2500 = vmatpush1.msra.mxu0 %v2299
    %2501 = vmatprep.subr.mxu0 0.0
    %2502 = vmatpush1.msra.mxu0 %v2304
    %2503 = vmatprep.subr.mxu0 0.0
    %2504 = vmatpush1.msra.mxu0 %v2309
    %2505 = vmatprep.subr.mxu0 0.0
    %2506 = vmatpush1.msra.mxu0 %v2314
    %2507 = vmatprep.subr.mxu0 0.0
    %2508 = vmatpush1.msra.mxu0 %v2319
    %2509 = vmatprep.subr.mxu0 0.0
    %2510 = vmatpush1.msra.mxu0 %v2324
    %2511 = vmatprep.subr.mxu0 0.0
    %2512 = vmatpush1.msra.mxu0 %v2329
    %2513 = vmatprep.subr.mxu0 0.0
    %2514 = vmatpush1.msra.mxu0 %v2334
    %2515 = vmatprep.subr.mxu0 0.0
    %2516 = vmatpush1.msra.mxu0 %v2339
    %2517 = vmatprep.subr.mxu0 0.0
    %2518 = vmatpush1.msra.mxu0 %v2344
    %2519 = vmatprep.subr.mxu0 0.0
    %2520 = vmatpush1.msra.mxu0 0.0
    %2521 = vmatprep.subr.mxu0 0.0
    %2522 = vmatpush1.msra.mxu0 0.0
    %2523 = vmatprep.subr.mxu0 0.0
    %2524 = vmatpush1.msra.mxu0 0.0
    %2525 = vmatprep.subr.mxu0 0.0
    %2526 = vmatpush1.msra.mxu0 0.0
    %2527 = vmatprep.subr.mxu0 0.0
    %2528 = vmatpush1.msra.mxu0 0.0
    %2529 = vmatprep.subr.mxu0 0.0
    %2530 = vmatpush1.msra.mxu0 0.0
    %2531 = vmatprep.subr.mxu0 0.0
    %2532 = vmatpush1.msra.mxu0 0.0
    %2533 = vmatprep.subr.mxu0 0.0
    %2534 = vmatpush1.msra.mxu0 0.0
    %2535 = vmatprep.subr.mxu0 0.0
    %2536 = vmatpush1.msra.mxu0 0.0
    %2537 = vmatprep.subr.mxu0 0.0
    %2538 = vmatpush1.msra.mxu0 0.0
    %2539 = vmatprep.subr.mxu0 0.0
    %2540 = vmatpush1.msra.mxu0 0.0
    %2541 = vmatprep.subr.mxu0 0.0
    %2542 = vmatpush1.msra.mxu0 0.0
    %2543 = vmatprep.subr.mxu0 0.0
    %2544 = vmatpush1.msra.mxu0 0.0
    %2545 = vmatprep.subr.mxu0 0.0
    %2546 = vmatpush1.msra.mxu0 0.0
    %2547 = vmatprep.subr.mxu0 0.0
    %2548 = vmatpush1.msra.mxu0 0.0
    %2549 = vmatprep.subr.mxu0 0.0
    %2550 = vmatpush1.msra.mxu0 0.0
    %2551 = vmatprep.mubr.f32.mxu0 0.0
    %2552 = vmatmul.mubr.f32.gmra.mrb[0].mxu0 %v1919
    %v2553 = vpop.f32.mrb[0].mxu0
    %v2554 = vadd.f32 0.0, %v2553
    %v2555 = vpop.f32.mrb[0].mxu0
    %2556 = vdwg.mxu0
    %v2562 = vcombine.low %v2412, %v2414
    %v2563 = vcombine.low %v2483, %v2485
    %v2565 = vunpack.c.l.s4 1966171168
    %v2566 = vunpack.c.0.s8 %v2565
    %v2567 = vlaneseq
    %v2568 = vshrl.u32 %v2567, 7
    %v2569 = vsub.s32 %v2566, %v2568
    %v2570 = vrot.slane %v2562, %v2569
    %v2572 = vunpack.c.l.s4 1966171168
    %v2573 = vunpack.c.0.s8 %v2572
    %v2574 = vlaneseq
    %v2575 = vshrl.u32 %v2574, 7
    %v2576 = vsub.s32 %v2573, %v2575
    %v2577 = vrot.slane %v2563, %v2576
    %v2579 = vunpack.c.l.s4 1966171168
    %v2580 = vunpack.c.0.s8 %v2579
    %v2581 = vlaneseq
    %v2582 = vshrl.u32 %v2581, 7
    %v2583 = vsub.s32 %v2580, %v2582
    %v2584 = vrot.slane %v2554, %v2583
    %v2585 = vcombine.low %v2570, %v2577
    %v2587 = vunpack.c.l.s4 1966171168
    %v2588 = vunpack.c.0.s8 %v2587
    %v2589 = vlaneseq
    %v2590 = vshrl.u32 %v2589, 7
    %v2591 = vsub.s32 %v2588, %v2590
    %v2592 = vrot.slane %v2585, %v2591
    %v2594 = vunpack.c.l.s4 1966171168
    %v2595 = vunpack.c.0.s8 %v2594
    %v2596 = vlaneseq
    %v2597 = vshrl.u32 %v2596, 7
    %v2598 = vsub.s32 %v2595, %v2597
    %v2599 = vrot.slane %v2584, %v2598
    %v2600 = vcombine.low %v2592, %v2599
    %v2602 = vadd.f32 %v2264, %v2600
    %v2603 = vxor.u32 %v2602, 2147483648
    %v2604 = vmul.f32 %v2603, 1.442695
    %v2605 = vpow.pop %v2604
    %v2606 = vadd.f32 %v2605, 1.0
    %v2607 = vrcp.pop %v2606
    %v2608 = vmul.f32 1.0, %v2607
    %v2610 = vrot.slane %v2602, 1
    %v2612 = vxor.u32 %v2610, 2147483648
    %v2613 = vmul.f32 %v2612, 1.442695
    %v2614 = vpow.pop %v2613
    %v2615 = vadd.f32 %v2614, 1.0
    %v2616 = vrcp.pop %v2615
    %v2617 = vmul.f32 1.0, %v2616
    %v2618 = vrot.slane %v2602, 2
    %v2620 = vtanh.pop %v2618
    %v2621 = vrot.slane %v2602, 3
    %v2623 = vxor.u32 %v2621, 2147483648
    %v2624 = vmul.f32 %v2623, 1.442695
    %v2625 = vpow.pop %v2624
    %v2626 = vadd.f32 %v2625, 1.0
    %v2627 = vrcp.pop %v2626
    %v2628 = vmul.f32 1.0, %v2627
    %v2629 = vrot.slane %v2602, 4
    %v2631 = vxor.u32 %v2629, 2147483648
    %v2632 = vmul.f32 %v2631, 1.442695
    %v2633 = vpow.pop %v2632
    %v2634 = vadd.f32 %v2633, 1.0
    %v2635 = vrcp.pop %v2634
    %v2636 = vmul.f32 1.0, %v2635
    %v2637 = vmul.f32 %v2608, %v2620
    %v2638 = vmul.f32 %v2628, %v1909
    %v2639 = vadd.f32 %v2637, %v2638
    %v2640 = vmul.f32 %v2636, %v1922
    %v2641 = vadd.f32 %v2639, %v2640
    %v2642 = vtanh.pop %v2641
    %v2643 = vmul.f32 %v2617, %v2642
    %2644 = vst [vmem:[#allocation3 + $0x5] sm:$0x1] %v2641
    %2645 = vst [vmem:[#allocation2 + $0x5] sm:$0x1] %v2643
    %s2646 = sld [smem:[#allocation5 + $0x8]]
    %p2647 = scmp.ge.s32.totalorder %s2646, 0
    %s2648 = scalar_select %p2647, 1, 0
    %s2649 = scvt.s32.f32 %s2648
    %p2650 = scmp.gt.s32.totalorder %s2646, 0
    %s2651 = scalar_select %p2650, %s2646, 0
    %s2652 = scalar_lea.vmem [#allocation2], %s2651
    %v2653 = vld [vmem:[%s2652] sm:$0x1]
    %v2654 = vstv %s2649
    %v2655 = vmul.f32 %v2653, %v2654
    %s2656 = scalar_lea.vmem [#allocation3], %s2651
    %v2657 = vld [vmem:[%s2656] sm:$0x1]
    %v2658 = vmul.f32 %v2657, %v2654
    %s2659 = sld [smem:[#allocation5 + $0x9]]
    %p2660 = scmp.ge.s32.totalorder %s2659, 0
    %s2661 = scalar_select %p2660, 1, 0
    %s2662 = scvt.s32.f32 %s2661
    %p2663 = scmp.gt.s32.totalorder %s2659, 0
    %s2664 = scalar_select %p2663, %s2659, 0
    %s2665 = scalar_lea.vmem [#allocation2], %s2664
    %v2666 = vld [vmem:[%s2665] sm:$0x1]
    %v2667 = vstv %s2662
    %v2668 = vmul.f32 %v2666, %v2667
    %s2669 = scalar_lea.vmem [#allocation3], %s2664
    %v2670 = vld [vmem:[%s2669] sm:$0x1]
    %v2671 = vmul.f32 %v2670, %v2667
    %s2672 = scalar_lea.vmem [#allocation4], 4
    %v2673 = vld [vmem:[%s2672] ss:$8 sm:$0xf]
    %v2674 = vld [vmem:[%s2672] ss:$8 sm:$0x10]
    %v2675 = vor.u32 %v2673, %v2674
    %v2676 = vld [vmem:[#allocation13] sm:$0xff]
    %v2677 = vld [vmem:[#allocation13 + $0x8] sm:$0xff]
    %v2678 = vld [vmem:[#allocation13 + $0x10] sm:$0xff]
    %v2679 = vld [vmem:[#allocation13 + $0x18] sm:$0xff]
    %v2680 = vld [vmem:[#allocation13 + $0x20] sm:$0xff]
    %v2681 = vld [vmem:[#allocation13 + $0x28] sm:$0xff]
    %v2682 = vld [vmem:[#allocation13 + $0x30] sm:$0xff]
    %v2683 = vld [vmem:[#allocation13 + $0x38] sm:$0xff]
    %v2684 = vld [vmem:[#allocation13 + $0x40] sm:$0xff]
    %v2685 = vld [vmem:[#allocation13 + $0x48] sm:$0xff]
    %v2686 = vld [vmem:[#allocation13 + $0x50] sm:$0xff]
    %v2687 = vld [vmem:[#allocation13 + $0x58] sm:$0xff]
    %v2688 = vld [vmem:[#allocation13 + $0x60] sm:$0xff]
    %v2689 = vld [vmem:[#allocation13 + $0x68] sm:$0xff]
    %v2690 = vld [vmem:[#allocation13 + $0x70] sm:$0xff]
    %v2691 = vld [vmem:[#allocation13 + $0x78] sm:$0xff]
    %v2692 = vld [vmem:[#allocation13 + $0x80] sm:$0xff]
    %v2693 = vld [vmem:[#allocation13 + $0x88] sm:$0xff]
    %v2694 = vld [vmem:[#allocation13 + $0x90] sm:$0xff]
    %v2695 = vld [vmem:[#allocation13 + $0x98] sm:$0xff]
    %v2696 = vld [vmem:[#allocation13 + $0xa0] sm:$0xff]
    %v2697 = vld [vmem:[#allocation13 + $0xa8] sm:$0xff]
    %v2698 = vld [vmem:[#allocation13 + $0xb0] sm:$0xff]
    %v2699 = vld [vmem:[#allocation13 + $0xb8] sm:$0xff]
    %v2700 = vld [vmem:[#allocation13 + $0xc0] sm:$0xff]
    %v2701 = vld [vmem:[#allocation13 + $0xc8] sm:$0xff]
    %v2702 = vld [vmem:[#allocation13 + $0xd0] sm:$0xff]
    %v2703 = vld [vmem:[#allocation13 + $0xd8] sm:$0xff]
    %v2704 = vld [vmem:[#allocation13 + $0xe0] sm:$0xff]
    %v2705 = vld [vmem:[#allocation13 + $0xe8] sm:$0xff]
    %v2706 = vld [vmem:[#allocation13 + $0xf0] sm:$0xff]
    %v2707 = vld [vmem:[#allocation13 + $0xf8] sm:$0xff]
    %v2708 = vld [vmem:[#allocation13 + $0x100] sm:$0xff]
    %v2709 = vld [vmem:[#allocation13 + $0x108] sm:$0xff]
    %v2710 = vld [vmem:[#allocation13 + $0x110] sm:$0xff]
    %v2711 = vld [vmem:[#allocation13 + $0x118] sm:$0xff]
    %v2712 = vld [vmem:[#allocation13 + $0x120] sm:$0xff]
    %v2713 = vld [vmem:[#allocation13 + $0x128] sm:$0xff]
    %v2714 = vld [vmem:[#allocation13 + $0x130] sm:$0xff]
    %v2715 = vld [vmem:[#allocation13 + $0x138] sm:$0xff]
    %v2716 = vld [vmem:[#allocation13 + $0x140] sm:$0xff]
    %v2717 = vld [vmem:[#allocation13 + $0x148] sm:$0xff]
    %v2718 = vld [vmem:[#allocation13 + $0x150] sm:$0xff]
    %v2719 = vld [vmem:[#allocation13 + $0x158] sm:$0xff]
    %v2720 = vld [vmem:[#allocation13 + $0x160] sm:$0xff]
    %v2721 = vld [vmem:[#allocation13 + $0x168] sm:$0xff]
    %v2722 = vld [vmem:[#allocation13 + $0x170] sm:$0xff]
    %v2723 = vld [vmem:[#allocation13 + $0x178] sm:$0xff]
    %v2724 = vld [vmem:[#allocation13 + $0x180] sm:$0xff]
    %v2725 = vld [vmem:[#allocation13 + $0x188] sm:$0xff]
    %v2726 = vld [vmem:[#allocation13 + $0x190] sm:$0xff]
    %v2727 = vld [vmem:[#allocation13 + $0x198] sm:$0xff]
    %v2728 = vld [vmem:[#allocation13 + $0x1a0] sm:$0xff]
    %v2729 = vld [vmem:[#allocation13 + $0x1a8] sm:$0xff]
    %v2730 = vld [vmem:[#allocation13 + $0x1b0] sm:$0xff]
    %v2731 = vld [vmem:[#allocation13 + $0x1b8] sm:$0xff]
    %v2732 = vld [vmem:[#allocation13 + $0x1c0] sm:$0xff]
    %v2733 = vld [vmem:[#allocation13 + $0x1c8] sm:$0xff]
    %v2734 = vld [vmem:[#allocation13 + $0x1d0] sm:$0xff]
    %v2735 = vld [vmem:[#allocation13 + $0x1d8] sm:$0xff]
    %v2736 = vld [vmem:[#allocation13 + $0x1e0] sm:$0xff]
    %v2737 = vld [vmem:[#allocation13 + $0x1e8] sm:$0xff]
    %v2738 = vld [vmem:[#allocation13 + $0x1f0] sm:$0xff]
    %v2739 = vld [vmem:[#allocation13 + $0x1f8] sm:$0xff]
    %v2740 = vld [vmem:[#allocation13 + $0x200] sm:$0xff]
    %v2741 = vld [vmem:[#allocation13 + $0x208] sm:$0xff]
    %v2742 = vld [vmem:[#allocation13 + $0x210] sm:$0xff]
    %v2743 = vld [vmem:[#allocation13 + $0x218] sm:$0xff]
    %v2744 = vld [vmem:[#allocation13 + $0x220] sm:$0xff]
    %v2745 = vld [vmem:[#allocation13 + $0x228] sm:$0xff]
    %v2746 = vld [vmem:[#allocation13 + $0x230] sm:$0xff]
    %v2747 = vld [vmem:[#allocation13 + $0x238] sm:$0xff]
    %v2748 = vld [vmem:[#allocation13 + $0x240] sm:$0xff]
    %v2749 = vld [vmem:[#allocation13 + $0x248] sm:$0xff]
    %v2750 = vld [vmem:[#allocation13 + $0x250] sm:$0xff]
    %v2751 = vld [vmem:[#allocation13 + $0x258] sm:$0xff]
    %v2752 = vld [vmem:[#allocation13 + $0x260] sm:$0xff]
    %v2753 = vld [vmem:[#allocation13 + $0x268] sm:$0xff]
    %v2754 = vld [vmem:[#allocation13 + $0x270] sm:$0xff]
    %v2755 = vld [vmem:[#allocation13 + $0x278] sm:$0xff]
    %2756 = vmatprep.subr.mxu0 %v2677
    %2757 = vmatpush1.msra.mxu0 %v2676
    %2758 = vmatprep.subr.mxu0 %v2682
    %2759 = vmatpush1.msra.mxu0 %v2681
    %2760 = vmatprep.subr.mxu0 %v2687
    %2761 = vmatpush1.msra.mxu0 %v2686
    %2762 = vmatprep.subr.mxu0 %v2692
    %2763 = vmatpush1.msra.mxu0 %v2691
    %2764 = vmatprep.subr.mxu0 %v2697
    %2765 = vmatpush1.msra.mxu0 %v2696
    %2766 = vmatprep.subr.mxu0 %v2702
    %2767 = vmatpush1.msra.mxu0 %v2701
    %2768 = vmatprep.subr.mxu0 %v2707
    %2769 = vmatpush1.msra.mxu0 %v2706
    %2770 = vmatprep.subr.mxu0 %v2712
    %2771 = vmatpush1.msra.mxu0 %v2711
    %2772 = vmatprep.subr.mxu0 %v2717
    %2773 = vmatpush1.msra.mxu0 %v2716
    %2774 = vmatprep.subr.mxu0 %v2722
    %2775 = vmatpush1.msra.mxu0 %v2721
    %2776 = vmatprep.subr.mxu0 %v2727
    %2777 = vmatpush1.msra.mxu0 %v2726
    %2778 = vmatprep.subr.mxu0 %v2732
    %2779 = vmatpush1.msra.mxu0 %v2731
    %2780 = vmatprep.subr.mxu0 %v2737
    %2781 = vmatpush1.msra.mxu0 %v2736
    %2782 = vmatprep.subr.mxu0 %v2742
    %2783 = vmatpush1.msra.mxu0 %v2741
    %2784 = vmatprep.subr.mxu0 %v2747
    %2785 = vmatpush1.msra.mxu0 %v2746
    %2786 = vmatprep.subr.mxu0 %v2752
    %2787 = vmatpush1.msra.mxu0 %v2751
    %2788 = vmatprep.subr.mxu0 0.0
    %2789 = vmatpush1.msra.mxu0 0.0
    %2790 = vmatprep.subr.mxu0 0.0
    %2791 = vmatpush1.msra.mxu0 0.0
    %2792 = vmatprep.subr.mxu0 0.0
    %2793 = vmatpush1.msra.mxu0 0.0
    %2794 = vmatprep.subr.mxu0 0.0
    %2795 = vmatpush1.msra.mxu0 0.0
    %2796 = vmatprep.subr.mxu0 0.0
    %2797 = vmatpush1.msra.mxu0 0.0
    %2798 = vmatprep.subr.mxu0 0.0
    %2799 = vmatpush1.msra.mxu0 0.0
    %2800 = vmatprep.subr.mxu0 0.0
    %2801 = vmatpush1.msra.mxu0 0.0
    %2802 = vmatprep.subr.mxu0 0.0
    %2803 = vmatpush1.msra.mxu0 0.0
    %2804 = vmatprep.subr.mxu0 0.0
    %2805 = vmatpush1.msra.mxu0 0.0
    %2806 = vmatprep.subr.mxu0 0.0
    %2807 = vmatpush1.msra.mxu0 0.0
    %2808 = vmatprep.subr.mxu0 0.0
    %2809 = vmatpush1.msra.mxu0 0.0
    %2810 = vmatprep.subr.mxu0 0.0
    %2811 = vmatpush1.msra.mxu0 0.0
    %2812 = vmatprep.subr.mxu0 0.0
    %2813 = vmatpush1.msra.mxu0 0.0
    %2814 = vmatprep.subr.mxu0 0.0
    %2815 = vmatpush1.msra.mxu0 0.0
    %2816 = vmatprep.subr.mxu0 0.0
    %2817 = vmatpush1.msra.mxu0 0.0
    %2818 = vmatprep.subr.mxu0 0.0
    %2819 = vmatpush1.msra.mxu0 0.0
    %2820 = vmatprep.mubr.f32.mxu0 0.0
    %2821 = vmatmul.mubr.f32.gmra.mrb[0].mxu0 %v2655
    %v2822 = vpop.f32.mrb[0].mxu0
    %v2823 = vadd.f32 0.0, %v2822
    %v2824 = vpop.f32.mrb[0].mxu0
    %v2825 = vadd.f32 0.0, %v2824
    %2826 = vdwg.mxu0
    %2827 = vmatprep.subr.mxu0 %v2679
    %2828 = vmatpush1.msra.mxu0 %v2678
    %2829 = vmatprep.subr.mxu0 %v2684
    %2830 = vmatpush1.msra.mxu0 %v2683
    %2831 = vmatprep.subr.mxu0 %v2689
    %2832 = vmatpush1.msra.mxu0 %v2688
    %2833 = vmatprep.subr.mxu0 %v2694
    %2834 = vmatpush1.msra.mxu0 %v2693
    %2835 = vmatprep.subr.mxu0 %v2699
    %2836 = vmatpush1.msra.mxu0 %v2698
    %2837 = vmatprep.subr.mxu0 %v2704
    %2838 = vmatpush1.msra.mxu0 %v2703
    %2839 = vmatprep.subr.mxu0 %v2709
    %2840 = vmatpush1.msra.mxu0 %v2708
    %2841 = vmatprep.subr.mxu0 %v2714
    %2842 = vmatpush1.msra.mxu0 %v2713
    %2843 = vmatprep.subr.mxu0 %v2719
    %2844 = vmatpush1.msra.mxu0 %v2718
    %2845 = vmatprep.subr.mxu0 %v2724
    %2846 = vmatpush1.msra.mxu0 %v2723
    %2847 = vmatprep.subr.mxu0 %v2729
    %2848 = vmatpush1.msra.mxu0 %v2728
    %2849 = vmatprep.subr.mxu0 %v2734
    %2850 = vmatpush1.msra.mxu0 %v2733
    %2851 = vmatprep.subr.mxu0 %v2739
    %2852 = vmatpush1.msra.mxu0 %v2738
    %2853 = vmatprep.subr.mxu0 %v2744
    %2854 = vmatpush1.msra.mxu0 %v2743
    %2855 = vmatprep.subr.mxu0 %v2749
    %2856 = vmatpush1.msra.mxu0 %v2748
    %2857 = vmatprep.subr.mxu0 %v2754
    %2858 = vmatpush1.msra.mxu0 %v2753
    %2859 = vmatprep.subr.mxu0 0.0
    %2860 = vmatpush1.msra.mxu0 0.0
    %2861 = vmatprep.subr.mxu0 0.0
    %2862 = vmatpush1.msra.mxu0 0.0
    %2863 = vmatprep.subr.mxu0 0.0
    %2864 = vmatpush1.msra.mxu0 0.0
    %2865 = vmatprep.subr.mxu0 0.0
    %2866 = vmatpush1.msra.mxu0 0.0
    %2867 = vmatprep.subr.mxu0 0.0
    %2868 = vmatpush1.msra.mxu0 0.0
    %2869 = vmatprep.subr.mxu0 0.0
    %2870 = vmatpush1.msra.mxu0 0.0
    %2871 = vmatprep.subr.mxu0 0.0
    %2872 = vmatpush1.msra.mxu0 0.0
    %2873 = vmatprep.subr.mxu0 0.0
    %2874 = vmatpush1.msra.mxu0 0.0
    %2875 = vmatprep.subr.mxu0 0.0
    %2876 = vmatpush1.msra.mxu0 0.0
    %2877 = vmatprep.subr.mxu0 0.0
    %2878 = vmatpush1.msra.mxu0 0.0
    %2879 = vmatprep.subr.mxu0 0.0
    %2880 = vmatpush1.msra.mxu0 0.0
    %2881 = vmatprep.subr.mxu0 0.0
    %2882 = vmatpush1.msra.mxu0 0.0
    %2883 = vmatprep.subr.mxu0 0.0
    %2884 = vmatpush1.msra.mxu0 0.0
    %2885 = vmatprep.subr.mxu0 0.0
    %2886 = vmatpush1.msra.mxu0 0.0
    %2887 = vmatprep.subr.mxu0 0.0
    %2888 = vmatpush1.msra.mxu0 0.0
    %2889 = vmatprep.subr.mxu0 0.0
    %2890 = vmatpush1.msra.mxu0 0.0
    %2891 = vmatprep.mubr.f32.mxu0 0.0
    %2892 = vmatmul.mubr.f32.gmra.mrb[0].mxu0 %v2655
    %v2893 = vpop.f32.mrb[0].mxu0
    %v2894 = vadd.f32 0.0, %v2893
    %v2895 = vpop.f32.mrb[0].mxu0
    %v2896 = vadd.f32 0.0, %v2895
    %2897 = vdwg.mxu0
    %2898 = vmatprep.subr.mxu0 0.0
    %2899 = vmatpush1.msra.mxu0 %v2680
    %2900 = vmatprep.subr.mxu0 0.0
    %2901 = vmatpush1.msra.mxu0 %v2685
    %2902 = vmatprep.subr.mxu0 0.0
    %2903 = vmatpush1.msra.mxu0 %v2690
    %2904 = vmatprep.subr.mxu0 0.0
    %2905 = vmatpush1.msra.mxu0 %v2695
    %2906 = vmatprep.subr.mxu0 0.0
    %2907 = vmatpush1.msra.mxu0 %v2700
    %2908 = vmatprep.subr.mxu0 0.0
    %2909 = vmatpush1.msra.mxu0 %v2705
    %2910 = vmatprep.subr.mxu0 0.0
    %2911 = vmatpush1.msra.mxu0 %v2710
    %2912 = vmatprep.subr.mxu0 0.0
    %2913 = vmatpush1.msra.mxu0 %v2715
    %2914 = vmatprep.subr.mxu0 0.0
    %2915 = vmatpush1.msra.mxu0 %v2720
    %2916 = vmatprep.subr.mxu0 0.0
    %2917 = vmatpush1.msra.mxu0 %v2725
    %2918 = vmatprep.subr.mxu0 0.0
    %2919 = vmatpush1.msra.mxu0 %v2730
    %2920 = vmatprep.subr.mxu0 0.0
    %2921 = vmatpush1.msra.mxu0 %v2735
    %2922 = vmatprep.subr.mxu0 0.0
    %2923 = vmatpush1.msra.mxu0 %v2740
    %2924 = vmatprep.subr.mxu0 0.0
    %2925 = vmatpush1.msra.mxu0 %v2745
    %2926 = vmatprep.subr.mxu0 0.0
    %2927 = vmatpush1.msra.mxu0 %v2750
    %2928 = vmatprep.subr.mxu0 0.0
    %2929 = vmatpush1.msra.mxu0 %v2755
    %2930 = vmatprep.subr.mxu0 0.0
    %2931 = vmatpush1.msra.mxu0 0.0
    %2932 = vmatprep.subr.mxu0 0.0
    %2933 = vmatpush1.msra.mxu0 0.0
    %2934 = vmatprep.subr.mxu0 0.0
    %2935 = vmatpush1.msra.mxu0 0.0
    %2936 = vmatprep.subr.mxu0 0.0
    %2937 = vmatpush1.msra.mxu0 0.0
    %2938 = vmatprep.subr.mxu0 0.0
    %2939 = vmatpush1.msra.mxu0 0.0
    %2940 = vmatprep.subr.mxu0 0.0
    %2941 = vmatpush1.msra.mxu0 0.0
    %2942 = vmatprep.subr.mxu0 0.0
    %2943 = vmatpush1.msra.mxu0 0.0
    %2944 = vmatprep.subr.mxu0 0.0
    %2945 = vmatpush1.msra.mxu0 0.0
    %2946 = vmatprep.subr.mxu0 0.0
    %2947 = vmatpush1.msra.mxu0 0.0
    %2948 = vmatprep.subr.mxu0 0.0
    %2949 = vmatpush1.msra.mxu0 0.0
    %2950 = vmatprep.subr.mxu0 0.0
    %2951 = vmatpush1.msra.mxu0 0.0
    %2952 = vmatprep.subr.mxu0 0.0
    %2953 = vmatpush1.msra.mxu0 0.0
    %2954 = vmatprep.subr.mxu0 0.0
    %2955 = vmatpush1.msra.mxu0 0.0
    %2956 = vmatprep.subr.mxu0 0.0
    %2957 = vmatpush1.msra.mxu0 0.0
    %2958 = vmatprep.subr.mxu0 0.0
    %2959 = vmatpush1.msra.mxu0 0.0
    %2960 = vmatprep.subr.mxu0 0.0
    %2961 = vmatpush1.msra.mxu0 0.0
    %2962 = vmatprep.mubr.f32.mxu0 0.0
    %2963 = vmatmul.mubr.f32.gmra.mrb[0].mxu0 %v2655
    %v2964 = vpop.f32.mrb[0].mxu0
    %v2965 = vadd.f32 0.0, %v2964
    %v2966 = vpop.f32.mrb[0].mxu0
    %2967 = vdwg.mxu0
    %v2973 = vcombine.low %v2823, %v2825
    %v2974 = vcombine.low %v2894, %v2896
    %v2976 = vunpack.c.l.s4 1966171168
    %v2977 = vunpack.c.0.s8 %v2976
    %v2978 = vlaneseq
    %v2979 = vshrl.u32 %v2978, 7
    %v2980 = vsub.s32 %v2977, %v2979
    %v2981 = vrot.slane %v2973, %v2980
    %v2983 = vunpack.c.l.s4 1966171168
    %v2984 = vunpack.c.0.s8 %v2983
    %v2985 = vlaneseq
    %v2986 = vshrl.u32 %v2985, 7
    %v2987 = vsub.s32 %v2984, %v2986
    %v2988 = vrot.slane %v2974, %v2987
    %v2990 = vunpack.c.l.s4 1966171168
    %v2991 = vunpack.c.0.s8 %v2990
    %v2992 = vlaneseq
    %v2993 = vshrl.u32 %v2992, 7
    %v2994 = vsub.s32 %v2991, %v2993
    %v2995 = vrot.slane %v2965, %v2994
    %v2996 = vcombine.low %v2981, %v2988
    %v2998 = vunpack.c.l.s4 1966171168
    %v2999 = vunpack.c.0.s8 %v2998
    %v3000 = vlaneseq
    %v3001 = vshrl.u32 %v3000, 7
    %v3002 = vsub.s32 %v2999, %v3001
    %v3003 = vrot.slane %v2996, %v3002
    %v3005 = vunpack.c.l.s4 1966171168
    %v3006 = vunpack.c.0.s8 %v3005
    %v3007 = vlaneseq
    %v3008 = vshrl.u32 %v3007, 7
    %v3009 = vsub.s32 %v3006, %v3008
    %v3010 = vrot.slane %v2995, %v3009
    %v3011 = vcombine.low %v3003, %v3010
    %v3013 = vadd.f32 %v2675, %v3011
    %v3014 = vld [vmem:[%s766] sm:$0xff]
    %v3015 = vld [vmem:[%s766 + $0x8] sm:$0xff]
    %v3016 = vld [vmem:[%s766 + $0x10] sm:$0xff]
    %v3017 = vld [vmem:[%s766 + $0x18] sm:$0xff]
    %v3018 = vld [vmem:[%s766 + $0x20] sm:$0xff]
    %v3019 = vld [vmem:[%s766 + $0x28] sm:$0xff]
    %v3020 = vld [vmem:[%s766 + $0x30] sm:$0xff]
    %v3021 = vld [vmem:[%s766 + $0x38] sm:$0xff]
    %v3022 = vld [vmem:[%s766 + $0x40] sm:$0xff]
    %v3023 = vld [vmem:[%s766 + $0x48] sm:$0xff]
    %v3024 = vld [vmem:[%s766 + $0x50] sm:$0xff]
    %v3025 = vld [vmem:[%s766 + $0x58] sm:$0xff]
    %v3026 = vld [vmem:[%s766 + $0x60] sm:$0xff]
    %v3027 = vld [vmem:[%s766 + $0x68] sm:$0xff]
    %v3028 = vld [vmem:[%s766 + $0x70] sm:$0xff]
    %v3029 = vld [vmem:[%s766 + $0x78] sm:$0xff]
    %v3030 = vld [vmem:[%s766 + $0x80] sm:$0xff]
    %v3031 = vld [vmem:[%s766 + $0x88] sm:$0xff]
    %v3032 = vld [vmem:[%s766 + $0x90] sm:$0xff]
    %v3033 = vld [vmem:[%s766 + $0x98] sm:$0xff]
    %v3034 = vld [vmem:[%s766 + $0xa0] sm:$0xff]
    %v3035 = vld [vmem:[%s766 + $0xa8] sm:$0xff]
    %v3036 = vld [vmem:[%s766 + $0xb0] sm:$0xff]
    %v3037 = vld [vmem:[%s766 + $0xb8] sm:$0xff]
    %v3038 = vld [vmem:[%s766 + $0xc0] sm:$0xff]
    %v3039 = vld [vmem:[%s766 + $0xc8] sm:$0xff]
    %v3040 = vld [vmem:[%s766 + $0xd0] sm:$0xff]
    %v3041 = vld [vmem:[%s766 + $0xd8] sm:$0xff]
    %v3042 = vld [vmem:[%s766 + $0xe0] sm:$0xff]
    %v3043 = vld [vmem:[%s766 + $0xe8] sm:$0xff]
    %v3044 = vld [vmem:[%s766 + $0xf0] sm:$0xff]
    %v3045 = vld [vmem:[%s766 + $0xf8] sm:$0xff]
    %v3046 = vld [vmem:[%s766 + $0x100] sm:$0xff]
    %v3047 = vld [vmem:[%s766 + $0x108] sm:$0xff]
    %v3048 = vld [vmem:[%s766 + $0x110] sm:$0xff]
    %v3049 = vld [vmem:[%s766 + $0x118] sm:$0xff]
    %v3050 = vld [vmem:[%s766 + $0x120] sm:$0xff]
    %v3051 = vld [vmem:[%s766 + $0x128] sm:$0xff]
    %v3052 = vld [vmem:[%s766 + $0x130] sm:$0xff]
    %v3053 = vld [vmem:[%s766 + $0x138] sm:$0xff]
    %v3054 = vld [vmem:[%s766 + $0x140] sm:$0xff]
    %v3055 = vld [vmem:[%s766 + $0x148] sm:$0xff]
    %v3056 = vld [vmem:[%s766 + $0x150] sm:$0xff]
    %v3057 = vld [vmem:[%s766 + $0x158] sm:$0xff]
    %v3058 = vld [vmem:[%s766 + $0x160] sm:$0xff]
    %v3059 = vld [vmem:[%s766 + $0x168] sm:$0xff]
    %v3060 = vld [vmem:[%s766 + $0x170] sm:$0xff]
    %v3061 = vld [vmem:[%s766 + $0x178] sm:$0xff]
    %v3062 = vld [vmem:[%s766 + $0x180] sm:$0xff]
    %v3063 = vld [vmem:[%s766 + $0x188] sm:$0xff]
    %v3064 = vld [vmem:[%s766 + $0x190] sm:$0xff]
    %v3065 = vld [vmem:[%s766 + $0x198] sm:$0xff]
    %v3066 = vld [vmem:[%s766 + $0x1a0] sm:$0xff]
    %v3067 = vld [vmem:[%s766 + $0x1a8] sm:$0xff]
    %v3068 = vld [vmem:[%s766 + $0x1b0] sm:$0xff]
    %v3069 = vld [vmem:[%s766 + $0x1b8] sm:$0xff]
    %v3070 = vld [vmem:[%s766 + $0x1c0] sm:$0xff]
    %v3071 = vld [vmem:[%s766 + $0x1c8] sm:$0xff]
    %v3072 = vld [vmem:[%s766 + $0x1d0] sm:$0xff]
    %v3073 = vld [vmem:[%s766 + $0x1d8] sm:$0xff]
    %v3074 = vld [vmem:[%s766 + $0x1e0] sm:$0xff]
    %v3075 = vld [vmem:[%s766 + $0x1e8] sm:$0xff]
    %v3076 = vld [vmem:[%s766 + $0x1f0] sm:$0xff]
    %v3077 = vld [vmem:[%s766 + $0x1f8] sm:$0xff]
    %v3078 = vld [vmem:[%s766 + $0x200] sm:$0xff]
    %v3079 = vld [vmem:[%s766 + $0x208] sm:$0xff]
    %v3080 = vld [vmem:[%s766 + $0x210] sm:$0xff]
    %v3081 = vld [vmem:[%s766 + $0x218] sm:$0xff]
    %v3082 = vld [vmem:[%s766 + $0x220] sm:$0xff]
    %v3083 = vld [vmem:[%s766 + $0x228] sm:$0xff]
    %v3084 = vld [vmem:[%s766 + $0x230] sm:$0xff]
    %v3085 = vld [vmem:[%s766 + $0x238] sm:$0xff]
    %v3086 = vld [vmem:[%s766 + $0x240] sm:$0xff]
    %v3087 = vld [vmem:[%s766 + $0x248] sm:$0xff]
    %v3088 = vld [vmem:[%s766 + $0x250] sm:$0xff]
    %v3089 = vld [vmem:[%s766 + $0x258] sm:$0xff]
    %v3090 = vld [vmem:[%s766 + $0x260] sm:$0xff]
    %v3091 = vld [vmem:[%s766 + $0x268] sm:$0xff]
    %v3092 = vld [vmem:[%s766 + $0x270] sm:$0xff]
    %v3093 = vld [vmem:[%s766 + $0x278] sm:$0xff]
    %3094 = vmatprep.subr.mxu0 %v3015
    %3095 = vmatpush1.msra.mxu0 %v3014
    %3096 = vmatprep.subr.mxu0 %v3020
    %3097 = vmatpush1.msra.mxu0 %v3019
    %3098 = vmatprep.subr.mxu0 %v3025
    %3099 = vmatpush1.msra.mxu0 %v3024
    %3100 = vmatprep.subr.mxu0 %v3030
    %3101 = vmatpush1.msra.mxu0 %v3029
    %3102 = vmatprep.subr.mxu0 %v3035
    %3103 = vmatpush1.msra.mxu0 %v3034
    %3104 = vmatprep.subr.mxu0 %v3040
    %3105 = vmatpush1.msra.mxu0 %v3039
    %3106 = vmatprep.subr.mxu0 %v3045
    %3107 = vmatpush1.msra.mxu0 %v3044
    %3108 = vmatprep.subr.mxu0 %v3050
    %3109 = vmatpush1.msra.mxu0 %v3049
    %3110 = vmatprep.subr.mxu0 %v3055
    %3111 = vmatpush1.msra.mxu0 %v3054
    %3112 = vmatprep.subr.mxu0 %v3060
    %3113 = vmatpush1.msra.mxu0 %v3059
    %3114 = vmatprep.subr.mxu0 %v3065
    %3115 = vmatpush1.msra.mxu0 %v3064
    %3116 = vmatprep.subr.mxu0 %v3070
    %3117 = vmatpush1.msra.mxu0 %v3069
    %3118 = vmatprep.subr.mxu0 %v3075
    %3119 = vmatpush1.msra.mxu0 %v3074
    %3120 = vmatprep.subr.mxu0 %v3080
    %3121 = vmatpush1.msra.mxu0 %v3079
    %3122 = vmatprep.subr.mxu0 %v3085
    %3123 = vmatpush1.msra.mxu0 %v3084
    %3124 = vmatprep.subr.mxu0 %v3090
    %3125 = vmatpush1.msra.mxu0 %v3089
    %3126 = vmatprep.subr.mxu0 0.0
    %3127 = vmatpush1.msra.mxu0 0.0
    %3128 = vmatprep.subr.mxu0 0.0
    %3129 = vmatpush1.msra.mxu0 0.0
    %3130 = vmatprep.subr.mxu0 0.0
    %3131 = vmatpush1.msra.mxu0 0.0
    %3132 = vmatprep.subr.mxu0 0.0
    %3133 = vmatpush1.msra.mxu0 0.0
    %3134 = vmatprep.subr.mxu0 0.0
    %3135 = vmatpush1.msra.mxu0 0.0
    %3136 = vmatprep.subr.mxu0 0.0
    %3137 = vmatpush1.msra.mxu0 0.0
    %3138 = vmatprep.subr.mxu0 0.0
    %3139 = vmatpush1.msra.mxu0 0.0
    %3140 = vmatprep.subr.mxu0 0.0
    %3141 = vmatpush1.msra.mxu0 0.0
    %3142 = vmatprep.subr.mxu0 0.0
    %3143 = vmatpush1.msra.mxu0 0.0
    %3144 = vmatprep.subr.mxu0 0.0
    %3145 = vmatpush1.msra.mxu0 0.0
    %3146 = vmatprep.subr.mxu0 0.0
    %3147 = vmatpush1.msra.mxu0 0.0
    %3148 = vmatprep.subr.mxu0 0.0
    %3149 = vmatpush1.msra.mxu0 0.0
    %3150 = vmatprep.subr.mxu0 0.0
    %3151 = vmatpush1.msra.mxu0 0.0
    %3152 = vmatprep.subr.mxu0 0.0
    %3153 = vmatpush1.msra.mxu0 0.0
    %3154 = vmatprep.subr.mxu0 0.0
    %3155 = vmatpush1.msra.mxu0 0.0
    %3156 = vmatprep.subr.mxu0 0.0
    %3157 = vmatpush1.msra.mxu0 0.0
    %3158 = vmatprep.mubr.f32.mxu0 0.0
    %3159 = vmatmul.mubr.f32.gmra.mrb[0].mxu0 %v2668
    %v3160 = vpop.f32.mrb[0].mxu0
    %v3161 = vadd.f32 0.0, %v3160
    %v3162 = vpop.f32.mrb[0].mxu0
    %v3163 = vadd.f32 0.0, %v3162
    %3164 = vdwg.mxu0
    %3165 = vmatprep.subr.mxu0 %v3017
    %3166 = vmatpush1.msra.mxu0 %v3016
    %3167 = vmatprep.subr.mxu0 %v3022
    %3168 = vmatpush1.msra.mxu0 %v3021
    %3169 = vmatprep.subr.mxu0 %v3027
    %3170 = vmatpush1.msra.mxu0 %v3026
    %3171 = vmatprep.subr.mxu0 %v3032
    %3172 = vmatpush1.msra.mxu0 %v3031
    %3173 = vmatprep.subr.mxu0 %v3037
    %3174 = vmatpush1.msra.mxu0 %v3036
    %3175 = vmatprep.subr.mxu0 %v3042
    %3176 = vmatpush1.msra.mxu0 %v3041
    %3177 = vmatprep.subr.mxu0 %v3047
    %3178 = vmatpush1.msra.mxu0 %v3046
    %3179 = vmatprep.subr.mxu0 %v3052
    %3180 = vmatpush1.msra.mxu0 %v3051
    %3181 = vmatprep.subr.mxu0 %v3057
    %3182 = vmatpush1.msra.mxu0 %v3056
    %3183 = vmatprep.subr.mxu0 %v3062
    %3184 = vmatpush1.msra.mxu0 %v3061
    %3185 = vmatprep.subr.mxu0 %v3067
    %3186 = vmatpush1.msra.mxu0 %v3066
    %3187 = vmatprep.subr.mxu0 %v3072
    %3188 = vmatpush1.msra.mxu0 %v3071
    %3189 = vmatprep.subr.mxu0 %v3077
    %3190 = vmatpush1.msra.mxu0 %v3076
    %3191 = vmatprep.subr.mxu0 %v3082
    %3192 = vmatpush1.msra.mxu0 %v3081
    %3193 = vmatprep.subr.mxu0 %v3087
    %3194 = vmatpush1.msra.mxu0 %v3086
    %3195 = vmatprep.subr.mxu0 %v3092
    %3196 = vmatpush1.msra.mxu0 %v3091
    %3197 = vmatprep.subr.mxu0 0.0
    %3198 = vmatpush1.msra.mxu0 0.0
    %3199 = vmatprep.subr.mxu0 0.0
    %3200 = vmatpush1.msra.mxu0 0.0
    %3201 = vmatprep.subr.mxu0 0.0
    %3202 = vmatpush1.msra.mxu0 0.0
    %3203 = vmatprep.subr.mxu0 0.0
    %3204 = vmatpush1.msra.mxu0 0.0
    %3205 = vmatprep.subr.mxu0 0.0
    %3206 = vmatpush1.msra.mxu0 0.0
    %3207 = vmatprep.subr.mxu0 0.0
    %3208 = vmatpush1.msra.mxu0 0.0
    %3209 = vmatprep.subr.mxu0 0.0
    %3210 = vmatpush1.msra.mxu0 0.0
    %3211 = vmatprep.subr.mxu0 0.0
    %3212 = vmatpush1.msra.mxu0 0.0
    %3213 = vmatprep.subr.mxu0 0.0
    %3214 = vmatpush1.msra.mxu0 0.0
    %3215 = vmatprep.subr.mxu0 0.0
    %3216 = vmatpush1.msra.mxu0 0.0
    %3217 = vmatprep.subr.mxu0 0.0
    %3218 = vmatpush1.msra.mxu0 0.0
    %3219 = vmatprep.subr.mxu0 0.0
    %3220 = vmatpush1.msra.mxu0 0.0
    %3221 = vmatprep.subr.mxu0 0.0
    %3222 = vmatpush1.msra.mxu0 0.0
    %3223 = vmatprep.subr.mxu0 0.0
    %3224 = vmatpush1.msra.mxu0 0.0
    %3225 = vmatprep.subr.mxu0 0.0
    %3226 = vmatpush1.msra.mxu0 0.0
    %3227 = vmatprep.subr.mxu0 0.0
    %3228 = vmatpush1.msra.mxu0 0.0
    %3229 = vmatprep.mubr.f32.mxu0 0.0
    %3230 = vmatmul.mubr.f32.gmra.mrb[0].mxu0 %v2668
    %v3231 = vpop.f32.mrb[0].mxu0
    %v3232 = vadd.f32 0.0, %v3231
    %v3233 = vpop.f32.mrb[0].mxu0
    %v3234 = vadd.f32 0.0, %v3233
    %3235 = vdwg.mxu0
    %3236 = vmatprep.subr.mxu0 0.0
    %3237 = vmatpush1.msra.mxu0 %v3018
    %3238 = vmatprep.subr.mxu0 0.0
    %3239 = vmatpush1.msra.mxu0 %v3023
    %3240 = vmatprep.subr.mxu0 0.0
    %3241 = vmatpush1.msra.mxu0 %v3028
    %3242 = vmatprep.subr.mxu0 0.0
    %3243 = vmatpush1.msra.mxu0 %v3033
    %3244 = vmatprep.subr.mxu0 0.0
    %3245 = vmatpush1.msra.mxu0 %v3038
    %3246 = vmatprep.subr.mxu0 0.0
    %3247 = vmatpush1.msra.mxu0 %v3043
    %3248 = vmatprep.subr.mxu0 0.0
    %3249 = vmatpush1.msra.mxu0 %v3048
    %3250 = vmatprep.subr.mxu0 0.0
    %3251 = vmatpush1.msra.mxu0 %v3053
    %3252 = vmatprep.subr.mxu0 0.0
    %3253 = vmatpush1.msra.mxu0 %v3058
    %3254 = vmatprep.subr.mxu0 0.0
    %3255 = vmatpush1.msra.mxu0 %v3063
    %3256 = vmatprep.subr.mxu0 0.0
    %3257 = vmatpush1.msra.mxu0 %v3068
    %3258 = vmatprep.subr.mxu0 0.0
    %3259 = vmatpush1.msra.mxu0 %v3073
    %3260 = vmatprep.subr.mxu0 0.0
    %3261 = vmatpush1.msra.mxu0 %v3078
    %3262 = vmatprep.subr.mxu0 0.0
    %3263 = vmatpush1.msra.mxu0 %v3083
    %3264 = vmatprep.subr.mxu0 0.0
    %3265 = vmatpush1.msra.mxu0 %v3088
    %3266 = vmatprep.subr.mxu0 0.0
    %3267 = vmatpush1.msra.mxu0 %v3093
    %3268 = vmatprep.subr.mxu0 0.0
    %3269 = vmatpush1.msra.mxu0 0.0
    %3270 = vmatprep.subr.mxu0 0.0
    %3271 = vmatpush1.msra.mxu0 0.0
    %3272 = vmatprep.subr.mxu0 0.0
    %3273 = vmatpush1.msra.mxu0 0.0
    %3274 = vmatprep.subr.mxu0 0.0
    %3275 = vmatpush1.msra.mxu0 0.0
    %3276 = vmatprep.subr.mxu0 0.0
    %3277 = vmatpush1.msra.mxu0 0.0
    %3278 = vmatprep.subr.mxu0 0.0
    %3279 = vmatpush1.msra.mxu0 0.0
    %3280 = vmatprep.subr.mxu0 0.0
    %3281 = vmatpush1.msra.mxu0 0.0
    %3282 = vmatprep.subr.mxu0 0.0
    %3283 = vmatpush1.msra.mxu0 0.0
    %3284 = vmatprep.subr.mxu0 0.0
    %3285 = vmatpush1.msra.mxu0 0.0
    %3286 = vmatprep.subr.mxu0 0.0
    %3287 = vmatpush1.msra.mxu0 0.0
    %3288 = vmatprep.subr.mxu0 0.0
    %3289 = vmatpush1.msra.mxu0 0.0
    %3290 = vmatprep.subr.mxu0 0.0
    %3291 = vmatpush1.msra.mxu0 0.0
    %3292 = vmatprep.subr.mxu0 0.0
    %3293 = vmatpush1.msra.mxu0 0.0
    %3294 = vmatprep.subr.mxu0 0.0
    %3295 = vmatpush1.msra.mxu0 0.0
    %3296 = vmatprep.subr.mxu0 0.0
    %3297 = vmatpush1.msra.mxu0 0.0
    %3298 = vmatprep.subr.mxu0 0.0
    %3299 = vmatpush1.msra.mxu0 0.0
    %3300 = vmatprep.mubr.f32.mxu0 0.0
    %3301 = vmatmul.mubr.f32.gmra.mrb[0].mxu0 %v2668
    %v3302 = vpop.f32.mrb[0].mxu0
    %v3303 = vadd.f32 0.0, %v3302
    %v3304 = vpop.f32.mrb[0].mxu0
    %3305 = vdwg.mxu0
    %v3311 = vcombine.low %v3161, %v3163
    %v3312 = vcombine.low %v3232, %v3234
    %v3314 = vunpack.c.l.s4 1966171168
    %v3315 = vunpack.c.0.s8 %v3314
    %v3316 = vlaneseq
    %v3317 = vshrl.u32 %v3316, 7
    %v3318 = vsub.s32 %v3315, %v3317
    %v3319 = vrot.slane %v3311, %v3318
    %v3321 = vunpack.c.l.s4 1966171168
    %v3322 = vunpack.c.0.s8 %v3321
    %v3323 = vlaneseq
    %v3324 = vshrl.u32 %v3323, 7
    %v3325 = vsub.s32 %v3322, %v3324
    %v3326 = vrot.slane %v3312, %v3325
    %v3328 = vunpack.c.l.s4 1966171168
    %v3329 = vunpack.c.0.s8 %v3328
    %v3330 = vlaneseq
    %v3331 = vshrl.u32 %v3330, 7
    %v3332 = vsub.s32 %v3329, %v3331
    %v3333 = vrot.slane %v3303, %v3332
    %v3334 = vcombine.low %v3319, %v3326
    %v3336 = vunpack.c.l.s4 1966171168
    %v3337 = vunpack.c.0.s8 %v3336
    %v3338 = vlaneseq
    %v3339 = vshrl.u32 %v3338, 7
    %v3340 = vsub.s32 %v3337, %v3339
    %v3341 = vrot.slane %v3334, %v3340
    %v3343 = vunpack.c.l.s4 1966171168
    %v3344 = vunpack.c.0.s8 %v3343
    %v3345 = vlaneseq
    %v3346 = vshrl.u32 %v3345, 7
    %v3347 = vsub.s32 %v3344, %v3346
    %v3348 = vrot.slane %v3333, %v3347
    %v3349 = vcombine.low %v3341, %v3348
    %v3351 = vadd.f32 %v3013, %v3349
    %v3352 = vxor.u32 %v3351, 2147483648
    %v3353 = vmul.f32 %v3352, 1.442695
    %v3354 = vpow.pop %v3353
    %v3355 = vadd.f32 %v3354, 1.0
    %v3356 = vrcp.pop %v3355
    %v3357 = vmul.f32 1.0, %v3356
    %v3359 = vrot.slane %v3351, 1
    %v3361 = vxor.u32 %v3359, 2147483648
    %v3362 = vmul.f32 %v3361, 1.442695
    %v3363 = vpow.pop %v3362
    %v3364 = vadd.f32 %v3363, 1.0
    %v3365 = vrcp.pop %v3364
    %v3366 = vmul.f32 1.0, %v3365
    %v3367 = vrot.slane %v3351, 2
    %v3369 = vtanh.pop %v3367
    %v3370 = vrot.slane %v3351, 3
    %v3372 = vxor.u32 %v3370, 2147483648
    %v3373 = vmul.f32 %v3372, 1.442695
    %v3374 = vpow.pop %v3373
    %v3375 = vadd.f32 %v3374, 1.0
    %v3376 = vrcp.pop %v3375
    %v3377 = vmul.f32 1.0, %v3376
    %v3378 = vrot.slane %v3351, 4
    %v3380 = vxor.u32 %v3378, 2147483648
    %v3381 = vmul.f32 %v3380, 1.442695
    %v3382 = vpow.pop %v3381
    %v3383 = vadd.f32 %v3382, 1.0
    %v3384 = vrcp.pop %v3383
    %v3385 = vmul.f32 1.0, %v3384
    %v3386 = vmul.f32 %v3357, %v3369
    %v3387 = vmul.f32 %v3377, %v2658
    %v3388 = vadd.f32 %v3386, %v3387
    %v3389 = vmul.f32 %v3385, %v2671
    %v3390 = vadd.f32 %v3388, %v3389
    %v3391 = vtanh.pop %v3390
    %v3392 = vmul.f32 %v3366, %v3391
    %3393 = vst [vmem:[#allocation3 + $0x4] sm:$0x1] %v3390
    %3394 = vst [vmem:[#allocation2 + $0x4] sm:$0x1] %v3392
    %s3395 = sld [smem:[#allocation5 + $0x6]]
    %p3396 = scmp.ge.s32.totalorder %s3395, 0
    %s3397 = scalar_select %p3396, 1, 0
    %s3398 = scvt.s32.f32 %s3397
    %p3399 = scmp.gt.s32.totalorder %s3395, 0
    %s3400 = scalar_select %p3399, %s3395, 0
    %s3401 = scalar_lea.vmem [#allocation2], %s3400
    %v3402 = vld [vmem:[%s3401] sm:$0x1]
    %v3403 = vstv %s3398
    %v3404 = vmul.f32 %v3402, %v3403
    %s3405 = scalar_lea.vmem [#allocation3], %s3400
    %v3406 = vld [vmem:[%s3405] sm:$0x1]
    %v3407 = vmul.f32 %v3406, %v3403
    %s3408 = sld [smem:[#allocation5 + $0x7]]
    %p3409 = scmp.ge.s32.totalorder %s3408, 0
    %s3410 = scalar_select %p3409, 1, 0
    %s3411 = scvt.s32.f32 %s3410
    %p3412 = scmp.gt.s32.totalorder %s3408, 0
    %s3413 = scalar_select %p3412, %s3408, 0
    %s3414 = scalar_lea.vmem [#allocation2], %s3413
    %v3415 = vld [vmem:[%s3414] sm:$0x1]
    %v3416 = vstv %s3411
    %v3417 = vmul.f32 %v3415, %v3416
    %s3418 = scalar_lea.vmem [#allocation3], %s3413
    %v3419 = vld [vmem:[%s3418] sm:$0x1]
    %v3420 = vmul.f32 %v3419, %v3416
    %s3421 = scalar_lea.vmem [#allocation4], 3
    %v3422 = vld [vmem:[%s3421] ss:$8 sm:$0xf]
    %v3423 = vld [vmem:[%s3421] ss:$8 sm:$0x10]
    %v3424 = vor.u32 %v3422, %v3423
    %v3425 = vld [vmem:[#allocation13] sm:$0xff]
    %v3426 = vld [vmem:[#allocation13 + $0x8] sm:$0xff]
    %v3427 = vld [vmem:[#allocation13 + $0x10] sm:$0xff]
    %v3428 = vld [vmem:[#allocation13 + $0x18] sm:$0xff]
    %v3429 = vld [vmem:[#allocation13 + $0x20] sm:$0xff]
    %v3430 = vld [vmem:[#allocation13 + $0x28] sm:$0xff]
    %v3431 = vld [vmem:[#allocation13 + $0x30] sm:$0xff]
    %v3432 = vld [vmem:[#allocation13 + $0x38] sm:$0xff]
    %v3433 = vld [vmem:[#allocation13 + $0x40] sm:$0xff]
    %v3434 = vld [vmem:[#allocation13 + $0x48] sm:$0xff]
    %v3435 = vld [vmem:[#allocation13 + $0x50] sm:$0xff]
    %v3436 = vld [vmem:[#allocation13 + $0x58] sm:$0xff]
    %v3437 = vld [vmem:[#allocation13 + $0x60] sm:$0xff]
    %v3438 = vld [vmem:[#allocation13 + $0x68] sm:$0xff]
    %v3439 = vld [vmem:[#allocation13 + $0x70] sm:$0xff]
    %v3440 = vld [vmem:[#allocation13 + $0x78] sm:$0xff]
    %v3441 = vld [vmem:[#allocation13 + $0x80] sm:$0xff]
    %v3442 = vld [vmem:[#allocation13 + $0x88] sm:$0xff]
    %v3443 = vld [vmem:[#allocation13 + $0x90] sm:$0xff]
    %v3444 = vld [vmem:[#allocation13 + $0x98] sm:$0xff]
    %v3445 = vld [vmem:[#allocation13 + $0xa0] sm:$0xff]
    %v3446 = vld [vmem:[#allocation13 + $0xa8] sm:$0xff]
    %v3447 = vld [vmem:[#allocation13 + $0xb0] sm:$0xff]
    %v3448 = vld [vmem:[#allocation13 + $0xb8] sm:$0xff]
    %v3449 = vld [vmem:[#allocation13 + $0xc0] sm:$0xff]
    %v3450 = vld [vmem:[#allocation13 + $0xc8] sm:$0xff]
    %v3451 = vld [vmem:[#allocation13 + $0xd0] sm:$0xff]
    %v3452 = vld [vmem:[#allocation13 + $0xd8] sm:$0xff]
    %v3453 = vld [vmem:[#allocation13 + $0xe0] sm:$0xff]
    %v3454 = vld [vmem:[#allocation13 + $0xe8] sm:$0xff]
    %v3455 = vld [vmem:[#allocation13 + $0xf0] sm:$0xff]
    %v3456 = vld [vmem:[#allocation13 + $0xf8] sm:$0xff]
    %v3457 = vld [vmem:[#allocation13 + $0x100] sm:$0xff]
    %v3458 = vld [vmem:[#allocation13 + $0x108] sm:$0xff]
    %v3459 = vld [vmem:[#allocation13 + $0x110] sm:$0xff]
    %v3460 = vld [vmem:[#allocation13 + $0x118] sm:$0xff]
    %v3461 = vld [vmem:[#allocation13 + $0x120] sm:$0xff]
    %v3462 = vld [vmem:[#allocation13 + $0x128] sm:$0xff]
    %v3463 = vld [vmem:[#allocation13 + $0x130] sm:$0xff]
    %v3464 = vld [vmem:[#allocation13 + $0x138] sm:$0xff]
    %v3465 = vld [vmem:[#allocation13 + $0x140] sm:$0xff]
    %v3466 = vld [vmem:[#allocation13 + $0x148] sm:$0xff]
    %v3467 = vld [vmem:[#allocation13 + $0x150] sm:$0xff]
    %v3468 = vld [vmem:[#allocation13 + $0x158] sm:$0xff]
    %v3469 = vld [vmem:[#allocation13 + $0x160] sm:$0xff]
    %v3470 = vld [vmem:[#allocation13 + $0x168] sm:$0xff]
    %v3471 = vld [vmem:[#allocation13 + $0x170] sm:$0xff]
    %v3472 = vld [vmem:[#allocation13 + $0x178] sm:$0xff]
    %v3473 = vld [vmem:[#allocation13 + $0x180] sm:$0xff]
    %v3474 = vld [vmem:[#allocation13 + $0x188] sm:$0xff]
    %v3475 = vld [vmem:[#allocation13 + $0x190] sm:$0xff]
    %v3476 = vld [vmem:[#allocation13 + $0x198] sm:$0xff]
    %v3477 = vld [vmem:[#allocation13 + $0x1a0] sm:$0xff]
    %v3478 = vld [vmem:[#allocation13 + $0x1a8] sm:$0xff]
    %v3479 = vld [vmem:[#allocation13 + $0x1b0] sm:$0xff]
    %v3480 = vld [vmem:[#allocation13 + $0x1b8] sm:$0xff]
    %v3481 = vld [vmem:[#allocation13 + $0x1c0] sm:$0xff]
    %v3482 = vld [vmem:[#allocation13 + $0x1c8] sm:$0xff]
    %v3483 = vld [vmem:[#allocation13 + $0x1d0] sm:$0xff]
    %v3484 = vld [vmem:[#allocation13 + $0x1d8] sm:$0xff]
    %v3485 = vld [vmem:[#allocation13 + $0x1e0] sm:$0xff]
    %v3486 = vld [vmem:[#allocation13 + $0x1e8] sm:$0xff]
    %v3487 = vld [vmem:[#allocation13 + $0x1f0] sm:$0xff]
    %v3488 = vld [vmem:[#allocation13 + $0x1f8] sm:$0xff]
    %v3489 = vld [vmem:[#allocation13 + $0x200] sm:$0xff]
    %v3490 = vld [vmem:[#allocation13 + $0x208] sm:$0xff]
    %v3491 = vld [vmem:[#allocation13 + $0x210] sm:$0xff]
    %v3492 = vld [vmem:[#allocation13 + $0x218] sm:$0xff]
    %v3493 = vld [vmem:[#allocation13 + $0x220] sm:$0xff]
    %v3494 = vld [vmem:[#allocation13 + $0x228] sm:$0xff]
    %v3495 = vld [vmem:[#allocation13 + $0x230] sm:$0xff]
    %v3496 = vld [vmem:[#allocation13 + $0x238] sm:$0xff]
    %v3497 = vld [vmem:[#allocation13 + $0x240] sm:$0xff]
    %v3498 = vld [vmem:[#allocation13 + $0x248] sm:$0xff]
    %v3499 = vld [vmem:[#allocation13 + $0x250] sm:$0xff]
    %v3500 = vld [vmem:[#allocation13 + $0x258] sm:$0xff]
    %v3501 = vld [vmem:[#allocation13 + $0x260] sm:$0xff]
    %v3502 = vld [vmem:[#allocation13 + $0x268] sm:$0xff]
    %v3503 = vld [vmem:[#allocation13 + $0x270] sm:$0xff]
    %v3504 = vld [vmem:[#allocation13 + $0x278] sm:$0xff]
    %3505 = vmatprep.subr.mxu0 %v3426
    %3506 = vmatpush1.msra.mxu0 %v3425
    %3507 = vmatprep.subr.mxu0 %v3431
    %3508 = vmatpush1.msra.mxu0 %v3430
    %3509 = vmatprep.subr.mxu0 %v3436
    %3510 = vmatpush1.msra.mxu0 %v3435
    %3511 = vmatprep.subr.mxu0 %v3441
    %3512 = vmatpush1.msra.mxu0 %v3440
    %3513 = vmatprep.subr.mxu0 %v3446
    %3514 = vmatpush1.msra.mxu0 %v3445
    %3515 = vmatprep.subr.mxu0 %v3451
    %3516 = vmatpush1.msra.mxu0 %v3450
    %3517 = vmatprep.subr.mxu0 %v3456
    %3518 = vmatpush1.msra.mxu0 %v3455
    %3519 = vmatprep.subr.mxu0 %v3461
    %3520 = vmatpush1.msra.mxu0 %v3460
    %3521 = vmatprep.subr.mxu0 %v3466
    %3522 = vmatpush1.msra.mxu0 %v3465
    %3523 = vmatprep.subr.mxu0 %v3471
    %3524 = vmatpush1.msra.mxu0 %v3470
    %3525 = vmatprep.subr.mxu0 %v3476
    %3526 = vmatpush1.msra.mxu0 %v3475
    %3527 = vmatprep.subr.mxu0 %v3481
    %3528 = vmatpush1.msra.mxu0 %v3480
    %3529 = vmatprep.subr.mxu0 %v3486
    %3530 = vmatpush1.msra.mxu0 %v3485
    %3531 = vmatprep.subr.mxu0 %v3491
    %3532 = vmatpush1.msra.mxu0 %v3490
    %3533 = vmatprep.subr.mxu0 %v3496
    %3534 = vmatpush1.msra.mxu0 %v3495
    %3535 = vmatprep.subr.mxu0 %v3501
    %3536 = vmatpush1.msra.mxu0 %v3500
    %3537 = vmatprep.subr.mxu0 0.0
    %3538 = vmatpush1.msra.mxu0 0.0
    %3539 = vmatprep.subr.mxu0 0.0
    %3540 = vmatpush1.msra.mxu0 0.0
    %3541 = vmatprep.subr.mxu0 0.0
    %3542 = vmatpush1.msra.mxu0 0.0
    %3543 = vmatprep.subr.mxu0 0.0
    %3544 = vmatpush1.msra.mxu0 0.0
    %3545 = vmatprep.subr.mxu0 0.0
    %3546 = vmatpush1.msra.mxu0 0.0
    %3547 = vmatprep.subr.mxu0 0.0
    %3548 = vmatpush1.msra.mxu0 0.0
    %3549 = vmatprep.subr.mxu0 0.0
    %3550 = vmatpush1.msra.mxu0 0.0
    %3551 = vmatprep.subr.mxu0 0.0
    %3552 = vmatpush1.msra.mxu0 0.0
    %3553 = vmatprep.subr.mxu0 0.0
    %3554 = vmatpush1.msra.mxu0 0.0
    %3555 = vmatprep.subr.mxu0 0.0
    %3556 = vmatpush1.msra.mxu0 0.0
    %3557 = vmatprep.subr.mxu0 0.0
    %3558 = vmatpush1.msra.mxu0 0.0
    %3559 = vmatprep.subr.mxu0 0.0
    %3560 = vmatpush1.msra.mxu0 0.0
    %3561 = vmatprep.subr.mxu0 0.0
    %3562 = vmatpush1.msra.mxu0 0.0
    %3563 = vmatprep.subr.mxu0 0.0
    %3564 = vmatpush1.msra.mxu0 0.0
    %3565 = vmatprep.subr.mxu0 0.0
    %3566 = vmatpush1.msra.mxu0 0.0
    %3567 = vmatprep.subr.mxu0 0.0
    %3568 = vmatpush1.msra.mxu0 0.0
    %3569 = vmatprep.mubr.f32.mxu0 0.0
    %3570 = vmatmul.mubr.f32.gmra.mrb[0].mxu0 %v3404
    %v3571 = vpop.f32.mrb[0].mxu0
    %v3572 = vadd.f32 0.0, %v3571
    %v3573 = vpop.f32.mrb[0].mxu0
    %v3574 = vadd.f32 0.0, %v3573
    %3575 = vdwg.mxu0
    %3576 = vmatprep.subr.mxu0 %v3428
    %3577 = vmatpush1.msra.mxu0 %v3427
    %3578 = vmatprep.subr.mxu0 %v3433
    %3579 = vmatpush1.msra.mxu0 %v3432
    %3580 = vmatprep.subr.mxu0 %v3438
    %3581 = vmatpush1.msra.mxu0 %v3437
    %3582 = vmatprep.subr.mxu0 %v3443
    %3583 = vmatpush1.msra.mxu0 %v3442
    %3584 = vmatprep.subr.mxu0 %v3448
    %3585 = vmatpush1.msra.mxu0 %v3447
    %3586 = vmatprep.subr.mxu0 %v3453
    %3587 = vmatpush1.msra.mxu0 %v3452
    %3588 = vmatprep.subr.mxu0 %v3458
    %3589 = vmatpush1.msra.mxu0 %v3457
    %3590 = vmatprep.subr.mxu0 %v3463
    %3591 = vmatpush1.msra.mxu0 %v3462
    %3592 = vmatprep.subr.mxu0 %v3468
    %3593 = vmatpush1.msra.mxu0 %v3467
    %3594 = vmatprep.subr.mxu0 %v3473
    %3595 = vmatpush1.msra.mxu0 %v3472
    %3596 = vmatprep.subr.mxu0 %v3478
    %3597 = vmatpush1.msra.mxu0 %v3477
    %3598 = vmatprep.subr.mxu0 %v3483
    %3599 = vmatpush1.msra.mxu0 %v3482
    %3600 = vmatprep.subr.mxu0 %v3488
    %3601 = vmatpush1.msra.mxu0 %v3487
    %3602 = vmatprep.subr.mxu0 %v3493
    %3603 = vmatpush1.msra.mxu0 %v3492
    %3604 = vmatprep.subr.mxu0 %v3498
    %3605 = vmatpush1.msra.mxu0 %v3497
    %3606 = vmatprep.subr.mxu0 %v3503
    %3607 = vmatpush1.msra.mxu0 %v3502
    %3608 = vmatprep.subr.mxu0 0.0
    %3609 = vmatpush1.msra.mxu0 0.0
    %3610 = vmatprep.subr.mxu0 0.0
    %3611 = vmatpush1.msra.mxu0 0.0
    %3612 = vmatprep.subr.mxu0 0.0
    %3613 = vmatpush1.msra.mxu0 0.0
    %3614 = vmatprep.subr.mxu0 0.0
    %3615 = vmatpush1.msra.mxu0 0.0
    %3616 = vmatprep.subr.mxu0 0.0
    %3617 = vmatpush1.msra.mxu0 0.0
    %3618 = vmatprep.subr.mxu0 0.0
    %3619 = vmatpush1.msra.mxu0 0.0
    %3620 = vmatprep.subr.mxu0 0.0
    %3621 = vmatpush1.msra.mxu0 0.0
    %3622 = vmatprep.subr.mxu0 0.0
    %3623 = vmatpush1.msra.mxu0 0.0
    %3624 = vmatprep.subr.mxu0 0.0
    %3625 = vmatpush1.msra.mxu0 0.0
    %3626 = vmatprep.subr.mxu0 0.0
    %3627 = vmatpush1.msra.mxu0 0.0
    %3628 = vmatprep.subr.mxu0 0.0
    %3629 = vmatpush1.msra.mxu0 0.0
    %3630 = vmatprep.subr.mxu0 0.0
    %3631 = vmatpush1.msra.mxu0 0.0
    %3632 = vmatprep.subr.mxu0 0.0
    %3633 = vmatpush1.msra.mxu0 0.0
    %3634 = vmatprep.subr.mxu0 0.0
    %3635 = vmatpush1.msra.mxu0 0.0
    %3636 = vmatprep.subr.mxu0 0.0
    %3637 = vmatpush1.msra.mxu0 0.0
    %3638 = vmatprep.subr.mxu0 0.0
    %3639 = vmatpush1.msra.mxu0 0.0
    %3640 = vmatprep.mubr.f32.mxu0 0.0
    %3641 = vmatmul.mubr.f32.gmra.mrb[0].mxu0 %v3404
    %v3642 = vpop.f32.mrb[0].mxu0
    %v3643 = vadd.f32 0.0, %v3642
    %v3644 = vpop.f32.mrb[0].mxu0
    %v3645 = vadd.f32 0.0, %v3644
    %3646 = vdwg.mxu0
    %3647 = vmatprep.subr.mxu0 0.0
    %3648 = vmatpush1.msra.mxu0 %v3429
    %3649 = vmatprep.subr.mxu0 0.0
    %3650 = vmatpush1.msra.mxu0 %v3434
    %3651 = vmatprep.subr.mxu0 0.0
    %3652 = vmatpush1.msra.mxu0 %v3439
    %3653 = vmatprep.subr.mxu0 0.0
    %3654 = vmatpush1.msra.mxu0 %v3444
    %3655 = vmatprep.subr.mxu0 0.0
    %3656 = vmatpush1.msra.mxu0 %v3449
    %3657 = vmatprep.subr.mxu0 0.0
    %3658 = vmatpush1.msra.mxu0 %v3454
    %3659 = vmatprep.subr.mxu0 0.0
    %3660 = vmatpush1.msra.mxu0 %v3459
    %3661 = vmatprep.subr.mxu0 0.0
    %3662 = vmatpush1.msra.mxu0 %v3464
    %3663 = vmatprep.subr.mxu0 0.0
    %3664 = vmatpush1.msra.mxu0 %v3469
    %3665 = vmatprep.subr.mxu0 0.0
    %3666 = vmatpush1.msra.mxu0 %v3474
    %3667 = vmatprep.subr.mxu0 0.0
    %3668 = vmatpush1.msra.mxu0 %v3479
    %3669 = vmatprep.subr.mxu0 0.0
    %3670 = vmatpush1.msra.mxu0 %v3484
    %3671 = vmatprep.subr.mxu0 0.0
    %3672 = vmatpush1.msra.mxu0 %v3489
    %3673 = vmatprep.subr.mxu0 0.0
    %3674 = vmatpush1.msra.mxu0 %v3494
    %3675 = vmatprep.subr.mxu0 0.0
    %3676 = vmatpush1.msra.mxu0 %v3499
    %3677 = vmatprep.subr.mxu0 0.0
    %3678 = vmatpush1.msra.mxu0 %v3504
    %3679 = vmatprep.subr.mxu0 0.0
    %3680 = vmatpush1.msra.mxu0 0.0
    %3681 = vmatprep.subr.mxu0 0.0
    %3682 = vmatpush1.msra.mxu0 0.0
    %3683 = vmatprep.subr.mxu0 0.0
    %3684 = vmatpush1.msra.mxu0 0.0
    %3685 = vmatprep.subr.mxu0 0.0
    %3686 = vmatpush1.msra.mxu0 0.0
    %3687 = vmatprep.subr.mxu0 0.0
    %3688 = vmatpush1.msra.mxu0 0.0
    %3689 = vmatprep.subr.mxu0 0.0
    %3690 = vmatpush1.msra.mxu0 0.0
    %3691 = vmatprep.subr.mxu0 0.0
    %3692 = vmatpush1.msra.mxu0 0.0
    %3693 = vmatprep.subr.mxu0 0.0
    %3694 = vmatpush1.msra.mxu0 0.0
    %3695 = vmatprep.subr.mxu0 0.0
    %3696 = vmatpush1.msra.mxu0 0.0
    %3697 = vmatprep.subr.mxu0 0.0
    %3698 = vmatpush1.msra.mxu0 0.0
    %3699 = vmatprep.subr.mxu0 0.0
    %3700 = vmatpush1.msra.mxu0 0.0
    %3701 = vmatprep.subr.mxu0 0.0
    %3702 = vmatpush1.msra.mxu0 0.0
    %3703 = vmatprep.subr.mxu0 0.0
    %3704 = vmatpush1.msra.mxu0 0.0
    %3705 = vmatprep.subr.mxu0 0.0
    %3706 = vmatpush1.msra.mxu0 0.0
    %3707 = vmatprep.subr.mxu0 0.0
    %3708 = vmatpush1.msra.mxu0 0.0
    %3709 = vmatprep.subr.mxu0 0.0
    %3710 = vmatpush1.msra.mxu0 0.0
    %3711 = vmatprep.mubr.f32.mxu0 0.0
    %3712 = vmatmul.mubr.f32.gmra.mrb[0].mxu0 %v3404
    %v3713 = vpop.f32.mrb[0].mxu0
    %v3714 = vadd.f32 0.0, %v3713
    %v3715 = vpop.f32.mrb[0].mxu0
    %3716 = vdwg.mxu0
    %v3722 = vcombine.low %v3572, %v3574
    %v3723 = vcombine.low %v3643, %v3645
    %v3725 = vunpack.c.l.s4 1966171168
    %v3726 = vunpack.c.0.s8 %v3725
    %v3727 = vlaneseq
    %v3728 = vshrl.u32 %v3727, 7
    %v3729 = vsub.s32 %v3726, %v3728
    %v3730 = vrot.slane %v3722, %v3729
    %v3732 = vunpack.c.l.s4 1966171168
    %v3733 = vunpack.c.0.s8 %v3732
    %v3734 = vlaneseq
    %v3735 = vshrl.u32 %v3734, 7
    %v3736 = vsub.s32 %v3733, %v3735
    %v3737 = vrot.slane %v3723, %v3736
    %v3739 = vunpack.c.l.s4 1966171168
    %v3740 = vunpack.c.0.s8 %v3739
    %v3741 = vlaneseq
    %v3742 = vshrl.u32 %v3741, 7
    %v3743 = vsub.s32 %v3740, %v3742
    %v3744 = vrot.slane %v3714, %v3743
    %v3745 = vcombine.low %v3730, %v3737
    %v3747 = vunpack.c.l.s4 1966171168
    %v3748 = vunpack.c.0.s8 %v3747
    %v3749 = vlaneseq
    %v3750 = vshrl.u32 %v3749, 7
    %v3751 = vsub.s32 %v3748, %v3750
    %v3752 = vrot.slane %v3745, %v3751
    %v3754 = vunpack.c.l.s4 1966171168
    %v3755 = vunpack.c.0.s8 %v3754
    %v3756 = vlaneseq
    %v3757 = vshrl.u32 %v3756, 7
    %v3758 = vsub.s32 %v3755, %v3757
    %v3759 = vrot.slane %v3744, %v3758
    %v3760 = vcombine.low %v3752, %v3759
    %v3762 = vadd.f32 %v3424, %v3760
    %v3763 = vld [vmem:[%s766] sm:$0xff]
    %v3764 = vld [vmem:[%s766 + $0x8] sm:$0xff]
    %v3765 = vld [vmem:[%s766 + $0x10] sm:$0xff]
    %v3766 = vld [vmem:[%s766 + $0x18] sm:$0xff]
    %v3767 = vld [vmem:[%s766 + $0x20] sm:$0xff]
    %v3768 = vld [vmem:[%s766 + $0x28] sm:$0xff]
    %v3769 = vld [vmem:[%s766 + $0x30] sm:$0xff]
    %v3770 = vld [vmem:[%s766 + $0x38] sm:$0xff]
    %v3771 = vld [vmem:[%s766 + $0x40] sm:$0xff]
    %v3772 = vld [vmem:[%s766 + $0x48] sm:$0xff]
    %v3773 = vld [vmem:[%s766 + $0x50] sm:$0xff]
    %v3774 = vld [vmem:[%s766 + $0x58] sm:$0xff]
    %v3775 = vld [vmem:[%s766 + $0x60] sm:$0xff]
    %v3776 = vld [vmem:[%s766 + $0x68] sm:$0xff]
    %v3777 = vld [vmem:[%s766 + $0x70] sm:$0xff]
    %v3778 = vld [vmem:[%s766 + $0x78] sm:$0xff]
    %v3779 = vld [vmem:[%s766 + $0x80] sm:$0xff]
    %v3780 = vld [vmem:[%s766 + $0x88] sm:$0xff]
    %v3781 = vld [vmem:[%s766 + $0x90] sm:$0xff]
    %v3782 = vld [vmem:[%s766 + $0x98] sm:$0xff]
    %v3783 = vld [vmem:[%s766 + $0xa0] sm:$0xff]
    %v3784 = vld [vmem:[%s766 + $0xa8] sm:$0xff]
    %v3785 = vld [vmem:[%s766 + $0xb0] sm:$0xff]
    %v3786 = vld [vmem:[%s766 + $0xb8] sm:$0xff]
    %v3787 = vld [vmem:[%s766 + $0xc0] sm:$0xff]
    %v3788 = vld [vmem:[%s766 + $0xc8] sm:$0xff]
    %v3789 = vld [vmem:[%s766 + $0xd0] sm:$0xff]
    %v3790 = vld [vmem:[%s766 + $0xd8] sm:$0xff]
    %v3791 = vld [vmem:[%s766 + $0xe0] sm:$0xff]
    %v3792 = vld [vmem:[%s766 + $0xe8] sm:$0xff]
    %v3793 = vld [vmem:[%s766 + $0xf0] sm:$0xff]
    %v3794 = vld [vmem:[%s766 + $0xf8] sm:$0xff]
    %v3795 = vld [vmem:[%s766 + $0x100] sm:$0xff]
    %v3796 = vld [vmem:[%s766 + $0x108] sm:$0xff]
    %v3797 = vld [vmem:[%s766 + $0x110] sm:$0xff]
    %v3798 = vld [vmem:[%s766 + $0x118] sm:$0xff]
    %v3799 = vld [vmem:[%s766 + $0x120] sm:$0xff]
    %v3800 = vld [vmem:[%s766 + $0x128] sm:$0xff]
    %v3801 = vld [vmem:[%s766 + $0x130] sm:$0xff]
    %v3802 = vld [vmem:[%s766 + $0x138] sm:$0xff]
    %v3803 = vld [vmem:[%s766 + $0x140] sm:$0xff]
    %v3804 = vld [vmem:[%s766 + $0x148] sm:$0xff]
    %v3805 = vld [vmem:[%s766 + $0x150] sm:$0xff]
    %v3806 = vld [vmem:[%s766 + $0x158] sm:$0xff]
    %v3807 = vld [vmem:[%s766 + $0x160] sm:$0xff]
    %v3808 = vld [vmem:[%s766 + $0x168] sm:$0xff]
    %v3809 = vld [vmem:[%s766 + $0x170] sm:$0xff]
    %v3810 = vld [vmem:[%s766 + $0x178] sm:$0xff]
    %v3811 = vld [vmem:[%s766 + $0x180] sm:$0xff]
    %v3812 = vld [vmem:[%s766 + $0x188] sm:$0xff]
    %v3813 = vld [vmem:[%s766 + $0x190] sm:$0xff]
    %v3814 = vld [vmem:[%s766 + $0x198] sm:$0xff]
    %v3815 = vld [vmem:[%s766 + $0x1a0] sm:$0xff]
    %v3816 = vld [vmem:[%s766 + $0x1a8] sm:$0xff]
    %v3817 = vld [vmem:[%s766 + $0x1b0] sm:$0xff]
    %v3818 = vld [vmem:[%s766 + $0x1b8] sm:$0xff]
    %v3819 = vld [vmem:[%s766 + $0x1c0] sm:$0xff]
    %v3820 = vld [vmem:[%s766 + $0x1c8] sm:$0xff]
    %v3821 = vld [vmem:[%s766 + $0x1d0] sm:$0xff]
    %v3822 = vld [vmem:[%s766 + $0x1d8] sm:$0xff]
    %v3823 = vld [vmem:[%s766 + $0x1e0] sm:$0xff]
    %v3824 = vld [vmem:[%s766 + $0x1e8] sm:$0xff]
    %v3825 = vld [vmem:[%s766 + $0x1f0] sm:$0xff]
    %v3826 = vld [vmem:[%s766 + $0x1f8] sm:$0xff]
    %v3827 = vld [vmem:[%s766 + $0x200] sm:$0xff]
    %v3828 = vld [vmem:[%s766 + $0x208] sm:$0xff]
    %v3829 = vld [vmem:[%s766 + $0x210] sm:$0xff]
    %v3830 = vld [vmem:[%s766 + $0x218] sm:$0xff]
    %v3831 = vld [vmem:[%s766 + $0x220] sm:$0xff]
    %v3832 = vld [vmem:[%s766 + $0x228] sm:$0xff]
    %v3833 = vld [vmem:[%s766 + $0x230] sm:$0xff]
    %v3834 = vld [vmem:[%s766 + $0x238] sm:$0xff]
    %v3835 = vld [vmem:[%s766 + $0x240] sm:$0xff]
    %v3836 = vld [vmem:[%s766 + $0x248] sm:$0xff]
    %v3837 = vld [vmem:[%s766 + $0x250] sm:$0xff]
    %v3838 = vld [vmem:[%s766 + $0x258] sm:$0xff]
    %v3839 = vld [vmem:[%s766 + $0x260] sm:$0xff]
    %v3840 = vld [vmem:[%s766 + $0x268] sm:$0xff]
    %v3841 = vld [vmem:[%s766 + $0x270] sm:$0xff]
    %v3842 = vld [vmem:[%s766 + $0x278] sm:$0xff]
    %3843 = vmatprep.subr.mxu0 %v3764
    %3844 = vmatpush1.msra.mxu0 %v3763
    %3845 = vmatprep.subr.mxu0 %v3769
    %3846 = vmatpush1.msra.mxu0 %v3768
    %3847 = vmatprep.subr.mxu0 %v3774
    %3848 = vmatpush1.msra.mxu0 %v3773
    %3849 = vmatprep.subr.mxu0 %v3779
    %3850 = vmatpush1.msra.mxu0 %v3778
    %3851 = vmatprep.subr.mxu0 %v3784
    %3852 = vmatpush1.msra.mxu0 %v3783
    %3853 = vmatprep.subr.mxu0 %v3789
    %3854 = vmatpush1.msra.mxu0 %v3788
    %3855 = vmatprep.subr.mxu0 %v3794
    %3856 = vmatpush1.msra.mxu0 %v3793
    %3857 = vmatprep.subr.mxu0 %v3799
    %3858 = vmatpush1.msra.mxu0 %v3798
    %3859 = vmatprep.subr.mxu0 %v3804
    %3860 = vmatpush1.msra.mxu0 %v3803
    %3861 = vmatprep.subr.mxu0 %v3809
    %3862 = vmatpush1.msra.mxu0 %v3808
    %3863 = vmatprep.subr.mxu0 %v3814
    %3864 = vmatpush1.msra.mxu0 %v3813
    %3865 = vmatprep.subr.mxu0 %v3819
    %3866 = vmatpush1.msra.mxu0 %v3818
    %3867 = vmatprep.subr.mxu0 %v3824
    %3868 = vmatpush1.msra.mxu0 %v3823
    %3869 = vmatprep.subr.mxu0 %v3829
    %3870 = vmatpush1.msra.mxu0 %v3828
    %3871 = vmatprep.subr.mxu0 %v3834
    %3872 = vmatpush1.msra.mxu0 %v3833
    %3873 = vmatprep.subr.mxu0 %v3839
    %3874 = vmatpush1.msra.mxu0 %v3838
    %3875 = vmatprep.subr.mxu0 0.0
    %3876 = vmatpush1.msra.mxu0 0.0
    %3877 = vmatprep.subr.mxu0 0.0
    %3878 = vmatpush1.msra.mxu0 0.0
    %3879 = vmatprep.subr.mxu0 0.0
    %3880 = vmatpush1.msra.mxu0 0.0
    %3881 = vmatprep.subr.mxu0 0.0
    %3882 = vmatpush1.msra.mxu0 0.0
    %3883 = vmatprep.subr.mxu0 0.0
    %3884 = vmatpush1.msra.mxu0 0.0
    %3885 = vmatprep.subr.mxu0 0.0
    %3886 = vmatpush1.msra.mxu0 0.0
    %3887 = vmatprep.subr.mxu0 0.0
    %3888 = vmatpush1.msra.mxu0 0.0
    %3889 = vmatprep.subr.mxu0 0.0
    %3890 = vmatpush1.msra.mxu0 0.0
    %3891 = vmatprep.subr.mxu0 0.0
    %3892 = vmatpush1.msra.mxu0 0.0
    %3893 = vmatprep.subr.mxu0 0.0
    %3894 = vmatpush1.msra.mxu0 0.0
    %3895 = vmatprep.subr.mxu0 0.0
    %3896 = vmatpush1.msra.mxu0 0.0
    %3897 = vmatprep.subr.mxu0 0.0
    %3898 = vmatpush1.msra.mxu0 0.0
    %3899 = vmatprep.subr.mxu0 0.0
    %3900 = vmatpush1.msra.mxu0 0.0
    %3901 = vmatprep.subr.mxu0 0.0
    %3902 = vmatpush1.msra.mxu0 0.0
    %3903 = vmatprep.subr.mxu0 0.0
    %3904 = vmatpush1.msra.mxu0 0.0
    %3905 = vmatprep.subr.mxu0 0.0
    %3906 = vmatpush1.msra.mxu0 0.0
    %3907 = vmatprep.mubr.f32.mxu0 0.0
    %3908 = vmatmul.mubr.f32.gmra.mrb[0].mxu0 %v3417
    %v3909 = vpop.f32.mrb[0].mxu0
    %v3910 = vadd.f32 0.0, %v3909
    %v3911 = vpop.f32.mrb[0].mxu0
    %v3912 = vadd.f32 0.0, %v3911
    %3913 = vdwg.mxu0
    %3914 = vmatprep.subr.mxu0 %v3766
    %3915 = vmatpush1.msra.mxu0 %v3765
    %3916 = vmatprep.subr.mxu0 %v3771
    %3917 = vmatpush1.msra.mxu0 %v3770
    %3918 = vmatprep.subr.mxu0 %v3776
    %3919 = vmatpush1.msra.mxu0 %v3775
    %3920 = vmatprep.subr.mxu0 %v3781
    %3921 = vmatpush1.msra.mxu0 %v3780
    %3922 = vmatprep.subr.mxu0 %v3786
    %3923 = vmatpush1.msra.mxu0 %v3785
    %3924 = vmatprep.subr.mxu0 %v3791
    %3925 = vmatpush1.msra.mxu0 %v3790
    %3926 = vmatprep.subr.mxu0 %v3796
    %3927 = vmatpush1.msra.mxu0 %v3795
    %3928 = vmatprep.subr.mxu0 %v3801
    %3929 = vmatpush1.msra.mxu0 %v3800
    %3930 = vmatprep.subr.mxu0 %v3806
    %3931 = vmatpush1.msra.mxu0 %v3805
    %3932 = vmatprep.subr.mxu0 %v3811
    %3933 = vmatpush1.msra.mxu0 %v3810
    %3934 = vmatprep.subr.mxu0 %v3816
    %3935 = vmatpush1.msra.mxu0 %v3815
    %3936 = vmatprep.subr.mxu0 %v3821
    %3937 = vmatpush1.msra.mxu0 %v3820
    %3938 = vmatprep.subr.mxu0 %v3826
    %3939 = vmatpush1.msra.mxu0 %v3825
    %3940 = vmatprep.subr.mxu0 %v3831
    %3941 = vmatpush1.msra.mxu0 %v3830
    %3942 = vmatprep.subr.mxu0 %v3836
    %3943 = vmatpush1.msra.mxu0 %v3835
    %3944 = vmatprep.subr.mxu0 %v3841
    %3945 = vmatpush1.msra.mxu0 %v3840
    %3946 = vmatprep.subr.mxu0 0.0
    %3947 = vmatpush1.msra.mxu0 0.0
    %3948 = vmatprep.subr.mxu0 0.0
    %3949 = vmatpush1.msra.mxu0 0.0
    %3950 = vmatprep.subr.mxu0 0.0
    %3951 = vmatpush1.msra.mxu0 0.0
    %3952 = vmatprep.subr.mxu0 0.0
    %3953 = vmatpush1.msra.mxu0 0.0
    %3954 = vmatprep.subr.mxu0 0.0
    %3955 = vmatpush1.msra.mxu0 0.0
    %3956 = vmatprep.subr.mxu0 0.0
    %3957 = vmatpush1.msra.mxu0 0.0
    %3958 = vmatprep.subr.mxu0 0.0
    %3959 = vmatpush1.msra.mxu0 0.0
    %3960 = vmatprep.subr.mxu0 0.0
    %3961 = vmatpush1.msra.mxu0 0.0
    %3962 = vmatprep.subr.mxu0 0.0
    %3963 = vmatpush1.msra.mxu0 0.0
    %3964 = vmatprep.subr.mxu0 0.0
    %3965 = vmatpush1.msra.mxu0 0.0
    %3966 = vmatprep.subr.mxu0 0.0
    %3967 = vmatpush1.msra.mxu0 0.0
    %3968 = vmatprep.subr.mxu0 0.0
    %3969 = vmatpush1.msra.mxu0 0.0
    %3970 = vmatprep.subr.mxu0 0.0
    %3971 = vmatpush1.msra.mxu0 0.0
    %3972 = vmatprep.subr.mxu0 0.0
    %3973 = vmatpush1.msra.mxu0 0.0
    %3974 = vmatprep.subr.mxu0 0.0
    %3975 = vmatpush1.msra.mxu0 0.0
    %3976 = vmatprep.subr.mxu0 0.0
    %3977 = vmatpush1.msra.mxu0 0.0
    %3978 = vmatprep.mubr.f32.mxu0 0.0
    %3979 = vmatmul.mubr.f32.gmra.mrb[0].mxu0 %v3417
    %v3980 = vpop.f32.mrb[0].mxu0
    %v3981 = vadd.f32 0.0, %v3980
    %v3982 = vpop.f32.mrb[0].mxu0
    %v3983 = vadd.f32 0.0, %v3982
    %3984 = vdwg.mxu0
    %3985 = vmatprep.subr.mxu0 0.0
    %3986 = vmatpush1.msra.mxu0 %v3767
    %3987 = vmatprep.subr.mxu0 0.0
    %3988 = vmatpush1.msra.mxu0 %v3772
    %3989 = vmatprep.subr.mxu0 0.0
    %3990 = vmatpush1.msra.mxu0 %v3777
    %3991 = vmatprep.subr.mxu0 0.0
    %3992 = vmatpush1.msra.mxu0 %v3782
    %3993 = vmatprep.subr.mxu0 0.0
    %3994 = vmatpush1.msra.mxu0 %v3787
    %3995 = vmatprep.subr.mxu0 0.0
    %3996 = vmatpush1.msra.mxu0 %v3792
    %3997 = vmatprep.subr.mxu0 0.0
    %3998 = vmatpush1.msra.mxu0 %v3797
    %3999 = vmatprep.subr.mxu0 0.0
    %4000 = vmatpush1.msra.mxu0 %v3802
    %4001 = vmatprep.subr.mxu0 0.0
    %4002 = vmatpush1.msra.mxu0 %v3807
    %4003 = vmatprep.subr.mxu0 0.0
    %4004 = vmatpush1.msra.mxu0 %v3812
    %4005 = vmatprep.subr.mxu0 0.0
    %4006 = vmatpush1.msra.mxu0 %v3817
    %4007 = vmatprep.subr.mxu0 0.0
    %4008 = vmatpush1.msra.mxu0 %v3822
    %4009 = vmatprep.subr.mxu0 0.0
    %4010 = vmatpush1.msra.mxu0 %v3827
    %4011 = vmatprep.subr.mxu0 0.0
    %4012 = vmatpush1.msra.mxu0 %v3832
    %4013 = vmatprep.subr.mxu0 0.0
    %4014 = vmatpush1.msra.mxu0 %v3837
    %4015 = vmatprep.subr.mxu0 0.0
    %4016 = vmatpush1.msra.mxu0 %v3842
    %4017 = vmatprep.subr.mxu0 0.0
    %4018 = vmatpush1.msra.mxu0 0.0
    %4019 = vmatprep.subr.mxu0 0.0
    %4020 = vmatpush1.msra.mxu0 0.0
    %4021 = vmatprep.subr.mxu0 0.0
    %4022 = vmatpush1.msra.mxu0 0.0
    %4023 = vmatprep.subr.mxu0 0.0
    %4024 = vmatpush1.msra.mxu0 0.0
    %4025 = vmatprep.subr.mxu0 0.0
    %4026 = vmatpush1.msra.mxu0 0.0
    %4027 = vmatprep.subr.mxu0 0.0
    %4028 = vmatpush1.msra.mxu0 0.0
    %4029 = vmatprep.subr.mxu0 0.0
    %4030 = vmatpush1.msra.mxu0 0.0
    %4031 = vmatprep.subr.mxu0 0.0
    %4032 = vmatpush1.msra.mxu0 0.0
    %4033 = vmatprep.subr.mxu0 0.0
    %4034 = vmatpush1.msra.mxu0 0.0
    %4035 = vmatprep.subr.mxu0 0.0
    %4036 = vmatpush1.msra.mxu0 0.0
    %4037 = vmatprep.subr.mxu0 0.0
    %4038 = vmatpush1.msra.mxu0 0.0
    %4039 = vmatprep.subr.mxu0 0.0
    %4040 = vmatpush1.msra.mxu0 0.0
    %4041 = vmatprep.subr.mxu0 0.0
    %4042 = vmatpush1.msra.mxu0 0.0
    %4043 = vmatprep.subr.mxu0 0.0
    %4044 = vmatpush1.msra.mxu0 0.0
    %4045 = vmatprep.subr.mxu0 0.0
    %4046 = vmatpush1.msra.mxu0 0.0
    %4047 = vmatprep.subr.mxu0 0.0
    %4048 = vmatpush1.msra.mxu0 0.0
    %4049 = vmatprep.mubr.f32.mxu0 0.0
    %4050 = vmatmul.mubr.f32.gmra.mrb[0].mxu0 %v3417
    %v4051 = vpop.f32.mrb[0].mxu0
    %v4052 = vadd.f32 0.0, %v4051
    %v4053 = vpop.f32.mrb[0].mxu0
    %4054 = vdwg.mxu0
    %v4060 = vcombine.low %v3910, %v3912
    %v4061 = vcombine.low %v3981, %v3983
    %v4063 = vunpack.c.l.s4 1966171168
    %v4064 = vunpack.c.0.s8 %v4063
    %v4065 = vlaneseq
    %v4066 = vshrl.u32 %v4065, 7
    %v4067 = vsub.s32 %v4064, %v4066
    %v4068 = vrot.slane %v4060, %v4067
    %v4070 = vunpack.c.l.s4 1966171168
    %v4071 = vunpack.c.0.s8 %v4070
    %v4072 = vlaneseq
    %v4073 = vshrl.u32 %v4072, 7
    %v4074 = vsub.s32 %v4071, %v4073
    %v4075 = vrot.slane %v4061, %v4074
    %v4077 = vunpack.c.l.s4 1966171168
    %v4078 = vunpack.c.0.s8 %v4077
    %v4079 = vlaneseq
    %v4080 = vshrl.u32 %v4079, 7
    %v4081 = vsub.s32 %v4078, %v4080
    %v4082 = vrot.slane %v4052, %v4081
    %v4083 = vcombine.low %v4068, %v4075
    %v4085 = vunpack.c.l.s4 1966171168
    %v4086 = vunpack.c.0.s8 %v4085
    %v4087 = vlaneseq
    %v4088 = vshrl.u32 %v4087, 7
    %v4089 = vsub.s32 %v4086, %v4088
    %v4090 = vrot.slane %v4083, %v4089
    %v4092 = vunpack.c.l.s4 1966171168
    %v4093 = vunpack.c.0.s8 %v4092
    %v4094 = vlaneseq
    %v4095 = vshrl.u32 %v4094, 7
    %v4096 = vsub.s32 %v4093, %v4095
    %v4097 = vrot.slane %v4082, %v4096
    %v4098 = vcombine.low %v4090, %v4097
    %v4100 = vadd.f32 %v3762, %v4098
    %v4101 = vxor.u32 %v4100, 2147483648
    %v4102 = vmul.f32 %v4101, 1.442695
    %v4103 = vpow.pop %v4102
    %v4104 = vadd.f32 %v4103, 1.0
    %v4105 = vrcp.pop %v4104
    %v4106 = vmul.f32 1.0, %v4105
    %v4108 = vrot.slane %v4100, 1
    %v4110 = vxor.u32 %v4108, 2147483648
    %v4111 = vmul.f32 %v4110, 1.442695
    %v4112 = vpow.pop %v4111
    %v4113 = vadd.f32 %v4112, 1.0
    %v4114 = vrcp.pop %v4113
    %v4115 = vmul.f32 1.0, %v4114
    %v4116 = vrot.slane %v4100, 2
    %v4118 = vtanh.pop %v4116
    %v4119 = vrot.slane %v4100, 3
    %v4121 = vxor.u32 %v4119, 2147483648
    %v4122 = vmul.f32 %v4121, 1.442695
    %v4123 = vpow.pop %v4122
    %v4124 = vadd.f32 %v4123, 1.0
    %v4125 = vrcp.pop %v4124
    %v4126 = vmul.f32 1.0, %v4125
    %v4127 = vrot.slane %v4100, 4
    %v4129 = vxor.u32 %v4127, 2147483648
    %v4130 = vmul.f32 %v4129, 1.442695
    %v4131 = vpow.pop %v4130
    %v4132 = vadd.f32 %v4131, 1.0
    %v4133 = vrcp.pop %v4132
    %v4134 = vmul.f32 1.0, %v4133
    %v4135 = vmul.f32 %v4106, %v4118
    %v4136 = vmul.f32 %v4126, %v3407
    %v4137 = vadd.f32 %v4135, %v4136
    %v4138 = vmul.f32 %v4134, %v3420
    %v4139 = vadd.f32 %v4137, %v4138
    %v4140 = vtanh.pop %v4139
    %v4141 = vmul.f32 %v4115, %v4140
    %4142 = vst [vmem:[#allocation3 + $0x3] sm:$0x1] %v4139
    %4143 = vst [vmem:[#allocation2 + $0x3] sm:$0x1] %v4141
    %s4144 = sld [smem:[#allocation5 + $0x4]]
    %p4145 = scmp.ge.s32.totalorder %s4144, 0
    %s4146 = scalar_select %p4145, 1, 0
    %s4147 = scvt.s32.f32 %s4146
    %p4148 = scmp.gt.s32.totalorder %s4144, 0
    %s4149 = scalar_select %p4148, %s4144, 0
    %s4150 = scalar_lea.vmem [#allocation2], %s4149
    %v4151 = vld [vmem:[%s4150] sm:$0x1]
    %v4152 = vstv %s4147
    %v4153 = vmul.f32 %v4151, %v4152
    %s4154 = scalar_lea.vmem [#allocation3], %s4149
    %v4155 = vld [vmem:[%s4154] sm:$0x1]
    %v4156 = vmul.f32 %v4155, %v4152
    %s4157 = sld [smem:[#allocation5 + $0x5]]
    %p4158 = scmp.ge.s32.totalorder %s4157, 0
    %s4159 = scalar_select %p4158, 1, 0
    %s4160 = scvt.s32.f32 %s4159
    %p4161 = scmp.gt.s32.totalorder %s4157, 0
    %s4162 = scalar_select %p4161, %s4157, 0
    %s4163 = scalar_lea.vmem [#allocation2], %s4162
    %v4164 = vld [vmem:[%s4163] sm:$0x1]
    %v4165 = vstv %s4160
    %v4166 = vmul.f32 %v4164, %v4165
    %s4167 = scalar_lea.vmem [#allocation3], %s4162
    %v4168 = vld [vmem:[%s4167] sm:$0x1]
    %v4169 = vmul.f32 %v4168, %v4165
    %s4170 = scalar_lea.vmem [#allocation4], 2
    %v4171 = vld [vmem:[%s4170] ss:$8 sm:$0xf]
    %v4172 = vld [vmem:[%s4170] ss:$8 sm:$0x10]
    %v4173 = vor.u32 %v4171, %v4172
    %v4174 = vld [vmem:[#allocation13] sm:$0xff]
    %v4175 = vld [vmem:[#allocation13 + $0x8] sm:$0xff]
    %v4176 = vld [vmem:[#allocation13 + $0x10] sm:$0xff]
    %v4177 = vld [vmem:[#allocation13 + $0x18] sm:$0xff]
    %v4178 = vld [vmem:[#allocation13 + $0x20] sm:$0xff]
    %v4179 = vld [vmem:[#allocation13 + $0x28] sm:$0xff]
    %v4180 = vld [vmem:[#allocation13 + $0x30] sm:$0xff]
    %v4181 = vld [vmem:[#allocation13 + $0x38] sm:$0xff]
    %v4182 = vld [vmem:[#allocation13 + $0x40] sm:$0xff]
    %v4183 = vld [vmem:[#allocation13 + $0x48] sm:$0xff]
    %v4184 = vld [vmem:[#allocation13 + $0x50] sm:$0xff]
    %v4185 = vld [vmem:[#allocation13 + $0x58] sm:$0xff]
    %v4186 = vld [vmem:[#allocation13 + $0x60] sm:$0xff]
    %v4187 = vld [vmem:[#allocation13 + $0x68] sm:$0xff]
    %v4188 = vld [vmem:[#allocation13 + $0x70] sm:$0xff]
    %v4189 = vld [vmem:[#allocation13 + $0x78] sm:$0xff]
    %v4190 = vld [vmem:[#allocation13 + $0x80] sm:$0xff]
    %v4191 = vld [vmem:[#allocation13 + $0x88] sm:$0xff]
    %v4192 = vld [vmem:[#allocation13 + $0x90] sm:$0xff]
    %v4193 = vld [vmem:[#allocation13 + $0x98] sm:$0xff]
    %v4194 = vld [vmem:[#allocation13 + $0xa0] sm:$0xff]
    %v4195 = vld [vmem:[#allocation13 + $0xa8] sm:$0xff]
    %v4196 = vld [vmem:[#allocation13 + $0xb0] sm:$0xff]
    %v4197 = vld [vmem:[#allocation13 + $0xb8] sm:$0xff]
    %v4198 = vld [vmem:[#allocation13 + $0xc0] sm:$0xff]
    %v4199 = vld [vmem:[#allocation13 + $0xc8] sm:$0xff]
    %v4200 = vld [vmem:[#allocation13 + $0xd0] sm:$0xff]
    %v4201 = vld [vmem:[#allocation13 + $0xd8] sm:$0xff]
    %v4202 = vld [vmem:[#allocation13 + $0xe0] sm:$0xff]
    %v4203 = vld [vmem:[#allocation13 + $0xe8] sm:$0xff]
    %v4204 = vld [vmem:[#allocation13 + $0xf0] sm:$0xff]
    %v4205 = vld [vmem:[#allocation13 + $0xf8] sm:$0xff]
    %v4206 = vld [vmem:[#allocation13 + $0x100] sm:$0xff]
    %v4207 = vld [vmem:[#allocation13 + $0x108] sm:$0xff]
    %v4208 = vld [vmem:[#allocation13 + $0x110] sm:$0xff]
    %v4209 = vld [vmem:[#allocation13 + $0x118] sm:$0xff]
    %v4210 = vld [vmem:[#allocation13 + $0x120] sm:$0xff]
    %v4211 = vld [vmem:[#allocation13 + $0x128] sm:$0xff]
    %v4212 = vld [vmem:[#allocation13 + $0x130] sm:$0xff]
    %v4213 = vld [vmem:[#allocation13 + $0x138] sm:$0xff]
    %v4214 = vld [vmem:[#allocation13 + $0x140] sm:$0xff]
    %v4215 = vld [vmem:[#allocation13 + $0x148] sm:$0xff]
    %v4216 = vld [vmem:[#allocation13 + $0x150] sm:$0xff]
    %v4217 = vld [vmem:[#allocation13 + $0x158] sm:$0xff]
    %v4218 = vld [vmem:[#allocation13 + $0x160] sm:$0xff]
    %v4219 = vld [vmem:[#allocation13 + $0x168] sm:$0xff]
    %v4220 = vld [vmem:[#allocation13 + $0x170] sm:$0xff]
    %v4221 = vld [vmem:[#allocation13 + $0x178] sm:$0xff]
    %v4222 = vld [vmem:[#allocation13 + $0x180] sm:$0xff]
    %v4223 = vld [vmem:[#allocation13 + $0x188] sm:$0xff]
    %v4224 = vld [vmem:[#allocation13 + $0x190] sm:$0xff]
    %v4225 = vld [vmem:[#allocation13 + $0x198] sm:$0xff]
    %v4226 = vld [vmem:[#allocation13 + $0x1a0] sm:$0xff]
    %v4227 = vld [vmem:[#allocation13 + $0x1a8] sm:$0xff]
    %v4228 = vld [vmem:[#allocation13 + $0x1b0] sm:$0xff]
    %v4229 = vld [vmem:[#allocation13 + $0x1b8] sm:$0xff]
    %v4230 = vld [vmem:[#allocation13 + $0x1c0] sm:$0xff]
    %v4231 = vld [vmem:[#allocation13 + $0x1c8] sm:$0xff]
    %v4232 = vld [vmem:[#allocation13 + $0x1d0] sm:$0xff]
    %v4233 = vld [vmem:[#allocation13 + $0x1d8] sm:$0xff]
    %v4234 = vld [vmem:[#allocation13 + $0x1e0] sm:$0xff]
    %v4235 = vld [vmem:[#allocation13 + $0x1e8] sm:$0xff]
    %v4236 = vld [vmem:[#allocation13 + $0x1f0] sm:$0xff]
    %v4237 = vld [vmem:[#allocation13 + $0x1f8] sm:$0xff]
    %v4238 = vld [vmem:[#allocation13 + $0x200] sm:$0xff]
    %v4239 = vld [vmem:[#allocation13 + $0x208] sm:$0xff]
    %v4240 = vld [vmem:[#allocation13 + $0x210] sm:$0xff]
    %v4241 = vld [vmem:[#allocation13 + $0x218] sm:$0xff]
    %v4242 = vld [vmem:[#allocation13 + $0x220] sm:$0xff]
    %v4243 = vld [vmem:[#allocation13 + $0x228] sm:$0xff]
    %v4244 = vld [vmem:[#allocation13 + $0x230] sm:$0xff]
    %v4245 = vld [vmem:[#allocation13 + $0x238] sm:$0xff]
    %v4246 = vld [vmem:[#allocation13 + $0x240] sm:$0xff]
    %v4247 = vld [vmem:[#allocation13 + $0x248] sm:$0xff]
    %v4248 = vld [vmem:[#allocation13 + $0x250] sm:$0xff]
    %v4249 = vld [vmem:[#allocation13 + $0x258] sm:$0xff]
    %v4250 = vld [vmem:[#allocation13 + $0x260] sm:$0xff]
    %v4251 = vld [vmem:[#allocation13 + $0x268] sm:$0xff]
    %v4252 = vld [vmem:[#allocation13 + $0x270] sm:$0xff]
    %v4253 = vld [vmem:[#allocation13 + $0x278] sm:$0xff]
    %4254 = vmatprep.subr.mxu0 %v4175
    %4255 = vmatpush1.msra.mxu0 %v4174
    %4256 = vmatprep.subr.mxu0 %v4180
    %4257 = vmatpush1.msra.mxu0 %v4179
    %4258 = vmatprep.subr.mxu0 %v4185
    %4259 = vmatpush1.msra.mxu0 %v4184
    %4260 = vmatprep.subr.mxu0 %v4190
    %4261 = vmatpush1.msra.mxu0 %v4189
    %4262 = vmatprep.subr.mxu0 %v4195
    %4263 = vmatpush1.msra.mxu0 %v4194
    %4264 = vmatprep.subr.mxu0 %v4200
    %4265 = vmatpush1.msra.mxu0 %v4199
    %4266 = vmatprep.subr.mxu0 %v4205
    %4267 = vmatpush1.msra.mxu0 %v4204
    %4268 = vmatprep.subr.mxu0 %v4210
    %4269 = vmatpush1.msra.mxu0 %v4209
    %4270 = vmatprep.subr.mxu0 %v4215
    %4271 = vmatpush1.msra.mxu0 %v4214
    %4272 = vmatprep.subr.mxu0 %v4220
    %4273 = vmatpush1.msra.mxu0 %v4219
    %4274 = vmatprep.subr.mxu0 %v4225
    %4275 = vmatpush1.msra.mxu0 %v4224
    %4276 = vmatprep.subr.mxu0 %v4230
    %4277 = vmatpush1.msra.mxu0 %v4229
    %4278 = vmatprep.subr.mxu0 %v4235
    %4279 = vmatpush1.msra.mxu0 %v4234
    %4280 = vmatprep.subr.mxu0 %v4240
    %4281 = vmatpush1.msra.mxu0 %v4239
    %4282 = vmatprep.subr.mxu0 %v4245
    %4283 = vmatpush1.msra.mxu0 %v4244
    %4284 = vmatprep.subr.mxu0 %v4250
    %4285 = vmatpush1.msra.mxu0 %v4249
    %4286 = vmatprep.subr.mxu0 0.0
    %4287 = vmatpush1.msra.mxu0 0.0
    %4288 = vmatprep.subr.mxu0 0.0
    %4289 = vmatpush1.msra.mxu0 0.0
    %4290 = vmatprep.subr.mxu0 0.0
    %4291 = vmatpush1.msra.mxu0 0.0
    %4292 = vmatprep.subr.mxu0 0.0
    %4293 = vmatpush1.msra.mxu0 0.0
    %4294 = vmatprep.subr.mxu0 0.0
    %4295 = vmatpush1.msra.mxu0 0.0
    %4296 = vmatprep.subr.mxu0 0.0
    %4297 = vmatpush1.msra.mxu0 0.0
    %4298 = vmatprep.subr.mxu0 0.0
    %4299 = vmatpush1.msra.mxu0 0.0
    %4300 = vmatprep.subr.mxu0 0.0
    %4301 = vmatpush1.msra.mxu0 0.0
    %4302 = vmatprep.subr.mxu0 0.0
    %4303 = vmatpush1.msra.mxu0 0.0
    %4304 = vmatprep.subr.mxu0 0.0
    %4305 = vmatpush1.msra.mxu0 0.0
    %4306 = vmatprep.subr.mxu0 0.0
    %4307 = vmatpush1.msra.mxu0 0.0
    %4308 = vmatprep.subr.mxu0 0.0
    %4309 = vmatpush1.msra.mxu0 0.0
    %4310 = vmatprep.subr.mxu0 0.0
    %4311 = vmatpush1.msra.mxu0 0.0
    %4312 = vmatprep.subr.mxu0 0.0
    %4313 = vmatpush1.msra.mxu0 0.0
    %4314 = vmatprep.subr.mxu0 0.0
    %4315 = vmatpush1.msra.mxu0 0.0
    %4316 = vmatprep.subr.mxu0 0.0
    %4317 = vmatpush1.msra.mxu0 0.0
    %4318 = vmatprep.mubr.f32.mxu0 0.0
    %4319 = vmatmul.mubr.f32.gmra.mrb[0].mxu0 %v4153
    %v4320 = vpop.f32.mrb[0].mxu0
    %v4321 = vadd.f32 0.0, %v4320
    %v4322 = vpop.f32.mrb[0].mxu0
    %v4323 = vadd.f32 0.0, %v4322
    %4324 = vdwg.mxu0
    %4325 = vmatprep.subr.mxu0 %v4177
    %4326 = vmatpush1.msra.mxu0 %v4176
    %4327 = vmatprep.subr.mxu0 %v4182
    %4328 = vmatpush1.msra.mxu0 %v4181
    %4329 = vmatprep.subr.mxu0 %v4187
    %4330 = vmatpush1.msra.mxu0 %v4186
    %4331 = vmatprep.subr.mxu0 %v4192
    %4332 = vmatpush1.msra.mxu0 %v4191
    %4333 = vmatprep.subr.mxu0 %v4197
    %4334 = vmatpush1.msra.mxu0 %v4196
    %4335 = vmatprep.subr.mxu0 %v4202
    %4336 = vmatpush1.msra.mxu0 %v4201
    %4337 = vmatprep.subr.mxu0 %v4207
    %4338 = vmatpush1.msra.mxu0 %v4206
    %4339 = vmatprep.subr.mxu0 %v4212
    %4340 = vmatpush1.msra.mxu0 %v4211
    %4341 = vmatprep.subr.mxu0 %v4217
    %4342 = vmatpush1.msra.mxu0 %v4216
    %4343 = vmatprep.subr.mxu0 %v4222
    %4344 = vmatpush1.msra.mxu0 %v4221
    %4345 = vmatprep.subr.mxu0 %v4227
    %4346 = vmatpush1.msra.mxu0 %v4226
    %4347 = vmatprep.subr.mxu0 %v4232
    %4348 = vmatpush1.msra.mxu0 %v4231
    %4349 = vmatprep.subr.mxu0 %v4237
    %4350 = vmatpush1.msra.mxu0 %v4236
    %4351 = vmatprep.subr.mxu0 %v4242
    %4352 = vmatpush1.msra.mxu0 %v4241
    %4353 = vmatprep.subr.mxu0 %v4247
    %4354 = vmatpush1.msra.mxu0 %v4246
    %4355 = vmatprep.subr.mxu0 %v4252
    %4356 = vmatpush1.msra.mxu0 %v4251
    %4357 = vmatprep.subr.mxu0 0.0
    %4358 = vmatpush1.msra.mxu0 0.0
    %4359 = vmatprep.subr.mxu0 0.0
    %4360 = vmatpush1.msra.mxu0 0.0
    %4361 = vmatprep.subr.mxu0 0.0
    %4362 = vmatpush1.msra.mxu0 0.0
    %4363 = vmatprep.subr.mxu0 0.0
    %4364 = vmatpush1.msra.mxu0 0.0
    %4365 = vmatprep.subr.mxu0 0.0
    %4366 = vmatpush1.msra.mxu0 0.0
    %4367 = vmatprep.subr.mxu0 0.0
    %4368 = vmatpush1.msra.mxu0 0.0
    %4369 = vmatprep.subr.mxu0 0.0
    %4370 = vmatpush1.msra.mxu0 0.0
    %4371 = vmatprep.subr.mxu0 0.0
    %4372 = vmatpush1.msra.mxu0 0.0
    %4373 = vmatprep.subr.mxu0 0.0
    %4374 = vmatpush1.msra.mxu0 0.0
    %4375 = vmatprep.subr.mxu0 0.0
    %4376 = vmatpush1.msra.mxu0 0.0
    %4377 = vmatprep.subr.mxu0 0.0
    %4378 = vmatpush1.msra.mxu0 0.0
    %4379 = vmatprep.subr.mxu0 0.0
    %4380 = vmatpush1.msra.mxu0 0.0
    %4381 = vmatprep.subr.mxu0 0.0
    %4382 = vmatpush1.msra.mxu0 0.0
    %4383 = vmatprep.subr.mxu0 0.0
    %4384 = vmatpush1.msra.mxu0 0.0
    %4385 = vmatprep.subr.mxu0 0.0
    %4386 = vmatpush1.msra.mxu0 0.0
    %4387 = vmatprep.subr.mxu0 0.0
    %4388 = vmatpush1.msra.mxu0 0.0
    %4389 = vmatprep.mubr.f32.mxu0 0.0
    %4390 = vmatmul.mubr.f32.gmra.mrb[0].mxu0 %v4153
    %v4391 = vpop.f32.mrb[0].mxu0
    %v4392 = vadd.f32 0.0, %v4391
    %v4393 = vpop.f32.mrb[0].mxu0
    %v4394 = vadd.f32 0.0, %v4393
    %4395 = vdwg.mxu0
    %4396 = vmatprep.subr.mxu0 0.0
    %4397 = vmatpush1.msra.mxu0 %v4178
    %4398 = vmatprep.subr.mxu0 0.0
    %4399 = vmatpush1.msra.mxu0 %v4183
    %4400 = vmatprep.subr.mxu0 0.0
    %4401 = vmatpush1.msra.mxu0 %v4188
    %4402 = vmatprep.subr.mxu0 0.0
    %4403 = vmatpush1.msra.mxu0 %v4193
    %4404 = vmatprep.subr.mxu0 0.0
    %4405 = vmatpush1.msra.mxu0 %v4198
    %4406 = vmatprep.subr.mxu0 0.0
    %4407 = vmatpush1.msra.mxu0 %v4203
    %4408 = vmatprep.subr.mxu0 0.0
    %4409 = vmatpush1.msra.mxu0 %v4208
    %4410 = vmatprep.subr.mxu0 0.0
    %4411 = vmatpush1.msra.mxu0 %v4213
    %4412 = vmatprep.subr.mxu0 0.0
    %4413 = vmatpush1.msra.mxu0 %v4218
    %4414 = vmatprep.subr.mxu0 0.0
    %4415 = vmatpush1.msra.mxu0 %v4223
    %4416 = vmatprep.subr.mxu0 0.0
    %4417 = vmatpush1.msra.mxu0 %v4228
    %4418 = vmatprep.subr.mxu0 0.0
    %4419 = vmatpush1.msra.mxu0 %v4233
    %4420 = vmatprep.subr.mxu0 0.0
    %4421 = vmatpush1.msra.mxu0 %v4238
    %4422 = vmatprep.subr.mxu0 0.0
    %4423 = vmatpush1.msra.mxu0 %v4243
    %4424 = vmatprep.subr.mxu0 0.0
    %4425 = vmatpush1.msra.mxu0 %v4248
    %4426 = vmatprep.subr.mxu0 0.0
    %4427 = vmatpush1.msra.mxu0 %v4253
    %4428 = vmatprep.subr.mxu0 0.0
    %4429 = vmatpush1.msra.mxu0 0.0
    %4430 = vmatprep.subr.mxu0 0.0
    %4431 = vmatpush1.msra.mxu0 0.0
    %4432 = vmatprep.subr.mxu0 0.0
    %4433 = vmatpush1.msra.mxu0 0.0
    %4434 = vmatprep.subr.mxu0 0.0
    %4435 = vmatpush1.msra.mxu0 0.0
    %4436 = vmatprep.subr.mxu0 0.0
    %4437 = vmatpush1.msra.mxu0 0.0
    %4438 = vmatprep.subr.mxu0 0.0
    %4439 = vmatpush1.msra.mxu0 0.0
    %4440 = vmatprep.subr.mxu0 0.0
    %4441 = vmatpush1.msra.mxu0 0.0
    %4442 = vmatprep.subr.mxu0 0.0
    %4443 = vmatpush1.msra.mxu0 0.0
    %4444 = vmatprep.subr.mxu0 0.0
    %4445 = vmatpush1.msra.mxu0 0.0
    %4446 = vmatprep.subr.mxu0 0.0
    %4447 = vmatpush1.msra.mxu0 0.0
    %4448 = vmatprep.subr.mxu0 0.0
    %4449 = vmatpush1.msra.mxu0 0.0
    %4450 = vmatprep.subr.mxu0 0.0
    %4451 = vmatpush1.msra.mxu0 0.0
    %4452 = vmatprep.subr.mxu0 0.0
    %4453 = vmatpush1.msra.mxu0 0.0
    %4454 = vmatprep.subr.mxu0 0.0
    %4455 = vmatpush1.msra.mxu0 0.0
    %4456 = vmatprep.subr.mxu0 0.0
    %4457 = vmatpush1.msra.mxu0 0.0
    %4458 = vmatprep.subr.mxu0 0.0
    %4459 = vmatpush1.msra.mxu0 0.0
    %4460 = vmatprep.mubr.f32.mxu0 0.0
    %4461 = vmatmul.mubr.f32.gmra.mrb[0].mxu0 %v4153
    %v4462 = vpop.f32.mrb[0].mxu0
    %v4463 = vadd.f32 0.0, %v4462
    %v4464 = vpop.f32.mrb[0].mxu0
    %4465 = vdwg.mxu0
    %v4471 = vcombine.low %v4321, %v4323
    %v4472 = vcombine.low %v4392, %v4394
    %v4474 = vunpack.c.l.s4 1966171168
    %v4475 = vunpack.c.0.s8 %v4474
    %v4476 = vlaneseq
    %v4477 = vshrl.u32 %v4476, 7
    %v4478 = vsub.s32 %v4475, %v4477
    %v4479 = vrot.slane %v4471, %v4478
    %v4481 = vunpack.c.l.s4 1966171168
    %v4482 = vunpack.c.0.s8 %v4481
    %v4483 = vlaneseq
    %v4484 = vshrl.u32 %v4483, 7
    %v4485 = vsub.s32 %v4482, %v4484
    %v4486 = vrot.slane %v4472, %v4485
    %v4488 = vunpack.c.l.s4 1966171168
    %v4489 = vunpack.c.0.s8 %v4488
    %v4490 = vlaneseq
    %v4491 = vshrl.u32 %v4490, 7
    %v4492 = vsub.s32 %v4489, %v4491
    %v4493 = vrot.slane %v4463, %v4492
    %v4494 = vcombine.low %v4479, %v4486
    %v4496 = vunpack.c.l.s4 1966171168
    %v4497 = vunpack.c.0.s8 %v4496
    %v4498 = vlaneseq
    %v4499 = vshrl.u32 %v4498, 7
    %v4500 = vsub.s32 %v4497, %v4499
    %v4501 = vrot.slane %v4494, %v4500
    %v4503 = vunpack.c.l.s4 1966171168
    %v4504 = vunpack.c.0.s8 %v4503
    %v4505 = vlaneseq
    %v4506 = vshrl.u32 %v4505, 7
    %v4507 = vsub.s32 %v4504, %v4506
    %v4508 = vrot.slane %v4493, %v4507
    %v4509 = vcombine.low %v4501, %v4508
    %v4511 = vadd.f32 %v4173, %v4509
    %v4512 = vld [vmem:[%s766] sm:$0xff]
    %v4513 = vld [vmem:[%s766 + $0x8] sm:$0xff]
    %v4514 = vld [vmem:[%s766 + $0x10] sm:$0xff]
    %v4515 = vld [vmem:[%s766 + $0x18] sm:$0xff]
    %v4516 = vld [vmem:[%s766 + $0x20] sm:$0xff]
    %v4517 = vld [vmem:[%s766 + $0x28] sm:$0xff]
    %v4518 = vld [vmem:[%s766 + $0x30] sm:$0xff]
    %v4519 = vld [vmem:[%s766 + $0x38] sm:$0xff]
    %v4520 = vld [vmem:[%s766 + $0x40] sm:$0xff]
    %v4521 = vld [vmem:[%s766 + $0x48] sm:$0xff]
    %v4522 = vld [vmem:[%s766 + $0x50] sm:$0xff]
    %v4523 = vld [vmem:[%s766 + $0x58] sm:$0xff]
    %v4524 = vld [vmem:[%s766 + $0x60] sm:$0xff]
    %v4525 = vld [vmem:[%s766 + $0x68] sm:$0xff]
    %v4526 = vld [vmem:[%s766 + $0x70] sm:$0xff]
    %v4527 = vld [vmem:[%s766 + $0x78] sm:$0xff]
    %v4528 = vld [vmem:[%s766 + $0x80] sm:$0xff]
    %v4529 = vld [vmem:[%s766 + $0x88] sm:$0xff]
    %v4530 = vld [vmem:[%s766 + $0x90] sm:$0xff]
    %v4531 = vld [vmem:[%s766 + $0x98] sm:$0xff]
    %v4532 = vld [vmem:[%s766 + $0xa0] sm:$0xff]
    %v4533 = vld [vmem:[%s766 + $0xa8] sm:$0xff]
    %v4534 = vld [vmem:[%s766 + $0xb0] sm:$0xff]
    %v4535 = vld [vmem:[%s766 + $0xb8] sm:$0xff]
    %v4536 = vld [vmem:[%s766 + $0xc0] sm:$0xff]
    %v4537 = vld [vmem:[%s766 + $0xc8] sm:$0xff]
    %v4538 = vld [vmem:[%s766 + $0xd0] sm:$0xff]
    %v4539 = vld [vmem:[%s766 + $0xd8] sm:$0xff]
    %v4540 = vld [vmem:[%s766 + $0xe0] sm:$0xff]
    %v4541 = vld [vmem:[%s766 + $0xe8] sm:$0xff]
    %v4542 = vld [vmem:[%s766 + $0xf0] sm:$0xff]
    %v4543 = vld [vmem:[%s766 + $0xf8] sm:$0xff]
    %v4544 = vld [vmem:[%s766 + $0x100] sm:$0xff]
    %v4545 = vld [vmem:[%s766 + $0x108] sm:$0xff]
    %v4546 = vld [vmem:[%s766 + $0x110] sm:$0xff]
    %v4547 = vld [vmem:[%s766 + $0x118] sm:$0xff]
    %v4548 = vld [vmem:[%s766 + $0x120] sm:$0xff]
    %v4549 = vld [vmem:[%s766 + $0x128] sm:$0xff]
    %v4550 = vld [vmem:[%s766 + $0x130] sm:$0xff]
    %v4551 = vld [vmem:[%s766 + $0x138] sm:$0xff]
    %v4552 = vld [vmem:[%s766 + $0x140] sm:$0xff]
    %v4553 = vld [vmem:[%s766 + $0x148] sm:$0xff]
    %v4554 = vld [vmem:[%s766 + $0x150] sm:$0xff]
    %v4555 = vld [vmem:[%s766 + $0x158] sm:$0xff]
    %v4556 = vld [vmem:[%s766 + $0x160] sm:$0xff]
    %v4557 = vld [vmem:[%s766 + $0x168] sm:$0xff]
    %v4558 = vld [vmem:[%s766 + $0x170] sm:$0xff]
    %v4559 = vld [vmem:[%s766 + $0x178] sm:$0xff]
    %v4560 = vld [vmem:[%s766 + $0x180] sm:$0xff]
    %v4561 = vld [vmem:[%s766 + $0x188] sm:$0xff]
    %v4562 = vld [vmem:[%s766 + $0x190] sm:$0xff]
    %v4563 = vld [vmem:[%s766 + $0x198] sm:$0xff]
    %v4564 = vld [vmem:[%s766 + $0x1a0] sm:$0xff]
    %v4565 = vld [vmem:[%s766 + $0x1a8] sm:$0xff]
    %v4566 = vld [vmem:[%s766 + $0x1b0] sm:$0xff]
    %v4567 = vld [vmem:[%s766 + $0x1b8] sm:$0xff]
    %v4568 = vld [vmem:[%s766 + $0x1c0] sm:$0xff]
    %v4569 = vld [vmem:[%s766 + $0x1c8] sm:$0xff]
    %v4570 = vld [vmem:[%s766 + $0x1d0] sm:$0xff]
    %v4571 = vld [vmem:[%s766 + $0x1d8] sm:$0xff]
    %v4572 = vld [vmem:[%s766 + $0x1e0] sm:$0xff]
    %v4573 = vld [vmem:[%s766 + $0x1e8] sm:$0xff]
    %v4574 = vld [vmem:[%s766 + $0x1f0] sm:$0xff]
    %v4575 = vld [vmem:[%s766 + $0x1f8] sm:$0xff]
    %v4576 = vld [vmem:[%s766 + $0x200] sm:$0xff]
    %v4577 = vld [vmem:[%s766 + $0x208] sm:$0xff]
    %v4578 = vld [vmem:[%s766 + $0x210] sm:$0xff]
    %v4579 = vld [vmem:[%s766 + $0x218] sm:$0xff]
    %v4580 = vld [vmem:[%s766 + $0x220] sm:$0xff]
    %v4581 = vld [vmem:[%s766 + $0x228] sm:$0xff]
    %v4582 = vld [vmem:[%s766 + $0x230] sm:$0xff]
    %v4583 = vld [vmem:[%s766 + $0x238] sm:$0xff]
    %v4584 = vld [vmem:[%s766 + $0x240] sm:$0xff]
    %v4585 = vld [vmem:[%s766 + $0x248] sm:$0xff]
    %v4586 = vld [vmem:[%s766 + $0x250] sm:$0xff]
    %v4587 = vld [vmem:[%s766 + $0x258] sm:$0xff]
    %v4588 = vld [vmem:[%s766 + $0x260] sm:$0xff]
    %v4589 = vld [vmem:[%s766 + $0x268] sm:$0xff]
    %v4590 = vld [vmem:[%s766 + $0x270] sm:$0xff]
    %v4591 = vld [vmem:[%s766 + $0x278] sm:$0xff]
    %4592 = vmatprep.subr.mxu0 %v4513
    %4593 = vmatpush1.msra.mxu0 %v4512
    %4594 = vmatprep.subr.mxu0 %v4518
    %4595 = vmatpush1.msra.mxu0 %v4517
    %4596 = vmatprep.subr.mxu0 %v4523
    %4597 = vmatpush1.msra.mxu0 %v4522
    %4598 = vmatprep.subr.mxu0 %v4528
    %4599 = vmatpush1.msra.mxu0 %v4527
    %4600 = vmatprep.subr.mxu0 %v4533
    %4601 = vmatpush1.msra.mxu0 %v4532
    %4602 = vmatprep.subr.mxu0 %v4538
    %4603 = vmatpush1.msra.mxu0 %v4537
    %4604 = vmatprep.subr.mxu0 %v4543
    %4605 = vmatpush1.msra.mxu0 %v4542
    %4606 = vmatprep.subr.mxu0 %v4548
    %4607 = vmatpush1.msra.mxu0 %v4547
    %4608 = vmatprep.subr.mxu0 %v4553
    %4609 = vmatpush1.msra.mxu0 %v4552
    %4610 = vmatprep.subr.mxu0 %v4558
    %4611 = vmatpush1.msra.mxu0 %v4557
    %4612 = vmatprep.subr.mxu0 %v4563
    %4613 = vmatpush1.msra.mxu0 %v4562
    %4614 = vmatprep.subr.mxu0 %v4568
    %4615 = vmatpush1.msra.mxu0 %v4567
    %4616 = vmatprep.subr.mxu0 %v4573
    %4617 = vmatpush1.msra.mxu0 %v4572
    %4618 = vmatprep.subr.mxu0 %v4578
    %4619 = vmatpush1.msra.mxu0 %v4577
    %4620 = vmatprep.subr.mxu0 %v4583
    %4621 = vmatpush1.msra.mxu0 %v4582
    %4622 = vmatprep.subr.mxu0 %v4588
    %4623 = vmatpush1.msra.mxu0 %v4587
    %4624 = vmatprep.subr.mxu0 0.0
    %4625 = vmatpush1.msra.mxu0 0.0
    %4626 = vmatprep.subr.mxu0 0.0
    %4627 = vmatpush1.msra.mxu0 0.0
    %4628 = vmatprep.subr.mxu0 0.0
    %4629 = vmatpush1.msra.mxu0 0.0
    %4630 = vmatprep.subr.mxu0 0.0
    %4631 = vmatpush1.msra.mxu0 0.0
    %4632 = vmatprep.subr.mxu0 0.0
    %4633 = vmatpush1.msra.mxu0 0.0
    %4634 = vmatprep.subr.mxu0 0.0
    %4635 = vmatpush1.msra.mxu0 0.0
    %4636 = vmatprep.subr.mxu0 0.0
    %4637 = vmatpush1.msra.mxu0 0.0
    %4638 = vmatprep.subr.mxu0 0.0
    %4639 = vmatpush1.msra.mxu0 0.0
    %4640 = vmatprep.subr.mxu0 0.0
    %4641 = vmatpush1.msra.mxu0 0.0
    %4642 = vmatprep.subr.mxu0 0.0
    %4643 = vmatpush1.msra.mxu0 0.0
    %4644 = vmatprep.subr.mxu0 0.0
    %4645 = vmatpush1.msra.mxu0 0.0
    %4646 = vmatprep.subr.mxu0 0.0
    %4647 = vmatpush1.msra.mxu0 0.0
    %4648 = vmatprep.subr.mxu0 0.0
    %4649 = vmatpush1.msra.mxu0 0.0
    %4650 = vmatprep.subr.mxu0 0.0
    %4651 = vmatpush1.msra.mxu0 0.0
    %4652 = vmatprep.subr.mxu0 0.0
    %4653 = vmatpush1.msra.mxu0 0.0
    %4654 = vmatprep.subr.mxu0 0.0
    %4655 = vmatpush1.msra.mxu0 0.0
    %4656 = vmatprep.mubr.f32.mxu0 0.0
    %4657 = vmatmul.mubr.f32.gmra.mrb[0].mxu0 %v4166
    %v4658 = vpop.f32.mrb[0].mxu0
    %v4659 = vadd.f32 0.0, %v4658
    %v4660 = vpop.f32.mrb[0].mxu0
    %v4661 = vadd.f32 0.0, %v4660
    %4662 = vdwg.mxu0
    %4663 = vmatprep.subr.mxu0 %v4515
    %4664 = vmatpush1.msra.mxu0 %v4514
    %4665 = vmatprep.subr.mxu0 %v4520
    %4666 = vmatpush1.msra.mxu0 %v4519
    %4667 = vmatprep.subr.mxu0 %v4525
    %4668 = vmatpush1.msra.mxu0 %v4524
    %4669 = vmatprep.subr.mxu0 %v4530
    %4670 = vmatpush1.msra.mxu0 %v4529
    %4671 = vmatprep.subr.mxu0 %v4535
    %4672 = vmatpush1.msra.mxu0 %v4534
    %4673 = vmatprep.subr.mxu0 %v4540
    %4674 = vmatpush1.msra.mxu0 %v4539
    %4675 = vmatprep.subr.mxu0 %v4545
    %4676 = vmatpush1.msra.mxu0 %v4544
    %4677 = vmatprep.subr.mxu0 %v4550
    %4678 = vmatpush1.msra.mxu0 %v4549
    %4679 = vmatprep.subr.mxu0 %v4555
    %4680 = vmatpush1.msra.mxu0 %v4554
    %4681 = vmatprep.subr.mxu0 %v4560
    %4682 = vmatpush1.msra.mxu0 %v4559
    %4683 = vmatprep.subr.mxu0 %v4565
    %4684 = vmatpush1.msra.mxu0 %v4564
    %4685 = vmatprep.subr.mxu0 %v4570
    %4686 = vmatpush1.msra.mxu0 %v4569
    %4687 = vmatprep.subr.mxu0 %v4575
    %4688 = vmatpush1.msra.mxu0 %v4574
    %4689 = vmatprep.subr.mxu0 %v4580
    %4690 = vmatpush1.msra.mxu0 %v4579
    %4691 = vmatprep.subr.mxu0 %v4585
    %4692 = vmatpush1.msra.mxu0 %v4584
    %4693 = vmatprep.subr.mxu0 %v4590
    %4694 = vmatpush1.msra.mxu0 %v4589
    %4695 = vmatprep.subr.mxu0 0.0
    %4696 = vmatpush1.msra.mxu0 0.0
    %4697 = vmatprep.subr.mxu0 0.0
    %4698 = vmatpush1.msra.mxu0 0.0
    %4699 = vmatprep.subr.mxu0 0.0
    %4700 = vmatpush1.msra.mxu0 0.0
    %4701 = vmatprep.subr.mxu0 0.0
    %4702 = vmatpush1.msra.mxu0 0.0
    %4703 = vmatprep.subr.mxu0 0.0
    %4704 = vmatpush1.msra.mxu0 0.0
    %4705 = vmatprep.subr.mxu0 0.0
    %4706 = vmatpush1.msra.mxu0 0.0
    %4707 = vmatprep.subr.mxu0 0.0
    %4708 = vmatpush1.msra.mxu0 0.0
    %4709 = vmatprep.subr.mxu0 0.0
    %4710 = vmatpush1.msra.mxu0 0.0
    %4711 = vmatprep.subr.mxu0 0.0
    %4712 = vmatpush1.msra.mxu0 0.0
    %4713 = vmatprep.subr.mxu0 0.0
    %4714 = vmatpush1.msra.mxu0 0.0
    %4715 = vmatprep.subr.mxu0 0.0
    %4716 = vmatpush1.msra.mxu0 0.0
    %4717 = vmatprep.subr.mxu0 0.0
    %4718 = vmatpush1.msra.mxu0 0.0
    %4719 = vmatprep.subr.mxu0 0.0
    %4720 = vmatpush1.msra.mxu0 0.0
    %4721 = vmatprep.subr.mxu0 0.0
    %4722 = vmatpush1.msra.mxu0 0.0
    %4723 = vmatprep.subr.mxu0 0.0
    %4724 = vmatpush1.msra.mxu0 0.0
    %4725 = vmatprep.subr.mxu0 0.0
    %4726 = vmatpush1.msra.mxu0 0.0
    %4727 = vmatprep.mubr.f32.mxu0 0.0
    %4728 = vmatmul.mubr.f32.gmra.mrb[0].mxu0 %v4166
    %v4729 = vpop.f32.mrb[0].mxu0
    %v4730 = vadd.f32 0.0, %v4729
    %v4731 = vpop.f32.mrb[0].mxu0
    %v4732 = vadd.f32 0.0, %v4731
    %4733 = vdwg.mxu0
    %4734 = vmatprep.subr.mxu0 0.0
    %4735 = vmatpush1.msra.mxu0 %v4516
    %4736 = vmatprep.subr.mxu0 0.0
    %4737 = vmatpush1.msra.mxu0 %v4521
    %4738 = vmatprep.subr.mxu0 0.0
    %4739 = vmatpush1.msra.mxu0 %v4526
    %4740 = vmatprep.subr.mxu0 0.0
    %4741 = vmatpush1.msra.mxu0 %v4531
    %4742 = vmatprep.subr.mxu0 0.0
    %4743 = vmatpush1.msra.mxu0 %v4536
    %4744 = vmatprep.subr.mxu0 0.0
    %4745 = vmatpush1.msra.mxu0 %v4541
    %4746 = vmatprep.subr.mxu0 0.0
    %4747 = vmatpush1.msra.mxu0 %v4546
    %4748 = vmatprep.subr.mxu0 0.0
    %4749 = vmatpush1.msra.mxu0 %v4551
    %4750 = vmatprep.subr.mxu0 0.0
    %4751 = vmatpush1.msra.mxu0 %v4556
    %4752 = vmatprep.subr.mxu0 0.0
    %4753 = vmatpush1.msra.mxu0 %v4561
    %4754 = vmatprep.subr.mxu0 0.0
    %4755 = vmatpush1.msra.mxu0 %v4566
    %4756 = vmatprep.subr.mxu0 0.0
    %4757 = vmatpush1.msra.mxu0 %v4571
    %4758 = vmatprep.subr.mxu0 0.0
    %4759 = vmatpush1.msra.mxu0 %v4576
    %4760 = vmatprep.subr.mxu0 0.0
    %4761 = vmatpush1.msra.mxu0 %v4581
    %4762 = vmatprep.subr.mxu0 0.0
    %4763 = vmatpush1.msra.mxu0 %v4586
    %4764 = vmatprep.subr.mxu0 0.0
    %4765 = vmatpush1.msra.mxu0 %v4591
    %4766 = vmatprep.subr.mxu0 0.0
    %4767 = vmatpush1.msra.mxu0 0.0
    %4768 = vmatprep.subr.mxu0 0.0
    %4769 = vmatpush1.msra.mxu0 0.0
    %4770 = vmatprep.subr.mxu0 0.0
    %4771 = vmatpush1.msra.mxu0 0.0
    %4772 = vmatprep.subr.mxu0 0.0
    %4773 = vmatpush1.msra.mxu0 0.0
    %4774 = vmatprep.subr.mxu0 0.0
    %4775 = vmatpush1.msra.mxu0 0.0
    %4776 = vmatprep.subr.mxu0 0.0
    %4777 = vmatpush1.msra.mxu0 0.0
    %4778 = vmatprep.subr.mxu0 0.0
    %4779 = vmatpush1.msra.mxu0 0.0
    %4780 = vmatprep.subr.mxu0 0.0
    %4781 = vmatpush1.msra.mxu0 0.0
    %4782 = vmatprep.subr.mxu0 0.0
    %4783 = vmatpush1.msra.mxu0 0.0
    %4784 = vmatprep.subr.mxu0 0.0
    %4785 = vmatpush1.msra.mxu0 0.0
    %4786 = vmatprep.subr.mxu0 0.0
    %4787 = vmatpush1.msra.mxu0 0.0
    %4788 = vmatprep.subr.mxu0 0.0
    %4789 = vmatpush1.msra.mxu0 0.0
    %4790 = vmatprep.subr.mxu0 0.0
    %4791 = vmatpush1.msra.mxu0 0.0
    %4792 = vmatprep.subr.mxu0 0.0
    %4793 = vmatpush1.msra.mxu0 0.0
    %4794 = vmatprep.subr.mxu0 0.0
    %4795 = vmatpush1.msra.mxu0 0.0
    %4796 = vmatprep.subr.mxu0 0.0
    %4797 = vmatpush1.msra.mxu0 0.0
    %4798 = vmatprep.mubr.f32.mxu0 0.0
    %4799 = vmatmul.mubr.f32.gmra.mrb[0].mxu0 %v4166
    %v4800 = vpop.f32.mrb[0].mxu0
    %v4801 = vadd.f32 0.0, %v4800
    %v4802 = vpop.f32.mrb[0].mxu0
    %4803 = vdwg.mxu0
    %v4809 = vcombine.low %v4659, %v4661
    %v4810 = vcombine.low %v4730, %v4732
    %v4812 = vunpack.c.l.s4 1966171168
    %v4813 = vunpack.c.0.s8 %v4812
    %v4814 = vlaneseq
    %v4815 = vshrl.u32 %v4814, 7
    %v4816 = vsub.s32 %v4813, %v4815
    %v4817 = vrot.slane %v4809, %v4816
    %v4819 = vunpack.c.l.s4 1966171168
    %v4820 = vunpack.c.0.s8 %v4819
    %v4821 = vlaneseq
    %v4822 = vshrl.u32 %v4821, 7
    %v4823 = vsub.s32 %v4820, %v4822
    %v4824 = vrot.slane %v4810, %v4823
    %v4826 = vunpack.c.l.s4 1966171168
    %v4827 = vunpack.c.0.s8 %v4826
    %v4828 = vlaneseq
    %v4829 = vshrl.u32 %v4828, 7
    %v4830 = vsub.s32 %v4827, %v4829
    %v4831 = vrot.slane %v4801, %v4830
    %v4832 = vcombine.low %v4817, %v4824
    %v4834 = vunpack.c.l.s4 1966171168
    %v4835 = vunpack.c.0.s8 %v4834
    %v4836 = vlaneseq
    %v4837 = vshrl.u32 %v4836, 7
    %v4838 = vsub.s32 %v4835, %v4837
    %v4839 = vrot.slane %v4832, %v4838
    %v4841 = vunpack.c.l.s4 1966171168
    %v4842 = vunpack.c.0.s8 %v4841
    %v4843 = vlaneseq
    %v4844 = vshrl.u32 %v4843, 7
    %v4845 = vsub.s32 %v4842, %v4844
    %v4846 = vrot.slane %v4831, %v4845
    %v4847 = vcombine.low %v4839, %v4846
    %v4849 = vadd.f32 %v4511, %v4847
    %v4850 = vxor.u32 %v4849, 2147483648
    %v4851 = vmul.f32 %v4850, 1.442695
    %v4852 = vpow.pop %v4851
    %v4853 = vadd.f32 %v4852, 1.0
    %v4854 = vrcp.pop %v4853
    %v4855 = vmul.f32 1.0, %v4854
    %v4857 = vrot.slane %v4849, 1
    %v4859 = vxor.u32 %v4857, 2147483648
    %v4860 = vmul.f32 %v4859, 1.442695
    %v4861 = vpow.pop %v4860
    %v4862 = vadd.f32 %v4861, 1.0
    %v4863 = vrcp.pop %v4862
    %v4864 = vmul.f32 1.0, %v4863
    %v4865 = vrot.slane %v4849, 2
    %v4867 = vtanh.pop %v4865
    %v4868 = vrot.slane %v4849, 3
    %v4870 = vxor.u32 %v4868, 2147483648
    %v4871 = vmul.f32 %v4870, 1.442695
    %v4872 = vpow.pop %v4871
    %v4873 = vadd.f32 %v4872, 1.0
    %v4874 = vrcp.pop %v4873
    %v4875 = vmul.f32 1.0, %v4874
    %v4876 = vrot.slane %v4849, 4
    %v4878 = vxor.u32 %v4876, 2147483648
    %v4879 = vmul.f32 %v4878, 1.442695
    %v4880 = vpow.pop %v4879
    %v4881 = vadd.f32 %v4880, 1.0
    %v4882 = vrcp.pop %v4881
    %v4883 = vmul.f32 1.0, %v4882
    %v4884 = vmul.f32 %v4855, %v4867
    %v4885 = vmul.f32 %v4875, %v4156
    %v4886 = vadd.f32 %v4884, %v4885
    %v4887 = vmul.f32 %v4883, %v4169
    %v4888 = vadd.f32 %v4886, %v4887
    %v4889 = vtanh.pop %v4888
    %v4890 = vmul.f32 %v4864, %v4889
    %4891 = vst [vmem:[#allocation3 + $0x2] sm:$0x1] %v4888
    %4892 = vst [vmem:[#allocation2 + $0x2] sm:$0x1] %v4890
    %s4893 = sld [smem:[#allocation5 + $0x2]]
    %p4894 = scmp.ge.s32.totalorder %s4893, 0
    %s4895 = scalar_select %p4894, 1, 0
    %s4896 = scvt.s32.f32 %s4895
    %p4897 = scmp.gt.s32.totalorder %s4893, 0
    %s4898 = scalar_select %p4897, %s4893, 0
    %s4899 = scalar_lea.vmem [#allocation2], %s4898
    %v4900 = vld [vmem:[%s4899] sm:$0x1]
    %v4901 = vstv %s4896
    %v4902 = vmul.f32 %v4900, %v4901
    %s4903 = scalar_lea.vmem [#allocation3], %s4898
    %v4904 = vld [vmem:[%s4903] sm:$0x1]
    %v4905 = vmul.f32 %v4904, %v4901
    %s4906 = sld [smem:[#allocation5 + $0x3]]
    %p4907 = scmp.ge.s32.totalorder %s4906, 0
    %s4908 = scalar_select %p4907, 1, 0
    %s4909 = scvt.s32.f32 %s4908
    %p4910 = scmp.gt.s32.totalorder %s4906, 0
    %s4911 = scalar_select %p4910, %s4906, 0
    %s4912 = scalar_lea.vmem [#allocation2], %s4911
    %v4913 = vld [vmem:[%s4912] sm:$0x1]
    %v4914 = vstv %s4909
    %v4915 = vmul.f32 %v4913, %v4914
    %s4916 = scalar_lea.vmem [#allocation3], %s4911
    %v4917 = vld [vmem:[%s4916] sm:$0x1]
    %v4918 = vmul.f32 %v4917, %v4914
    %s4919 = scalar_lea.vmem [#allocation4], 1
    %v4920 = vld [vmem:[%s4919] ss:$8 sm:$0xf]
    %v4921 = vld [vmem:[%s4919] ss:$8 sm:$0x10]
    %v4922 = vor.u32 %v4920, %v4921
    %v4923 = vld [vmem:[#allocation13] sm:$0xff]
    %v4924 = vld [vmem:[#allocation13 + $0x8] sm:$0xff]
    %v4925 = vld [vmem:[#allocation13 + $0x10] sm:$0xff]
    %v4926 = vld [vmem:[#allocation13 + $0x18] sm:$0xff]
    %v4927 = vld [vmem:[#allocation13 + $0x20] sm:$0xff]
    %v4928 = vld [vmem:[#allocation13 + $0x28] sm:$0xff]
    %v4929 = vld [vmem:[#allocation13 + $0x30] sm:$0xff]
    %v4930 = vld [vmem:[#allocation13 + $0x38] sm:$0xff]
    %v4931 = vld [vmem:[#allocation13 + $0x40] sm:$0xff]
    %v4932 = vld [vmem:[#allocation13 + $0x48] sm:$0xff]
    %v4933 = vld [vmem:[#allocation13 + $0x50] sm:$0xff]
    %v4934 = vld [vmem:[#allocation13 + $0x58] sm:$0xff]
    %v4935 = vld [vmem:[#allocation13 + $0x60] sm:$0xff]
    %v4936 = vld [vmem:[#allocation13 + $0x68] sm:$0xff]
    %v4937 = vld [vmem:[#allocation13 + $0x70] sm:$0xff]
    %v4938 = vld [vmem:[#allocation13 + $0x78] sm:$0xff]
    %v4939 = vld [vmem:[#allocation13 + $0x80] sm:$0xff]
    %v4940 = vld [vmem:[#allocation13 + $0x88] sm:$0xff]
    %v4941 = vld [vmem:[#allocation13 + $0x90] sm:$0xff]
    %v4942 = vld [vmem:[#allocation13 + $0x98] sm:$0xff]
    %v4943 = vld [vmem:[#allocation13 + $0xa0] sm:$0xff]
    %v4944 = vld [vmem:[#allocation13 + $0xa8] sm:$0xff]
    %v4945 = vld [vmem:[#allocation13 + $0xb0] sm:$0xff]
    %v4946 = vld [vmem:[#allocation13 + $0xb8] sm:$0xff]
    %v4947 = vld [vmem:[#allocation13 + $0xc0] sm:$0xff]
    %v4948 = vld [vmem:[#allocation13 + $0xc8] sm:$0xff]
    %v4949 = vld [vmem:[#allocation13 + $0xd0] sm:$0xff]
    %v4950 = vld [vmem:[#allocation13 + $0xd8] sm:$0xff]
    %v4951 = vld [vmem:[#allocation13 + $0xe0] sm:$0xff]
    %v4952 = vld [vmem:[#allocation13 + $0xe8] sm:$0xff]
    %v4953 = vld [vmem:[#allocation13 + $0xf0] sm:$0xff]
    %v4954 = vld [vmem:[#allocation13 + $0xf8] sm:$0xff]
    %v4955 = vld [vmem:[#allocation13 + $0x100] sm:$0xff]
    %v4956 = vld [vmem:[#allocation13 + $0x108] sm:$0xff]
    %v4957 = vld [vmem:[#allocation13 + $0x110] sm:$0xff]
    %v4958 = vld [vmem:[#allocation13 + $0x118] sm:$0xff]
    %v4959 = vld [vmem:[#allocation13 + $0x120] sm:$0xff]
    %v4960 = vld [vmem:[#allocation13 + $0x128] sm:$0xff]
    %v4961 = vld [vmem:[#allocation13 + $0x130] sm:$0xff]
    %v4962 = vld [vmem:[#allocation13 + $0x138] sm:$0xff]
    %v4963 = vld [vmem:[#allocation13 + $0x140] sm:$0xff]
    %v4964 = vld [vmem:[#allocation13 + $0x148] sm:$0xff]
    %v4965 = vld [vmem:[#allocation13 + $0x150] sm:$0xff]
    %v4966 = vld [vmem:[#allocation13 + $0x158] sm:$0xff]
    %v4967 = vld [vmem:[#allocation13 + $0x160] sm:$0xff]
    %v4968 = vld [vmem:[#allocation13 + $0x168] sm:$0xff]
    %v4969 = vld [vmem:[#allocation13 + $0x170] sm:$0xff]
    %v4970 = vld [vmem:[#allocation13 + $0x178] sm:$0xff]
    %v4971 = vld [vmem:[#allocation13 + $0x180] sm:$0xff]
    %v4972 = vld [vmem:[#allocation13 + $0x188] sm:$0xff]
    %v4973 = vld [vmem:[#allocation13 + $0x190] sm:$0xff]
    %v4974 = vld [vmem:[#allocation13 + $0x198] sm:$0xff]
    %v4975 = vld [vmem:[#allocation13 + $0x1a0] sm:$0xff]
    %v4976 = vld [vmem:[#allocation13 + $0x1a8] sm:$0xff]
    %v4977 = vld [vmem:[#allocation13 + $0x1b0] sm:$0xff]
    %v4978 = vld [vmem:[#allocation13 + $0x1b8] sm:$0xff]
    %v4979 = vld [vmem:[#allocation13 + $0x1c0] sm:$0xff]
    %v4980 = vld [vmem:[#allocation13 + $0x1c8] sm:$0xff]
    %v4981 = vld [vmem:[#allocation13 + $0x1d0] sm:$0xff]
    %v4982 = vld [vmem:[#allocation13 + $0x1d8] sm:$0xff]
    %v4983 = vld [vmem:[#allocation13 + $0x1e0] sm:$0xff]
    %v4984 = vld [vmem:[#allocation13 + $0x1e8] sm:$0xff]
    %v4985 = vld [vmem:[#allocation13 + $0x1f0] sm:$0xff]
    %v4986 = vld [vmem:[#allocation13 + $0x1f8] sm:$0xff]
    %v4987 = vld [vmem:[#allocation13 + $0x200] sm:$0xff]
    %v4988 = vld [vmem:[#allocation13 + $0x208] sm:$0xff]
    %v4989 = vld [vmem:[#allocation13 + $0x210] sm:$0xff]
    %v4990 = vld [vmem:[#allocation13 + $0x218] sm:$0xff]
    %v4991 = vld [vmem:[#allocation13 + $0x220] sm:$0xff]
    %v4992 = vld [vmem:[#allocation13 + $0x228] sm:$0xff]
    %v4993 = vld [vmem:[#allocation13 + $0x230] sm:$0xff]
    %v4994 = vld [vmem:[#allocation13 + $0x238] sm:$0xff]
    %v4995 = vld [vmem:[#allocation13 + $0x240] sm:$0xff]
    %v4996 = vld [vmem:[#allocation13 + $0x248] sm:$0xff]
    %v4997 = vld [vmem:[#allocation13 + $0x250] sm:$0xff]
    %v4998 = vld [vmem:[#allocation13 + $0x258] sm:$0xff]
    %v4999 = vld [vmem:[#allocation13 + $0x260] sm:$0xff]
    %v5000 = vld [vmem:[#allocation13 + $0x268] sm:$0xff]
    %v5001 = vld [vmem:[#allocation13 + $0x270] sm:$0xff]
    %v5002 = vld [vmem:[#allocation13 + $0x278] sm:$0xff]
    %5003 = vmatprep.subr.mxu0 %v4924
    %5004 = vmatpush1.msra.mxu0 %v4923
    %5005 = vmatprep.subr.mxu0 %v4929
    %5006 = vmatpush1.msra.mxu0 %v4928
    %5007 = vmatprep.subr.mxu0 %v4934
    %5008 = vmatpush1.msra.mxu0 %v4933
    %5009 = vmatprep.subr.mxu0 %v4939
    %5010 = vmatpush1.msra.mxu0 %v4938
    %5011 = vmatprep.subr.mxu0 %v4944
    %5012 = vmatpush1.msra.mxu0 %v4943
    %5013 = vmatprep.subr.mxu0 %v4949
    %5014 = vmatpush1.msra.mxu0 %v4948
    %5015 = vmatprep.subr.mxu0 %v4954
    %5016 = vmatpush1.msra.mxu0 %v4953
    %5017 = vmatprep.subr.mxu0 %v4959
    %5018 = vmatpush1.msra.mxu0 %v4958
    %5019 = vmatprep.subr.mxu0 %v4964
    %5020 = vmatpush1.msra.mxu0 %v4963
    %5021 = vmatprep.subr.mxu0 %v4969
    %5022 = vmatpush1.msra.mxu0 %v4968
    %5023 = vmatprep.subr.mxu0 %v4974
    %5024 = vmatpush1.msra.mxu0 %v4973
    %5025 = vmatprep.subr.mxu0 %v4979
    %5026 = vmatpush1.msra.mxu0 %v4978
    %5027 = vmatprep.subr.mxu0 %v4984
    %5028 = vmatpush1.msra.mxu0 %v4983
    %5029 = vmatprep.subr.mxu0 %v4989
    %5030 = vmatpush1.msra.mxu0 %v4988
    %5031 = vmatprep.subr.mxu0 %v4994
    %5032 = vmatpush1.msra.mxu0 %v4993
    %5033 = vmatprep.subr.mxu0 %v4999
    %5034 = vmatpush1.msra.mxu0 %v4998
    %5035 = vmatprep.subr.mxu0 0.0
    %5036 = vmatpush1.msra.mxu0 0.0
    %5037 = vmatprep.subr.mxu0 0.0
    %5038 = vmatpush1.msra.mxu0 0.0
    %5039 = vmatprep.subr.mxu0 0.0
    %5040 = vmatpush1.msra.mxu0 0.0
    %5041 = vmatprep.subr.mxu0 0.0
    %5042 = vmatpush1.msra.mxu0 0.0
    %5043 = vmatprep.subr.mxu0 0.0
    %5044 = vmatpush1.msra.mxu0 0.0
    %5045 = vmatprep.subr.mxu0 0.0
    %5046 = vmatpush1.msra.mxu0 0.0
    %5047 = vmatprep.subr.mxu0 0.0
    %5048 = vmatpush1.msra.mxu0 0.0
    %5049 = vmatprep.subr.mxu0 0.0
    %5050 = vmatpush1.msra.mxu0 0.0
    %5051 = vmatprep.subr.mxu0 0.0
    %5052 = vmatpush1.msra.mxu0 0.0
    %5053 = vmatprep.subr.mxu0 0.0
    %5054 = vmatpush1.msra.mxu0 0.0
    %5055 = vmatprep.subr.mxu0 0.0
    %5056 = vmatpush1.msra.mxu0 0.0
    %5057 = vmatprep.subr.mxu0 0.0
    %5058 = vmatpush1.msra.mxu0 0.0
    %5059 = vmatprep.subr.mxu0 0.0
    %5060 = vmatpush1.msra.mxu0 0.0
    %5061 = vmatprep.subr.mxu0 0.0
    %5062 = vmatpush1.msra.mxu0 0.0
    %5063 = vmatprep.subr.mxu0 0.0
    %5064 = vmatpush1.msra.mxu0 0.0
    %5065 = vmatprep.subr.mxu0 0.0
    %5066 = vmatpush1.msra.mxu0 0.0
    %5067 = vmatprep.mubr.f32.mxu0 0.0
    %5068 = vmatmul.mubr.f32.gmra.mrb[0].mxu0 %v4902
    %v5069 = vpop.f32.mrb[0].mxu0
    %v5070 = vadd.f32 0.0, %v5069
    %v5071 = vpop.f32.mrb[0].mxu0
    %v5072 = vadd.f32 0.0, %v5071
    %5073 = vdwg.mxu0
    %5074 = vmatprep.subr.mxu0 %v4926
    %5075 = vmatpush1.msra.mxu0 %v4925
    %5076 = vmatprep.subr.mxu0 %v4931
    %5077 = vmatpush1.msra.mxu0 %v4930
    %5078 = vmatprep.subr.mxu0 %v4936
    %5079 = vmatpush1.msra.mxu0 %v4935
    %5080 = vmatprep.subr.mxu0 %v4941
    %5081 = vmatpush1.msra.mxu0 %v4940
    %5082 = vmatprep.subr.mxu0 %v4946
    %5083 = vmatpush1.msra.mxu0 %v4945
    %5084 = vmatprep.subr.mxu0 %v4951
    %5085 = vmatpush1.msra.mxu0 %v4950
    %5086 = vmatprep.subr.mxu0 %v4956
    %5087 = vmatpush1.msra.mxu0 %v4955
    %5088 = vmatprep.subr.mxu0 %v4961
    %5089 = vmatpush1.msra.mxu0 %v4960
    %5090 = vmatprep.subr.mxu0 %v4966
    %5091 = vmatpush1.msra.mxu0 %v4965
    %5092 = vmatprep.subr.mxu0 %v4971
    %5093 = vmatpush1.msra.mxu0 %v4970
    %5094 = vmatprep.subr.mxu0 %v4976
    %5095 = vmatpush1.msra.mxu0 %v4975
    %5096 = vmatprep.subr.mxu0 %v4981
    %5097 = vmatpush1.msra.mxu0 %v4980
    %5098 = vmatprep.subr.mxu0 %v4986
    %5099 = vmatpush1.msra.mxu0 %v4985
    %5100 = vmatprep.subr.mxu0 %v4991
    %5101 = vmatpush1.msra.mxu0 %v4990
    %5102 = vmatprep.subr.mxu0 %v4996
    %5103 = vmatpush1.msra.mxu0 %v4995
    %5104 = vmatprep.subr.mxu0 %v5001
    %5105 = vmatpush1.msra.mxu0 %v5000
    %5106 = vmatprep.subr.mxu0 0.0
    %5107 = vmatpush1.msra.mxu0 0.0
    %5108 = vmatprep.subr.mxu0 0.0
    %5109 = vmatpush1.msra.mxu0 0.0
    %5110 = vmatprep.subr.mxu0 0.0
    %5111 = vmatpush1.msra.mxu0 0.0
    %5112 = vmatprep.subr.mxu0 0.0
    %5113 = vmatpush1.msra.mxu0 0.0
    %5114 = vmatprep.subr.mxu0 0.0
    %5115 = vmatpush1.msra.mxu0 0.0
    %5116 = vmatprep.subr.mxu0 0.0
    %5117 = vmatpush1.msra.mxu0 0.0
    %5118 = vmatprep.subr.mxu0 0.0
    %5119 = vmatpush1.msra.mxu0 0.0
    %5120 = vmatprep.subr.mxu0 0.0
    %5121 = vmatpush1.msra.mxu0 0.0
    %5122 = vmatprep.subr.mxu0 0.0
    %5123 = vmatpush1.msra.mxu0 0.0
    %5124 = vmatprep.subr.mxu0 0.0
    %5125 = vmatpush1.msra.mxu0 0.0
    %5126 = vmatprep.subr.mxu0 0.0
    %5127 = vmatpush1.msra.mxu0 0.0
    %5128 = vmatprep.subr.mxu0 0.0
    %5129 = vmatpush1.msra.mxu0 0.0
    %5130 = vmatprep.subr.mxu0 0.0
    %5131 = vmatpush1.msra.mxu0 0.0
    %5132 = vmatprep.subr.mxu0 0.0
    %5133 = vmatpush1.msra.mxu0 0.0
    %5134 = vmatprep.subr.mxu0 0.0
    %5135 = vmatpush1.msra.mxu0 0.0
    %5136 = vmatprep.subr.mxu0 0.0
    %5137 = vmatpush1.msra.mxu0 0.0
    %5138 = vmatprep.mubr.f32.mxu0 0.0
    %5139 = vmatmul.mubr.f32.gmra.mrb[0].mxu0 %v4902
    %v5140 = vpop.f32.mrb[0].mxu0
    %v5141 = vadd.f32 0.0, %v5140
    %v5142 = vpop.f32.mrb[0].mxu0
    %v5143 = vadd.f32 0.0, %v5142
    %5144 = vdwg.mxu0
    %5145 = vmatprep.subr.mxu0 0.0
    %5146 = vmatpush1.msra.mxu0 %v4927
    %5147 = vmatprep.subr.mxu0 0.0
    %5148 = vmatpush1.msra.mxu0 %v4932
    %5149 = vmatprep.subr.mxu0 0.0
    %5150 = vmatpush1.msra.mxu0 %v4937
    %5151 = vmatprep.subr.mxu0 0.0
    %5152 = vmatpush1.msra.mxu0 %v4942
    %5153 = vmatprep.subr.mxu0 0.0
    %5154 = vmatpush1.msra.mxu0 %v4947
    %5155 = vmatprep.subr.mxu0 0.0
    %5156 = vmatpush1.msra.mxu0 %v4952
    %5157 = vmatprep.subr.mxu0 0.0
    %5158 = vmatpush1.msra.mxu0 %v4957
    %5159 = vmatprep.subr.mxu0 0.0
    %5160 = vmatpush1.msra.mxu0 %v4962
    %5161 = vmatprep.subr.mxu0 0.0
    %5162 = vmatpush1.msra.mxu0 %v4967
    %5163 = vmatprep.subr.mxu0 0.0
    %5164 = vmatpush1.msra.mxu0 %v4972
    %5165 = vmatprep.subr.mxu0 0.0
    %5166 = vmatpush1.msra.mxu0 %v4977
    %5167 = vmatprep.subr.mxu0 0.0
    %5168 = vmatpush1.msra.mxu0 %v4982
    %5169 = vmatprep.subr.mxu0 0.0
    %5170 = vmatpush1.msra.mxu0 %v4987
    %5171 = vmatprep.subr.mxu0 0.0
    %5172 = vmatpush1.msra.mxu0 %v4992
    %5173 = vmatprep.subr.mxu0 0.0
    %5174 = vmatpush1.msra.mxu0 %v4997
    %5175 = vmatprep.subr.mxu0 0.0
    %5176 = vmatpush1.msra.mxu0 %v5002
    %5177 = vmatprep.subr.mxu0 0.0
    %5178 = vmatpush1.msra.mxu0 0.0
    %5179 = vmatprep.subr.mxu0 0.0
    %5180 = vmatpush1.msra.mxu0 0.0
    %5181 = vmatprep.subr.mxu0 0.0
    %5182 = vmatpush1.msra.mxu0 0.0
    %5183 = vmatprep.subr.mxu0 0.0
    %5184 = vmatpush1.msra.mxu0 0.0
    %5185 = vmatprep.subr.mxu0 0.0
    %5186 = vmatpush1.msra.mxu0 0.0
    %5187 = vmatprep.subr.mxu0 0.0
    %5188 = vmatpush1.msra.mxu0 0.0
    %5189 = vmatprep.subr.mxu0 0.0
    %5190 = vmatpush1.msra.mxu0 0.0
    %5191 = vmatprep.subr.mxu0 0.0
    %5192 = vmatpush1.msra.mxu0 0.0
    %5193 = vmatprep.subr.mxu0 0.0
    %5194 = vmatpush1.msra.mxu0 0.0
    %5195 = vmatprep.subr.mxu0 0.0
    %5196 = vmatpush1.msra.mxu0 0.0
    %5197 = vmatprep.subr.mxu0 0.0
    %5198 = vmatpush1.msra.mxu0 0.0
    %5199 = vmatprep.subr.mxu0 0.0
    %5200 = vmatpush1.msra.mxu0 0.0
    %5201 = vmatprep.subr.mxu0 0.0
    %5202 = vmatpush1.msra.mxu0 0.0
    %5203 = vmatprep.subr.mxu0 0.0
    %5204 = vmatpush1.msra.mxu0 0.0
    %5205 = vmatprep.subr.mxu0 0.0
    %5206 = vmatpush1.msra.mxu0 0.0
    %5207 = vmatprep.subr.mxu0 0.0
    %5208 = vmatpush1.msra.mxu0 0.0
    %5209 = vmatprep.mubr.f32.mxu0 0.0
    %5210 = vmatmul.mubr.f32.gmra.mrb[0].mxu0 %v4902
    %v5211 = vpop.f32.mrb[0].mxu0
    %v5212 = vadd.f32 0.0, %v5211
    %v5213 = vpop.f32.mrb[0].mxu0
    %5214 = vdwg.mxu0
    %v5220 = vcombine.low %v5070, %v5072
    %v5221 = vcombine.low %v5141, %v5143
    %v5223 = vunpack.c.l.s4 1966171168
    %v5224 = vunpack.c.0.s8 %v5223
    %v5225 = vlaneseq
    %v5226 = vshrl.u32 %v5225, 7
    %v5227 = vsub.s32 %v5224, %v5226
    %v5228 = vrot.slane %v5220, %v5227
    %v5230 = vunpack.c.l.s4 1966171168
    %v5231 = vunpack.c.0.s8 %v5230
    %v5232 = vlaneseq
    %v5233 = vshrl.u32 %v5232, 7
    %v5234 = vsub.s32 %v5231, %v5233
    %v5235 = vrot.slane %v5221, %v5234
    %v5237 = vunpack.c.l.s4 1966171168
    %v5238 = vunpack.c.0.s8 %v5237
    %v5239 = vlaneseq
    %v5240 = vshrl.u32 %v5239, 7
    %v5241 = vsub.s32 %v5238, %v5240
    %v5242 = vrot.slane %v5212, %v5241
    %v5243 = vcombine.low %v5228, %v5235
    %v5245 = vunpack.c.l.s4 1966171168
    %v5246 = vunpack.c.0.s8 %v5245
    %v5247 = vlaneseq
    %v5248 = vshrl.u32 %v5247, 7
    %v5249 = vsub.s32 %v5246, %v5248
    %v5250 = vrot.slane %v5243, %v5249
    %v5252 = vunpack.c.l.s4 1966171168
    %v5253 = vunpack.c.0.s8 %v5252
    %v5254 = vlaneseq
    %v5255 = vshrl.u32 %v5254, 7
    %v5256 = vsub.s32 %v5253, %v5255
    %v5257 = vrot.slane %v5242, %v5256
    %v5258 = vcombine.low %v5250, %v5257
    %v5260 = vadd.f32 %v4922, %v5258
    %v5261 = vld [vmem:[%s766] sm:$0xff]
    %v5262 = vld [vmem:[%s766 + $0x8] sm:$0xff]
    %v5263 = vld [vmem:[%s766 + $0x10] sm:$0xff]
    %v5264 = vld [vmem:[%s766 + $0x18] sm:$0xff]
    %v5265 = vld [vmem:[%s766 + $0x20] sm:$0xff]
    %v5266 = vld [vmem:[%s766 + $0x28] sm:$0xff]
    %v5267 = vld [vmem:[%s766 + $0x30] sm:$0xff]
    %v5268 = vld [vmem:[%s766 + $0x38] sm:$0xff]
    %v5269 = vld [vmem:[%s766 + $0x40] sm:$0xff]
    %v5270 = vld [vmem:[%s766 + $0x48] sm:$0xff]
    %v5271 = vld [vmem:[%s766 + $0x50] sm:$0xff]
    %v5272 = vld [vmem:[%s766 + $0x58] sm:$0xff]
    %v5273 = vld [vmem:[%s766 + $0x60] sm:$0xff]
    %v5274 = vld [vmem:[%s766 + $0x68] sm:$0xff]
    %v5275 = vld [vmem:[%s766 + $0x70] sm:$0xff]
    %v5276 = vld [vmem:[%s766 + $0x78] sm:$0xff]
    %v5277 = vld [vmem:[%s766 + $0x80] sm:$0xff]
    %v5278 = vld [vmem:[%s766 + $0x88] sm:$0xff]
    %v5279 = vld [vmem:[%s766 + $0x90] sm:$0xff]
    %v5280 = vld [vmem:[%s766 + $0x98] sm:$0xff]
    %v5281 = vld [vmem:[%s766 + $0xa0] sm:$0xff]
    %v5282 = vld [vmem:[%s766 + $0xa8] sm:$0xff]
    %v5283 = vld [vmem:[%s766 + $0xb0] sm:$0xff]
    %v5284 = vld [vmem:[%s766 + $0xb8] sm:$0xff]
    %v5285 = vld [vmem:[%s766 + $0xc0] sm:$0xff]
    %v5286 = vld [vmem:[%s766 + $0xc8] sm:$0xff]
    %v5287 = vld [vmem:[%s766 + $0xd0] sm:$0xff]
    %v5288 = vld [vmem:[%s766 + $0xd8] sm:$0xff]
    %v5289 = vld [vmem:[%s766 + $0xe0] sm:$0xff]
    %v5290 = vld [vmem:[%s766 + $0xe8] sm:$0xff]
    %v5291 = vld [vmem:[%s766 + $0xf0] sm:$0xff]
    %v5292 = vld [vmem:[%s766 + $0xf8] sm:$0xff]
    %v5293 = vld [vmem:[%s766 + $0x100] sm:$0xff]
    %v5294 = vld [vmem:[%s766 + $0x108] sm:$0xff]
    %v5295 = vld [vmem:[%s766 + $0x110] sm:$0xff]
    %v5296 = vld [vmem:[%s766 + $0x118] sm:$0xff]
    %v5297 = vld [vmem:[%s766 + $0x120] sm:$0xff]
    %v5298 = vld [vmem:[%s766 + $0x128] sm:$0xff]
    %v5299 = vld [vmem:[%s766 + $0x130] sm:$0xff]
    %v5300 = vld [vmem:[%s766 + $0x138] sm:$0xff]
    %v5301 = vld [vmem:[%s766 + $0x140] sm:$0xff]
    %v5302 = vld [vmem:[%s766 + $0x148] sm:$0xff]
    %v5303 = vld [vmem:[%s766 + $0x150] sm:$0xff]
    %v5304 = vld [vmem:[%s766 + $0x158] sm:$0xff]
    %v5305 = vld [vmem:[%s766 + $0x160] sm:$0xff]
    %v5306 = vld [vmem:[%s766 + $0x168] sm:$0xff]
    %v5307 = vld [vmem:[%s766 + $0x170] sm:$0xff]
    %v5308 = vld [vmem:[%s766 + $0x178] sm:$0xff]
    %v5309 = vld [vmem:[%s766 + $0x180] sm:$0xff]
    %v5310 = vld [vmem:[%s766 + $0x188] sm:$0xff]
    %v5311 = vld [vmem:[%s766 + $0x190] sm:$0xff]
    %v5312 = vld [vmem:[%s766 + $0x198] sm:$0xff]
    %v5313 = vld [vmem:[%s766 + $0x1a0] sm:$0xff]
    %v5314 = vld [vmem:[%s766 + $0x1a8] sm:$0xff]
    %v5315 = vld [vmem:[%s766 + $0x1b0] sm:$0xff]
    %v5316 = vld [vmem:[%s766 + $0x1b8] sm:$0xff]
    %v5317 = vld [vmem:[%s766 + $0x1c0] sm:$0xff]
    %v5318 = vld [vmem:[%s766 + $0x1c8] sm:$0xff]
    %v5319 = vld [vmem:[%s766 + $0x1d0] sm:$0xff]
    %v5320 = vld [vmem:[%s766 + $0x1d8] sm:$0xff]
    %v5321 = vld [vmem:[%s766 + $0x1e0] sm:$0xff]
    %v5322 = vld [vmem:[%s766 + $0x1e8] sm:$0xff]
    %v5323 = vld [vmem:[%s766 + $0x1f0] sm:$0xff]
    %v5324 = vld [vmem:[%s766 + $0x1f8] sm:$0xff]
    %v5325 = vld [vmem:[%s766 + $0x200] sm:$0xff]
    %v5326 = vld [vmem:[%s766 + $0x208] sm:$0xff]
    %v5327 = vld [vmem:[%s766 + $0x210] sm:$0xff]
    %v5328 = vld [vmem:[%s766 + $0x218] sm:$0xff]
    %v5329 = vld [vmem:[%s766 + $0x220] sm:$0xff]
    %v5330 = vld [vmem:[%s766 + $0x228] sm:$0xff]
    %v5331 = vld [vmem:[%s766 + $0x230] sm:$0xff]
    %v5332 = vld [vmem:[%s766 + $0x238] sm:$0xff]
    %v5333 = vld [vmem:[%s766 + $0x240] sm:$0xff]
    %v5334 = vld [vmem:[%s766 + $0x248] sm:$0xff]
    %v5335 = vld [vmem:[%s766 + $0x250] sm:$0xff]
    %v5336 = vld [vmem:[%s766 + $0x258] sm:$0xff]
    %v5337 = vld [vmem:[%s766 + $0x260] sm:$0xff]
    %v5338 = vld [vmem:[%s766 + $0x268] sm:$0xff]
    %v5339 = vld [vmem:[%s766 + $0x270] sm:$0xff]
    %v5340 = vld [vmem:[%s766 + $0x278] sm:$0xff]
    %5341 = vmatprep.subr.mxu0 %v5262
    %5342 = vmatpush1.msra.mxu0 %v5261
    %5343 = vmatprep.subr.mxu0 %v5267
    %5344 = vmatpush1.msra.mxu0 %v5266
    %5345 = vmatprep.subr.mxu0 %v5272
    %5346 = vmatpush1.msra.mxu0 %v5271
    %5347 = vmatprep.subr.mxu0 %v5277
    %5348 = vmatpush1.msra.mxu0 %v5276
    %5349 = vmatprep.subr.mxu0 %v5282
    %5350 = vmatpush1.msra.mxu0 %v5281
    %5351 = vmatprep.subr.mxu0 %v5287
    %5352 = vmatpush1.msra.mxu0 %v5286
    %5353 = vmatprep.subr.mxu0 %v5292
    %5354 = vmatpush1.msra.mxu0 %v5291
    %5355 = vmatprep.subr.mxu0 %v5297
    %5356 = vmatpush1.msra.mxu0 %v5296
    %5357 = vmatprep.subr.mxu0 %v5302
    %5358 = vmatpush1.msra.mxu0 %v5301
    %5359 = vmatprep.subr.mxu0 %v5307
    %5360 = vmatpush1.msra.mxu0 %v5306
    %5361 = vmatprep.subr.mxu0 %v5312
    %5362 = vmatpush1.msra.mxu0 %v5311
    %5363 = vmatprep.subr.mxu0 %v5317
    %5364 = vmatpush1.msra.mxu0 %v5316
    %5365 = vmatprep.subr.mxu0 %v5322
    %5366 = vmatpush1.msra.mxu0 %v5321
    %5367 = vmatprep.subr.mxu0 %v5327
    %5368 = vmatpush1.msra.mxu0 %v5326
    %5369 = vmatprep.subr.mxu0 %v5332
    %5370 = vmatpush1.msra.mxu0 %v5331
    %5371 = vmatprep.subr.mxu0 %v5337
    %5372 = vmatpush1.msra.mxu0 %v5336
    %5373 = vmatprep.subr.mxu0 0.0
    %5374 = vmatpush1.msra.mxu0 0.0
    %5375 = vmatprep.subr.mxu0 0.0
    %5376 = vmatpush1.msra.mxu0 0.0
    %5377 = vmatprep.subr.mxu0 0.0
    %5378 = vmatpush1.msra.mxu0 0.0
    %5379 = vmatprep.subr.mxu0 0.0
    %5380 = vmatpush1.msra.mxu0 0.0
    %5381 = vmatprep.subr.mxu0 0.0
    %5382 = vmatpush1.msra.mxu0 0.0
    %5383 = vmatprep.subr.mxu0 0.0
    %5384 = vmatpush1.msra.mxu0 0.0
    %5385 = vmatprep.subr.mxu0 0.0
    %5386 = vmatpush1.msra.mxu0 0.0
    %5387 = vmatprep.subr.mxu0 0.0
    %5388 = vmatpush1.msra.mxu0 0.0
    %5389 = vmatprep.subr.mxu0 0.0
    %5390 = vmatpush1.msra.mxu0 0.0
    %5391 = vmatprep.subr.mxu0 0.0
    %5392 = vmatpush1.msra.mxu0 0.0
    %5393 = vmatprep.subr.mxu0 0.0
    %5394 = vmatpush1.msra.mxu0 0.0
    %5395 = vmatprep.subr.mxu0 0.0
    %5396 = vmatpush1.msra.mxu0 0.0
    %5397 = vmatprep.subr.mxu0 0.0
    %5398 = vmatpush1.msra.mxu0 0.0
    %5399 = vmatprep.subr.mxu0 0.0
    %5400 = vmatpush1.msra.mxu0 0.0
    %5401 = vmatprep.subr.mxu0 0.0
    %5402 = vmatpush1.msra.mxu0 0.0
    %5403 = vmatprep.subr.mxu0 0.0
    %5404 = vmatpush1.msra.mxu0 0.0
    %5405 = vmatprep.mubr.f32.mxu0 0.0
    %5406 = vmatmul.mubr.f32.gmra.mrb[0].mxu0 %v4915
    %v5407 = vpop.f32.mrb[0].mxu0
    %v5408 = vadd.f32 0.0, %v5407
    %v5409 = vpop.f32.mrb[0].mxu0
    %v5410 = vadd.f32 0.0, %v5409
    %5411 = vdwg.mxu0
    %5412 = vmatprep.subr.mxu0 %v5264
    %5413 = vmatpush1.msra.mxu0 %v5263
    %5414 = vmatprep.subr.mxu0 %v5269
    %5415 = vmatpush1.msra.mxu0 %v5268
    %5416 = vmatprep.subr.mxu0 %v5274
    %5417 = vmatpush1.msra.mxu0 %v5273
    %5418 = vmatprep.subr.mxu0 %v5279
    %5419 = vmatpush1.msra.mxu0 %v5278
    %5420 = vmatprep.subr.mxu0 %v5284
    %5421 = vmatpush1.msra.mxu0 %v5283
    %5422 = vmatprep.subr.mxu0 %v5289
    %5423 = vmatpush1.msra.mxu0 %v5288
    %5424 = vmatprep.subr.mxu0 %v5294
    %5425 = vmatpush1.msra.mxu0 %v5293
    %5426 = vmatprep.subr.mxu0 %v5299
    %5427 = vmatpush1.msra.mxu0 %v5298
    %5428 = vmatprep.subr.mxu0 %v5304
    %5429 = vmatpush1.msra.mxu0 %v5303
    %5430 = vmatprep.subr.mxu0 %v5309
    %5431 = vmatpush1.msra.mxu0 %v5308
    %5432 = vmatprep.subr.mxu0 %v5314
    %5433 = vmatpush1.msra.mxu0 %v5313
    %5434 = vmatprep.subr.mxu0 %v5319
    %5435 = vmatpush1.msra.mxu0 %v5318
    %5436 = vmatprep.subr.mxu0 %v5324
    %5437 = vmatpush1.msra.mxu0 %v5323
    %5438 = vmatprep.subr.mxu0 %v5329
    %5439 = vmatpush1.msra.mxu0 %v5328
    %5440 = vmatprep.subr.mxu0 %v5334
    %5441 = vmatpush1.msra.mxu0 %v5333
    %5442 = vmatprep.subr.mxu0 %v5339
    %5443 = vmatpush1.msra.mxu0 %v5338
    %5444 = vmatprep.subr.mxu0 0.0
    %5445 = vmatpush1.msra.mxu0 0.0
    %5446 = vmatprep.subr.mxu0 0.0
    %5447 = vmatpush1.msra.mxu0 0.0
    %5448 = vmatprep.subr.mxu0 0.0
    %5449 = vmatpush1.msra.mxu0 0.0
    %5450 = vmatprep.subr.mxu0 0.0
    %5451 = vmatpush1.msra.mxu0 0.0
    %5452 = vmatprep.subr.mxu0 0.0
    %5453 = vmatpush1.msra.mxu0 0.0
    %5454 = vmatprep.subr.mxu0 0.0
    %5455 = vmatpush1.msra.mxu0 0.0
    %5456 = vmatprep.subr.mxu0 0.0
    %5457 = vmatpush1.msra.mxu0 0.0
    %5458 = vmatprep.subr.mxu0 0.0
    %5459 = vmatpush1.msra.mxu0 0.0
    %5460 = vmatprep.subr.mxu0 0.0
    %5461 = vmatpush1.msra.mxu0 0.0
    %5462 = vmatprep.subr.mxu0 0.0
    %5463 = vmatpush1.msra.mxu0 0.0
    %5464 = vmatprep.subr.mxu0 0.0
    %5465 = vmatpush1.msra.mxu0 0.0
    %5466 = vmatprep.subr.mxu0 0.0
    %5467 = vmatpush1.msra.mxu0 0.0
    %5468 = vmatprep.subr.mxu0 0.0
    %5469 = vmatpush1.msra.mxu0 0.0
    %5470 = vmatprep.subr.mxu0 0.0
    %5471 = vmatpush1.msra.mxu0 0.0
    %5472 = vmatprep.subr.mxu0 0.0
    %5473 = vmatpush1.msra.mxu0 0.0
    %5474 = vmatprep.subr.mxu0 0.0
    %5475 = vmatpush1.msra.mxu0 0.0
    %5476 = vmatprep.mubr.f32.mxu0 0.0
    %5477 = vmatmul.mubr.f32.gmra.mrb[0].mxu0 %v4915
    %v5478 = vpop.f32.mrb[0].mxu0
    %v5479 = vadd.f32 0.0, %v5478
    %v5480 = vpop.f32.mrb[0].mxu0
    %v5481 = vadd.f32 0.0, %v5480
    %5482 = vdwg.mxu0
    %5483 = vmatprep.subr.mxu0 0.0
    %5484 = vmatpush1.msra.mxu0 %v5265
    %5485 = vmatprep.subr.mxu0 0.0
    %5486 = vmatpush1.msra.mxu0 %v5270
    %5487 = vmatprep.subr.mxu0 0.0
    %5488 = vmatpush1.msra.mxu0 %v5275
    %5489 = vmatprep.subr.mxu0 0.0
    %5490 = vmatpush1.msra.mxu0 %v5280
    %5491 = vmatprep.subr.mxu0 0.0
    %5492 = vmatpush1.msra.mxu0 %v5285
    %5493 = vmatprep.subr.mxu0 0.0
    %5494 = vmatpush1.msra.mxu0 %v5290
    %5495 = vmatprep.subr.mxu0 0.0
    %5496 = vmatpush1.msra.mxu0 %v5295
    %5497 = vmatprep.subr.mxu0 0.0
    %5498 = vmatpush1.msra.mxu0 %v5300
    %5499 = vmatprep.subr.mxu0 0.0
    %5500 = vmatpush1.msra.mxu0 %v5305
    %5501 = vmatprep.subr.mxu0 0.0
    %5502 = vmatpush1.msra.mxu0 %v5310
    %5503 = vmatprep.subr.mxu0 0.0
    %5504 = vmatpush1.msra.mxu0 %v5315
    %5505 = vmatprep.subr.mxu0 0.0
    %5506 = vmatpush1.msra.mxu0 %v5320
    %5507 = vmatprep.subr.mxu0 0.0
    %5508 = vmatpush1.msra.mxu0 %v5325
    %5509 = vmatprep.subr.mxu0 0.0
    %5510 = vmatpush1.msra.mxu0 %v5330
    %5511 = vmatprep.subr.mxu0 0.0
    %5512 = vmatpush1.msra.mxu0 %v5335
    %5513 = vmatprep.subr.mxu0 0.0
    %5514 = vmatpush1.msra.mxu0 %v5340
    %5515 = vmatprep.subr.mxu0 0.0
    %5516 = vmatpush1.msra.mxu0 0.0
    %5517 = vmatprep.subr.mxu0 0.0
    %5518 = vmatpush1.msra.mxu0 0.0
    %5519 = vmatprep.subr.mxu0 0.0
    %5520 = vmatpush1.msra.mxu0 0.0
    %5521 = vmatprep.subr.mxu0 0.0
    %5522 = vmatpush1.msra.mxu0 0.0
    %5523 = vmatprep.subr.mxu0 0.0
    %5524 = vmatpush1.msra.mxu0 0.0
    %5525 = vmatprep.subr.mxu0 0.0
    %5526 = vmatpush1.msra.mxu0 0.0
    %5527 = vmatprep.subr.mxu0 0.0
    %5528 = vmatpush1.msra.mxu0 0.0
    %5529 = vmatprep.subr.mxu0 0.0
    %5530 = vmatpush1.msra.mxu0 0.0
    %5531 = vmatprep.subr.mxu0 0.0
    %5532 = vmatpush1.msra.mxu0 0.0
    %5533 = vmatprep.subr.mxu0 0.0
    %5534 = vmatpush1.msra.mxu0 0.0
    %5535 = vmatprep.subr.mxu0 0.0
    %5536 = vmatpush1.msra.mxu0 0.0
    %5537 = vmatprep.subr.mxu0 0.0
    %5538 = vmatpush1.msra.mxu0 0.0
    %5539 = vmatprep.subr.mxu0 0.0
    %5540 = vmatpush1.msra.mxu0 0.0
    %5541 = vmatprep.subr.mxu0 0.0
    %5542 = vmatpush1.msra.mxu0 0.0
    %5543 = vmatprep.subr.mxu0 0.0
    %5544 = vmatpush1.msra.mxu0 0.0
    %5545 = vmatprep.subr.mxu0 0.0
    %5546 = vmatpush1.msra.mxu0 0.0
    %5547 = vmatprep.mubr.f32.mxu0 0.0
    %5548 = vmatmul.mubr.f32.gmra.mrb[0].mxu0 %v4915
    %v5549 = vpop.f32.mrb[0].mxu0
    %v5550 = vadd.f32 0.0, %v5549
    %v5551 = vpop.f32.mrb[0].mxu0
    %5552 = vdwg.mxu0
    %v5558 = vcombine.low %v5408, %v5410
    %v5559 = vcombine.low %v5479, %v5481
    %v5561 = vunpack.c.l.s4 1966171168
    %v5562 = vunpack.c.0.s8 %v5561
    %v5563 = vlaneseq
    %v5564 = vshrl.u32 %v5563, 7
    %v5565 = vsub.s32 %v5562, %v5564
    %v5566 = vrot.slane %v5558, %v5565
    %v5568 = vunpack.c.l.s4 1966171168
    %v5569 = vunpack.c.0.s8 %v5568
    %v5570 = vlaneseq
    %v5571 = vshrl.u32 %v5570, 7
    %v5572 = vsub.s32 %v5569, %v5571
    %v5573 = vrot.slane %v5559, %v5572
    %v5575 = vunpack.c.l.s4 1966171168
    %v5576 = vunpack.c.0.s8 %v5575
    %v5577 = vlaneseq
    %v5578 = vshrl.u32 %v5577, 7
    %v5579 = vsub.s32 %v5576, %v5578
    %v5580 = vrot.slane %v5550, %v5579
    %v5581 = vcombine.low %v5566, %v5573
    %v5583 = vunpack.c.l.s4 1966171168
    %v5584 = vunpack.c.0.s8 %v5583
    %v5585 = vlaneseq
    %v5586 = vshrl.u32 %v5585, 7
    %v5587 = vsub.s32 %v5584, %v5586
    %v5588 = vrot.slane %v5581, %v5587
    %v5590 = vunpack.c.l.s4 1966171168
    %v5591 = vunpack.c.0.s8 %v5590
    %v5592 = vlaneseq
    %v5593 = vshrl.u32 %v5592, 7
    %v5594 = vsub.s32 %v5591, %v5593
    %v5595 = vrot.slane %v5580, %v5594
    %v5596 = vcombine.low %v5588, %v5595
    %v5598 = vadd.f32 %v5260, %v5596
    %v5599 = vxor.u32 %v5598, 2147483648
    %v5600 = vmul.f32 %v5599, 1.442695
    %v5601 = vpow.pop %v5600
    %v5602 = vadd.f32 %v5601, 1.0
    %v5603 = vrcp.pop %v5602
    %v5604 = vmul.f32 1.0, %v5603
    %v5606 = vrot.slane %v5598, 1
    %v5608 = vxor.u32 %v5606, 2147483648
    %v5609 = vmul.f32 %v5608, 1.442695
    %v5610 = vpow.pop %v5609
    %v5611 = vadd.f32 %v5610, 1.0
    %v5612 = vrcp.pop %v5611
    %v5613 = vmul.f32 1.0, %v5612
    %v5614 = vrot.slane %v5598, 2
    %v5616 = vtanh.pop %v5614
    %v5617 = vrot.slane %v5598, 3
    %v5619 = vxor.u32 %v5617, 2147483648
    %v5620 = vmul.f32 %v5619, 1.442695
    %v5621 = vpow.pop %v5620
    %v5622 = vadd.f32 %v5621, 1.0
    %v5623 = vrcp.pop %v5622
    %v5624 = vmul.f32 1.0, %v5623
    %v5625 = vrot.slane %v5598, 4
    %v5627 = vxor.u32 %v5625, 2147483648
    %v5628 = vmul.f32 %v5627, 1.442695
    %v5629 = vpow.pop %v5628
    %v5630 = vadd.f32 %v5629, 1.0
    %v5631 = vrcp.pop %v5630
    %v5632 = vmul.f32 1.0, %v5631
    %v5633 = vmul.f32 %v5604, %v5616
    %v5634 = vmul.f32 %v5624, %v4905
    %v5635 = vadd.f32 %v5633, %v5634
    %v5636 = vmul.f32 %v5632, %v4918
    %v5637 = vadd.f32 %v5635, %v5636
    %v5638 = vtanh.pop %v5637
    %v5639 = vmul.f32 %v5613, %v5638
    %5640 = vst [vmem:[#allocation3 + $0x1] sm:$0x1] %v5637
    %5641 = vst [vmem:[#allocation2 + $0x1] sm:$0x1] %v5639
    %s5642 = sld [smem:[#allocation5]]
    %p5643 = scmp.ge.s32.totalorder %s5642, 0
    %s5644 = scalar_select %p5643, 1, 0
    %s5645 = scvt.s32.f32 %s5644
    %p5646 = scmp.gt.s32.totalorder %s5642, 0
    %s5647 = scalar_select %p5646, %s5642, 0
    %s5648 = scalar_lea.vmem [#allocation2], %s5647
    %v5649 = vld [vmem:[%s5648] sm:$0x1]
    %v5650 = vstv %s5645
    %v5651 = vmul.f32 %v5649, %v5650
    %s5652 = scalar_lea.vmem [#allocation3], %s5647
    %v5653 = vld [vmem:[%s5652] sm:$0x1]
    %v5654 = vmul.f32 %v5653, %v5650
    %s5655 = sld [smem:[#allocation5 + $0x1]]
    %p5656 = scmp.ge.s32.totalorder %s5655, 0
    %s5657 = scalar_select %p5656, 1, 0
    %s5658 = scvt.s32.f32 %s5657
    %p5659 = scmp.gt.s32.totalorder %s5655, 0
    %s5660 = scalar_select %p5659, %s5655, 0
    %s5661 = scalar_lea.vmem [#allocation2], %s5660
    %v5662 = vld [vmem:[%s5661] sm:$0x1]
    %v5663 = vstv %s5658
    %v5664 = vmul.f32 %v5662, %v5663
    %s5665 = scalar_lea.vmem [#allocation3], %s5660
    %v5666 = vld [vmem:[%s5665] sm:$0x1]
    %v5667 = vmul.f32 %v5666, %v5663
    %v5668 = vld [vmem:[#allocation4] ss:$8 sm:$0xf]
    %v5669 = vld [vmem:[#allocation4] ss:$8 sm:$0x10]
    %v5670 = vor.u32 %v5668, %v5669
    %v5671 = vld [vmem:[#allocation13] sm:$0xff]
    %v5672 = vld [vmem:[#allocation13 + $0x8] sm:$0xff]
    %v5673 = vld [vmem:[#allocation13 + $0x10] sm:$0xff]
    %v5674 = vld [vmem:[#allocation13 + $0x18] sm:$0xff]
    %v5675 = vld [vmem:[#allocation13 + $0x20] sm:$0xff]
    %v5676 = vld [vmem:[#allocation13 + $0x28] sm:$0xff]
    %v5677 = vld [vmem:[#allocation13 + $0x30] sm:$0xff]
    %v5678 = vld [vmem:[#allocation13 + $0x38] sm:$0xff]
    %v5679 = vld [vmem:[#allocation13 + $0x40] sm:$0xff]
    %v5680 = vld [vmem:[#allocation13 + $0x48] sm:$0xff]
    %v5681 = vld [vmem:[#allocation13 + $0x50] sm:$0xff]
    %v5682 = vld [vmem:[#allocation13 + $0x58] sm:$0xff]
    %v5683 = vld [vmem:[#allocation13 + $0x60] sm:$0xff]
    %v5684 = vld [vmem:[#allocation13 + $0x68] sm:$0xff]
    %v5685 = vld [vmem:[#allocation13 + $0x70] sm:$0xff]
    %v5686 = vld [vmem:[#allocation13 + $0x78] sm:$0xff]
    %v5687 = vld [vmem:[#allocation13 + $0x80] sm:$0xff]
    %v5688 = vld [vmem:[#allocation13 + $0x88] sm:$0xff]
    %v5689 = vld [vmem:[#allocation13 + $0x90] sm:$0xff]
    %v5690 = vld [vmem:[#allocation13 + $0x98] sm:$0xff]
    %v5691 = vld [vmem:[#allocation13 + $0xa0] sm:$0xff]
    %v5692 = vld [vmem:[#allocation13 + $0xa8] sm:$0xff]
    %v5693 = vld [vmem:[#allocation13 + $0xb0] sm:$0xff]
    %v5694 = vld [vmem:[#allocation13 + $0xb8] sm:$0xff]
    %v5695 = vld [vmem:[#allocation13 + $0xc0] sm:$0xff]
    %v5696 = vld [vmem:[#allocation13 + $0xc8] sm:$0xff]
    %v5697 = vld [vmem:[#allocation13 + $0xd0] sm:$0xff]
    %v5698 = vld [vmem:[#allocation13 + $0xd8] sm:$0xff]
    %v5699 = vld [vmem:[#allocation13 + $0xe0] sm:$0xff]
    %v5700 = vld [vmem:[#allocation13 + $0xe8] sm:$0xff]
    %v5701 = vld [vmem:[#allocation13 + $0xf0] sm:$0xff]
    %v5702 = vld [vmem:[#allocation13 + $0xf8] sm:$0xff]
    %v5703 = vld [vmem:[#allocation13 + $0x100] sm:$0xff]
    %v5704 = vld [vmem:[#allocation13 + $0x108] sm:$0xff]
    %v5705 = vld [vmem:[#allocation13 + $0x110] sm:$0xff]
    %v5706 = vld [vmem:[#allocation13 + $0x118] sm:$0xff]
    %v5707 = vld [vmem:[#allocation13 + $0x120] sm:$0xff]
    %v5708 = vld [vmem:[#allocation13 + $0x128] sm:$0xff]
    %v5709 = vld [vmem:[#allocation13 + $0x130] sm:$0xff]
    %v5710 = vld [vmem:[#allocation13 + $0x138] sm:$0xff]
    %v5711 = vld [vmem:[#allocation13 + $0x140] sm:$0xff]
    %v5712 = vld [vmem:[#allocation13 + $0x148] sm:$0xff]
    %v5713 = vld [vmem:[#allocation13 + $0x150] sm:$0xff]
    %v5714 = vld [vmem:[#allocation13 + $0x158] sm:$0xff]
    %v5715 = vld [vmem:[#allocation13 + $0x160] sm:$0xff]
    %v5716 = vld [vmem:[#allocation13 + $0x168] sm:$0xff]
    %v5717 = vld [vmem:[#allocation13 + $0x170] sm:$0xff]
    %v5718 = vld [vmem:[#allocation13 + $0x178] sm:$0xff]
    %v5719 = vld [vmem:[#allocation13 + $0x180] sm:$0xff]
    %v5720 = vld [vmem:[#allocation13 + $0x188] sm:$0xff]
    %v5721 = vld [vmem:[#allocation13 + $0x190] sm:$0xff]
    %v5722 = vld [vmem:[#allocation13 + $0x198] sm:$0xff]
    %v5723 = vld [vmem:[#allocation13 + $0x1a0] sm:$0xff]
    %v5724 = vld [vmem:[#allocation13 + $0x1a8] sm:$0xff]
    %v5725 = vld [vmem:[#allocation13 + $0x1b0] sm:$0xff]
    %v5726 = vld [vmem:[#allocation13 + $0x1b8] sm:$0xff]
    %v5727 = vld [vmem:[#allocation13 + $0x1c0] sm:$0xff]
    %v5728 = vld [vmem:[#allocation13 + $0x1c8] sm:$0xff]
    %v5729 = vld [vmem:[#allocation13 + $0x1d0] sm:$0xff]
    %v5730 = vld [vmem:[#allocation13 + $0x1d8] sm:$0xff]
    %v5731 = vld [vmem:[#allocation13 + $0x1e0] sm:$0xff]
    %v5732 = vld [vmem:[#allocation13 + $0x1e8] sm:$0xff]
    %v5733 = vld [vmem:[#allocation13 + $0x1f0] sm:$0xff]
    %v5734 = vld [vmem:[#allocation13 + $0x1f8] sm:$0xff]
    %v5735 = vld [vmem:[#allocation13 + $0x200] sm:$0xff]
    %v5736 = vld [vmem:[#allocation13 + $0x208] sm:$0xff]
    %v5737 = vld [vmem:[#allocation13 + $0x210] sm:$0xff]
    %v5738 = vld [vmem:[#allocation13 + $0x218] sm:$0xff]
    %v5739 = vld [vmem:[#allocation13 + $0x220] sm:$0xff]
    %v5740 = vld [vmem:[#allocation13 + $0x228] sm:$0xff]
    %v5741 = vld [vmem:[#allocation13 + $0x230] sm:$0xff]
    %v5742 = vld [vmem:[#allocation13 + $0x238] sm:$0xff]
    %v5743 = vld [vmem:[#allocation13 + $0x240] sm:$0xff]
    %v5744 = vld [vmem:[#allocation13 + $0x248] sm:$0xff]
    %v5745 = vld [vmem:[#allocation13 + $0x250] sm:$0xff]
    %v5746 = vld [vmem:[#allocation13 + $0x258] sm:$0xff]
    %v5747 = vld [vmem:[#allocation13 + $0x260] sm:$0xff]
    %v5748 = vld [vmem:[#allocation13 + $0x268] sm:$0xff]
    %v5749 = vld [vmem:[#allocation13 + $0x270] sm:$0xff]
    %v5750 = vld [vmem:[#allocation13 + $0x278] sm:$0xff]
    %5751 = vmatprep.subr.mxu0 %v5672
    %5752 = vmatpush1.msra.mxu0 %v5671
    %5753 = vmatprep.subr.mxu0 %v5677
    %5754 = vmatpush1.msra.mxu0 %v5676
    %5755 = vmatprep.subr.mxu0 %v5682
    %5756 = vmatpush1.msra.mxu0 %v5681
    %5757 = vmatprep.subr.mxu0 %v5687
    %5758 = vmatpush1.msra.mxu0 %v5686
    %5759 = vmatprep.subr.mxu0 %v5692
    %5760 = vmatpush1.msra.mxu0 %v5691
    %5761 = vmatprep.subr.mxu0 %v5697
    %5762 = vmatpush1.msra.mxu0 %v5696
    %5763 = vmatprep.subr.mxu0 %v5702
    %5764 = vmatpush1.msra.mxu0 %v5701
    %5765 = vmatprep.subr.mxu0 %v5707
    %5766 = vmatpush1.msra.mxu0 %v5706
    %5767 = vmatprep.subr.mxu0 %v5712
    %5768 = vmatpush1.msra.mxu0 %v5711
    %5769 = vmatprep.subr.mxu0 %v5717
    %5770 = vmatpush1.msra.mxu0 %v5716
    %5771 = vmatprep.subr.mxu0 %v5722
    %5772 = vmatpush1.msra.mxu0 %v5721
    %5773 = vmatprep.subr.mxu0 %v5727
    %5774 = vmatpush1.msra.mxu0 %v5726
    %5775 = vmatprep.subr.mxu0 %v5732
    %5776 = vmatpush1.msra.mxu0 %v5731
    %5777 = vmatprep.subr.mxu0 %v5737
    %5778 = vmatpush1.msra.mxu0 %v5736
    %5779 = vmatprep.subr.mxu0 %v5742
    %5780 = vmatpush1.msra.mxu0 %v5741
    %5781 = vmatprep.subr.mxu0 %v5747
    %5782 = vmatpush1.msra.mxu0 %v5746
    %5783 = vmatprep.subr.mxu0 0.0
    %5784 = vmatpush1.msra.mxu0 0.0
    %5785 = vmatprep.subr.mxu0 0.0
    %5786 = vmatpush1.msra.mxu0 0.0
    %5787 = vmatprep.subr.mxu0 0.0
    %5788 = vmatpush1.msra.mxu0 0.0
    %5789 = vmatprep.subr.mxu0 0.0
    %5790 = vmatpush1.msra.mxu0 0.0
    %5791 = vmatprep.subr.mxu0 0.0
    %5792 = vmatpush1.msra.mxu0 0.0
    %5793 = vmatprep.subr.mxu0 0.0
    %5794 = vmatpush1.msra.mxu0 0.0
    %5795 = vmatprep.subr.mxu0 0.0
    %5796 = vmatpush1.msra.mxu0 0.0
    %5797 = vmatprep.subr.mxu0 0.0
    %5798 = vmatpush1.msra.mxu0 0.0
    %5799 = vmatprep.subr.mxu0 0.0
    %5800 = vmatpush1.msra.mxu0 0.0
    %5801 = vmatprep.subr.mxu0 0.0
    %5802 = vmatpush1.msra.mxu0 0.0
    %5803 = vmatprep.subr.mxu0 0.0
    %5804 = vmatpush1.msra.mxu0 0.0
    %5805 = vmatprep.subr.mxu0 0.0
    %5806 = vmatpush1.msra.mxu0 0.0
    %5807 = vmatprep.subr.mxu0 0.0
    %5808 = vmatpush1.msra.mxu0 0.0
    %5809 = vmatprep.subr.mxu0 0.0
    %5810 = vmatpush1.msra.mxu0 0.0
    %5811 = vmatprep.subr.mxu0 0.0
    %5812 = vmatpush1.msra.mxu0 0.0
    %5813 = vmatprep.subr.mxu0 0.0
    %5814 = vmatpush1.msra.mxu0 0.0
    %5815 = vmatprep.mubr.f32.mxu0 0.0
    %5816 = vmatmul.mubr.f32.gmra.mrb[0].mxu0 %v5651
    %v5817 = vpop.f32.mrb[0].mxu0
    %v5818 = vadd.f32 0.0, %v5817
    %v5819 = vpop.f32.mrb[0].mxu0
    %v5820 = vadd.f32 0.0, %v5819
    %5821 = vdwg.mxu0
    %5822 = vmatprep.subr.mxu0 %v5674
    %5823 = vmatpush1.msra.mxu0 %v5673
    %5824 = vmatprep.subr.mxu0 %v5679
    %5825 = vmatpush1.msra.mxu0 %v5678
    %5826 = vmatprep.subr.mxu0 %v5684
    %5827 = vmatpush1.msra.mxu0 %v5683
    %5828 = vmatprep.subr.mxu0 %v5689
    %5829 = vmatpush1.msra.mxu0 %v5688
    %5830 = vmatprep.subr.mxu0 %v5694
    %5831 = vmatpush1.msra.mxu0 %v5693
    %5832 = vmatprep.subr.mxu0 %v5699
    %5833 = vmatpush1.msra.mxu0 %v5698
    %5834 = vmatprep.subr.mxu0 %v5704
    %5835 = vmatpush1.msra.mxu0 %v5703
    %5836 = vmatprep.subr.mxu0 %v5709
    %5837 = vmatpush1.msra.mxu0 %v5708
    %5838 = vmatprep.subr.mxu0 %v5714
    %5839 = vmatpush1.msra.mxu0 %v5713
    %5840 = vmatprep.subr.mxu0 %v5719
    %5841 = vmatpush1.msra.mxu0 %v5718
    %5842 = vmatprep.subr.mxu0 %v5724
    %5843 = vmatpush1.msra.mxu0 %v5723
    %5844 = vmatprep.subr.mxu0 %v5729
    %5845 = vmatpush1.msra.mxu0 %v5728
    %5846 = vmatprep.subr.mxu0 %v5734
    %5847 = vmatpush1.msra.mxu0 %v5733
    %5848 = vmatprep.subr.mxu0 %v5739
    %5849 = vmatpush1.msra.mxu0 %v5738
    %5850 = vmatprep.subr.mxu0 %v5744
    %5851 = vmatpush1.msra.mxu0 %v5743
    %5852 = vmatprep.subr.mxu0 %v5749
    %5853 = vmatpush1.msra.mxu0 %v5748
    %5854 = vmatprep.subr.mxu0 0.0
    %5855 = vmatpush1.msra.mxu0 0.0
    %5856 = vmatprep.subr.mxu0 0.0
    %5857 = vmatpush1.msra.mxu0 0.0
    %5858 = vmatprep.subr.mxu0 0.0
    %5859 = vmatpush1.msra.mxu0 0.0
    %5860 = vmatprep.subr.mxu0 0.0
    %5861 = vmatpush1.msra.mxu0 0.0
    %5862 = vmatprep.subr.mxu0 0.0
    %5863 = vmatpush1.msra.mxu0 0.0
    %5864 = vmatprep.subr.mxu0 0.0
    %5865 = vmatpush1.msra.mxu0 0.0
    %5866 = vmatprep.subr.mxu0 0.0
    %5867 = vmatpush1.msra.mxu0 0.0
    %5868 = vmatprep.subr.mxu0 0.0
    %5869 = vmatpush1.msra.mxu0 0.0
    %5870 = vmatprep.subr.mxu0 0.0
    %5871 = vmatpush1.msra.mxu0 0.0
    %5872 = vmatprep.subr.mxu0 0.0
    %5873 = vmatpush1.msra.mxu0 0.0
    %5874 = vmatprep.subr.mxu0 0.0
    %5875 = vmatpush1.msra.mxu0 0.0
    %5876 = vmatprep.subr.mxu0 0.0
    %5877 = vmatpush1.msra.mxu0 0.0
    %5878 = vmatprep.subr.mxu0 0.0
    %5879 = vmatpush1.msra.mxu0 0.0
    %5880 = vmatprep.subr.mxu0 0.0
    %5881 = vmatpush1.msra.mxu0 0.0
    %5882 = vmatprep.subr.mxu0 0.0
    %5883 = vmatpush1.msra.mxu0 0.0
    %5884 = vmatprep.subr.mxu0 0.0
    %5885 = vmatpush1.msra.mxu0 0.0
    %5886 = vmatprep.mubr.f32.mxu0 0.0
    %5887 = vmatmul.mubr.f32.gmra.mrb[0].mxu0 %v5651
    %v5888 = vpop.f32.mrb[0].mxu0
    %v5889 = vadd.f32 0.0, %v5888
    %v5890 = vpop.f32.mrb[0].mxu0
    %v5891 = vadd.f32 0.0, %v5890
    %5892 = vdwg.mxu0
    %5893 = vmatprep.subr.mxu0 0.0
    %5894 = vmatpush1.msra.mxu0 %v5675
    %5895 = vmatprep.subr.mxu0 0.0
    %5896 = vmatpush1.msra.mxu0 %v5680
    %5897 = vmatprep.subr.mxu0 0.0
    %5898 = vmatpush1.msra.mxu0 %v5685
    %5899 = vmatprep.subr.mxu0 0.0
    %5900 = vmatpush1.msra.mxu0 %v5690
    %5901 = vmatprep.subr.mxu0 0.0
    %5902 = vmatpush1.msra.mxu0 %v5695
    %5903 = vmatprep.subr.mxu0 0.0
    %5904 = vmatpush1.msra.mxu0 %v5700
    %5905 = vmatprep.subr.mxu0 0.0
    %5906 = vmatpush1.msra.mxu0 %v5705
    %5907 = vmatprep.subr.mxu0 0.0
    %5908 = vmatpush1.msra.mxu0 %v5710
    %5909 = vmatprep.subr.mxu0 0.0
    %5910 = vmatpush1.msra.mxu0 %v5715
    %5911 = vmatprep.subr.mxu0 0.0
    %5912 = vmatpush1.msra.mxu0 %v5720
    %5913 = vmatprep.subr.mxu0 0.0
    %5914 = vmatpush1.msra.mxu0 %v5725
    %5915 = vmatprep.subr.mxu0 0.0
    %5916 = vmatpush1.msra.mxu0 %v5730
    %5917 = vmatprep.subr.mxu0 0.0
    %5918 = vmatpush1.msra.mxu0 %v5735
    %5919 = vmatprep.subr.mxu0 0.0
    %5920 = vmatpush1.msra.mxu0 %v5740
    %5921 = vmatprep.subr.mxu0 0.0
    %5922 = vmatpush1.msra.mxu0 %v5745
    %5923 = vmatprep.subr.mxu0 0.0
    %5924 = vmatpush1.msra.mxu0 %v5750
    %5925 = vmatprep.subr.mxu0 0.0
    %5926 = vmatpush1.msra.mxu0 0.0
    %5927 = vmatprep.subr.mxu0 0.0
    %5928 = vmatpush1.msra.mxu0 0.0
    %5929 = vmatprep.subr.mxu0 0.0
    %5930 = vmatpush1.msra.mxu0 0.0
    %5931 = vmatprep.subr.mxu0 0.0
    %5932 = vmatpush1.msra.mxu0 0.0
    %5933 = vmatprep.subr.mxu0 0.0
    %5934 = vmatpush1.msra.mxu0 0.0
    %5935 = vmatprep.subr.mxu0 0.0
    %5936 = vmatpush1.msra.mxu0 0.0
    %5937 = vmatprep.subr.mxu0 0.0
    %5938 = vmatpush1.msra.mxu0 0.0
    %5939 = vmatprep.subr.mxu0 0.0
    %5940 = vmatpush1.msra.mxu0 0.0
    %5941 = vmatprep.subr.mxu0 0.0
    %5942 = vmatpush1.msra.mxu0 0.0
    %5943 = vmatprep.subr.mxu0 0.0
    %5944 = vmatpush1.msra.mxu0 0.0
    %5945 = vmatprep.subr.mxu0 0.0
    %5946 = vmatpush1.msra.mxu0 0.0
    %5947 = vmatprep.subr.mxu0 0.0
    %5948 = vmatpush1.msra.mxu0 0.0
    %5949 = vmatprep.subr.mxu0 0.0
    %5950 = vmatpush1.msra.mxu0 0.0
    %5951 = vmatprep.subr.mxu0 0.0
    %5952 = vmatpush1.msra.mxu0 0.0
    %5953 = vmatprep.subr.mxu0 0.0
    %5954 = vmatpush1.msra.mxu0 0.0
    %5955 = vmatprep.subr.mxu0 0.0
    %5956 = vmatpush1.msra.mxu0 0.0
    %5957 = vmatprep.mubr.f32.mxu0 0.0
    %5958 = vmatmul.mubr.f32.gmra.mrb[0].mxu0 %v5651
    %v5959 = vpop.f32.mrb[0].mxu0
    %v5960 = vadd.f32 0.0, %v5959
    %v5961 = vpop.f32.mrb[0].mxu0
    %5962 = vdwg.mxu0
    %v5968 = vcombine.low %v5818, %v5820
    %v5969 = vcombine.low %v5889, %v5891
    %v5971 = vunpack.c.l.s4 1966171168
    %v5972 = vunpack.c.0.s8 %v5971
    %v5973 = vlaneseq
    %v5974 = vshrl.u32 %v5973, 7
    %v5975 = vsub.s32 %v5972, %v5974
    %v5976 = vrot.slane %v5968, %v5975
    %v5978 = vunpack.c.l.s4 1966171168
    %v5979 = vunpack.c.0.s8 %v5978
    %v5980 = vlaneseq
    %v5981 = vshrl.u32 %v5980, 7
    %v5982 = vsub.s32 %v5979, %v5981
    %v5983 = vrot.slane %v5969, %v5982
    %v5985 = vunpack.c.l.s4 1966171168
    %v5986 = vunpack.c.0.s8 %v5985
    %v5987 = vlaneseq
    %v5988 = vshrl.u32 %v5987, 7
    %v5989 = vsub.s32 %v5986, %v5988
    %v5990 = vrot.slane %v5960, %v5989
    %v5991 = vcombine.low %v5976, %v5983
    %v5993 = vunpack.c.l.s4 1966171168
    %v5994 = vunpack.c.0.s8 %v5993
    %v5995 = vlaneseq
    %v5996 = vshrl.u32 %v5995, 7
    %v5997 = vsub.s32 %v5994, %v5996
    %v5998 = vrot.slane %v5991, %v5997
    %v6000 = vunpack.c.l.s4 1966171168
    %v6001 = vunpack.c.0.s8 %v6000
    %v6002 = vlaneseq
    %v6003 = vshrl.u32 %v6002, 7
    %v6004 = vsub.s32 %v6001, %v6003
    %v6005 = vrot.slane %v5990, %v6004
    %v6006 = vcombine.low %v5998, %v6005
    %v6008 = vadd.f32 %v5670, %v6006
    %v6009 = vld [vmem:[%s766] sm:$0xff]
    %v6010 = vld [vmem:[%s766 + $0x8] sm:$0xff]
    %v6011 = vld [vmem:[%s766 + $0x10] sm:$0xff]
    %v6012 = vld [vmem:[%s766 + $0x18] sm:$0xff]
    %v6013 = vld [vmem:[%s766 + $0x20] sm:$0xff]
    %v6014 = vld [vmem:[%s766 + $0x28] sm:$0xff]
    %v6015 = vld [vmem:[%s766 + $0x30] sm:$0xff]
    %v6016 = vld [vmem:[%s766 + $0x38] sm:$0xff]
    %v6017 = vld [vmem:[%s766 + $0x40] sm:$0xff]
    %v6018 = vld [vmem:[%s766 + $0x48] sm:$0xff]
    %v6019 = vld [vmem:[%s766 + $0x50] sm:$0xff]
    %v6020 = vld [vmem:[%s766 + $0x58] sm:$0xff]
    %v6021 = vld [vmem:[%s766 + $0x60] sm:$0xff]
    %v6022 = vld [vmem:[%s766 + $0x68] sm:$0xff]
    %v6023 = vld [vmem:[%s766 + $0x70] sm:$0xff]
    %v6024 = vld [vmem:[%s766 + $0x78] sm:$0xff]
    %v6025 = vld [vmem:[%s766 + $0x80] sm:$0xff]
    %v6026 = vld [vmem:[%s766 + $0x88] sm:$0xff]
    %v6027 = vld [vmem:[%s766 + $0x90] sm:$0xff]
    %v6028 = vld [vmem:[%s766 + $0x98] sm:$0xff]
    %v6029 = vld [vmem:[%s766 + $0xa0] sm:$0xff]
    %v6030 = vld [vmem:[%s766 + $0xa8] sm:$0xff]
    %v6031 = vld [vmem:[%s766 + $0xb0] sm:$0xff]
    %v6032 = vld [vmem:[%s766 + $0xb8] sm:$0xff]
    %v6033 = vld [vmem:[%s766 + $0xc0] sm:$0xff]
    %v6034 = vld [vmem:[%s766 + $0xc8] sm:$0xff]
    %v6035 = vld [vmem:[%s766 + $0xd0] sm:$0xff]
    %v6036 = vld [vmem:[%s766 + $0xd8] sm:$0xff]
    %v6037 = vld [vmem:[%s766 + $0xe0] sm:$0xff]
    %v6038 = vld [vmem:[%s766 + $0xe8] sm:$0xff]
    %v6039 = vld [vmem:[%s766 + $0xf0] sm:$0xff]
    %v6040 = vld [vmem:[%s766 + $0xf8] sm:$0xff]
    %v6041 = vld [vmem:[%s766 + $0x100] sm:$0xff]
    %v6042 = vld [vmem:[%s766 + $0x108] sm:$0xff]
    %v6043 = vld [vmem:[%s766 + $0x110] sm:$0xff]
    %v6044 = vld [vmem:[%s766 + $0x118] sm:$0xff]
    %v6045 = vld [vmem:[%s766 + $0x120] sm:$0xff]
    %v6046 = vld [vmem:[%s766 + $0x128] sm:$0xff]
    %v6047 = vld [vmem:[%s766 + $0x130] sm:$0xff]
    %v6048 = vld [vmem:[%s766 + $0x138] sm:$0xff]
    %v6049 = vld [vmem:[%s766 + $0x140] sm:$0xff]
    %v6050 = vld [vmem:[%s766 + $0x148] sm:$0xff]
    %v6051 = vld [vmem:[%s766 + $0x150] sm:$0xff]
    %v6052 = vld [vmem:[%s766 + $0x158] sm:$0xff]
    %v6053 = vld [vmem:[%s766 + $0x160] sm:$0xff]
    %v6054 = vld [vmem:[%s766 + $0x168] sm:$0xff]
    %v6055 = vld [vmem:[%s766 + $0x170] sm:$0xff]
    %v6056 = vld [vmem:[%s766 + $0x178] sm:$0xff]
    %v6057 = vld [vmem:[%s766 + $0x180] sm:$0xff]
    %v6058 = vld [vmem:[%s766 + $0x188] sm:$0xff]
    %v6059 = vld [vmem:[%s766 + $0x190] sm:$0xff]
    %v6060 = vld [vmem:[%s766 + $0x198] sm:$0xff]
    %v6061 = vld [vmem:[%s766 + $0x1a0] sm:$0xff]
    %v6062 = vld [vmem:[%s766 + $0x1a8] sm:$0xff]
    %v6063 = vld [vmem:[%s766 + $0x1b0] sm:$0xff]
    %v6064 = vld [vmem:[%s766 + $0x1b8] sm:$0xff]
    %v6065 = vld [vmem:[%s766 + $0x1c0] sm:$0xff]
    %v6066 = vld [vmem:[%s766 + $0x1c8] sm:$0xff]
    %v6067 = vld [vmem:[%s766 + $0x1d0] sm:$0xff]
    %v6068 = vld [vmem:[%s766 + $0x1d8] sm:$0xff]
    %v6069 = vld [vmem:[%s766 + $0x1e0] sm:$0xff]
    %v6070 = vld [vmem:[%s766 + $0x1e8] sm:$0xff]
    %v6071 = vld [vmem:[%s766 + $0x1f0] sm:$0xff]
    %v6072 = vld [vmem:[%s766 + $0x1f8] sm:$0xff]
    %v6073 = vld [vmem:[%s766 + $0x200] sm:$0xff]
    %v6074 = vld [vmem:[%s766 + $0x208] sm:$0xff]
    %v6075 = vld [vmem:[%s766 + $0x210] sm:$0xff]
    %v6076 = vld [vmem:[%s766 + $0x218] sm:$0xff]
    %v6077 = vld [vmem:[%s766 + $0x220] sm:$0xff]
    %v6078 = vld [vmem:[%s766 + $0x228] sm:$0xff]
    %v6079 = vld [vmem:[%s766 + $0x230] sm:$0xff]
    %v6080 = vld [vmem:[%s766 + $0x238] sm:$0xff]
    %v6081 = vld [vmem:[%s766 + $0x240] sm:$0xff]
    %v6082 = vld [vmem:[%s766 + $0x248] sm:$0xff]
    %v6083 = vld [vmem:[%s766 + $0x250] sm:$0xff]
    %v6084 = vld [vmem:[%s766 + $0x258] sm:$0xff]
    %v6085 = vld [vmem:[%s766 + $0x260] sm:$0xff]
    %v6086 = vld [vmem:[%s766 + $0x268] sm:$0xff]
    %v6087 = vld [vmem:[%s766 + $0x270] sm:$0xff]
    %v6088 = vld [vmem:[%s766 + $0x278] sm:$0xff]
    %6089 = vmatprep.subr.mxu0 %v6010
    %6090 = vmatpush1.msra.mxu0 %v6009
    %6091 = vmatprep.subr.mxu0 %v6015
    %6092 = vmatpush1.msra.mxu0 %v6014
    %6093 = vmatprep.subr.mxu0 %v6020
    %6094 = vmatpush1.msra.mxu0 %v6019
    %6095 = vmatprep.subr.mxu0 %v6025
    %6096 = vmatpush1.msra.mxu0 %v6024
    %6097 = vmatprep.subr.mxu0 %v6030
    %6098 = vmatpush1.msra.mxu0 %v6029
    %6099 = vmatprep.subr.mxu0 %v6035
    %6100 = vmatpush1.msra.mxu0 %v6034
    %6101 = vmatprep.subr.mxu0 %v6040
    %6102 = vmatpush1.msra.mxu0 %v6039
    %6103 = vmatprep.subr.mxu0 %v6045
    %6104 = vmatpush1.msra.mxu0 %v6044
    %6105 = vmatprep.subr.mxu0 %v6050
    %6106 = vmatpush1.msra.mxu0 %v6049
    %6107 = vmatprep.subr.mxu0 %v6055
    %6108 = vmatpush1.msra.mxu0 %v6054
    %6109 = vmatprep.subr.mxu0 %v6060
    %6110 = vmatpush1.msra.mxu0 %v6059
    %6111 = vmatprep.subr.mxu0 %v6065
    %6112 = vmatpush1.msra.mxu0 %v6064
    %6113 = vmatprep.subr.mxu0 %v6070
    %6114 = vmatpush1.msra.mxu0 %v6069
    %6115 = vmatprep.subr.mxu0 %v6075
    %6116 = vmatpush1.msra.mxu0 %v6074
    %6117 = vmatprep.subr.mxu0 %v6080
    %6118 = vmatpush1.msra.mxu0 %v6079
    %6119 = vmatprep.subr.mxu0 %v6085
    %6120 = vmatpush1.msra.mxu0 %v6084
    %6121 = vmatprep.subr.mxu0 0.0
    %6122 = vmatpush1.msra.mxu0 0.0
    %6123 = vmatprep.subr.mxu0 0.0
    %6124 = vmatpush1.msra.mxu0 0.0
    %6125 = vmatprep.subr.mxu0 0.0
    %6126 = vmatpush1.msra.mxu0 0.0
    %6127 = vmatprep.subr.mxu0 0.0
    %6128 = vmatpush1.msra.mxu0 0.0
    %6129 = vmatprep.subr.mxu0 0.0
    %6130 = vmatpush1.msra.mxu0 0.0
    %6131 = vmatprep.subr.mxu0 0.0
    %6132 = vmatpush1.msra.mxu0 0.0
    %6133 = vmatprep.subr.mxu0 0.0
    %6134 = vmatpush1.msra.mxu0 0.0
    %6135 = vmatprep.subr.mxu0 0.0
    %6136 = vmatpush1.msra.mxu0 0.0
    %6137 = vmatprep.subr.mxu0 0.0
    %6138 = vmatpush1.msra.mxu0 0.0
    %6139 = vmatprep.subr.mxu0 0.0
    %6140 = vmatpush1.msra.mxu0 0.0
    %6141 = vmatprep.subr.mxu0 0.0
    %6142 = vmatpush1.msra.mxu0 0.0
    %6143 = vmatprep.subr.mxu0 0.0
    %6144 = vmatpush1.msra.mxu0 0.0
    %6145 = vmatprep.subr.mxu0 0.0
    %6146 = vmatpush1.msra.mxu0 0.0
    %6147 = vmatprep.subr.mxu0 0.0
    %6148 = vmatpush1.msra.mxu0 0.0
    %6149 = vmatprep.subr.mxu0 0.0
    %6150 = vmatpush1.msra.mxu0 0.0
    %6151 = vmatprep.subr.mxu0 0.0
    %6152 = vmatpush1.msra.mxu0 0.0
    %6153 = vmatprep.mubr.f32.mxu0 0.0
    %6154 = vmatmul.mubr.f32.gmra.mrb[0].mxu0 %v5664
    %v6155 = vpop.f32.mrb[0].mxu0
    %v6156 = vadd.f32 0.0, %v6155
    %v6157 = vpop.f32.mrb[0].mxu0
    %v6158 = vadd.f32 0.0, %v6157
    %6159 = vdwg.mxu0
    %6160 = vmatprep.subr.mxu0 %v6012
    %6161 = vmatpush1.msra.mxu0 %v6011
    %6162 = vmatprep.subr.mxu0 %v6017
    %6163 = vmatpush1.msra.mxu0 %v6016
    %6164 = vmatprep.subr.mxu0 %v6022
    %6165 = vmatpush1.msra.mxu0 %v6021
    %6166 = vmatprep.subr.mxu0 %v6027
    %6167 = vmatpush1.msra.mxu0 %v6026
    %6168 = vmatprep.subr.mxu0 %v6032
    %6169 = vmatpush1.msra.mxu0 %v6031
    %6170 = vmatprep.subr.mxu0 %v6037
    %6171 = vmatpush1.msra.mxu0 %v6036
    %6172 = vmatprep.subr.mxu0 %v6042
    %6173 = vmatpush1.msra.mxu0 %v6041
    %6174 = vmatprep.subr.mxu0 %v6047
    %6175 = vmatpush1.msra.mxu0 %v6046
    %6176 = vmatprep.subr.mxu0 %v6052
    %6177 = vmatpush1.msra.mxu0 %v6051
    %6178 = vmatprep.subr.mxu0 %v6057
    %6179 = vmatpush1.msra.mxu0 %v6056
    %6180 = vmatprep.subr.mxu0 %v6062
    %6181 = vmatpush1.msra.mxu0 %v6061
    %6182 = vmatprep.subr.mxu0 %v6067
    %6183 = vmatpush1.msra.mxu0 %v6066
    %6184 = vmatprep.subr.mxu0 %v6072
    %6185 = vmatpush1.msra.mxu0 %v6071
    %6186 = vmatprep.subr.mxu0 %v6077
    %6187 = vmatpush1.msra.mxu0 %v6076
    %6188 = vmatprep.subr.mxu0 %v6082
    %6189 = vmatpush1.msra.mxu0 %v6081
    %6190 = vmatprep.subr.mxu0 %v6087
    %6191 = vmatpush1.msra.mxu0 %v6086
    %6192 = vmatprep.subr.mxu0 0.0
    %6193 = vmatpush1.msra.mxu0 0.0
    %6194 = vmatprep.subr.mxu0 0.0
    %6195 = vmatpush1.msra.mxu0 0.0
    %6196 = vmatprep.subr.mxu0 0.0
    %6197 = vmatpush1.msra.mxu0 0.0
    %6198 = vmatprep.subr.mxu0 0.0
    %6199 = vmatpush1.msra.mxu0 0.0
    %6200 = vmatprep.subr.mxu0 0.0
    %6201 = vmatpush1.msra.mxu0 0.0
    %6202 = vmatprep.subr.mxu0 0.0
    %6203 = vmatpush1.msra.mxu0 0.0
    %6204 = vmatprep.subr.mxu0 0.0
    %6205 = vmatpush1.msra.mxu0 0.0
    %6206 = vmatprep.subr.mxu0 0.0
    %6207 = vmatpush1.msra.mxu0 0.0
    %6208 = vmatprep.subr.mxu0 0.0
    %6209 = vmatpush1.msra.mxu0 0.0
    %6210 = vmatprep.subr.mxu0 0.0
    %6211 = vmatpush1.msra.mxu0 0.0
    %6212 = vmatprep.subr.mxu0 0.0
    %6213 = vmatpush1.msra.mxu0 0.0
    %6214 = vmatprep.subr.mxu0 0.0
    %6215 = vmatpush1.msra.mxu0 0.0
    %6216 = vmatprep.subr.mxu0 0.0
    %6217 = vmatpush1.msra.mxu0 0.0
    %6218 = vmatprep.subr.mxu0 0.0
    %6219 = vmatpush1.msra.mxu0 0.0
    %6220 = vmatprep.subr.mxu0 0.0
    %6221 = vmatpush1.msra.mxu0 0.0
    %6222 = vmatprep.subr.mxu0 0.0
    %6223 = vmatpush1.msra.mxu0 0.0
    %6224 = vmatprep.mubr.f32.mxu0 0.0
    %6225 = vmatmul.mubr.f32.gmra.mrb[0].mxu0 %v5664
    %v6226 = vpop.f32.mrb[0].mxu0
    %v6227 = vadd.f32 0.0, %v6226
    %v6228 = vpop.f32.mrb[0].mxu0
    %v6229 = vadd.f32 0.0, %v6228
    %6230 = vdwg.mxu0
    %6231 = vmatprep.subr.mxu0 0.0
    %6232 = vmatpush1.msra.mxu0 %v6013
    %6233 = vmatprep.subr.mxu0 0.0
    %6234 = vmatpush1.msra.mxu0 %v6018
    %6235 = vmatprep.subr.mxu0 0.0
    %6236 = vmatpush1.msra.mxu0 %v6023
    %6237 = vmatprep.subr.mxu0 0.0
    %6238 = vmatpush1.msra.mxu0 %v6028
    %6239 = vmatprep.subr.mxu0 0.0
    %6240 = vmatpush1.msra.mxu0 %v6033
    %6241 = vmatprep.subr.mxu0 0.0
    %6242 = vmatpush1.msra.mxu0 %v6038
    %6243 = vmatprep.subr.mxu0 0.0
    %6244 = vmatpush1.msra.mxu0 %v6043
    %6245 = vmatprep.subr.mxu0 0.0
    %6246 = vmatpush1.msra.mxu0 %v6048
    %6247 = vmatprep.subr.mxu0 0.0
    %6248 = vmatpush1.msra.mxu0 %v6053
    %6249 = vmatprep.subr.mxu0 0.0
    %6250 = vmatpush1.msra.mxu0 %v6058
    %6251 = vmatprep.subr.mxu0 0.0
    %6252 = vmatpush1.msra.mxu0 %v6063
    %6253 = vmatprep.subr.mxu0 0.0
    %6254 = vmatpush1.msra.mxu0 %v6068
    %6255 = vmatprep.subr.mxu0 0.0
    %6256 = vmatpush1.msra.mxu0 %v6073
    %6257 = vmatprep.subr.mxu0 0.0
    %6258 = vmatpush1.msra.mxu0 %v6078
    %6259 = vmatprep.subr.mxu0 0.0
    %6260 = vmatpush1.msra.mxu0 %v6083
    %6261 = vmatprep.subr.mxu0 0.0
    %6262 = vmatpush1.msra.mxu0 %v6088
    %6263 = vmatprep.subr.mxu0 0.0
    %6264 = vmatpush1.msra.mxu0 0.0
    %6265 = vmatprep.subr.mxu0 0.0
    %6266 = vmatpush1.msra.mxu0 0.0
    %6267 = vmatprep.subr.mxu0 0.0
    %6268 = vmatpush1.msra.mxu0 0.0
    %6269 = vmatprep.subr.mxu0 0.0
    %6270 = vmatpush1.msra.mxu0 0.0
    %6271 = vmatprep.subr.mxu0 0.0
    %6272 = vmatpush1.msra.mxu0 0.0
    %6273 = vmatprep.subr.mxu0 0.0
    %6274 = vmatpush1.msra.mxu0 0.0
    %6275 = vmatprep.subr.mxu0 0.0
    %6276 = vmatpush1.msra.mxu0 0.0
    %6277 = vmatprep.subr.mxu0 0.0
    %6278 = vmatpush1.msra.mxu0 0.0
    %6279 = vmatprep.subr.mxu0 0.0
    %6280 = vmatpush1.msra.mxu0 0.0
    %6281 = vmatprep.subr.mxu0 0.0
    %6282 = vmatpush1.msra.mxu0 0.0
    %6283 = vmatprep.subr.mxu0 0.0
    %6284 = vmatpush1.msra.mxu0 0.0
    %6285 = vmatprep.subr.mxu0 0.0
    %6286 = vmatpush1.msra.mxu0 0.0
    %6287 = vmatprep.subr.mxu0 0.0
    %6288 = vmatpush1.msra.mxu0 0.0
    %6289 = vmatprep.subr.mxu0 0.0
    %6290 = vmatpush1.msra.mxu0 0.0
    %6291 = vmatprep.subr.mxu0 0.0
    %6292 = vmatpush1.msra.mxu0 0.0
    %6293 = vmatprep.subr.mxu0 0.0
    %6294 = vmatpush1.msra.mxu0 0.0
    %6295 = vmatprep.mubr.f32.mxu0 0.0
    %6296 = vmatmul.mubr.f32.gmra.mrb[0].mxu0 %v5664
    %v6297 = vpop.f32.mrb[0].mxu0
    %v6298 = vadd.f32 0.0, %v6297
    %v6299 = vpop.f32.mrb[0].mxu0
    %6300 = vdwg.mxu0
    %v6306 = vcombine.low %v6156, %v6158
    %v6307 = vcombine.low %v6227, %v6229
    %v6309 = vunpack.c.l.s4 1966171168
    %v6310 = vunpack.c.0.s8 %v6309
    %v6311 = vlaneseq
    %v6312 = vshrl.u32 %v6311, 7
    %v6313 = vsub.s32 %v6310, %v6312
    %v6314 = vrot.slane %v6306, %v6313
    %v6316 = vunpack.c.l.s4 1966171168
    %v6317 = vunpack.c.0.s8 %v6316
    %v6318 = vlaneseq
    %v6319 = vshrl.u32 %v6318, 7
    %v6320 = vsub.s32 %v6317, %v6319
    %v6321 = vrot.slane %v6307, %v6320
    %v6323 = vunpack.c.l.s4 1966171168
    %v6324 = vunpack.c.0.s8 %v6323
    %v6325 = vlaneseq
    %v6326 = vshrl.u32 %v6325, 7
    %v6327 = vsub.s32 %v6324, %v6326
    %v6328 = vrot.slane %v6298, %v6327
    %v6329 = vcombine.low %v6314, %v6321
    %v6331 = vunpack.c.l.s4 1966171168
    %v6332 = vunpack.c.0.s8 %v6331
    %v6333 = vlaneseq
    %v6334 = vshrl.u32 %v6333, 7
    %v6335 = vsub.s32 %v6332, %v6334
    %v6336 = vrot.slane %v6329, %v6335
    %v6338 = vunpack.c.l.s4 1966171168
    %v6339 = vunpack.c.0.s8 %v6338
    %v6340 = vlaneseq
    %v6341 = vshrl.u32 %v6340, 7
    %v6342 = vsub.s32 %v6339, %v6341
    %v6343 = vrot.slane %v6328, %v6342
    %v6344 = vcombine.low %v6336, %v6343
    %v6346 = vadd.f32 %v6008, %v6344
    %v6347 = vxor.u32 %v6346, 2147483648
    %v6348 = vmul.f32 %v6347, 1.442695
    %v6349 = vpow.pop %v6348
    %v6350 = vadd.f32 %v6349, 1.0
    %v6351 = vrcp.pop %v6350
    %v6352 = vmul.f32 1.0, %v6351
    %v6354 = vrot.slane %v6346, 1
    %v6356 = vxor.u32 %v6354, 2147483648
    %v6357 = vmul.f32 %v6356, 1.442695
    %v6358 = vpow.pop %v6357
    %v6359 = vadd.f32 %v6358, 1.0
    %v6360 = vrcp.pop %v6359
    %v6361 = vmul.f32 1.0, %v6360
    %v6362 = vrot.slane %v6346, 2
    %v6364 = vtanh.pop %v6362
    %v6365 = vrot.slane %v6346, 3
    %v6367 = vxor.u32 %v6365, 2147483648
    %v6368 = vmul.f32 %v6367, 1.442695
    %v6369 = vpow.pop %v6368
    %v6370 = vadd.f32 %v6369, 1.0
    %v6371 = vrcp.pop %v6370
    %v6372 = vmul.f32 1.0, %v6371
    %v6373 = vrot.slane %v6346, 4
    %v6375 = vxor.u32 %v6373, 2147483648
    %v6376 = vmul.f32 %v6375, 1.442695
    %v6377 = vpow.pop %v6376
    %v6378 = vadd.f32 %v6377, 1.0
    %v6379 = vrcp.pop %v6378
    %v6380 = vmul.f32 1.0, %v6379
    %v6381 = vmul.f32 %v6352, %v6364
    %v6382 = vmul.f32 %v6372, %v5654
    %v6383 = vadd.f32 %v6381, %v6382
    %v6384 = vmul.f32 %v6380, %v5667
    %v6385 = vadd.f32 %v6383, %v6384
    %v6386 = vtanh.pop %v6385
    %v6387 = vmul.f32 %v6361, %v6386
    %6388 = vst [vmem:[#allocation3] sm:$0x1] %v6385
    %6389 = vst [vmem:[#allocation2] sm:$0x1] %v6387
    %v6390 = vld [vmem:[#allocation2] sm:$0xff]
    %v6391 = vld [vmem:[#allocation15] sm:$0xff]
    %v6392 = vld [vmem:[#allocation15 + $0x8] sm:$0xff]
    %v6393 = vld [vmem:[#allocation15 + $0x10] sm:$0xff]
    %v6394 = vld [vmem:[#allocation15 + $0x18] sm:$0xff]
    %v6395 = vld [vmem:[#allocation15 + $0x20] sm:$0xff]
    %v6396 = vld [vmem:[#allocation15 + $0x28] sm:$0xff]
    %v6397 = vld [vmem:[#allocation15 + $0x30] sm:$0xff]
    %v6398 = vld [vmem:[#allocation15 + $0x38] sm:$0xff]
    %v6399 = vld [vmem:[#allocation15 + $0x40] sm:$0xff]
    %v6400 = vld [vmem:[#allocation15 + $0x48] sm:$0xff]
    %v6401 = vld [vmem:[#allocation15 + $0x50] sm:$0xff]
    %v6402 = vld [vmem:[#allocation15 + $0x58] sm:$0xff]
    %v6403 = vld [vmem:[#allocation15 + $0x60] sm:$0xff]
    %v6404 = vld [vmem:[#allocation15 + $0x68] sm:$0xff]
    %v6405 = vld [vmem:[#allocation15 + $0x70] sm:$0xff]
    %v6406 = vld [vmem:[#allocation15 + $0x78] sm:$0xff]
    %v6407 = vld [vmem:[%s7] sm:$0x1]
    %v6409 = vlaneseq
    %v6410 = vshrl.u32 %v6409, 7
    %v6411 = vsub.s32 0, %v6410
    %v6412 = vrot.slane %v6407, %v6411
    %6414 = vmatprep.subr.mxu0 0.0
    %6415 = vmatpush1.msra.mxu0 %v6391
    %6416 = vmatprep.subr.mxu0 0.0
    %6417 = vmatpush1.msra.mxu0 %v6392
    %6418 = vmatprep.subr.mxu0 0.0
    %6419 = vmatpush1.msra.mxu0 %v6393
    %6420 = vmatprep.subr.mxu0 0.0
    %6421 = vmatpush1.msra.mxu0 %v6394
    %6422 = vmatprep.subr.mxu0 0.0
    %6423 = vmatpush1.msra.mxu0 %v6395
    %6424 = vmatprep.subr.mxu0 0.0
    %6425 = vmatpush1.msra.mxu0 %v6396
    %6426 = vmatprep.subr.mxu0 0.0
    %6427 = vmatpush1.msra.mxu0 %v6397
    %6428 = vmatprep.subr.mxu0 0.0
    %6429 = vmatpush1.msra.mxu0 %v6398
    %6430 = vmatprep.subr.mxu0 0.0
    %6431 = vmatpush1.msra.mxu0 %v6399
    %6432 = vmatprep.subr.mxu0 0.0
    %6433 = vmatpush1.msra.mxu0 %v6400
    %6434 = vmatprep.subr.mxu0 0.0
    %6435 = vmatpush1.msra.mxu0 %v6401
    %6436 = vmatprep.subr.mxu0 0.0
    %6437 = vmatpush1.msra.mxu0 %v6402
    %6438 = vmatprep.subr.mxu0 0.0
    %6439 = vmatpush1.msra.mxu0 %v6403
    %6440 = vmatprep.subr.mxu0 0.0
    %6441 = vmatpush1.msra.mxu0 %v6404
    %6442 = vmatprep.subr.mxu0 0.0
    %6443 = vmatpush1.msra.mxu0 %v6405
    %6444 = vmatprep.subr.mxu0 0.0
    %6445 = vmatpush1.msra.mxu0 %v6406
    %6446 = vmatprep.subr.mxu0 0.0
    %6447 = vmatpush1.msra.mxu0 0.0
    %6448 = vmatprep.subr.mxu0 0.0
    %6449 = vmatpush1.msra.mxu0 0.0
    %6450 = vmatprep.subr.mxu0 0.0
    %6451 = vmatpush1.msra.mxu0 0.0
    %6452 = vmatprep.subr.mxu0 0.0
    %6453 = vmatpush1.msra.mxu0 0.0
    %6454 = vmatprep.subr.mxu0 0.0
    %6455 = vmatpush1.msra.mxu0 0.0
    %6456 = vmatprep.subr.mxu0 0.0
    %6457 = vmatpush1.msra.mxu0 0.0
    %6458 = vmatprep.subr.mxu0 0.0
    %6459 = vmatpush1.msra.mxu0 0.0
    %6460 = vmatprep.subr.mxu0 0.0
    %6461 = vmatpush1.msra.mxu0 0.0
    %6462 = vmatprep.subr.mxu0 0.0
    %6463 = vmatpush1.msra.mxu0 0.0
    %6464 = vmatprep.subr.mxu0 0.0
    %6465 = vmatpush1.msra.mxu0 0.0
    %6466 = vmatprep.subr.mxu0 0.0
    %6467 = vmatpush1.msra.mxu0 0.0
    %6468 = vmatprep.subr.mxu0 0.0
    %6469 = vmatpush1.msra.mxu0 0.0
    %6470 = vmatprep.subr.mxu0 0.0
    %6471 = vmatpush1.msra.mxu0 0.0
    %6472 = vmatprep.subr.mxu0 0.0
    %6473 = vmatpush1.msra.mxu0 0.0
    %6474 = vmatprep.subr.mxu0 0.0
    %6475 = vmatpush1.msra.mxu0 0.0
    %6476 = vmatprep.subr.mxu0 0.0
    %6477 = vmatpush1.msra.mxu0 0.0
    %6478 = vmatprep.mubr.f32.mxu0 0.0
    %6479 = vmatmul.mubr.f32.gmra.mrb[0].mxu0 %v6390
    %v6480 = vpop.f32.mrb[0].mxu0
    %v6481 = vadd.f32 %v6412, %v6480
    %v6482 = vpop.f32.mrb[0].mxu0
    %6483 = vdwg.mxu0
    %v6484 = vmax.f32 %v6481, 0.0
    %v6485 = vld [vmem:[#allocation16] sm:$0xff]
    %v6486 = vld [vmem:[#allocation16 + $0x8] sm:$0xff]
    %v6487 = vld [vmem:[#allocation16 + $0x10] sm:$0xff]
    %v6488 = vld [vmem:[#allocation16 + $0x18] sm:$0xff]
    %v6489 = vld [vmem:[#allocation16 + $0x20] sm:$0xff]
    %v6490 = vld [vmem:[#allocation16 + $0x28] sm:$0xff]
    %v6491 = vld [vmem:[#allocation16 + $0x30] sm:$0xff]
    %v6492 = vld [vmem:[#allocation16 + $0x38] sm:$0xff]
    %v6493 = vld [vmem:[#allocation16 + $0x40] sm:$0xff]
    %v6494 = vld [vmem:[#allocation16 + $0x48] sm:$0xff]
    %v6495 = vld [vmem:[#allocation16 + $0x50] sm:$0xff]
    %v6496 = vld [vmem:[#allocation16 + $0x58] sm:$0xff]
    %v6497 = vld [vmem:[#allocation16 + $0x60] sm:$0xff]
    %v6498 = vld [vmem:[#allocation16 + $0x68] sm:$0xff]
    %v6499 = vld [vmem:[#allocation16 + $0x70] sm:$0xff]
    %v6500 = vld [vmem:[#allocation16 + $0x78] sm:$0xff]
    %v6501 = vld [vmem:[%s9] sm:$0x1]
    %v6503 = vlaneseq
    %v6504 = vshrl.u32 %v6503, 7
    %v6505 = vsub.s32 0, %v6504
    %v6506 = vrot.slane %v6501, %v6505
    %6508 = vmatprep.subr.mxu0 0.0
    %6509 = vmatpush1.msra.mxu0 %v6485
    %6510 = vmatprep.subr.mxu0 0.0
    %6511 = vmatpush1.msra.mxu0 %v6486
    %6512 = vmatprep.subr.mxu0 0.0
    %6513 = vmatpush1.msra.mxu0 %v6487
    %6514 = vmatprep.subr.mxu0 0.0
    %6515 = vmatpush1.msra.mxu0 %v6488
    %6516 = vmatprep.subr.mxu0 0.0
    %6517 = vmatpush1.msra.mxu0 %v6489
    %6518 = vmatprep.subr.mxu0 0.0
    %6519 = vmatpush1.msra.mxu0 %v6490
    %6520 = vmatprep.subr.mxu0 0.0
    %6521 = vmatpush1.msra.mxu0 %v6491
    %6522 = vmatprep.subr.mxu0 0.0
    %6523 = vmatpush1.msra.mxu0 %v6492
    %6524 = vmatprep.subr.mxu0 0.0
    %6525 = vmatpush1.msra.mxu0 %v6493
    %6526 = vmatprep.subr.mxu0 0.0
    %6527 = vmatpush1.msra.mxu0 %v6494
    %6528 = vmatprep.subr.mxu0 0.0
    %6529 = vmatpush1.msra.mxu0 %v6495
    %6530 = vmatprep.subr.mxu0 0.0
    %6531 = vmatpush1.msra.mxu0 %v6496
    %6532 = vmatprep.subr.mxu0 0.0
    %6533 = vmatpush1.msra.mxu0 %v6497
    %6534 = vmatprep.subr.mxu0 0.0
    %6535 = vmatpush1.msra.mxu0 %v6498
    %6536 = vmatprep.subr.mxu0 0.0
    %6537 = vmatpush1.msra.mxu0 %v6499
    %6538 = vmatprep.subr.mxu0 0.0
    %6539 = vmatpush1.msra.mxu0 %v6500
    %6540 = vmatprep.subr.mxu0 0.0
    %6541 = vmatpush1.msra.mxu0 0.0
    %6542 = vmatprep.subr.mxu0 0.0
    %6543 = vmatpush1.msra.mxu0 0.0
    %6544 = vmatprep.subr.mxu0 0.0
    %6545 = vmatpush1.msra.mxu0 0.0
    %6546 = vmatprep.subr.mxu0 0.0
    %6547 = vmatpush1.msra.mxu0 0.0
    %6548 = vmatprep.subr.mxu0 0.0
    %6549 = vmatpush1.msra.mxu0 0.0
    %6550 = vmatprep.subr.mxu0 0.0
    %6551 = vmatpush1.msra.mxu0 0.0
    %6552 = vmatprep.subr.mxu0 0.0
    %6553 = vmatpush1.msra.mxu0 0.0
    %6554 = vmatprep.subr.mxu0 0.0
    %6555 = vmatpush1.msra.mxu0 0.0
    %6556 = vmatprep.subr.mxu0 0.0
    %6557 = vmatpush1.msra.mxu0 0.0
    %6558 = vmatprep.subr.mxu0 0.0
    %6559 = vmatpush1.msra.mxu0 0.0
    %6560 = vmatprep.subr.mxu0 0.0
    %6561 = vmatpush1.msra.mxu0 0.0
    %6562 = vmatprep.subr.mxu0 0.0
    %6563 = vmatpush1.msra.mxu0 0.0
    %6564 = vmatprep.subr.mxu0 0.0
    %6565 = vmatpush1.msra.mxu0 0.0
    %6566 = vmatprep.subr.mxu0 0.0
    %6567 = vmatpush1.msra.mxu0 0.0
    %6568 = vmatprep.subr.mxu0 0.0
    %6569 = vmatpush1.msra.mxu0 0.0
    %6570 = vmatprep.subr.mxu0 0.0
    %6571 = vmatpush1.msra.mxu0 0.0
    %6572 = vmatprep.mubr.f32.mxu0 0.0
    %6573 = vmatmul.mubr.f32.gmra.mrb[0].mxu0 %v6484
    %v6574 = vpop.f32.mrb[0].mxu0
    %v6575 = vadd.f32 %v6506, %v6574
    %v6576 = vpop.f32.mrb[0].mxu0
    %6577 = vdwg.mxu0
    %v6578 = vmax.f32 %v6575, 0.0
    %s6579 = scalar_lea.vmem [#allocation16], 128
    %v6580 = vld [vmem:[%s6579] sm:$0xff]
    %v6581 = vld [vmem:[%s6579 + $0x8] sm:$0xff]
    %v6582 = vld [vmem:[%s6579 + $0x10] sm:$0xff]
    %v6583 = vld [vmem:[%s6579 + $0x18] sm:$0xff]
    %v6584 = vld [vmem:[%s6579 + $0x20] sm:$0xff]
    %v6585 = vld [vmem:[%s6579 + $0x28] sm:$0xff]
    %v6586 = vld [vmem:[%s6579 + $0x30] sm:$0xff]
    %v6587 = vld [vmem:[%s6579 + $0x38] sm:$0xff]
    %v6588 = vld [vmem:[%s6579 + $0x40] sm:$0xff]
    %v6589 = vld [vmem:[%s6579 + $0x48] sm:$0xff]
    %v6590 = vld [vmem:[%s6579 + $0x50] sm:$0xff]
    %v6591 = vld [vmem:[%s6579 + $0x58] sm:$0xff]
    %v6592 = vld [vmem:[%s6579 + $0x60] sm:$0xff]
    %v6593 = vld [vmem:[%s6579 + $0x68] sm:$0xff]
    %v6594 = vld [vmem:[%s6579 + $0x70] sm:$0xff]
    %v6595 = vld [vmem:[%s6579 + $0x78] sm:$0xff]
    %s6596 = scalar_lea.vmem %s9, 1
    %v6597 = vld [vmem:[%s6596] sm:$0x1]
    %v6599 = vlaneseq
    %v6600 = vshrl.u32 %v6599, 7
    %v6601 = vsub.s32 0, %v6600
    %v6602 = vrot.slane %v6597, %v6601
    %6604 = vmatprep.subr.mxu0 0.0
    %6605 = vmatpush1.msra.mxu0 %v6580
    %6606 = vmatprep.subr.mxu0 0.0
    %6607 = vmatpush1.msra.mxu0 %v6581
    %6608 = vmatprep.subr.mxu0 0.0
    %6609 = vmatpush1.msra.mxu0 %v6582
    %6610 = vmatprep.subr.mxu0 0.0
    %6611 = vmatpush1.msra.mxu0 %v6583
    %6612 = vmatprep.subr.mxu0 0.0
    %6613 = vmatpush1.msra.mxu0 %v6584
    %6614 = vmatprep.subr.mxu0 0.0
    %6615 = vmatpush1.msra.mxu0 %v6585
    %6616 = vmatprep.subr.mxu0 0.0
    %6617 = vmatpush1.msra.mxu0 %v6586
    %6618 = vmatprep.subr.mxu0 0.0
    %6619 = vmatpush1.msra.mxu0 %v6587
    %6620 = vmatprep.subr.mxu0 0.0
    %6621 = vmatpush1.msra.mxu0 %v6588
    %6622 = vmatprep.subr.mxu0 0.0
    %6623 = vmatpush1.msra.mxu0 %v6589
    %6624 = vmatprep.subr.mxu0 0.0
    %6625 = vmatpush1.msra.mxu0 %v6590
    %6626 = vmatprep.subr.mxu0 0.0
    %6627 = vmatpush1.msra.mxu0 %v6591
    %6628 = vmatprep.subr.mxu0 0.0
    %6629 = vmatpush1.msra.mxu0 %v6592
    %6630 = vmatprep.subr.mxu0 0.0
    %6631 = vmatpush1.msra.mxu0 %v6593
    %6632 = vmatprep.subr.mxu0 0.0
    %6633 = vmatpush1.msra.mxu0 %v6594
    %6634 = vmatprep.subr.mxu0 0.0
    %6635 = vmatpush1.msra.mxu0 %v6595
    %6636 = vmatprep.subr.mxu0 0.0
    %6637 = vmatpush1.msra.mxu0 0.0
    %6638 = vmatprep.subr.mxu0 0.0
    %6639 = vmatpush1.msra.mxu0 0.0
    %6640 = vmatprep.subr.mxu0 0.0
    %6641 = vmatpush1.msra.mxu0 0.0
    %6642 = vmatprep.subr.mxu0 0.0
    %6643 = vmatpush1.msra.mxu0 0.0
    %6644 = vmatprep.subr.mxu0 0.0
    %6645 = vmatpush1.msra.mxu0 0.0
    %6646 = vmatprep.subr.mxu0 0.0
    %6647 = vmatpush1.msra.mxu0 0.0
    %6648 = vmatprep.subr.mxu0 0.0
    %6649 = vmatpush1.msra.mxu0 0.0
    %6650 = vmatprep.subr.mxu0 0.0
    %6651 = vmatpush1.msra.mxu0 0.0
    %6652 = vmatprep.subr.mxu0 0.0
    %6653 = vmatpush1.msra.mxu0 0.0
    %6654 = vmatprep.subr.mxu0 0.0
    %6655 = vmatpush1.msra.mxu0 0.0
    %6656 = vmatprep.subr.mxu0 0.0
    %6657 = vmatpush1.msra.mxu0 0.0
    %6658 = vmatprep.subr.mxu0 0.0
    %6659 = vmatpush1.msra.mxu0 0.0
    %6660 = vmatprep.subr.mxu0 0.0
    %6661 = vmatpush1.msra.mxu0 0.0
    %6662 = vmatprep.subr.mxu0 0.0
    %6663 = vmatpush1.msra.mxu0 0.0
    %6664 = vmatprep.subr.mxu0 0.0
    %6665 = vmatpush1.msra.mxu0 0.0
    %6666 = vmatprep.subr.mxu0 0.0
    %6667 = vmatpush1.msra.mxu0 0.0
    %6668 = vmatprep.mubr.f32.mxu0 0.0
    %6669 = vmatmul.mubr.f32.gmra.mrb[0].mxu0 %v6578
    %v6670 = vpop.f32.mrb[0].mxu0
    %v6671 = vadd.f32 %v6602, %v6670
    %v6672 = vpop.f32.mrb[0].mxu0
    %6673 = vdwg.mxu0
    %v6674 = vmax.f32 %v6671, 0.0
    %v6675 = vld [vmem:[#allocation18] sm:$0xff]
    %v6676 = vld [vmem:[#allocation18 + $0x8] sm:$0xff]
    %v6677 = vld [vmem:[#allocation18 + $0x10] sm:$0xff]
    %v6678 = vld [vmem:[#allocation18 + $0x18] sm:$0xff]
    %v6679 = vld [vmem:[#allocation18 + $0x20] sm:$0xff]
    %v6680 = vld [vmem:[#allocation18 + $0x28] sm:$0xff]
    %v6681 = vld [vmem:[#allocation18 + $0x30] sm:$0xff]
    %v6682 = vld [vmem:[#allocation18 + $0x38] sm:$0xff]
    %v6683 = vld [vmem:[#allocation18 + $0x40] sm:$0xff]
    %v6684 = vld [vmem:[#allocation18 + $0x48] sm:$0xff]
    %v6685 = vld [vmem:[#allocation18 + $0x50] sm:$0xff]
    %v6686 = vld [vmem:[#allocation18 + $0x58] sm:$0xff]
    %v6687 = vld [vmem:[#allocation18 + $0x60] sm:$0xff]
    %v6688 = vld [vmem:[#allocation18 + $0x68] sm:$0xff]
    %v6689 = vld [vmem:[#allocation18 + $0x70] sm:$0xff]
    %v6690 = vld [vmem:[#allocation18 + $0x78] sm:$0xff]
    %v6691 = vld [vmem:[%s11] sm:$0x1]
    %v6693 = vlaneseq
    %v6694 = vshrl.u32 %v6693, 7
    %v6695 = vsub.s32 0, %v6694
    %v6696 = vrot.slane %v6691, %v6695
    %6698 = vmatprep.subr.mxu0 0.0
    %6699 = vmatpush1.msra.mxu0 %v6675
    %6700 = vmatprep.subr.mxu0 0.0
    %6701 = vmatpush1.msra.mxu0 %v6676
    %6702 = vmatprep.subr.mxu0 0.0
    %6703 = vmatpush1.msra.mxu0 %v6677
    %6704 = vmatprep.subr.mxu0 0.0
    %6705 = vmatpush1.msra.mxu0 %v6678
    %6706 = vmatprep.subr.mxu0 0.0
    %6707 = vmatpush1.msra.mxu0 %v6679
    %6708 = vmatprep.subr.mxu0 0.0
    %6709 = vmatpush1.msra.mxu0 %v6680
    %6710 = vmatprep.subr.mxu0 0.0
    %6711 = vmatpush1.msra.mxu0 %v6681
    %6712 = vmatprep.subr.mxu0 0.0
    %6713 = vmatpush1.msra.mxu0 %v6682
    %6714 = vmatprep.subr.mxu0 0.0
    %6715 = vmatpush1.msra.mxu0 %v6683
    %6716 = vmatprep.subr.mxu0 0.0
    %6717 = vmatpush1.msra.mxu0 %v6684
    %6718 = vmatprep.subr.mxu0 0.0
    %6719 = vmatpush1.msra.mxu0 %v6685
    %6720 = vmatprep.subr.mxu0 0.0
    %6721 = vmatpush1.msra.mxu0 %v6686
    %6722 = vmatprep.subr.mxu0 0.0
    %6723 = vmatpush1.msra.mxu0 %v6687
    %6724 = vmatprep.subr.mxu0 0.0
    %6725 = vmatpush1.msra.mxu0 %v6688
    %6726 = vmatprep.subr.mxu0 0.0
    %6727 = vmatpush1.msra.mxu0 %v6689
    %6728 = vmatprep.subr.mxu0 0.0
    %6729 = vmatpush1.msra.mxu0 %v6690
    %6730 = vmatprep.subr.mxu0 0.0
    %6731 = vmatpush1.msra.mxu0 0.0
    %6732 = vmatprep.subr.mxu0 0.0
    %6733 = vmatpush1.msra.mxu0 0.0
    %6734 = vmatprep.subr.mxu0 0.0
    %6735 = vmatpush1.msra.mxu0 0.0
    %6736 = vmatprep.subr.mxu0 0.0
    %6737 = vmatpush1.msra.mxu0 0.0
    %6738 = vmatprep.subr.mxu0 0.0
    %6739 = vmatpush1.msra.mxu0 0.0
    %6740 = vmatprep.subr.mxu0 0.0
    %6741 = vmatpush1.msra.mxu0 0.0
    %6742 = vmatprep.subr.mxu0 0.0
    %6743 = vmatpush1.msra.mxu0 0.0
    %6744 = vmatprep.subr.mxu0 0.0
    %6745 = vmatpush1.msra.mxu0 0.0
    %6746 = vmatprep.subr.mxu0 0.0
    %6747 = vmatpush1.msra.mxu0 0.0
    %6748 = vmatprep.subr.mxu0 0.0
    %6749 = vmatpush1.msra.mxu0 0.0
    %6750 = vmatprep.subr.mxu0 0.0
    %6751 = vmatpush1.msra.mxu0 0.0
    %6752 = vmatprep.subr.mxu0 0.0
    %6753 = vmatpush1.msra.mxu0 0.0
    %6754 = vmatprep.subr.mxu0 0.0
    %6755 = vmatpush1.msra.mxu0 0.0
    %6756 = vmatprep.subr.mxu0 0.0
    %6757 = vmatpush1.msra.mxu0 0.0
    %6758 = vmatprep.subr.mxu0 0.0
    %6759 = vmatpush1.msra.mxu0 0.0
    %6760 = vmatprep.subr.mxu0 0.0
    %6761 = vmatpush1.msra.mxu0 0.0
    %6762 = vmatprep.mubr.f32.mxu0 0.0
    %6763 = vmatmul.mubr.f32.gmra.mrb[0].mxu0 %v6674
    %v6764 = vpop.f32.mrb[0].mxu0
    %v6765 = vadd.f32 %v6696, %v6764
    %v6766 = vpop.f32.mrb[0].mxu0
    %6767 = vdwg.mxu0
    %v6768 = vld [vmem:[#allocation10] sm:$0xff]
    %vm6769 = vcmp.gt.f32.partialorder %v6768, 0.5
    %v6770 = vsel %vm6769, %v6765, -1e+30
    %6771 = vmax.xlane.f32.xlu0 %v6770
    %v6772 = vpop.xlane.xlu0 %6771
    %v6773 = vrot.slane %v6772, 4
    %v6774 = vmax.f32 %v6772, %v6773
    %v6775 = vrot.slane %v6774, 2
    %v6776 = vmax.f32 %v6774, %v6775
    %v6777 = vrot.slane %v6776, 1
    %v6778 = vmax.f32 %v6776, %v6777
    %s6779 = vtos %v6778
    %v6780 = vstv %s6779
    %v6781 = vsub.f32 %v6770, %v6780
    %v6782 = vmul.f32 %v6781, 1.442695
    %v6783 = vpow.pop %v6782
    %6784 = vadd.xlane.f32.xlu0 %v6783
    %v6785 = vpop.xlane.xlu0 %6784
    %v6786 = vrot.slane %v6785, 4
    %v6787 = vadd.f32 %v6785, %v6786
    %v6788 = vrot.slane %v6787, 2
    %v6789 = vadd.f32 %v6787, %v6788
    %v6790 = vrot.slane %v6789, 1
    %v6791 = vadd.f32 %v6789, %v6790
    %s6792 = vtos %v6791
    %v6793 = vstv %s6792
    %v6794 = vrcp.pop %v6793
    %s6795 = vtos %v6794
    %v6796 = vstv %s6795
    %v6797 = vmul.f32 %v6783, %v6796
    %6798 = vst [vmem:[#allocation19] sm:$0xff] %v6797
    // Predicated region
    $region82: #{tpu_custom_call.1} parent=1 // pred_check
      _
    $region83: #{tpu_custom_call.1} parent=1 // pred_check_branch
      %6800 = sbr.rel (0) target = $region85
    $region84: #{tpu_custom_call.1} parent=1 // pred_region
      %s6802 = ssub.s32 128, 128
      %6803 = vsyncadd [#allocation7], %s6802
      %s6805 = sshll.u32 [#allocation19], 4
      %s6806 = int_to_ptr.vmem [resolvable:$true] %s6805
      %6808 = dma.vmem_to_hbm [thread:$0]  %s6806, 128, %s12, [#allocation7]
    $region85: #{tpu_custom_call.1} parent=1 // pred_fallthru
      _
    // Predicated region
    $region86: #{tpu_custom_call.1} parent=1 // pred_check
      _
    $region87: #{tpu_custom_call.1} parent=1 // pred_check_branch
      %6810 = sbr.rel (0) target = $region89
    $region88: #{tpu_custom_call.1} parent=1 // pred_region
      %6811 = dma.done [#allocation7], 128
    $region89: #{tpu_custom_call.1} parent=1 // pred_fallthru
      _
    %6812 = vsyncpa [#allocation6], 1
    %6813 = vsyncpa [#allocation11], 1
    %6814 = vsyncpa [#allocation14], 1
    %6815 = vsyncpa [#allocation17], 1
    %6816 = vsyncpa [#allocation7], 1
    %6817 = vsyncpa [#allocation8], 1

</llo_original>
